<compile_context>
chip_gen: v7x
topology: tpu7x:2x2x1
jax: 0.10.0
libtpu: 0.0.40
codegen_flags: <defaults>
</compile_context>

<pallas_src>
import math
import functools

import jax
import jax.numpy as jnp
from jax import lax
from jax.experimental import pallas as pl
from jax.experimental.pallas import tpu as pltpu


# ----------------------------------------------------------------------------
# Generation-aware configuration
# ----------------------------------------------------------------------------
def _tpu_config():
    """Returns (vmem_budget_bytes, n_tensorcores)."""
    vmem_budget = 96 * 1024 * 1024       # v5e / v6e: 128 MiB physical
    n_cores = 1
    try:
        kind = jax.devices()[0].device_kind.lower()
    except Exception:
        kind = ""
    if "v7" in kind or "7x" in kind:
        vmem_budget = 48 * 1024 * 1024   # v7x: 64 MiB physical, 2 TCs
        n_cores = 2
    elif "v4" in kind or "v5p" in kind:
        n_cores = 2                      # megacore
    return vmem_budget, n_cores


def _pick_rows_split(n_rows, per_row_bytes, fixed_bytes, n_cores, budget):
    """Smallest grid split (>= n_cores when possible) whose per-step block
    fits the VMEM budget."""
    usable = max(budget - fixed_bytes, budget // 4)
    fallback = None
    for g in range(1, n_rows + 1):
        if n_rows % g:
            continue
        nb = n_rows // g
        if nb * per_row_bytes <= usable:
            if g >= n_cores:
                return g, nb
            if fallback is None:
                fallback = (g, nb)
    return fallback if fallback is not None else (n_rows, 1)


# ----------------------------------------------------------------------------
# 1) Fused intra path kernel (per batch item):
#    BiLSTM over F + intra_fc + InstanceNorm2d(width) + residual.
# ----------------------------------------------------------------------------
def _intra_kernel(x_ref, wih_ref, whhf_ref, whhb_ref, b_ref, wfc_ref, bfc_ref,
                  o_ref, ginf_ref, ginb_ref, lf_ref, lb_ref, *, eps):
    _, Fd, T, C = x_ref.shape
    H = C // 2

    # Hoisted input projection for BOTH directions (bf16 MXU feed, f32 acc).
    # Gate column order per direction: [i, f, o, g].
    xb = x_ref[...].astype(jnp.bfloat16).reshape(Fd * T, C)
    gin = jnp.dot(xb, wih_ref[...], preferred_element_type=jnp.float32) + b_ref[...]
    ginf_ref[...] = gin[:, 0:4 * H].reshape(Fd, T, 4 * H).astype(jnp.bfloat16)
    ginb_ref[...] = gin[:, 4 * H:8 * H].reshape(Fd, T, 4 * H).astype(jnp.bfloat16)

    whhf = whhf_ref[...]          # (H, 4H) bf16
    whhb = whhb_ref[...]

    def cell(gates, c_prev):
        # one wide sigmoid (i|f|o) + one tanh (g) per direction
        sig = jax.nn.sigmoid(gates[:, 0:3 * H])
        g = jnp.tanh(gates[:, 3 * H:4 * H])
        c_new = sig[:, H:2 * H] * c_prev + sig[:, 0:H] * g
        h_new = sig[:, 2 * H:3 * H] * jnp.tanh(c_new)
        return h_new, c_new

    def step(s, carry):
        hf, hb, cf, cb = carry
        tb = Fd - 1 - s
        grf = jnp.dot(hf.astype(jnp.bfloat16), whhf,
                      preferred_element_type=jnp.float32)
        grb = jnp.dot(hb.astype(jnp.bfloat16), whhb,
                      preferred_element_type=jnp.float32)
        gf = ginf_ref[s].astype(jnp.float32) + grf
        gb = ginb_ref[tb].astype(jnp.float32) + grb
        hf, cf = cell(gf, cf)
        hb, cb = cell(gb, cb)
        lf_ref[s] = hf
        lb_ref[tb] = hb
        return hf, hb, cf, cb

    z = jnp.zeros((T, H), jnp.float32)
    lax.fori_loop(0, Fd, step, (z, z, z, z), unroll=min(Fd, 8))

    # intra_fc on [h_fwd | h_bwd] as two half-K matmuls (no concat copy).
    lf2 = lf_ref[...].reshape(Fd * T, H).astype(jnp.bfloat16)
    lb2 = lb_ref[...].reshape(Fd * T, H).astype(jnp.bfloat16)
    dense = (jnp.dot(lf2, wfc_ref[0:H, :], preferred_element_type=jnp.float32)
             + jnp.dot(lb2, wfc_ref[H:2 * H, :], preferred_element_type=jnp.float32)
             + bfc_ref[...])

    # InstanceNorm2d(width): per frequency bin, stats over (T, C), eps=1e-8.
    d3 = dense.reshape(Fd, T, C)
    mean = jnp.mean(jnp.mean(d3, axis=2, keepdims=True), axis=1, keepdims=True)
    var = jnp.mean(jnp.mean(jnp.square(d3 - mean), axis=2, keepdims=True),
                   axis=1, keepdims=True)
    norm = (d3 - mean) * lax.rsqrt(var + eps)

    res = x_ref[...].astype(jnp.float32).reshape(Fd, T, C)
    o_ref[...] = (res + norm).reshape(o_ref.shape).astype(o_ref.dtype)


def intra_call(x4, p, eps=1e-8):
    B, Fd, T, C = x4.shape
    H = C // 2
    vmem_budget, _ = _tpu_config()
    return pl.pallas_call(
        functools.partial(_intra_kernel, eps=eps),
        out_shape=jax.ShapeDtypeStruct((B, Fd, T, C), x4.dtype),
        grid=(B,),
        in_specs=[
            pl.BlockSpec((1, Fd, T, C), lambda b: (b, 0, 0, 0)),
            pl.BlockSpec((C, 8 * H), lambda b: (0, 0)),      # W_ih (fwd|bwd)
            pl.BlockSpec((H, 4 * H), lambda b: (0, 0)),      # W_hh fwd
            pl.BlockSpec((H, 4 * H), lambda b: (0, 0)),      # W_hh bwd
            pl.BlockSpec((1, 8 * H), lambda b: (0, 0)),      # folded biases
            pl.BlockSpec((C, C), lambda b: (0, 0)),          # intra_fc W^T
            pl.BlockSpec((1, C), lambda b: (0, 0)),          # intra_fc b
        ],
        out_specs=pl.BlockSpec((1, Fd, T, C), lambda b: (b, 0, 0, 0)),
        scratch_shapes=[
            pltpu.VMEM((Fd, T, 4 * H), jnp.bfloat16),        # hoisted gates fwd
            pltpu.VMEM((Fd, T, 4 * H), jnp.bfloat16),        # hoisted gates bwd
            pltpu.VMEM((Fd, T, H), jnp.float32),             # fwd hidden seq
            pltpu.VMEM((Fd, T, H), jnp.float32),             # bwd hidden seq
        ],
        compiler_params=pltpu.CompilerParams(
            dimension_semantics=("parallel",),
            vmem_limit_bytes=vmem_budget),
    )(x4, p["w_ih_cat"], p["w_hh_f"], p["w_hh_b"], p["b_lstm"],
      p["intra_fc_w"], p["intra_fc_b"])


# ----------------------------------------------------------------------------
# 2) Fused MHAblockV2 chain kernel: all blocks in one pallas_call, residual
#    stream resident in VMEM across the "arbitrary" block axis.
# ----------------------------------------------------------------------------
def _mha_chain_kernel(x_ref, pe_ref, wqkv_ref, wout_ref, g1_ref, b1_ref,
                      wfc1_ref, bfc1_ref, wfc2_ref, bfc2_ref, g2_ref, b2_ref,
                      o_ref, strm_ref, *, nh, eps):
    nb, T, C = x_ref.shape
    hd = C // nh
    scale = 1.0 / math.sqrt(hd)
    j = pl.program_id(1)

    # First block only: add PE and load the residual stream into VMEM scratch.
    @pl.when(j == 0)
    def _():
        x0 = (x_ref[...].astype(jnp.float32)
              + pe_ref[...].astype(jnp.float32)[None])
        strm_ref[...] = x0.reshape(nb * T, C)

    x2 = strm_ref[...]                                 # (nb*T, C) f32 stream
    xb = x2.astype(jnp.bfloat16)

    # fused QKV projection (module's MHA has bias=False)
    qkv = jnp.dot(xb, wqkv_ref[0], preferred_element_type=jnp.float32)

    # causal additive mask; broadcast hoisted out of the head loop
    row = lax.broadcasted_iota(jnp.int32, (T, T), 0)
    col = lax.broadcasted_iota(jnp.int32, (T, T), 1)
    neg = jnp.where(col > row, jnp.float32(-1e30), jnp.float32(0.0))
    negb = jnp.broadcast_to(neg[None, :, :], (nb, T, T))

    heads = []
    for h in range(nh):
        q = qkv[:, h * hd:(h + 1) * hd].reshape(nb, T, hd).astype(jnp.bfloat16)
        k = qkv[:, C + h * hd:C + (h + 1) * hd].reshape(nb, T, hd).astype(jnp.bfloat16)
        v = qkv[:, 2 * C + h * hd:2 * C + (h + 1) * hd].reshape(nb, T, hd).astype(jnp.bfloat16)
        s = jnp.einsum("bqd,bkd->bqk", q, k,
                       preferred_element_type=jnp.float32) * scale + negb
        m = jnp.max(s, axis=-1, keepdims=True)
        p = jnp.exp(s - m)
        p = p * pl.reciprocal(jnp.sum(p, axis=-1, keepdims=True), approx=True)
        o_h = jnp.einsum("bqk,bkd->bqd", p.astype(jnp.bfloat16), v,
                         preferred_element_type=jnp.float32)
        heads.append(o_h.reshape(nb * T, hd))

    # single fused out-projection over the full C contraction
    attn = jnp.concatenate(heads, axis=-1).astype(jnp.bfloat16)
    mha_out = jnp.dot(attn, wout_ref[0], preferred_element_type=jnp.float32)

    def layernorm(y, g, b):
        mu = jnp.mean(y, axis=-1, keepdims=True)
        var = jnp.mean(jnp.square(y - mu), axis=-1, keepdims=True)
        return (y - mu) * lax.rsqrt(var + eps) * g + b

    layer1 = layernorm(x2 + mha_out, g1_ref[0], b1_ref[0])

    hmid = jnp.maximum(
        jnp.dot(layer1.astype(jnp.bfloat16), wfc1_ref[0],
                preferred_element_type=jnp.float32) + bfc1_ref[0], 0.0)
    ffn = (jnp.dot(hmid.astype(jnp.bfloat16), wfc2_ref[0],
                   preferred_element_type=jnp.float32) + bfc2_ref[0])
    layer2 = layernorm(layer1 + ffn, g2_ref[0], b2_ref[0])

    strm_ref[...] = layer2
    @pl.when(j == pl.num_programs(1) - 1)
    def _():
        o_ref[...] = layer2.reshape(nb, T, C).astype(o_ref.dtype)


def mha_chain_call(x, p, n_heads, pe, eps=1e-6):
    BN, T, C = x.shape
    nblk = p["w_qkv_s"].shape[0]
    vmem_budget, n_cores = _tpu_config()
    per_row = 4 * T * (24 * C + 5 * T)           # rough live f32 bytes per row
    fixed = 64 * C * C + 8 * T * C               # stacked weights (dbl-buffered)
    gpts, nb = _pick_rows_split(BN, per_row, fixed, n_cores,
                                int(vmem_budget * 0.8))

    return pl.pallas_call(
        functools.partial(_mha_chain_kernel, nh=n_heads, eps=eps),
        out_shape=jax.ShapeDtypeStruct((BN, T, C), x.dtype),
        grid=(gpts, nblk),
        in_specs=[
            pl.BlockSpec((nb, T, C), lambda i, j: (i, 0, 0)),
            pl.BlockSpec((T, C), lambda i, j: (0, 0)),             # PE
            pl.BlockSpec((1, C, 3 * C), lambda i, j: (j, 0, 0)),   # W_qkv
            pl.BlockSpec((1, C, C), lambda i, j: (j, 0, 0)),       # W_out
            pl.BlockSpec((1, 1, C), lambda i, j: (j, 0, 0)),       # ln1 gamma
            pl.BlockSpec((1, 1, C), lambda i, j: (j, 0, 0)),       # ln1 beta
            pl.BlockSpec((1, C, 4 * C), lambda i, j: (j, 0, 0)),   # W_fc1
            pl.BlockSpec((1, 1, 4 * C), lambda i, j: (j, 0, 0)),   # b_fc1
            pl.BlockSpec((1, 4 * C, C), lambda i, j: (j, 0, 0)),   # W_fc2
            pl.BlockSpec((1, 1, C), lambda i, j: (j, 0, 0)),       # b_fc2
            pl.BlockSpec((1, 1, C), lambda i, j: (j, 0, 0)),       # ln2 gamma
            pl.BlockSpec((1, 1, C), lambda i, j: (j, 0, 0)),       # ln2 beta
        ],
        out_specs=pl.BlockSpec((nb, T, C), lambda i, j: (i, 0, 0)),
        scratch_shapes=[
            pltpu.VMEM((nb * T, C), jnp.float32),   # resident residual stream
        ],
        compiler_params=pltpu.CompilerParams(
            dimension_semantics=("parallel", "arbitrary"),
            vmem_limit_bytes=vmem_budget),
    )(x, pe, p["w_qkv_s"], p["w_out_s"], p["ln1_g_s"], p["ln1_b_s"],
      p["w_fc1_s"], p["b_fc1_s"], p["w_fc2_s"], p["b_fc2_s"],
      p["ln2_g_s"], p["ln2_b_s"])


# ----------------------------------------------------------------------------
# 3) Fused inter tail kernel: inter_fc + InstanceNorm2d(channel) + residual
# ----------------------------------------------------------------------------
def _inter_tail_kernel(y_ref, res_ref, wfc_ref, bfc_ref, o_ref, *, eps):
    _, Fd, T, C = y_ref.shape
    y = y_ref[...].astype(jnp.bfloat16).reshape(Fd * T, C)
    dense = (jnp.dot(y, wfc_ref[...], preferred_element_type=jnp.float32)
             + bfc_ref[...])
    # InstanceNorm2d(channel): per channel, stats over (F, T), eps=1e-8.
    mean = jnp.mean(dense, axis=0, keepdims=True)
    var = jnp.mean(jnp.square(dense - mean), axis=0, keepdims=True)
    norm = (dense - mean) * lax.rsqrt(var + eps)
    out = res_ref[...].astype(jnp.float32) + norm.reshape(1, Fd, T, C)
    o_ref[...] = out.astype(o_ref.dtype)


def inter_tail_call(y, intra_out, p, eps=1e-8):
    B, Fd, T, C = y.shape
    vmem_budget, _ = _tpu_config()
    return pl.pallas_call(
        functools.partial(_inter_tail_kernel, eps=eps),
        out_shape=jax.ShapeDtypeStruct((B, Fd, T, C), y.dtype),
        grid=(B,),
        in_specs=[
            pl.BlockSpec((1, Fd, T, C), lambda b: (b, 0, 0, 0)),
            pl.BlockSpec((1, Fd, T, C), lambda b: (b, 0, 0, 0)),
            pl.BlockSpec((C, C), lambda b: (0, 0)),
            pl.BlockSpec((1, C), lambda b: (0, 0)),
        ],
        out_specs=pl.BlockSpec((1, Fd, T, C), lambda b: (b, 0, 0, 0)),
        compiler_params=pltpu.CompilerParams(
            dimension_semantics=("parallel",),
            vmem_limit_bytes=vmem_budget),
    )(y, intra_out, p["inter_fc_w"], p["inter_fc_b"])


# ----------------------------------------------------------------------------
# Positional encoding (small constant, folded by XLA under jit)
# ----------------------------------------------------------------------------
def positional_encoding(T, C):
    pos = jnp.arange(T, dtype=jnp.float32)[:, None]
    denom = jnp.exp(jnp.arange(0, C, 2, dtype=jnp.float32)
                    * (-(math.log(10000.0) / C)))
    pe = jnp.zeros((T, C), jnp.float32)
    pe = pe.at[:, 0::2].set(jnp.sin(pos * denom))
    pe = pe.at[:, 1::2].set(jnp.cos(pos * denom))
    return pe


# ----------------------------------------------------------------------------
# Full DPRAN forward (3 fused pallas_calls)
# ----------------------------------------------------------------------------
def dpran_forward(x, params, n_heads):
    B, C, T, Fd = x.shape                              # (B, numUnits, T, width)
    x4 = jnp.transpose(x, (0, 3, 2, 1))                # (B, F, T, C)

    # intra path -> (B, F, T, C)
    intra_out = intra_call(x4, params)

    # inter path: all MHA blocks fused into one kernel (PE added on block 0)
    pe = positional_encoding(T, C).astype(x.dtype)
    inter = mha_chain_call(intra_out.reshape(B * Fd, T, C), params, n_heads, pe)

    # inter_fc + InstanceNorm(channel) + final residual -> (B, F, T, C)
    out = inter_tail_call(inter.reshape(B, Fd, T, C), intra_out, params)
    return jnp.transpose(out, (0, 3, 2, 1))            # (B, C, T, F)


# ----------------------------------------------------------------------------
# Deterministic synthetic parameters (same shapes as the PyTorch module) and
# one-time weight preparation (transpose / reorder / stack / bf16 cast).
# ----------------------------------------------------------------------------
def init_params(key, num_units, mha_blocks, n_heads):
    d_model = num_units
    d_ff = 4 * num_units
    H = num_units // 2
    keys = iter(jax.random.split(key, 32 + 8 * mha_blocks))

    def w(shape, scale=0.1):
        return jax.random.normal(next(keys), shape, jnp.float32) * scale

    params = {
        "lstm": {
            "w_ih_f": w((4 * H, num_units)), "w_hh_f": w((4 * H, H)),
            "b_ih_f": w((4 * H,)),           "b_hh_f": w((4 * H,)),
            "w_ih_b": w((4 * H, num_units)), "w_hh_b": w((4 * H, H)),
            "b_ih_b": w((4 * H,)),           "b_hh_b": w((4 * H,)),
        },
        "intra_fc_w": w((num_units, num_units)),
        "intra_fc_b": w((num_units,)),
        "inter_fc_w": w((num_units, num_units)),
        "inter_fc_b": w((num_units,)),
        "mha_blocks": [],
    }
    for _ in range(mha_blocks):
        params["mha_blocks"].append({
            "in_proj_w": w((3 * d_model, d_model)),   # bias=False
            "out_proj_w": w((d_model, d_model)),      # bias=False
            "ln1_g": jnp.ones((d_model,), jnp.float32),
            "ln1_b": jnp.zeros((d_model,), jnp.float32),
            "fc1_w": w((d_ff, d_model)), "fc1_b": w((d_ff,)),
            "fc2_w": w((d_model, d_ff)), "fc2_b": w((d_model,)),
            "ln2_g": jnp.ones((d_model,), jnp.float32),
            "ln2_b": jnp.zeros((d_model,), jnp.float32),
        })
    return params


def prepare_params(raw):
    """One-time weight prep (outside the per-forward path): pre-transpose to
    the (K, N) layout the MXU wants, reorder LSTM gates to [i, f, o, g] so the
    sigmoid gates are contiguous, fold the LSTM bias pairs, stack the per-MHA-
    block weights along a leading block axis and pre-cast matmul weights to
    bf16 (biases / affine params stay f32)."""
    bf16 = jnp.bfloat16
    lstm = raw["lstm"]
    H = lstm["w_hh_f"].shape[1]

    def reorder(w):   # torch gate order i,f,g,o  ->  i,f,o,g  (along axis 0)
        return jnp.concatenate(
            [w[0:H], w[H:2 * H], w[3 * H:4 * H], w[2 * H:3 * H]], axis=0)

    w_ih_cat = jnp.concatenate(
        [reorder(lstm["w_ih_f"]).T, reorder(lstm["w_ih_b"]).T], axis=1)  # (C,8H)
    b_lstm = jnp.concatenate(
        [reorder(lstm["b_ih_f"] + lstm["b_hh_f"]),
         reorder(lstm["b_ih_b"] + lstm["b_hh_b"])]).reshape(1, 8 * H)

    p = {
        "w_ih_cat": w_ih_cat.astype(bf16),
        "w_hh_f": reorder(lstm["w_hh_f"]).T.astype(bf16),   # (H, 4H)
        "w_hh_b": reorder(lstm["w_hh_b"]).T.astype(bf16),   # (H, 4H)
        "b_lstm": b_lstm,
        "intra_fc_w": raw["intra_fc_w"].T.astype(bf16),
        "intra_fc_b": raw["intra_fc_b"].reshape(1, -1),
        "inter_fc_w": raw["inter_fc_w"].T.astype(bf16),
        "inter_fc_b": raw["inter_fc_b"].reshape(1, -1),
    }

    blks = raw["mha_blocks"]
    stack = lambda key, fn: jnp.stack([fn(b[key]) for b in blks], axis=0)
    p["w_qkv_s"] = stack("in_proj_w", lambda w: w.T).astype(bf16)   # (nblk,C,3C)
    p["w_out_s"] = stack("out_proj_w", lambda w: w.T).astype(bf16)  # (nblk,C,C)
    p["ln1_g_s"] = stack("ln1_g", lambda v: v.reshape(1, -1))
    p["ln1_b_s"] = stack("ln1_b", lambda v: v.reshape(1, -1))
    p["w_fc1_s"] = stack("fc1_w", lambda w: w.T).astype(bf16)       # (nblk,C,4C)
    p["b_fc1_s"] = stack("fc1_b", lambda v: v.reshape(1, -1))
    p["w_fc2_s"] = stack("fc2_w", lambda w: w.T).astype(bf16)       # (nblk,4C,C)
    p["b_fc2_s"] = stack("fc2_b", lambda v: v.reshape(1, -1))
    p["ln2_g_s"] = stack("ln2_g", lambda v: v.reshape(1, -1))
    p["ln2_b_s"] = stack("ln2_b", lambda v: v.reshape(1, -1))
    return p


if __name__ == "__main__":
    # Module hyper-params implied by the forward's reshapes:
    #   channel == numUnits (LSTM/Linear feature dim), width == F (freq bins)
    B, T = 2, 8
    num_units = 16        # numUnits == channel
    width = 8             # F
    n_heads = 2
    mha_blocks = 2

    key = jax.random.PRNGKey(0)
    kx, kp = jax.random.split(key)
    x = jax.random.normal(kx, (B, num_units, T, width), jnp.float32)
    # weight prep happens once, outside the jitted forward
    params = prepare_params(init_params(kp, num_units, mha_blocks, n_heads))

    fwd = jax.jit(functools.partial(dpran_forward, n_heads=n_heads))
    out = fwd(x, params)
    jax.block_until_ready(out)
    assert out.shape == (B, num_units, T, width)
    assert bool(jnp.all(jnp.isfinite(out)))
    print("KERNEL_OK")
</pallas_src>

<mosaic_0001>
module attributes {stable_mosaic.version = 11 : i64} {
  func.func @_inter_tail_kernel(%arg0: i32, %arg1: memref<1x8x8x16xf32, #tpu.memory_space<vmem>>, %arg2: memref<1x8x8x16xf32, #tpu.memory_space<vmem>>, %arg3: memref<16x16xbf16, #tpu.memory_space<vmem>>, %arg4: memref<1x16xf32, #tpu.memory_space<vmem>>, %arg5: memref<1x8x8x16xf32, #tpu.memory_space<vmem>>) attributes {dimension_semantics = [#tpu.dimension_semantics<parallel>], iteration_bounds = array<i64: 2>, scalar_prefetch = 0 : i64, scratch_operands = 0 : i64, tpu.core_type = #tpu.core_type<tc>, window_params = [{transform_indices = @transform_0, window_bounds = array<i64: 1, 8, 8, 16>}, {transform_indices = @transform_1, window_bounds = array<i64: 1, 8, 8, 16>}, {pipeline_mode = #tpu.pipeline_mode<synchronous>, transform_indices = @transform_2, window_bounds = array<i64: 16, 16>}, {pipeline_mode = #tpu.pipeline_mode<synchronous>, transform_indices = @transform_3, window_bounds = array<i64: 1, 16>}, {transform_indices = @transform_4, window_bounds = array<i64: 1, 8, 8, 16>}]} {
    %c0 = arith.constant 0 : index
    %c0_0 = arith.constant 0 : index
    %c0_1 = arith.constant 0 : index
    %c0_2 = arith.constant 0 : index
    %0 = vector.load %arg1[%c0, %c0_0, %c0_1, %c0_2] : memref<1x8x8x16xf32, #tpu.memory_space<vmem>>, vector<1x8x8x16xf32>
    %1 = arith.truncf %0 : vector<1x8x8x16xf32> to vector<1x8x8x16xbf16>
    %2 = vector.shape_cast %1 : vector<1x8x8x16xbf16> to vector<64x16xbf16>
    %c0_3 = arith.constant 0 : index
    %c0_4 = arith.constant 0 : index
    %3 = vector.load %arg3[%c0_3, %c0_4] : memref<16x16xbf16, #tpu.memory_space<vmem>>, vector<16x16xbf16>
    %cst = arith.constant dense<0.000000e+00> : vector<64x16xf32>
    %4 = tpu.matmul %2, %3, %cst {dimension_numbers = #tpu.dot_dimension_numbers<[1], [0], [0], [1], [0, 0, 1, 1], [], []>} : vector<64x16xbf16>, vector<16x16xbf16>, vector<64x16xf32> -> vector<64x16xf32>
    %c0_5 = arith.constant 0 : index
    %c0_6 = arith.constant 0 : index
    %5 = vector.load %arg4[%c0_5, %c0_6] : memref<1x16xf32, #tpu.memory_space<vmem>>, vector<1x16xf32>
    %6 = vector.broadcast %5 : vector<1x16xf32> to vector<64x16xf32>
    %7 = arith.addf %4, %6 : vector<64x16xf32>
    %cst_7 = arith.constant dense<0.000000e+00> : vector<16xf32>
    %8 = vector.multi_reduction <add>, %7, %cst_7 [0] : vector<64x16xf32> to vector<16xf32>
    %9 = vector.shape_cast %8 : vector<16xf32> to vector<1x16xf32>
    %cst_8 = arith.constant 6.400000e+01 : f32
    %10 = vector.broadcast %cst_8 : f32 to vector<1x16xf32>
    %11 = arith.divf %9, %10 : vector<1x16xf32>
    %12 = vector.broadcast %11 : vector<1x16xf32> to vector<64x16xf32>
    %13 = arith.subf %7, %12 : vector<64x16xf32>
    %14 = arith.mulf %13, %13 : vector<64x16xf32>
    %cst_9 = arith.constant dense<0.000000e+00> : vector<16xf32>
    %15 = vector.multi_reduction <add>, %14, %cst_9 [0] : vector<64x16xf32> to vector<16xf32>
    %16 = vector.shape_cast %15 : vector<16xf32> to vector<1x16xf32>
    %cst_10 = arith.constant 6.400000e+01 : f32
    %17 = vector.broadcast %cst_10 : f32 to vector<1x16xf32>
    %18 = arith.divf %16, %17 : vector<1x16xf32>
    %19 = vector.broadcast %11 : vector<1x16xf32> to vector<64x16xf32>
    %20 = arith.subf %7, %19 : vector<64x16xf32>
    %cst_11 = arith.constant 9.99999993E-9 : f32
    %21 = vector.broadcast %cst_11 : f32 to vector<1x16xf32>
    %22 = arith.addf %18, %21 : vector<1x16xf32>
    %23 = math.rsqrt %22 : vector<1x16xf32>
    %24 = vector.broadcast %23 : vector<1x16xf32> to vector<64x16xf32>
    %25 = arith.mulf %20, %24 : vector<64x16xf32>
    %c0_12 = arith.constant 0 : index
    %c0_13 = arith.constant 0 : index
    %c0_14 = arith.constant 0 : index
    %c0_15 = arith.constant 0 : index
    %26 = vector.load %arg2[%c0_12, %c0_13, %c0_14, %c0_15] : memref<1x8x8x16xf32, #tpu.memory_space<vmem>>, vector<1x8x8x16xf32>
    %27 = vector.shape_cast %25 : vector<64x16xf32> to vector<1x8x8x16xf32>
    %28 = arith.addf %26, %27 : vector<1x8x8x16xf32>
    %c0_16 = arith.constant 0 : index
    %c0_17 = arith.constant 0 : index
    %c0_18 = arith.constant 0 : index
    %c0_19 = arith.constant 0 : index
    %29 = vector.load %arg5[%c0_16, %c0_17, %c0_18, %c0_19] : memref<1x8x8x16xf32, #tpu.memory_space<vmem>>, vector<1x8x8x16xf32>
    tpu.vector_store %arg5[%c0_16, %c0_17, %c0_18, %c0_19], %28 {strides = array<i32>} : memref<1x8x8x16xf32, #tpu.memory_space<vmem>>, vector<1x8x8x16xf32>,
    return
  }
  func.func @transform_0(%arg0: i32) -> (i32, i32, i32, i32) {
    %c0_i32 = arith.constant 0 : i32
    %c0_i32_0 = arith.constant 0 : i32
    %c0_i32_1 = arith.constant 0 : i32
    %c0_i32_2 = arith.constant 0 : i32
    return %arg0, %c0_i32, %c0_i32_0, %c0_i32_1 : i32, i32, i32, i32
  }
  func.func @transform_1(%arg0: i32) -> (i32, i32, i32, i32) {
    %c0_i32 = arith.constant 0 : i32
    %c0_i32_0 = arith.constant 0 : i32
    %c0_i32_1 = arith.constant 0 : i32
    %c0_i32_2 = arith.constant 0 : i32
    return %arg0, %c0_i32, %c0_i32_0, %c0_i32_1 : i32, i32, i32, i32
  }
  func.func @transform_2(%arg0: i32) -> (i32, i32) {
    %c0_i32 = arith.constant 0 : i32
    %c0_i32_0 = arith.constant 0 : i32
    %c0_i32_1 = arith.constant 0 : i32
    return %c0_i32, %c0_i32_0 : i32, i32
  }
  func.func @transform_3(%arg0: i32) -> (i32, i32) {
    %c0_i32 = arith.constant 0 : i32
    %c0_i32_0 = arith.constant 0 : i32
    %c0_i32_1 = arith.constant 0 : i32
    return %c0_i32, %c0_i32_0 : i32, i32
  }
  func.func @transform_4(%arg0: i32) -> (i32, i32, i32, i32) {
    %c0_i32 = arith.constant 0 : i32
    %c0_i32_0 = arith.constant 0 : i32
    %c0_i32_1 = arith.constant 0 : i32
    %c0_i32_2 = arith.constant 0 : i32
    return %arg0, %c0_i32, %c0_i32_0, %c0_i32_1 : i32, i32, i32, i32
  }
}

module attributes {stable_mosaic.version = 11 : i64} {
  func.func @_intra_kernel(%arg0: i32, %arg1: memref<1x8x8x16xf32, #tpu.memory_space<vmem>>, %arg2: memref<16x64xbf16, #tpu.memory_space<vmem>>, %arg3: memref<8x32xbf16, #tpu.memory_space<vmem>>, %arg4: memref<8x32xbf16, #tpu.memory_space<vmem>>, %arg5: memref<1x64xf32, #tpu.memory_space<vmem>>, %arg6: memref<16x16xbf16, #tpu.memory_space<vmem>>, %arg7: memref<1x16xf32, #tpu.memory_space<vmem>>, %arg8: memref<1x8x8x16xf32, #tpu.memory_space<vmem>>, %arg9: memref<8x8x32xbf16, #tpu.memory_space<vmem>>, %arg10: memref<8x8x32xbf16, #tpu.memory_space<vmem>>, %arg11: memref<8x8x8xf32, #tpu.memory_space<vmem>>, %arg12: memref<8x8x8xf32, #tpu.memory_space<vmem>>) attributes {dimension_semantics = [#tpu.dimension_semantics<parallel>], iteration_bounds = array<i64: 2>, scalar_prefetch = 0 : i64, scratch_operands = 4 : i64, tpu.core_type = #tpu.core_type<tc>, window_params = [{transform_indices = @transform_0, window_bounds = array<i64: 1, 8, 8, 16>}, {pipeline_mode = #tpu.pipeline_mode<synchronous>, transform_indices = @transform_1, window_bounds = array<i64: 16, 64>}, {pipeline_mode = #tpu.pipeline_mode<synchronous>, transform_indices = @transform_2, window_bounds = array<i64: 8, 32>}, {pipeline_mode = #tpu.pipeline_mode<synchronous>, transform_indices = @transform_3, window_bounds = array<i64: 8, 32>}, {pipeline_mode = #tpu.pipeline_mode<synchronous>, transform_indices = @transform_4, window_bounds = array<i64: 1, 64>}, {pipeline_mode = #tpu.pipeline_mode<synchronous>, transform_indices = @transform_5, window_bounds = array<i64: 16, 16>}, {pipeline_mode = #tpu.pipeline_mode<synchronous>, transform_indices = @transform_6, window_bounds = array<i64: 1, 16>}, {transform_indices = @transform_7, window_bounds = array<i64: 1, 8, 8, 16>}]} {
    %c0 = arith.constant 0 : index
    %c0_0 = arith.constant 0 : index
    %c0_1 = arith.constant 0 : index
    %c0_2 = arith.constant 0 : index
    %0 = vector.load %arg1[%c0, %c0_0, %c0_1, %c0_2] : memref<1x8x8x16xf32, #tpu.memory_space<vmem>>, vector<1x8x8x16xf32>
    %1 = arith.truncf %0 : vector<1x8x8x16xf32> to vector<1x8x8x16xbf16>
    %2 = vector.shape_cast %1 : vector<1x8x8x16xbf16> to vector<64x16xbf16>
    %c0_3 = arith.constant 0 : index
    %c0_4 = arith.constant 0 : index
    %3 = vector.load %arg2[%c0_3, %c0_4] : memref<16x64xbf16, #tpu.memory_space<vmem>>, vector<16x64xbf16>
    %cst = arith.constant dense<0.000000e+00> : vector<64x64xf32>
    %4 = tpu.matmul %2, %3, %cst {dimension_numbers = #tpu.dot_dimension_numbers<[1], [0], [0], [1], [0, 0, 1, 1], [], []>} : vector<64x16xbf16>, vector<16x64xbf16>, vector<64x64xf32> -> vector<64x64xf32>
    %c0_5 = arith.constant 0 : index
    %c0_6 = arith.constant 0 : index
    %5 = vector.load %arg5[%c0_5, %c0_6] : memref<1x64xf32, #tpu.memory_space<vmem>>, vector<1x64xf32>
    %6 = vector.broadcast %5 : vector<1x64xf32> to vector<64x64xf32>
    %7 = arith.addf %4, %6 : vector<64x64xf32>
    %8 = vector.extract_strided_slice %7 {offsets = [0, 0], sizes = [64, 32], strides = [1, 1]} : vector<64x64xf32> to vector<64x32xf32>
    %9 = vector.shape_cast %8 : vector<64x32xf32> to vector<8x8x32xf32>
    %10 = arith.truncf %9 : vector<8x8x32xf32> to vector<8x8x32xbf16>
    %c0_7 = arith.constant 0 : index
    %c0_8 = arith.constant 0 : index
    %c0_9 = arith.constant 0 : index
    %11 = vector.load %arg9[%c0_7, %c0_8, %c0_9] : memref<8x8x32xbf16, #tpu.memory_space<vmem>>, vector<8x8x32xbf16>
    tpu.vector_store %arg9[%c0_7, %c0_8, %c0_9], %10 {strides = array<i32>} : memref<8x8x32xbf16, #tpu.memory_space<vmem>>, vector<8x8x32xbf16>,
    %12 = vector.extract_strided_slice %7 {offsets = [0, 32], sizes = [64, 32], strides = [1, 1]} : vector<64x64xf32> to vector<64x32xf32>
    %13 = vector.shape_cast %12 : vector<64x32xf32> to vector<8x8x32xf32>
    %14 = arith.truncf %13 : vector<8x8x32xf32> to vector<8x8x32xbf16>
    %c0_10 = arith.constant 0 : index
    %c0_11 = arith.constant 0 : index
    %c0_12 = arith.constant 0 : index
    %15 = vector.load %arg10[%c0_10, %c0_11, %c0_12] : memref<8x8x32xbf16, #tpu.memory_space<vmem>>, vector<8x8x32xbf16>
    tpu.vector_store %arg10[%c0_10, %c0_11, %c0_12], %14 {strides = array<i32>} : memref<8x8x32xbf16, #tpu.memory_space<vmem>>, vector<8x8x32xbf16>,
    %c0_13 = arith.constant 0 : index
    %c0_14 = arith.constant 0 : index
    %16 = vector.load %arg3[%c0_13, %c0_14] : memref<8x32xbf16, #tpu.memory_space<vmem>>, vector<8x32xbf16>
    %c0_15 = arith.constant 0 : index
    %c0_16 = arith.constant 0 : index
    %17 = vector.load %arg4[%c0_15, %c0_16] : memref<8x32xbf16, #tpu.memory_space<vmem>>, vector<8x32xbf16>
    %cst_17 = arith.constant 0.000000e+00 : f32
    %18 = vector.broadcast %cst_17 : f32 to vector<8x8xf32>
    %c0_i32 = arith.constant 0 : i32
    %c7_i32 = arith.constant 7 : i32
    %19 = arith.subi %c7_i32, %c0_i32 : i32
    %20 = arith.truncf %18 : vector<8x8xf32> to vector<8x8xbf16>
    %cst_18 = arith.constant dense<0.000000e+00> : vector<8x32xf32>
    %21 = tpu.matmul %20, %16, %cst_18 {dimension_numbers = #tpu.dot_dimension_numbers<[1], [0], [0], [1], [0, 0, 1, 1], [], []>} : vector<8x8xbf16>, vector<8x32xbf16>, vector<8x32xf32> -> vector<8x32xf32>
    %22 = arith.truncf %18 : vector<8x8xf32> to vector<8x8xbf16>
    %cst_19 = arith.constant dense<0.000000e+00> : vector<8x32xf32>
    %23 = tpu.matmul %22, %17, %cst_19 {dimension_numbers = #tpu.dot_dimension_numbers<[1], [0], [0], [1], [0, 0, 1, 1], [], []>} : vector<8x8xbf16>, vector<8x32xbf16>, vector<8x32xf32> -> vector<8x32xf32>
    %24 = arith.index_cast %c0_i32 : i32 to index
    %c0_20 = arith.constant 0 : index
    %c0_21 = arith.constant 0 : index
    %25 = vector.load %arg9[%24, %c0_20, %c0_21] : memref<8x8x32xbf16, #tpu.memory_space<vmem>>, vector<1x8x32xbf16>
    %26 = vector.shape_cast %25 : vector<1x8x32xbf16> to vector<8x32xbf16>
    %27 = arith.extf %26 : vector<8x32xbf16> to vector<8x32xf32>
    %28 = arith.addf %27, %21 : vector<8x32xf32>
    %29 = arith.index_cast %19 : i32 to index
    %c0_22 = arith.constant 0 : index
    %c0_23 = arith.constant 0 : index
    %30 = vector.load %arg10[%29, %c0_22, %c0_23] : memref<8x8x32xbf16, #tpu.memory_space<vmem>>, vector<1x8x32xbf16>
    %31 = vector.shape_cast %30 : vector<1x8x32xbf16> to vector<8x32xbf16>
    %32 = arith.extf %31 : vector<8x32xbf16> to vector<8x32xf32>
    %33 = arith.addf %32, %23 : vector<8x32xf32>
    %34 = vector.extract_strided_slice %28 {offsets = [0, 0], sizes = [8, 24], strides = [1, 1]} : vector<8x32xf32> to vector<8x24xf32>
    %35 = arith.negf %34 : vector<8x24xf32>
    %36 = math.exp %35 : vector<8x24xf32>
    %cst_24 = arith.constant 1.000000e+00 : f32
    %37 = vector.broadcast %cst_24 : f32 to vector<8x24xf32>
    %38 = arith.addf %37, %36 : vector<8x24xf32>
    %39 = arith.divf %37, %38 : vector<8x24xf32>
    %40 = vector.extract_strided_slice %28 {offsets = [0, 24], sizes = [8, 8], strides = [1, 1]} : vector<8x32xf32> to vector<8x8xf32>
    %41 = math.tanh %40 : vector<8x8xf32>
    %42 = vector.extract_strided_slice %39 {offsets = [0, 8], sizes = [8, 8], strides = [1, 1]} : vector<8x24xf32> to vector<8x8xf32>
    %43 = arith.mulf %42, %18 : vector<8x8xf32>
    %44 = vector.extract_strided_slice %39 {offsets = [0, 0], sizes = [8, 8], strides = [1, 1]} : vector<8x24xf32> to vector<8x8xf32>
    %45 = arith.mulf %44, %41 : vector<8x8xf32>
    %46 = arith.addf %43, %45 : vector<8x8xf32>
    %47 = vector.extract_strided_slice %39 {offsets = [0, 16], sizes = [8, 8], strides = [1, 1]} : vector<8x24xf32> to vector<8x8xf32>
    %48 = math.tanh %46 : vector<8x8xf32>
    %49 = arith.mulf %47, %48 : vector<8x8xf32>
    %50 = vector.extract_strided_slice %33 {offsets = [0, 0], sizes = [8, 24], strides = [1, 1]} : vector<8x32xf32> to vector<8x24xf32>
    %51 = arith.negf %50 : vector<8x24xf32>
    %52 = math.exp %51 : vector<8x24xf32>
    %cst_25 = arith.constant 1.000000e+00 : f32
    %53 = vector.broadcast %cst_25 : f32 to vector<8x24xf32>
    %54 = arith.addf %53, %52 : vector<8x24xf32>
    %55 = arith.divf %53, %54 : vector<8x24xf32>
    %56 = vector.extract_strided_slice %33 {offsets = [0, 24], sizes = [8, 8], strides = [1, 1]} : vector<8x32xf32> to vector<8x8xf32>
    %57 = math.tanh %56 : vector<8x8xf32>
    %58 = vector.extract_strided_slice %55 {offsets = [0, 8], sizes = [8, 8], strides = [1, 1]} : vector<8x24xf32> to vector<8x8xf32>
    %59 = arith.mulf %58, %18 : vector<8x8xf32>
    %60 = vector.extract_strided_slice %55 {offsets = [0, 0], sizes = [8, 8], strides = [1, 1]} : vector<8x24xf32> to vector<8x8xf32>
    %61 = arith.mulf %60, %57 : vector<8x8xf32>
    %62 = arith.addf %59, %61 : vector<8x8xf32>
    %63 = vector.extract_strided_slice %55 {offsets = [0, 16], sizes = [8, 8], strides = [1, 1]} : vector<8x24xf32> to vector<8x8xf32>
    %64 = math.tanh %62 : vector<8x8xf32>
    %65 = arith.mulf %63, %64 : vector<8x8xf32>
    %66 = arith.index_cast %c0_i32 : i32 to index
    %c0_26 = arith.constant 0 : index
    %c0_27 = arith.constant 0 : index
    %67 = vector.load %arg11[%66, %c0_26, %c0_27] : memref<8x8x8xf32, #tpu.memory_space<vmem>>, vector<1x8x8xf32>
    %68 = vector.shape_cast %67 : vector<1x8x8xf32> to vector<8x8xf32>
    %69 = vector.shape_cast %49 : vector<8x8xf32> to vector<1x8x8xf32>
    tpu.vector_store %arg11[%66, %c0_26, %c0_27], %69 {strides = array<i32>} : memref<8x8x8xf32, #tpu.memory_space<vmem>>, vector<1x8x8xf32>,
    %70 = arith.index_cast %19 : i32 to index
    %c0_28 = arith.constant 0 : index
    %c0_29 = arith.constant 0 : index
    %71 = vector.load %arg12[%70, %c0_28, %c0_29] : memref<8x8x8xf32, #tpu.memory_space<vmem>>, vector<1x8x8xf32>
    %72 = vector.shape_cast %71 : vector<1x8x8xf32> to vector<8x8xf32>
    %73 = vector.shape_cast %65 : vector<8x8xf32> to vector<1x8x8xf32>
    tpu.vector_store %arg12[%70, %c0_28, %c0_29], %73 {strides = array<i32>} : memref<8x8x8xf32, #tpu.memory_space<vmem>>, vector<1x8x8xf32>,
    %c1_i32 = arith.constant 1 : i32
    %c7_i32_30 = arith.constant 7 : i32
    %74 = arith.subi %c7_i32_30, %c1_i32 : i32
    %75 = arith.truncf %49 : vector<8x8xf32> to vector<8x8xbf16>
    %cst_31 = arith.constant dense<0.000000e+00> : vector<8x32xf32>
    %76 = tpu.matmul %75, %16, %cst_31 {dimension_numbers = #tpu.dot_dimension_numbers<[1], [0], [0], [1], [0, 0, 1, 1], [], []>} : vector<8x8xbf16>, vector<8x32xbf16>, vector<8x32xf32> -> vector<8x32xf32>
    %77 = arith.truncf %65 : vector<8x8xf32> to vector<8x8xbf16>
    %cst_32 = arith.constant dense<0.000000e+00> : vector<8x32xf32>
    %78 = tpu.matmul %77, %17, %cst_32 {dimension_numbers = #tpu.dot_dimension_numbers<[1], [0], [0], [1], [0, 0, 1, 1], [], []>} : vector<8x8xbf16>, vector<8x32xbf16>, vector<8x32xf32> -> vector<8x32xf32>
    %79 = arith.index_cast %c1_i32 : i32 to index
    %c0_33 = arith.constant 0 : index
    %c0_34 = arith.constant 0 : index
    %80 = vector.load %arg9[%79, %c0_33, %c0_34] : memref<8x8x32xbf16, #tpu.memory_space<vmem>>, vector<1x8x32xbf16>
    %81 = vector.shape_cast %80 : vector<1x8x32xbf16> to vector<8x32xbf16>
    %82 = arith.extf %81 : vector<8x32xbf16> to vector<8x32xf32>
    %83 = arith.addf %82, %76 : vector<8x32xf32>
    %84 = arith.index_cast %74 : i32 to index
    %c0_35 = arith.constant 0 : index
    %c0_36 = arith.constant 0 : index
    %85 = vector.load %arg10[%84, %c0_35, %c0_36] : memref<8x8x32xbf16, #tpu.memory_space<vmem>>, vector<1x8x32xbf16>
    %86 = vector.shape_cast %85 : vector<1x8x32xbf16> to vector<8x32xbf16>
    %87 = arith.extf %86 : vector<8x32xbf16> to vector<8x32xf32>
    %88 = arith.addf %87, %78 : vector<8x32xf32>
    %89 = vector.extract_strided_slice %83 {offsets = [0, 0], sizes = [8, 24], strides = [1, 1]} : vector<8x32xf32> to vector<8x24xf32>
    %90 = arith.negf %89 : vector<8x24xf32>
    %91 = math.exp %90 : vector<8x24xf32>
    %cst_37 = arith.constant 1.000000e+00 : f32
    %92 = vector.broadcast %cst_37 : f32 to vector<8x24xf32>
    %93 = arith.addf %92, %91 : vector<8x24xf32>
    %94 = arith.divf %92, %93 : vector<8x24xf32>
    %95 = vector.extract_strided_slice %83 {offsets = [0, 24], sizes = [8, 8], strides = [1, 1]} : vector<8x32xf32> to vector<8x8xf32>
    %96 = math.tanh %95 : vector<8x8xf32>
    %97 = vector.extract_strided_slice %94 {offsets = [0, 8], sizes = [8, 8], strides = [1, 1]} : vector<8x24xf32> to vector<8x8xf32>
    %98 = arith.mulf %97, %46 : vector<8x8xf32>
    %99 = vector.extract_strided_slice %94 {offsets = [0, 0], sizes = [8, 8], strides = [1, 1]} : vector<8x24xf32> to vector<8x8xf32>
    %100 = arith.mulf %99, %96 : vector<8x8xf32>
    %101 = arith.addf %98, %100 : vector<8x8xf32>
    %102 = vector.extract_strided_slice %94 {offsets = [0, 16], sizes = [8, 8], strides = [1, 1]} : vector<8x24xf32> to vector<8x8xf32>
    %103 = math.tanh %101 : vector<8x8xf32>
    %104 = arith.mulf %102, %103 : vector<8x8xf32>
    %105 = vector.extract_strided_slice %88 {offsets = [0, 0], sizes = [8, 24], strides = [1, 1]} : vector<8x32xf32> to vector<8x24xf32>
    %106 = arith.negf %105 : vector<8x24xf32>
    %107 = math.exp %106 : vector<8x24xf32>
    %cst_38 = arith.constant 1.000000e+00 : f32
    %108 = vector.broadcast %cst_38 : f32 to vector<8x24xf32>
    %109 = arith.addf %108, %107 : vector<8x24xf32>
    %110 = arith.divf %108, %109 : vector<8x24xf32>
    %111 = vector.extract_strided_slice %88 {offsets = [0, 24], sizes = [8, 8], strides = [1, 1]} : vector<8x32xf32> to vector<8x8xf32>
    %112 = math.tanh %111 : vector<8x8xf32>
    %113 = vector.extract_strided_slice %110 {offsets = [0, 8], sizes = [8, 8], strides = [1, 1]} : vector<8x24xf32> to vector<8x8xf32>
    %114 = arith.mulf %113, %62 : vector<8x8xf32>
    %115 = vector.extract_strided_slice %110 {offsets = [0, 0], sizes = [8, 8], strides = [1, 1]} : vector<8x24xf32> to vector<8x8xf32>
    %116 = arith.mulf %115, %112 : vector<8x8xf32>
    %117 = arith.addf %114, %116 : vector<8x8xf32>
    %118 = vector.extract_strided_slice %110 {offsets = [0, 16], sizes = [8, 8], strides = [1, 1]} : vector<8x24xf32> to vector<8x8xf32>
    %119 = math.tanh %117 : vector<8x8xf32>
    %120 = arith.mulf %118, %119 : vector<8x8xf32>
    %121 = arith.index_cast %c1_i32 : i32 to index
    %c0_39 = arith.constant 0 : index
    %c0_40 = arith.constant 0 : index
    %122 = vector.load %arg11[%121, %c0_39, %c0_40] : memref<8x8x8xf32, #tpu.memory_space<vmem>>, vector<1x8x8xf32>
    %123 = vector.shape_cast %122 : vector<1x8x8xf32> to vector<8x8xf32>
    %124 = vector.shape_cast %104 : vector<8x8xf32> to vector<1x8x8xf32>
    tpu.vector_store %arg11[%121, %c0_39, %c0_40], %124 {strides = array<i32>} : memref<8x8x8xf32, #tpu.memory_space<vmem>>, vector<1x8x8xf32>,
    %125 = arith.index_cast %74 : i32 to index
    %c0_41 = arith.constant 0 : index
    %c0_42 = arith.constant 0 : index
    %126 = vector.load %arg12[%125, %c0_41, %c0_42] : memref<8x8x8xf32, #tpu.memory_space<vmem>>, vector<1x8x8xf32>
    %127 = vector.shape_cast %126 : vector<1x8x8xf32> to vector<8x8xf32>
    %128 = vector.shape_cast %120 : vector<8x8xf32> to vector<1x8x8xf32>
    tpu.vector_store %arg12[%125, %c0_41, %c0_42], %128 {strides = array<i32>} : memref<8x8x8xf32, #tpu.memory_space<vmem>>, vector<1x8x8xf32>,
    %c2_i32 = arith.constant 2 : i32
    %c7_i32_43 = arith.constant 7 : i32
    %129 = arith.subi %c7_i32_43, %c2_i32 : i32
    %130 = arith.truncf %104 : vector<8x8xf32> to vector<8x8xbf16>
    %cst_44 = arith.constant dense<0.000000e+00> : vector<8x32xf32>
    %131 = tpu.matmul %130, %16, %cst_44 {dimension_numbers = #tpu.dot_dimension_numbers<[1], [0], [0], [1], [0, 0, 1, 1], [], []>} : vector<8x8xbf16>, vector<8x32xbf16>, vector<8x32xf32> -> vector<8x32xf32>
    %132 = arith.truncf %120 : vector<8x8xf32> to vector<8x8xbf16>
    %cst_45 = arith.constant dense<0.000000e+00> : vector<8x32xf32>
    %133 = tpu.matmul %132, %17, %cst_45 {dimension_numbers = #tpu.dot_dimension_numbers<[1], [0], [0], [1], [0, 0, 1, 1], [], []>} : vector<8x8xbf16>, vector<8x32xbf16>, vector<8x32xf32> -> vector<8x32xf32>
    %134 = arith.index_cast %c2_i32 : i32 to index
    %c0_46 = arith.constant 0 : index
    %c0_47 = arith.constant 0 : index
    %135 = vector.load %arg9[%134, %c0_46, %c0_47] : memref<8x8x32xbf16, #tpu.memory_space<vmem>>, vector<1x8x32xbf16>
    %136 = vector.shape_cast %135 : vector<1x8x32xbf16> to vector<8x32xbf16>
    %137 = arith.extf %136 : vector<8x32xbf16> to vector<8x32xf32>
    %138 = arith.addf %137, %131 : vector<8x32xf32>
    %139 = arith.index_cast %129 : i32 to index
    %c0_48 = arith.constant 0 : index
    %c0_49 = arith.constant 0 : index
    %140 = vector.load %arg10[%139, %c0_48, %c0_49] : memref<8x8x32xbf16, #tpu.memory_space<vmem>>, vector<1x8x32xbf16>
    %141 = vector.shape_cast %140 : vector<1x8x32xbf16> to vector<8x32xbf16>
    %142 = arith.extf %141 : vector<8x32xbf16> to vector<8x32xf32>
    %143 = arith.addf %142, %133 : vector<8x32xf32>
    %144 = vector.extract_strided_slice %138 {offsets = [0, 0], sizes = [8, 24], strides = [1, 1]} : vector<8x32xf32> to vector<8x24xf32>
    %145 = arith.negf %144 : vector<8x24xf32>
    %146 = math.exp %145 : vector<8x24xf32>
    %cst_50 = arith.constant 1.000000e+00 : f32
    %147 = vector.broadcast %cst_50 : f32 to vector<8x24xf32>
    %148 = arith.addf %147, %146 : vector<8x24xf32>
    %149 = arith.divf %147, %148 : vector<8x24xf32>
    %150 = vector.extract_strided_slice %138 {offsets = [0, 24], sizes = [8, 8], strides = [1, 1]} : vector<8x32xf32> to vector<8x8xf32>
    %151 = math.tanh %150 : vector<8x8xf32>
    %152 = vector.extract_strided_slice %149 {offsets = [0, 8], sizes = [8, 8], strides = [1, 1]} : vector<8x24xf32> to vector<8x8xf32>
    %153 = arith.mulf %152, %101 : vector<8x8xf32>
    %154 = vector.extract_strided_slice %149 {offsets = [0, 0], sizes = [8, 8], strides = [1, 1]} : vector<8x24xf32> to vector<8x8xf32>
    %155 = arith.mulf %154, %151 : vector<8x8xf32>
    %156 = arith.addf %153, %155 : vector<8x8xf32>
    %157 = vector.extract_strided_slice %149 {offsets = [0, 16], sizes = [8, 8], strides = [1, 1]} : vector<8x24xf32> to vector<8x8xf32>
    %158 = math.tanh %156 : vector<8x8xf32>
    %159 = arith.mulf %157, %158 : vector<8x8xf32>
    %160 = vector.extract_strided_slice %143 {offsets = [0, 0], sizes = [8, 24], strides = [1, 1]} : vector<8x32xf32> to vector<8x24xf32>
    %161 = arith.negf %160 : vector<8x24xf32>
    %162 = math.exp %161 : vector<8x24xf32>
    %cst_51 = arith.constant 1.000000e+00 : f32
    %163 = vector.broadcast %cst_51 : f32 to vector<8x24xf32>
    %164 = arith.addf %163, %162 : vector<8x24xf32>
    %165 = arith.divf %163, %164 : vector<8x24xf32>
    %166 = vector.extract_strided_slice %143 {offsets = [0, 24], sizes = [8, 8], strides = [1, 1]} : vector<8x32xf32> to vector<8x8xf32>
    %167 = math.tanh %166 : vector<8x8xf32>
    %168 = vector.extract_strided_slice %165 {offsets = [0, 8], sizes = [8, 8], strides = [1, 1]} : vector<8x24xf32> to vector<8x8xf32>
    %169 = arith.mulf %168, %117 : vector<8x8xf32>
    %170 = vector.extract_strided_slice %165 {offsets = [0, 0], sizes = [8, 8], strides = [1, 1]} : vector<8x24xf32> to vector<8x8xf32>
    %171 = arith.mulf %170, %167 : vector<8x8xf32>
    %172 = arith.addf %169, %171 : vector<8x8xf32>
    %173 = vector.extract_strided_slice %165 {offsets = [0, 16], sizes = [8, 8], strides = [1, 1]} : vector<8x24xf32> to vector<8x8xf32>
    %174 = math.tanh %172 : vector<8x8xf32>
    %175 = arith.mulf %173, %174 : vector<8x8xf32>
    %176 = arith.index_cast %c2_i32 : i32 to index
    %c0_52 = arith.constant 0 : index
    %c0_53 = arith.constant 0 : index
    %177 = vector.load %arg11[%176, %c0_52, %c0_53] : memref<8x8x8xf32, #tpu.memory_space<vmem>>, vector<1x8x8xf32>
    %178 = vector.shape_cast %177 : vector<1x8x8xf32> to vector<8x8xf32>
    %179 = vector.shape_cast %159 : vector<8x8xf32> to vector<1x8x8xf32>
    tpu.vector_store %arg11[%176, %c0_52, %c0_53], %179 {strides = array<i32>} : memref<8x8x8xf32, #tpu.memory_space<vmem>>, vector<1x8x8xf32>,
    %180 = arith.index_cast %129 : i32 to index
    %c0_54 = arith.constant 0 : index
    %c0_55 = arith.constant 0 : index
    %181 = vector.load %arg12[%180, %c0_54, %c0_55] : memref<8x8x8xf32, #tpu.memory_space<vmem>>, vector<1x8x8xf32>
    %182 = vector.shape_cast %181 : vector<1x8x8xf32> to vector<8x8xf32>
    %183 = vector.shape_cast %175 : vector<8x8xf32> to vector<1x8x8xf32>
    tpu.vector_store %arg12[%180, %c0_54, %c0_55], %183 {strides = array<i32>} : memref<8x8x8xf32, #tpu.memory_space<vmem>>, vector<1x8x8xf32>,
    %c3_i32 = arith.constant 3 : i32
    %c7_i32_56 = arith.constant 7 : i32
    %184 = arith.subi %c7_i32_56, %c3_i32 : i32
    %185 = arith.truncf %159 : vector<8x8xf32> to vector<8x8xbf16>
    %cst_57 = arith.constant dense<0.000000e+00> : vector<8x32xf32>
    %186 = tpu.matmul %185, %16, %cst_57 {dimension_numbers = #tpu.dot_dimension_numbers<[1], [0], [0], [1], [0, 0, 1, 1], [], []>} : vector<8x8xbf16>, vector<8x32xbf16>, vector<8x32xf32> -> vector<8x32xf32>
    %187 = arith.truncf %175 : vector<8x8xf32> to vector<8x8xbf16>
    %cst_58 = arith.constant dense<0.000000e+00> : vector<8x32xf32>
    %188 = tpu.matmul %187, %17, %cst_58 {dimension_numbers = #tpu.dot_dimension_numbers<[1], [0], [0], [1], [0, 0, 1, 1], [], []>} : vector<8x8xbf16>, vector<8x32xbf16>, vector<8x32xf32> -> vector<8x32xf32>
    %189 = arith.index_cast %c3_i32 : i32 to index
    %c0_59 = arith.constant 0 : index
    %c0_60 = arith.constant 0 : index
    %190 = vector.load %arg9[%189, %c0_59, %c0_60] : memref<8x8x32xbf16, #tpu.memory_space<vmem>>, vector<1x8x32xbf16>
    %191 = vector.shape_cast %190 : vector<1x8x32xbf16> to vector<8x32xbf16>
    %192 = arith.extf %191 : vector<8x32xbf16> to vector<8x32xf32>
    %193 = arith.addf %192, %186 : vector<8x32xf32>
    %194 = arith.index_cast %184 : i32 to index
    %c0_61 = arith.constant 0 : index
    %c0_62 = arith.constant 0 : index
    %195 = vector.load %arg10[%194, %c0_61, %c0_62] : memref<8x8x32xbf16, #tpu.memory_space<vmem>>, vector<1x8x32xbf16>
    %196 = vector.shape_cast %195 : vector<1x8x32xbf16> to vector<8x32xbf16>
    %197 = arith.extf %196 : vector<8x32xbf16> to vector<8x32xf32>
    %198 = arith.addf %197, %188 : vector<8x32xf32>
    %199 = vector.extract_strided_slice %193 {offsets = [0, 0], sizes = [8, 24], strides = [1, 1]} : vector<8x32xf32> to vector<8x24xf32>
    %200 = arith.negf %199 : vector<8x24xf32>
    %201 = math.exp %200 : vector<8x24xf32>
    %cst_63 = arith.constant 1.000000e+00 : f32
    %202 = vector.broadcast %cst_63 : f32 to vector<8x24xf32>
    %203 = arith.addf %202, %201 : vector<8x24xf32>
    %204 = arith.divf %202, %203 : vector<8x24xf32>
    %205 = vector.extract_strided_slice %193 {offsets = [0, 24], sizes = [8, 8], strides = [1, 1]} : vector<8x32xf32> to vector<8x8xf32>
    %206 = math.tanh %205 : vector<8x8xf32>
    %207 = vector.extract_strided_slice %204 {offsets = [0, 8], sizes = [8, 8], strides = [1, 1]} : vector<8x24xf32> to vector<8x8xf32>
    %208 = arith.mulf %207, %156 : vector<8x8xf32>
    %209 = vector.extract_strided_slice %204 {offsets = [0, 0], sizes = [8, 8], strides = [1, 1]} : vector<8x24xf32> to vector<8x8xf32>
    %210 = arith.mulf %209, %206 : vector<8x8xf32>
    %211 = arith.addf %208, %210 : vector<8x8xf32>
    %212 = vector.extract_strided_slice %204 {offsets = [0, 16], sizes = [8, 8], strides = [1, 1]} : vector<8x24xf32> to vector<8x8xf32>
    %213 = math.tanh %211 : vector<8x8xf32>
    %214 = arith.mulf %212, %213 : vector<8x8xf32>
    %215 = vector.extract_strided_slice %198 {offsets = [0, 0], sizes = [8, 24], strides = [1, 1]} : vector<8x32xf32> to vector<8x24xf32>
    %216 = arith.negf %215 : vector<8x24xf32>
    %217 = math.exp %216 : vector<8x24xf32>
    %cst_64 = arith.constant 1.000000e+00 : f32
    %218 = vector.broadcast %cst_64 : f32 to vector<8x24xf32>
    %219 = arith.addf %218, %217 : vector<8x24xf32>
    %220 = arith.divf %218, %219 : vector<8x24xf32>
    %221 = vector.extract_strided_slice %198 {offsets = [0, 24], sizes = [8, 8], strides = [1, 1]} : vector<8x32xf32> to vector<8x8xf32>
    %222 = math.tanh %221 : vector<8x8xf32>
    %223 = vector.extract_strided_slice %220 {offsets = [0, 8], sizes = [8, 8], strides = [1, 1]} : vector<8x24xf32> to vector<8x8xf32>
    %224 = arith.mulf %223, %172 : vector<8x8xf32>
    %225 = vector.extract_strided_slice %220 {offsets = [0, 0], sizes = [8, 8], strides = [1, 1]} : vector<8x24xf32> to vector<8x8xf32>
    %226 = arith.mulf %225, %222 : vector<8x8xf32>
    %227 = arith.addf %224, %226 : vector<8x8xf32>
    %228 = vector.extract_strided_slice %220 {offsets = [0, 16], sizes = [8, 8], strides = [1, 1]} : vector<8x24xf32> to vector<8x8xf32>
    %229 = math.tanh %227 : vector<8x8xf32>
    %230 = arith.mulf %228, %229 : vector<8x8xf32>
    %231 = arith.index_cast %c3_i32 : i32 to index
    %c0_65 = arith.constant 0 : index
    %c0_66 = arith.constant 0 : index
    %232 = vector.load %arg11[%231, %c0_65, %c0_66] : memref<8x8x8xf32, #tpu.memory_space<vmem>>, vector<1x8x8xf32>
    %233 = vector.shape_cast %232 : vector<1x8x8xf32> to vector<8x8xf32>
    %234 = vector.shape_cast %214 : vector<8x8xf32> to vector<1x8x8xf32>
    tpu.vector_store %arg11[%231, %c0_65, %c0_66], %234 {strides = array<i32>} : memref<8x8x8xf32, #tpu.memory_space<vmem>>, vector<1x8x8xf32>,
    %235 = arith.index_cast %184 : i32 to index
    %c0_67 = arith.constant 0 : index
    %c0_68 = arith.constant 0 : index
    %236 = vector.load %arg12[%235, %c0_67, %c0_68] : memref<8x8x8xf32, #tpu.memory_space<vmem>>, vector<1x8x8xf32>
    %237 = vector.shape_cast %236 : vector<1x8x8xf32> to vector<8x8xf32>
    %238 = vector.shape_cast %230 : vector<8x8xf32> to vector<1x8x8xf32>
    tpu.vector_store %arg12[%235, %c0_67, %c0_68], %238 {strides = array<i32>} : memref<8x8x8xf32, #tpu.memory_space<vmem>>, vector<1x8x8xf32>,
    %c4_i32 = arith.constant 4 : i32
    %c7_i32_69 = arith.constant 7 : i32
    %239 = arith.subi %c7_i32_69, %c4_i32 : i32
    %240 = arith.truncf %214 : vector<8x8xf32> to vector<8x8xbf16>
    %cst_70 = arith.constant dense<0.000000e+00> : vector<8x32xf32>
    %241 = tpu.matmul %240, %16, %cst_70 {dimension_numbers = #tpu.dot_dimension_numbers<[1], [0], [0], [1], [0, 0, 1, 1], [], []>} : vector<8x8xbf16>, vector<8x32xbf16>, vector<8x32xf32> -> vector<8x32xf32>
    %242 = arith.truncf %230 : vector<8x8xf32> to vector<8x8xbf16>
    %cst_71 = arith.constant dense<0.000000e+00> : vector<8x32xf32>
    %243 = tpu.matmul %242, %17, %cst_71 {dimension_numbers = #tpu.dot_dimension_numbers<[1], [0], [0], [1], [0, 0, 1, 1], [], []>} : vector<8x8xbf16>, vector<8x32xbf16>, vector<8x32xf32> -> vector<8x32xf32>
    %244 = arith.index_cast %c4_i32 : i32 to index
    %c0_72 = arith.constant 0 : index
    %c0_73 = arith.constant 0 : index
    %245 = vector.load %arg9[%244, %c0_72, %c0_73] : memref<8x8x32xbf16, #tpu.memory_space<vmem>>, vector<1x8x32xbf16>
    %246 = vector.shape_cast %245 : vector<1x8x32xbf16> to vector<8x32xbf16>
    %247 = arith.extf %246 : vector<8x32xbf16> to vector<8x32xf32>
    %248 = arith.addf %247, %241 : vector<8x32xf32>
    %249 = arith.index_cast %239 : i32 to index
    %c0_74 = arith.constant 0 : index
    %c0_75 = arith.constant 0 : index
    %250 = vector.load %arg10[%249, %c0_74, %c0_75] : memref<8x8x32xbf16, #tpu.memory_space<vmem>>, vector<1x8x32xbf16>
    %251 = vector.shape_cast %250 : vector<1x8x32xbf16> to vector<8x32xbf16>
    %252 = arith.extf %251 : vector<8x32xbf16> to vector<8x32xf32>
    %253 = arith.addf %252, %243 : vector<8x32xf32>
    %254 = vector.extract_strided_slice %248 {offsets = [0, 0], sizes = [8, 24], strides = [1, 1]} : vector<8x32xf32> to vector<8x24xf32>
    %255 = arith.negf %254 : vector<8x24xf32>
    %256 = math.exp %255 : vector<8x24xf32>
    %cst_76 = arith.constant 1.000000e+00 : f32
    %257 = vector.broadcast %cst_76 : f32 to vector<8x24xf32>
    %258 = arith.addf %257, %256 : vector<8x24xf32>
    %259 = arith.divf %257, %258 : vector<8x24xf32>
    %260 = vector.extract_strided_slice %248 {offsets = [0, 24], sizes = [8, 8], strides = [1, 1]} : vector<8x32xf32> to vector<8x8xf32>
    %261 = math.tanh %260 : vector<8x8xf32>
    %262 = vector.extract_strided_slice %259 {offsets = [0, 8], sizes = [8, 8], strides = [1, 1]} : vector<8x24xf32> to vector<8x8xf32>
    %263 = arith.mulf %262, %211 : vector<8x8xf32>
    %264 = vector.extract_strided_slice %259 {offsets = [0, 0], sizes = [8, 8], strides = [1, 1]} : vector<8x24xf32> to vector<8x8xf32>
    %265 = arith.mulf %264, %261 : vector<8x8xf32>
    %266 = arith.addf %263, %265 : vector<8x8xf32>
    %267 = vector.extract_strided_slice %259 {offsets = [0, 16], sizes = [8, 8], strides = [1, 1]} : vector<8x24xf32> to vector<8x8xf32>
    %268 = math.tanh %266 : vector<8x8xf32>
    %269 = arith.mulf %267, %268 : vector<8x8xf32>
    %270 = vector.extract_strided_slice %253 {offsets = [0, 0], sizes = [8, 24], strides = [1, 1]} : vector<8x32xf32> to vector<8x24xf32>
    %271 = arith.negf %270 : vector<8x24xf32>
    %272 = math.exp %271 : vector<8x24xf32>
    %cst_77 = arith.constant 1.000000e+00 : f32
    %273 = vector.broadcast %cst_77 : f32 to vector<8x24xf32>
    %274 = arith.addf %273, %272 : vector<8x24xf32>
    %275 = arith.divf %273, %274 : vector<8x24xf32>
    %276 = vector.extract_strided_slice %253 {offsets = [0, 24], sizes = [8, 8], strides = [1, 1]} : vector<8x32xf32> to vector<8x8xf32>
    %277 = math.tanh %276 : vector<8x8xf32>
    %278 = vector.extract_strided_slice %275 {offsets = [0, 8], sizes = [8, 8], strides = [1, 1]} : vector<8x24xf32> to vector<8x8xf32>
    %279 = arith.mulf %278, %227 : vector<8x8xf32>
    %280 = vector.extract_strided_slice %275 {offsets = [0, 0], sizes = [8, 8], strides = [1, 1]} : vector<8x24xf32> to vector<8x8xf32>
    %281 = arith.mulf %280, %277 : vector<8x8xf32>
    %282 = arith.addf %279, %281 : vector<8x8xf32>
    %283 = vector.extract_strided_slice %275 {offsets = [0, 16], sizes = [8, 8], strides = [1, 1]} : vector<8x24xf32> to vector<8x8xf32>
    %284 = math.tanh %282 : vector<8x8xf32>
    %285 = arith.mulf %283, %284 : vector<8x8xf32>
    %286 = arith.index_cast %c4_i32 : i32 to index
    %c0_78 = arith.constant 0 : index
    %c0_79 = arith.constant 0 : index
    %287 = vector.load %arg11[%286, %c0_78, %c0_79] : memref<8x8x8xf32, #tpu.memory_space<vmem>>, vector<1x8x8xf32>
    %288 = vector.shape_cast %287 : vector<1x8x8xf32> to vector<8x8xf32>
    %289 = vector.shape_cast %269 : vector<8x8xf32> to vector<1x8x8xf32>
    tpu.vector_store %arg11[%286, %c0_78, %c0_79], %289 {strides = array<i32>} : memref<8x8x8xf32, #tpu.memory_space<vmem>>, vector<1x8x8xf32>,
    %290 = arith.index_cast %239 : i32 to index
    %c0_80 = arith.constant 0 : index
    %c0_81 = arith.constant 0 : index
    %291 = vector.load %arg12[%290, %c0_80, %c0_81] : memref<8x8x8xf32, #tpu.memory_space<vmem>>, vector<1x8x8xf32>
    %292 = vector.shape_cast %291 : vector<1x8x8xf32> to vector<8x8xf32>
    %293 = vector.shape_cast %285 : vector<8x8xf32> to vector<1x8x8xf32>
    tpu.vector_store %arg12[%290, %c0_80, %c0_81], %293 {strides = array<i32>} : memref<8x8x8xf32, #tpu.memory_space<vmem>>, vector<1x8x8xf32>,
    %c5_i32 = arith.constant 5 : i32
    %c7_i32_82 = arith.constant 7 : i32
    %294 = arith.subi %c7_i32_82, %c5_i32 : i32
    %295 = arith.truncf %269 : vector<8x8xf32> to vector<8x8xbf16>
    %cst_83 = arith.constant dense<0.000000e+00> : vector<8x32xf32>
    %296 = tpu.matmul %295, %16, %cst_83 {dimension_numbers = #tpu.dot_dimension_numbers<[1], [0], [0], [1], [0, 0, 1, 1], [], []>} : vector<8x8xbf16>, vector<8x32xbf16>, vector<8x32xf32> -> vector<8x32xf32>
    %297 = arith.truncf %285 : vector<8x8xf32> to vector<8x8xbf16>
    %cst_84 = arith.constant dense<0.000000e+00> : vector<8x32xf32>
    %298 = tpu.matmul %297, %17, %cst_84 {dimension_numbers = #tpu.dot_dimension_numbers<[1], [0], [0], [1], [0, 0, 1, 1], [], []>} : vector<8x8xbf16>, vector<8x32xbf16>, vector<8x32xf32> -> vector<8x32xf32>
    %299 = arith.index_cast %c5_i32 : i32 to index
    %c0_85 = arith.constant 0 : index
    %c0_86 = arith.constant 0 : index
    %300 = vector.load %arg9[%299, %c0_85, %c0_86] : memref<8x8x32xbf16, #tpu.memory_space<vmem>>, vector<1x8x32xbf16>
    %301 = vector.shape_cast %300 : vector<1x8x32xbf16> to vector<8x32xbf16>
    %302 = arith.extf %301 : vector<8x32xbf16> to vector<8x32xf32>
    %303 = arith.addf %302, %296 : vector<8x32xf32>
    %304 = arith.index_cast %294 : i32 to index
    %c0_87 = arith.constant 0 : index
    %c0_88 = arith.constant 0 : index
    %305 = vector.load %arg10[%304, %c0_87, %c0_88] : memref<8x8x32xbf16, #tpu.memory_space<vmem>>, vector<1x8x32xbf16>
    %306 = vector.shape_cast %305 : vector<1x8x32xbf16> to vector<8x32xbf16>
    %307 = arith.extf %306 : vector<8x32xbf16> to vector<8x32xf32>
    %308 = arith.addf %307, %298 : vector<8x32xf32>
    %309 = vector.extract_strided_slice %303 {offsets = [0, 0], sizes = [8, 24], strides = [1, 1]} : vector<8x32xf32> to vector<8x24xf32>
    %310 = arith.negf %309 : vector<8x24xf32>
    %311 = math.exp %310 : vector<8x24xf32>
    %cst_89 = arith.constant 1.000000e+00 : f32
    %312 = vector.broadcast %cst_89 : f32 to vector<8x24xf32>
    %313 = arith.addf %312, %311 : vector<8x24xf32>
    %314 = arith.divf %312, %313 : vector<8x24xf32>
    %315 = vector.extract_strided_slice %303 {offsets = [0, 24], sizes = [8, 8], strides = [1, 1]} : vector<8x32xf32> to vector<8x8xf32>
    %316 = math.tanh %315 : vector<8x8xf32>
    %317 = vector.extract_strided_slice %314 {offsets = [0, 8], sizes = [8, 8], strides = [1, 1]} : vector<8x24xf32> to vector<8x8xf32>
    %318 = arith.mulf %317, %266 : vector<8x8xf32>
    %319 = vector.extract_strided_slice %314 {offsets = [0, 0], sizes = [8, 8], strides = [1, 1]} : vector<8x24xf32> to vector<8x8xf32>
    %320 = arith.mulf %319, %316 : vector<8x8xf32>
    %321 = arith.addf %318, %320 : vector<8x8xf32>
    %322 = vector.extract_strided_slice %314 {offsets = [0, 16], sizes = [8, 8], strides = [1, 1]} : vector<8x24xf32> to vector<8x8xf32>
    %323 = math.tanh %321 : vector<8x8xf32>
    %324 = arith.mulf %322, %323 : vector<8x8xf32>
    %325 = vector.extract_strided_slice %308 {offsets = [0, 0], sizes = [8, 24], strides = [1, 1]} : vector<8x32xf32> to vector<8x24xf32>
    %326 = arith.negf %325 : vector<8x24xf32>
    %327 = math.exp %326 : vector<8x24xf32>
    %cst_90 = arith.constant 1.000000e+00 : f32
    %328 = vector.broadcast %cst_90 : f32 to vector<8x24xf32>
    %329 = arith.addf %328, %327 : vector<8x24xf32>
    %330 = arith.divf %328, %329 : vector<8x24xf32>
    %331 = vector.extract_strided_slice %308 {offsets = [0, 24], sizes = [8, 8], strides = [1, 1]} : vector<8x32xf32> to vector<8x8xf32>
    %332 = math.tanh %331 : vector<8x8xf32>
    %333 = vector.extract_strided_slice %330 {offsets = [0, 8], sizes = [8, 8], strides = [1, 1]} : vector<8x24xf32> to vector<8x8xf32>
    %334 = arith.mulf %333, %282 : vector<8x8xf32>
    %335 = vector.extract_strided_slice %330 {offsets = [0, 0], sizes = [8, 8], strides = [1, 1]} : vector<8x24xf32> to vector<8x8xf32>
    %336 = arith.mulf %335, %332 : vector<8x8xf32>
    %337 = arith.addf %334, %336 : vector<8x8xf32>
    %338 = vector.extract_strided_slice %330 {offsets = [0, 16], sizes = [8, 8], strides = [1, 1]} : vector<8x24xf32> to vector<8x8xf32>
    %339 = math.tanh %337 : vector<8x8xf32>
    %340 = arith.mulf %338, %339 : vector<8x8xf32>
    %341 = arith.index_cast %c5_i32 : i32 to index
    %c0_91 = arith.constant 0 : index
    %c0_92 = arith.constant 0 : index
    %342 = vector.load %arg11[%341, %c0_91, %c0_92] : memref<8x8x8xf32, #tpu.memory_space<vmem>>, vector<1x8x8xf32>
    %343 = vector.shape_cast %342 : vector<1x8x8xf32> to vector<8x8xf32>
    %344 = vector.shape_cast %324 : vector<8x8xf32> to vector<1x8x8xf32>
    tpu.vector_store %arg11[%341, %c0_91, %c0_92], %344 {strides = array<i32>} : memref<8x8x8xf32, #tpu.memory_space<vmem>>, vector<1x8x8xf32>,
    %345 = arith.index_cast %294 : i32 to index
    %c0_93 = arith.constant 0 : index
    %c0_94 = arith.constant 0 : index
    %346 = vector.load %arg12[%345, %c0_93, %c0_94] : memref<8x8x8xf32, #tpu.memory_space<vmem>>, vector<1x8x8xf32>
    %347 = vector.shape_cast %346 : vector<1x8x8xf32> to vector<8x8xf32>
    %348 = vector.shape_cast %340 : vector<8x8xf32> to vector<1x8x8xf32>
    tpu.vector_store %arg12[%345, %c0_93, %c0_94], %348 {strides = array<i32>} : memref<8x8x8xf32, #tpu.memory_space<vmem>>, vector<1x8x8xf32>,
    %c6_i32 = arith.constant 6 : i32
    %c7_i32_95 = arith.constant 7 : i32
    %349 = arith.subi %c7_i32_95, %c6_i32 : i32
    %350 = arith.truncf %324 : vector<8x8xf32> to vector<8x8xbf16>
    %cst_96 = arith.constant dense<0.000000e+00> : vector<8x32xf32>
    %351 = tpu.matmul %350, %16, %cst_96 {dimension_numbers = #tpu.dot_dimension_numbers<[1], [0], [0], [1], [0, 0, 1, 1], [], []>} : vector<8x8xbf16>, vector<8x32xbf16>, vector<8x32xf32> -> vector<8x32xf32>
    %352 = arith.truncf %340 : vector<8x8xf32> to vector<8x8xbf16>
    %cst_97 = arith.constant dense<0.000000e+00> : vector<8x32xf32>
    %353 = tpu.matmul %352, %17, %cst_97 {dimension_numbers = #tpu.dot_dimension_numbers<[1], [0], [0], [1], [0, 0, 1, 1], [], []>} : vector<8x8xbf16>, vector<8x32xbf16>, vector<8x32xf32> -> vector<8x32xf32>
    %354 = arith.index_cast %c6_i32 : i32 to index
    %c0_98 = arith.constant 0 : index
    %c0_99 = arith.constant 0 : index
    %355 = vector.load %arg9[%354, %c0_98, %c0_99] : memref<8x8x32xbf16, #tpu.memory_space<vmem>>, vector<1x8x32xbf16>
    %356 = vector.shape_cast %355 : vector<1x8x32xbf16> to vector<8x32xbf16>
    %357 = arith.extf %356 : vector<8x32xbf16> to vector<8x32xf32>
    %358 = arith.addf %357, %351 : vector<8x32xf32>
    %359 = arith.index_cast %349 : i32 to index
    %c0_100 = arith.constant 0 : index
    %c0_101 = arith.constant 0 : index
    %360 = vector.load %arg10[%359, %c0_100, %c0_101] : memref<8x8x32xbf16, #tpu.memory_space<vmem>>, vector<1x8x32xbf16>
    %361 = vector.shape_cast %360 : vector<1x8x32xbf16> to vector<8x32xbf16>
    %362 = arith.extf %361 : vector<8x32xbf16> to vector<8x32xf32>
    %363 = arith.addf %362, %353 : vector<8x32xf32>
    %364 = vector.extract_strided_slice %358 {offsets = [0, 0], sizes = [8, 24], strides = [1, 1]} : vector<8x32xf32> to vector<8x24xf32>
    %365 = arith.negf %364 : vector<8x24xf32>
    %366 = math.exp %365 : vector<8x24xf32>
    %cst_102 = arith.constant 1.000000e+00 : f32
    %367 = vector.broadcast %cst_102 : f32 to vector<8x24xf32>
    %368 = arith.addf %367, %366 : vector<8x24xf32>
    %369 = arith.divf %367, %368 : vector<8x24xf32>
    %370 = vector.extract_strided_slice %358 {offsets = [0, 24], sizes = [8, 8], strides = [1, 1]} : vector<8x32xf32> to vector<8x8xf32>
    %371 = math.tanh %370 : vector<8x8xf32>
    %372 = vector.extract_strided_slice %369 {offsets = [0, 8], sizes = [8, 8], strides = [1, 1]} : vector<8x24xf32> to vector<8x8xf32>
    %373 = arith.mulf %372, %321 : vector<8x8xf32>
    %374 = vector.extract_strided_slice %369 {offsets = [0, 0], sizes = [8, 8], strides = [1, 1]} : vector<8x24xf32> to vector<8x8xf32>
    %375 = arith.mulf %374, %371 : vector<8x8xf32>
    %376 = arith.addf %373, %375 : vector<8x8xf32>
    %377 = vector.extract_strided_slice %369 {offsets = [0, 16], sizes = [8, 8], strides = [1, 1]} : vector<8x24xf32> to vector<8x8xf32>
    %378 = math.tanh %376 : vector<8x8xf32>
    %379 = arith.mulf %377, %378 : vector<8x8xf32>
    %380 = vector.extract_strided_slice %363 {offsets = [0, 0], sizes = [8, 24], strides = [1, 1]} : vector<8x32xf32> to vector<8x24xf32>
    %381 = arith.negf %380 : vector<8x24xf32>
    %382 = math.exp %381 : vector<8x24xf32>
    %cst_103 = arith.constant 1.000000e+00 : f32
    %383 = vector.broadcast %cst_103 : f32 to vector<8x24xf32>
    %384 = arith.addf %383, %382 : vector<8x24xf32>
    %385 = arith.divf %383, %384 : vector<8x24xf32>
    %386 = vector.extract_strided_slice %363 {offsets = [0, 24], sizes = [8, 8], strides = [1, 1]} : vector<8x32xf32> to vector<8x8xf32>
    %387 = math.tanh %386 : vector<8x8xf32>
    %388 = vector.extract_strided_slice %385 {offsets = [0, 8], sizes = [8, 8], strides = [1, 1]} : vector<8x24xf32> to vector<8x8xf32>
    %389 = arith.mulf %388, %337 : vector<8x8xf32>
    %390 = vector.extract_strided_slice %385 {offsets = [0, 0], sizes = [8, 8], strides = [1, 1]} : vector<8x24xf32> to vector<8x8xf32>
    %391 = arith.mulf %390, %387 : vector<8x8xf32>
    %392 = arith.addf %389, %391 : vector<8x8xf32>
    %393 = vector.extract_strided_slice %385 {offsets = [0, 16], sizes = [8, 8], strides = [1, 1]} : vector<8x24xf32> to vector<8x8xf32>
    %394 = math.tanh %392 : vector<8x8xf32>
    %395 = arith.mulf %393, %394 : vector<8x8xf32>
    %396 = arith.index_cast %c6_i32 : i32 to index
    %c0_104 = arith.constant 0 : index
    %c0_105 = arith.constant 0 : index
    %397 = vector.load %arg11[%396, %c0_104, %c0_105] : memref<8x8x8xf32, #tpu.memory_space<vmem>>, vector<1x8x8xf32>
    %398 = vector.shape_cast %397 : vector<1x8x8xf32> to vector<8x8xf32>
    %399 = vector.shape_cast %379 : vector<8x8xf32> to vector<1x8x8xf32>
    tpu.vector_store %arg11[%396, %c0_104, %c0_105], %399 {strides = array<i32>} : memref<8x8x8xf32, #tpu.memory_space<vmem>>, vector<1x8x8xf32>,
    %400 = arith.index_cast %349 : i32 to index
    %c0_106 = arith.constant 0 : index
    %c0_107 = arith.constant 0 : index
    %401 = vector.load %arg12[%400, %c0_106, %c0_107] : memref<8x8x8xf32, #tpu.memory_space<vmem>>, vector<1x8x8xf32>
    %402 = vector.shape_cast %401 : vector<1x8x8xf32> to vector<8x8xf32>
    %403 = vector.shape_cast %395 : vector<8x8xf32> to vector<1x8x8xf32>
    tpu.vector_store %arg12[%400, %c0_106, %c0_107], %403 {strides = array<i32>} : memref<8x8x8xf32, #tpu.memory_space<vmem>>, vector<1x8x8xf32>,
    %c7_i32_108 = arith.constant 7 : i32
    %c7_i32_109 = arith.constant 7 : i32
    %404 = arith.subi %c7_i32_109, %c7_i32_108 : i32
    %405 = arith.truncf %379 : vector<8x8xf32> to vector<8x8xbf16>
    %cst_110 = arith.constant dense<0.000000e+00> : vector<8x32xf32>
    %406 = tpu.matmul %405, %16, %cst_110 {dimension_numbers = #tpu.dot_dimension_numbers<[1], [0], [0], [1], [0, 0, 1, 1], [], []>} : vector<8x8xbf16>, vector<8x32xbf16>, vector<8x32xf32> -> vector<8x32xf32>
    %407 = arith.truncf %395 : vector<8x8xf32> to vector<8x8xbf16>
    %cst_111 = arith.constant dense<0.000000e+00> : vector<8x32xf32>
    %408 = tpu.matmul %407, %17, %cst_111 {dimension_numbers = #tpu.dot_dimension_numbers<[1], [0], [0], [1], [0, 0, 1, 1], [], []>} : vector<8x8xbf16>, vector<8x32xbf16>, vector<8x32xf32> -> vector<8x32xf32>
    %409 = arith.index_cast %c7_i32_108 : i32 to index
    %c0_112 = arith.constant 0 : index
    %c0_113 = arith.constant 0 : index
    %410 = vector.load %arg9[%409, %c0_112, %c0_113] : memref<8x8x32xbf16, #tpu.memory_space<vmem>>, vector<1x8x32xbf16>
    %411 = vector.shape_cast %410 : vector<1x8x32xbf16> to vector<8x32xbf16>
    %412 = arith.extf %411 : vector<8x32xbf16> to vector<8x32xf32>
    %413 = arith.addf %412, %406 : vector<8x32xf32>
    %414 = arith.index_cast %404 : i32 to index
    %c0_114 = arith.constant 0 : index
    %c0_115 = arith.constant 0 : index
    %415 = vector.load %arg10[%414, %c0_114, %c0_115] : memref<8x8x32xbf16, #tpu.memory_space<vmem>>, vector<1x8x32xbf16>
    %416 = vector.shape_cast %415 : vector<1x8x32xbf16> to vector<8x32xbf16>
    %417 = arith.extf %416 : vector<8x32xbf16> to vector<8x32xf32>
    %418 = arith.addf %417, %408 : vector<8x32xf32>
    %419 = vector.extract_strided_slice %413 {offsets = [0, 0], sizes = [8, 24], strides = [1, 1]} : vector<8x32xf32> to vector<8x24xf32>
    %420 = arith.negf %419 : vector<8x24xf32>
    %421 = math.exp %420 : vector<8x24xf32>
    %cst_116 = arith.constant 1.000000e+00 : f32
    %422 = vector.broadcast %cst_116 : f32 to vector<8x24xf32>
    %423 = arith.addf %422, %421 : vector<8x24xf32>
    %424 = arith.divf %422, %423 : vector<8x24xf32>
    %425 = vector.extract_strided_slice %413 {offsets = [0, 24], sizes = [8, 8], strides = [1, 1]} : vector<8x32xf32> to vector<8x8xf32>
    %426 = math.tanh %425 : vector<8x8xf32>
    %427 = vector.extract_strided_slice %424 {offsets = [0, 8], sizes = [8, 8], strides = [1, 1]} : vector<8x24xf32> to vector<8x8xf32>
    %428 = arith.mulf %427, %376 : vector<8x8xf32>
    %429 = vector.extract_strided_slice %424 {offsets = [0, 0], sizes = [8, 8], strides = [1, 1]} : vector<8x24xf32> to vector<8x8xf32>
    %430 = arith.mulf %429, %426 : vector<8x8xf32>
    %431 = arith.addf %428, %430 : vector<8x8xf32>
    %432 = vector.extract_strided_slice %424 {offsets = [0, 16], sizes = [8, 8], strides = [1, 1]} : vector<8x24xf32> to vector<8x8xf32>
    %433 = math.tanh %431 : vector<8x8xf32>
    %434 = arith.mulf %432, %433 : vector<8x8xf32>
    %435 = vector.extract_strided_slice %418 {offsets = [0, 0], sizes = [8, 24], strides = [1, 1]} : vector<8x32xf32> to vector<8x24xf32>
    %436 = arith.negf %435 : vector<8x24xf32>
    %437 = math.exp %436 : vector<8x24xf32>
    %cst_117 = arith.constant 1.000000e+00 : f32
    %438 = vector.broadcast %cst_117 : f32 to vector<8x24xf32>
    %439 = arith.addf %438, %437 : vector<8x24xf32>
    %440 = arith.divf %438, %439 : vector<8x24xf32>
    %441 = vector.extract_strided_slice %418 {offsets = [0, 24], sizes = [8, 8], strides = [1, 1]} : vector<8x32xf32> to vector<8x8xf32>
    %442 = math.tanh %441 : vector<8x8xf32>
    %443 = vector.extract_strided_slice %440 {offsets = [0, 8], sizes = [8, 8], strides = [1, 1]} : vector<8x24xf32> to vector<8x8xf32>
    %444 = arith.mulf %443, %392 : vector<8x8xf32>
    %445 = vector.extract_strided_slice %440 {offsets = [0, 0], sizes = [8, 8], strides = [1, 1]} : vector<8x24xf32> to vector<8x8xf32>
    %446 = arith.mulf %445, %442 : vector<8x8xf32>
    %447 = arith.addf %444, %446 : vector<8x8xf32>
    %448 = vector.extract_strided_slice %440 {offsets = [0, 16], sizes = [8, 8], strides = [1, 1]} : vector<8x24xf32> to vector<8x8xf32>
    %449 = math.tanh %447 : vector<8x8xf32>
    %450 = arith.mulf %448, %449 : vector<8x8xf32>
    %451 = arith.index_cast %c7_i32_108 : i32 to index
    %c0_118 = arith.constant 0 : index
    %c0_119 = arith.constant 0 : index
    %452 = vector.load %arg11[%451, %c0_118, %c0_119] : memref<8x8x8xf32, #tpu.memory_space<vmem>>, vector<1x8x8xf32>
    %453 = vector.shape_cast %452 : vector<1x8x8xf32> to vector<8x8xf32>
    %454 = vector.shape_cast %434 : vector<8x8xf32> to vector<1x8x8xf32>
    tpu.vector_store %arg11[%451, %c0_118, %c0_119], %454 {strides = array<i32>} : memref<8x8x8xf32, #tpu.memory_space<vmem>>, vector<1x8x8xf32>,
    %455 = arith.index_cast %404 : i32 to index
    %c0_120 = arith.constant 0 : index
    %c0_121 = arith.constant 0 : index
    %456 = vector.load %arg12[%455, %c0_120, %c0_121] : memref<8x8x8xf32, #tpu.memory_space<vmem>>, vector<1x8x8xf32>
    %457 = vector.shape_cast %456 : vector<1x8x8xf32> to vector<8x8xf32>
    %458 = vector.shape_cast %450 : vector<8x8xf32> to vector<1x8x8xf32>
    tpu.vector_store %arg12[%455, %c0_120, %c0_121], %458 {strides = array<i32>} : memref<8x8x8xf32, #tpu.memory_space<vmem>>, vector<1x8x8xf32>,
    %c8_i32 = arith.constant 8 : i32
    %c0_122 = arith.constant 0 : index
    %c0_123 = arith.constant 0 : index
    %c0_124 = arith.constant 0 : index
    %459 = vector.load %arg11[%c0_122, %c0_123, %c0_124] : memref<8x8x8xf32, #tpu.memory_space<vmem>>, vector<8x8x8xf32>
    %460 = vector.shape_cast %459 : vector<8x8x8xf32> to vector<64x8xf32>
    %461 = arith.truncf %460 : vector<64x8xf32> to vector<64x8xbf16>
    %c0_125 = arith.constant 0 : index
    %c0_126 = arith.constant 0 : index
    %c0_127 = arith.constant 0 : index
    %462 = vector.load %arg12[%c0_125, %c0_126, %c0_127] : memref<8x8x8xf32, #tpu.memory_space<vmem>>, vector<8x8x8xf32>
    %463 = vector.shape_cast %462 : vector<8x8x8xf32> to vector<64x8xf32>
    %464 = arith.truncf %463 : vector<64x8xf32> to vector<64x8xbf16>
    %c0_128 = arith.constant 0 : index
    %c0_129 = arith.constant 0 : index
    %465 = vector.load %arg6[%c0_128, %c0_129] : memref<16x16xbf16, #tpu.memory_space<vmem>>, vector<8x16xbf16>
    %cst_130 = arith.constant dense<0.000000e+00> : vector<64x16xf32>
    %466 = tpu.matmul %461, %465, %cst_130 {dimension_numbers = #tpu.dot_dimension_numbers<[1], [0], [0], [1], [0, 0, 1, 1], [], []>} : vector<64x8xbf16>, vector<8x16xbf16>, vector<64x16xf32> -> vector<64x16xf32>
    %c8 = arith.constant 8 : index
    %c0_131 = arith.constant 0 : index
    %467 = vector.load %arg6[%c8, %c0_131] : memref<16x16xbf16, #tpu.memory_space<vmem>>, vector<8x16xbf16>
    %cst_132 = arith.constant dense<0.000000e+00> : vector<64x16xf32>
    %468 = tpu.matmul %464, %467, %cst_132 {dimension_numbers = #tpu.dot_dimension_numbers<[1], [0], [0], [1], [0, 0, 1, 1], [], []>} : vector<64x8xbf16>, vector<8x16xbf16>, vector<64x16xf32> -> vector<64x16xf32>
    %469 = arith.addf %466, %468 : vector<64x16xf32>
    %c0_133 = arith.constant 0 : index
    %c0_134 = arith.constant 0 : index
    %470 = vector.load %arg7[%c0_133, %c0_134] : memref<1x16xf32, #tpu.memory_space<vmem>>, vector<1x16xf32>
    %471 = vector.broadcast %470 : vector<1x16xf32> to vector<64x16xf32>
    %472 = arith.addf %469, %471 : vector<64x16xf32>
    %473 = vector.shape_cast %472 : vector<64x16xf32> to vector<8x8x16xf32>
    %cst_135 = arith.constant dense<0.000000e+00> : vector<8x8xf32>
    %474 = vector.multi_reduction <add>, %473, %cst_135 [2] : vector<8x8x16xf32> to vector<8x8xf32>
    %475 = vector.shape_cast %474 : vector<8x8xf32> to vector<8x8x1xf32>
    %cst_136 = arith.constant 1.600000e+01 : f32
    %476 = vector.broadcast %cst_136 : f32 to vector<8x8x1xf32>
    %477 = arith.divf %475, %476 : vector<8x8x1xf32>
    %cst_137 = arith.constant dense<0.000000e+00> : vector<8x1xf32>
    %478 = vector.multi_reduction <add>, %477, %cst_137 [1] : vector<8x8x1xf32> to vector<8x1xf32>
    %479 = vector.shape_cast %478 : vector<8x1xf32> to vector<8x1x1xf32>
    %cst_138 = arith.constant 8.000000e+00 : f32
    %480 = vector.broadcast %cst_138 : f32 to vector<8x1x1xf32>
    %481 = arith.divf %479, %480 : vector<8x1x1xf32>
    %482 = vector.broadcast %481 : vector<8x1x1xf32> to vector<8x8x16xf32>
    %483 = arith.subf %473, %482 : vector<8x8x16xf32>
    %484 = arith.mulf %483, %483 : vector<8x8x16xf32>
    %cst_139 = arith.constant dense<0.000000e+00> : vector<8x8xf32>
    %485 = vector.multi_reduction <add>, %484, %cst_139 [2] : vector<8x8x16xf32> to vector<8x8xf32>
    %486 = vector.shape_cast %485 : vector<8x8xf32> to vector<8x8x1xf32>
    %cst_140 = arith.constant 1.600000e+01 : f32
    %487 = vector.broadcast %cst_140 : f32 to vector<8x8x1xf32>
    %488 = arith.divf %486, %487 : vector<8x8x1xf32>
    %cst_141 = arith.constant dense<0.000000e+00> : vector<8x1xf32>
    %489 = vector.multi_reduction <add>, %488, %cst_141 [1] : vector<8x8x1xf32> to vector<8x1xf32>
    %490 = vector.shape_cast %489 : vector<8x1xf32> to vector<8x1x1xf32>
    %cst_142 = arith.constant 8.000000e+00 : f32
    %491 = vector.broadcast %cst_142 : f32 to vector<8x1x1xf32>
    %492 = arith.divf %490, %491 : vector<8x1x1xf32>
    %493 = vector.broadcast %481 : vector<8x1x1xf32> to vector<8x8x16xf32>
    %494 = arith.subf %473, %493 : vector<8x8x16xf32>
    %cst_143 = arith.constant 9.99999993E-9 : f32
    %495 = vector.broadcast %cst_143 : f32 to vector<8x1x1xf32>
    %496 = arith.addf %492, %495 : vector<8x1x1xf32>
    %497 = math.rsqrt %496 : vector<8x1x1xf32>
    %498 = vector.broadcast %497 : vector<8x1x1xf32> to vector<8x8x16xf32>
    %499 = arith.mulf %494, %498 : vector<8x8x16xf32>
    %c0_144 = arith.constant 0 : index
    %c0_145 = arith.constant 0 : index
    %c0_146 = arith.constant 0 : index
    %c0_147 = arith.constant 0 : index
    %500 = vector.load %arg1[%c0_144, %c0_145, %c0_146, %c0_147] : memref<1x8x8x16xf32, #tpu.memory_space<vmem>>, vector<1x8x8x16xf32>
    %501 = vector.shape_cast %500 : vector<1x8x8x16xf32> to vector<8x8x16xf32>
    %502 = arith.addf %501, %499 : vector<8x8x16xf32>
    %503 = vector.shape_cast %502 : vector<8x8x16xf32> to vector<1x8x8x16xf32>
    %c0_148 = arith.constant 0 : index
    %c0_149 = arith.constant 0 : index
    %c0_150 = arith.constant 0 : index
    %c0_151 = arith.constant 0 : index
    %504 = vector.load %arg8[%c0_148, %c0_149, %c0_150, %c0_151] : memref<1x8x8x16xf32, #tpu.memory_space<vmem>>, vector<1x8x8x16xf32>
    tpu.vector_store %arg8[%c0_148, %c0_149, %c0_150, %c0_151], %503 {strides = array<i32>} : memref<1x8x8x16xf32, #tpu.memory_space<vmem>>, vector<1x8x8x16xf32>,
    return
  }
  func.func @transform_0(%arg0: i32) -> (i32, i32, i32, i32) {
    %c0_i32 = arith.constant 0 : i32
    %c0_i32_0 = arith.constant 0 : i32
    %c0_i32_1 = arith.constant 0 : i32
    %c0_i32_2 = arith.constant 0 : i32
    return %arg0, %c0_i32, %c0_i32_0, %c0_i32_1 : i32, i32, i32, i32
  }
  func.func @transform_1(%arg0: i32) -> (i32, i32) {
    %c0_i32 = arith.constant 0 : i32
    %c0_i32_0 = arith.constant 0 : i32
    %c0_i32_1 = arith.constant 0 : i32
    return %c0_i32, %c0_i32_0 : i32, i32
  }
  func.func @transform_2(%arg0: i32) -> (i32, i32) {
    %c0_i32 = arith.constant 0 : i32
    %c0_i32_0 = arith.constant 0 : i32
    %c0_i32_1 = arith.constant 0 : i32
    return %c0_i32, %c0_i32_0 : i32, i32
  }
  func.func @transform_3(%arg0: i32) -> (i32, i32) {
    %c0_i32 = arith.constant 0 : i32
    %c0_i32_0 = arith.constant 0 : i32
    %c0_i32_1 = arith.constant 0 : i32
    return %c0_i32, %c0_i32_0 : i32, i32
  }
  func.func @transform_4(%arg0: i32) -> (i32, i32) {
    %c0_i32 = arith.constant 0 : i32
    %c0_i32_0 = arith.constant 0 : i32
    %c0_i32_1 = arith.constant 0 : i32
    return %c0_i32, %c0_i32_0 : i32, i32
  }
  func.func @transform_5(%arg0: i32) -> (i32, i32) {
    %c0_i32 = arith.constant 0 : i32
    %c0_i32_0 = arith.constant 0 : i32
    %c0_i32_1 = arith.constant 0 : i32
    return %c0_i32, %c0_i32_0 : i32, i32
  }
  func.func @transform_6(%arg0: i32) -> (i32, i32) {
    %c0_i32 = arith.constant 0 : i32
    %c0_i32_0 = arith.constant 0 : i32
    %c0_i32_1 = arith.constant 0 : i32
    return %c0_i32, %c0_i32_0 : i32, i32
  }
  func.func @transform_7(%arg0: i32) -> (i32, i32, i32, i32) {
    %c0_i32 = arith.constant 0 : i32
    %c0_i32_0 = arith.constant 0 : i32
    %c0_i32_1 = arith.constant 0 : i32
    %c0_i32_2 = arith.constant 0 : i32
    return %arg0, %c0_i32, %c0_i32_0, %c0_i32_1 : i32, i32, i32, i32
  }
}

module attributes {stable_mosaic.version = 11 : i64} {
  func.func @_mha_chain_kernel(%arg0: i32, %arg1: i32, %arg2: memref<16x8x16xf32, #tpu.memory_space<vmem>>, %arg3: memref<8x16xf32, #tpu.memory_space<vmem>>, %arg4: memref<1x16x48xbf16, #tpu.memory_space<vmem>>, %arg5: memref<1x16x16xbf16, #tpu.memory_space<vmem>>, %arg6: memref<1x1x16xf32, #tpu.memory_space<vmem>>, %arg7: memref<1x1x16xf32, #tpu.memory_space<vmem>>, %arg8: memref<1x16x64xbf16, #tpu.memory_space<vmem>>, %arg9: memref<1x1x64xf32, #tpu.memory_space<vmem>>, %arg10: memref<1x64x16xbf16, #tpu.memory_space<vmem>>, %arg11: memref<1x1x16xf32, #tpu.memory_space<vmem>>, %arg12: memref<1x1x16xf32, #tpu.memory_space<vmem>>, %arg13: memref<1x1x16xf32, #tpu.memory_space<vmem>>, %arg14: memref<16x8x16xf32, #tpu.memory_space<vmem>>, %arg15: memref<128x16xf32, #tpu.memory_space<vmem>>) attributes {dimension_semantics = [#tpu.dimension_semantics<parallel>, #tpu.dimension_semantics<arbitrary>], iteration_bounds = array<i64: 1, 2>, scalar_prefetch = 0 : i64, scratch_operands = 1 : i64, tpu.core_type = #tpu.core_type<tc>, window_params = [{transform_indices = @transform_0, window_bounds = array<i64: 16, 8, 16>}, {pipeline_mode = #tpu.pipeline_mode<synchronous>, transform_indices = @transform_1, window_bounds = array<i64: 8, 16>}, {transform_indices = @transform_2, window_bounds = array<i64: 1, 16, 48>}, {transform_indices = @transform_3, window_bounds = array<i64: 1, 16, 16>}, {transform_indices = @transform_4, window_bounds = array<i64: 1, 1, 16>}, {transform_indices = @transform_5, window_bounds = array<i64: 1, 1, 16>}, {transform_indices = @transform_6, window_bounds = array<i64: 1, 16, 64>}, {transform_indices = @transform_7, window_bounds = array<i64: 1, 1, 64>}, {transform_indices = @transform_8, window_bounds = array<i64: 1, 64, 16>}, {transform_indices = @transform_9, window_bounds = array<i64: 1, 1, 16>}, {transform_indices = @transform_10, window_bounds = array<i64: 1, 1, 16>}, {transform_indices = @transform_11, window_bounds = array<i64: 1, 1, 16>}, {transform_indices = @transform_12, window_bounds = array<i64: 16, 8, 16>}]} {
    %c0_i32 = arith.constant 0 : i32
    %0 = arith.cmpi eq, %arg1, %c0_i32 : i32
    %1 = arith.extui %0 : i1 to i32
    %c0_i32_0 = arith.constant 0 : i32
    %2 = arith.cmpi ne, %1, %c0_i32_0 : i32
    scf.if %2 {
      %c0_61 = arith.constant 0 : index
      %c0_62 = arith.constant 0 : index
      %c0_63 = arith.constant 0 : index
      %150 = vector.load %arg2[%c0_61, %c0_62, %c0_63] : memref<16x8x16xf32, #tpu.memory_space<vmem>>, vector<16x8x16xf32>
      %c0_64 = arith.constant 0 : index
      %c0_65 = arith.constant 0 : index
      %151 = vector.load %arg3[%c0_64, %c0_65] : memref<8x16xf32, #tpu.memory_space<vmem>>, vector<8x16xf32>
      %152 = vector.shape_cast %151 : vector<8x16xf32> to vector<1x8x16xf32>
      %153 = vector.broadcast %152 : vector<1x8x16xf32> to vector<16x8x16xf32>
      %154 = arith.addf %150, %153 : vector<16x8x16xf32>
      %155 = vector.shape_cast %154 : vector<16x8x16xf32> to vector<128x16xf32>
      %c0_66 = arith.constant 0 : index
      %c0_67 = arith.constant 0 : index
      %156 = vector.load %arg15[%c0_66, %c0_67] : memref<128x16xf32, #tpu.memory_space<vmem>>, vector<128x16xf32>
      tpu.vector_store %arg15[%c0_66, %c0_67], %155 {strides = array<i32>} : memref<128x16xf32, #tpu.memory_space<vmem>>, vector<128x16xf32>,
    } else {
    }
    %c0 = arith.constant 0 : index
    %c0_1 = arith.constant 0 : index
    %3 = vector.load %arg15[%c0, %c0_1] : memref<128x16xf32, #tpu.memory_space<vmem>>, vector<128x16xf32>
    %4 = arith.truncf %3 : vector<128x16xf32> to vector<128x16xbf16>
    %c0_2 = arith.constant 0 : index
    %c0_3 = arith.constant 0 : index
    %c0_4 = arith.constant 0 : index
    %5 = vector.load %arg4[%c0_2, %c0_3, %c0_4] : memref<1x16x48xbf16, #tpu.memory_space<vmem>>, vector<1x16x48xbf16>
    %6 = vector.shape_cast %5 : vector<1x16x48xbf16> to vector<16x48xbf16>
    %cst = arith.constant dense<0.000000e+00> : vector<128x48xf32>
    %7 = tpu.matmul %4, %6, %cst {dimension_numbers = #tpu.dot_dimension_numbers<[1], [0], [0], [1], [0, 0, 1, 1], [], []>} : vector<128x16xbf16>, vector<16x48xbf16>, vector<128x48xf32> -> vector<128x48xf32>
    %8 = tpu.iota {dimensions = array<i32: 0>} : vector<8x8xi32>
    %9 = tpu.iota {dimensions = array<i32: 1>} : vector<8x8xi32>
    %10 = arith.cmpi sgt, %9, %8 : vector<8x8xi32>
    %cst_5 = arith.constant -1.000000e+30 : f32
    %cst_6 = arith.constant 0.000000e+00 : f32
    %11 = vector.broadcast %cst_5 : f32 to vector<8x8xf32>
    %12 = vector.broadcast %cst_6 : f32 to vector<8x8xf32>
    %13 = arith.select %10, %11, %12 : vector<8x8xi1>, vector<8x8xf32>
    %14 = vector.shape_cast %13 : vector<8x8xf32> to vector<1x8x8xf32>
    %15 = vector.shape_cast %14 : vector<1x8x8xf32> to vector<1x8x8xf32>
    %16 = vector.broadcast %15 : vector<1x8x8xf32> to vector<16x8x8xf32>
    %17 = vector.extract_strided_slice %7 {offsets = [0, 0], sizes = [128, 8], strides = [1, 1]} : vector<128x48xf32> to vector<128x8xf32>
    %18 = vector.shape_cast %17 : vector<128x8xf32> to vector<16x8x8xf32>
    %19 = arith.truncf %18 : vector<16x8x8xf32> to vector<16x8x8xbf16>
    %20 = vector.extract_strided_slice %7 {offsets = [0, 16], sizes = [128, 8], strides = [1, 1]} : vector<128x48xf32> to vector<128x8xf32>
    %21 = vector.shape_cast %20 : vector<128x8xf32> to vector<16x8x8xf32>
    %22 = arith.truncf %21 : vector<16x8x8xf32> to vector<16x8x8xbf16>
    %23 = vector.extract_strided_slice %7 {offsets = [0, 32], sizes = [128, 8], strides = [1, 1]} : vector<128x48xf32> to vector<128x8xf32>
    %24 = vector.shape_cast %23 : vector<128x8xf32> to vector<16x8x8xf32>
    %25 = arith.truncf %24 : vector<16x8x8xf32> to vector<16x8x8xbf16>
    "tpu.trace_start"() <{level = 10 : i32, message = "bqd,bkd->bqk"}> : () -> ()
    %cst_7 = arith.constant dense<0.000000e+00> : vector<16x8x8xf32>
    %26 = tpu.matmul %19, %22, %cst_7 {dimension_numbers = #tpu.dot_dimension_numbers<[2], [2], [1], [1], [0, 0, 0, 1, 1, 1], [0], [0]>} : vector<16x8x8xbf16>, vector<16x8x8xbf16>, vector<16x8x8xf32> -> vector<16x8x8xf32>
    "tpu.trace_stop"() : () -> ()
    %cst_8 = arith.constant 0.353553385 : f32
    %27 = vector.broadcast %cst_8 : f32 to vector<16x8x8xf32>
    %28 = arith.mulf %26, %27 : vector<16x8x8xf32>
    %29 = arith.addf %28, %16 : vector<16x8x8xf32>
    %cst_9 = arith.constant dense<0xFF800000> : vector<16x8xf32>
    %30 = vector.multi_reduction <maximumf>, %29, %cst_9 [2] : vector<16x8x8xf32> to vector<16x8xf32>
    %31 = vector.shape_cast %30 : vector<16x8xf32> to vector<16x8x1xf32>
    %32 = vector.broadcast %31 : vector<16x8x1xf32> to vector<16x8x8xf32>
    %33 = arith.subf %29, %32 : vector<16x8x8xf32>
    %34 = math.exp %33 : vector<16x8x8xf32>
    %cst_10 = arith.constant dense<0.000000e+00> : vector<16x8xf32>
    %35 = vector.multi_reduction <add>, %34, %cst_10 [2] : vector<16x8x8xf32> to vector<16x8xf32>
    %36 = vector.shape_cast %35 : vector<16x8xf32> to vector<16x8x1xf32>
    %37 = tpu.reciprocal %36 {approx = true} : vector<16x8x1xf32> -> vector<16x8x1xf32>
    %38 = vector.broadcast %37 : vector<16x8x1xf32> to vector<16x8x8xf32>
    %39 = arith.mulf %34, %38 : vector<16x8x8xf32>
    %40 = arith.truncf %39 : vector<16x8x8xf32> to vector<16x8x8xbf16>
    "tpu.trace_start"() <{level = 10 : i32, message = "bqk,bkd->bqd"}> : () -> ()
    %cst_11 = arith.constant dense<0.000000e+00> : vector<16x8x8xf32>
    %41 = tpu.matmul %40, %25, %cst_11 {dimension_numbers = #tpu.dot_dimension_numbers<[2], [1], [1], [2], [0, 0, 0, 1, 1, 2], [0], [0]>} : vector<16x8x8xbf16>, vector<16x8x8xbf16>, vector<16x8x8xf32> -> vector<16x8x8xf32>
    "tpu.trace_stop"() : () -> ()
    %42 = vector.shape_cast %41 : vector<16x8x8xf32> to vector<128x8xf32>
    %43 = vector.extract_strided_slice %7 {offsets = [0, 8], sizes = [128, 8], strides = [1, 1]} : vector<128x48xf32> to vector<128x8xf32>
    %44 = vector.shape_cast %43 : vector<128x8xf32> to vector<16x8x8xf32>
    %45 = arith.truncf %44 : vector<16x8x8xf32> to vector<16x8x8xbf16>
    %46 = vector.extract_strided_slice %7 {offsets = [0, 24], sizes = [128, 8], strides = [1, 1]} : vector<128x48xf32> to vector<128x8xf32>
    %47 = vector.shape_cast %46 : vector<128x8xf32> to vector<16x8x8xf32>
    %48 = arith.truncf %47 : vector<16x8x8xf32> to vector<16x8x8xbf16>
    %49 = vector.extract_strided_slice %7 {offsets = [0, 40], sizes = [128, 8], strides = [1, 1]} : vector<128x48xf32> to vector<128x8xf32>
    %50 = vector.shape_cast %49 : vector<128x8xf32> to vector<16x8x8xf32>
    %51 = arith.truncf %50 : vector<16x8x8xf32> to vector<16x8x8xbf16>
    "tpu.trace_start"() <{level = 10 : i32, message = "bqd,bkd->bqk"}> : () -> ()
    %cst_12 = arith.constant dense<0.000000e+00> : vector<16x8x8xf32>
    %52 = tpu.matmul %45, %48, %cst_12 {dimension_numbers = #tpu.dot_dimension_numbers<[2], [2], [1], [1], [0, 0, 0, 1, 1, 1], [0], [0]>} : vector<16x8x8xbf16>, vector<16x8x8xbf16>, vector<16x8x8xf32> -> vector<16x8x8xf32>
    "tpu.trace_stop"() : () -> ()
    %cst_13 = arith.constant 0.353553385 : f32
    %53 = vector.broadcast %cst_13 : f32 to vector<16x8x8xf32>
    %54 = arith.mulf %52, %53 : vector<16x8x8xf32>
    %55 = arith.addf %54, %16 : vector<16x8x8xf32>
    %cst_14 = arith.constant dense<0xFF800000> : vector<16x8xf32>
    %56 = vector.multi_reduction <maximumf>, %55, %cst_14 [2] : vector<16x8x8xf32> to vector<16x8xf32>
    %57 = vector.shape_cast %56 : vector<16x8xf32> to vector<16x8x1xf32>
    %58 = vector.broadcast %57 : vector<16x8x1xf32> to vector<16x8x8xf32>
    %59 = arith.subf %55, %58 : vector<16x8x8xf32>
    %60 = math.exp %59 : vector<16x8x8xf32>
    %cst_15 = arith.constant dense<0.000000e+00> : vector<16x8xf32>
    %61 = vector.multi_reduction <add>, %60, %cst_15 [2] : vector<16x8x8xf32> to vector<16x8xf32>
    %62 = vector.shape_cast %61 : vector<16x8xf32> to vector<16x8x1xf32>
    %63 = tpu.reciprocal %62 {approx = true} : vector<16x8x1xf32> -> vector<16x8x1xf32>
    %64 = vector.broadcast %63 : vector<16x8x1xf32> to vector<16x8x8xf32>
    %65 = arith.mulf %60, %64 : vector<16x8x8xf32>
    %66 = arith.truncf %65 : vector<16x8x8xf32> to vector<16x8x8xbf16>
    "tpu.trace_start"() <{level = 10 : i32, message = "bqk,bkd->bqd"}> : () -> ()
    %cst_16 = arith.constant dense<0.000000e+00> : vector<16x8x8xf32>
    %67 = tpu.matmul %66, %51, %cst_16 {dimension_numbers = #tpu.dot_dimension_numbers<[2], [1], [1], [2], [0, 0, 0, 1, 1, 2], [0], [0]>} : vector<16x8x8xbf16>, vector<16x8x8xbf16>, vector<16x8x8xf32> -> vector<16x8x8xf32>
    "tpu.trace_stop"() : () -> ()
    %68 = vector.shape_cast %67 : vector<16x8x8xf32> to vector<128x8xf32>
    %69 = tpu.concatenate %42, %68 in 1 : vector<128x8xf32>, vector<128x8xf32> -> vector<128x16xf32>
    %70 = arith.truncf %69 : vector<128x16xf32> to vector<128x16xbf16>
    %c0_17 = arith.constant 0 : index
    %c0_18 = arith.constant 0 : index
    %c0_19 = arith.constant 0 : index
    %71 = vector.load %arg5[%c0_17, %c0_18, %c0_19] : memref<1x16x16xbf16, #tpu.memory_space<vmem>>, vector<1x16x16xbf16>
    %72 = vector.shape_cast %71 : vector<1x16x16xbf16> to vector<16x16xbf16>
    %cst_20 = arith.constant dense<0.000000e+00> : vector<128x16xf32>
    %73 = tpu.matmul %70, %72, %cst_20 {dimension_numbers = #tpu.dot_dimension_numbers<[1], [0], [0], [1], [0, 0, 1, 1], [], []>} : vector<128x16xbf16>, vector<16x16xbf16>, vector<128x16xf32> -> vector<128x16xf32>
    %74 = arith.addf %3, %73 : vector<128x16xf32>
    %c0_21 = arith.constant 0 : index
    %c0_22 = arith.constant 0 : index
    %c0_23 = arith.constant 0 : index
    %75 = vector.load %arg6[%c0_21, %c0_22, %c0_23] : memref<1x1x16xf32, #tpu.memory_space<vmem>>, vector<1x1x16xf32>
    %76 = vector.shape_cast %75 : vector<1x1x16xf32> to vector<1x16xf32>
    %c0_24 = arith.constant 0 : index
    %c0_25 = arith.constant 0 : index
    %c0_26 = arith.constant 0 : index
    %77 = vector.load %arg7[%c0_24, %c0_25, %c0_26] : memref<1x1x16xf32, #tpu.memory_space<vmem>>, vector<1x1x16xf32>
    %78 = vector.shape_cast %77 : vector<1x1x16xf32> to vector<1x16xf32>
    %cst_27 = arith.constant dense<0.000000e+00> : vector<128xf32>
    %79 = vector.multi_reduction <add>, %74, %cst_27 [1] : vector<128x16xf32> to vector<128xf32>
    %80 = vector.shape_cast %79 : vector<128xf32> to vector<128x1xf32>
    %cst_28 = arith.constant 1.600000e+01 : f32
    %81 = vector.broadcast %cst_28 : f32 to vector<128x1xf32>
    %82 = arith.divf %80, %81 : vector<128x1xf32>
    %83 = vector.broadcast %82 : vector<128x1xf32> to vector<128x16xf32>
    %84 = arith.subf %74, %83 : vector<128x16xf32>
    %85 = arith.mulf %84, %84 : vector<128x16xf32>
    %cst_29 = arith.constant dense<0.000000e+00> : vector<128xf32>
    %86 = vector.multi_reduction <add>, %85, %cst_29 [1] : vector<128x16xf32> to vector<128xf32>
    %87 = vector.shape_cast %86 : vector<128xf32> to vector<128x1xf32>
    %cst_30 = arith.constant 1.600000e+01 : f32
    %88 = vector.broadcast %cst_30 : f32 to vector<128x1xf32>
    %89 = arith.divf %87, %88 : vector<128x1xf32>
    %90 = vector.broadcast %82 : vector<128x1xf32> to vector<128x16xf32>
    %91 = arith.subf %74, %90 : vector<128x16xf32>
    %cst_31 = arith.constant 9.99999997E-7 : f32
    %92 = vector.broadcast %cst_31 : f32 to vector<128x1xf32>
    %93 = arith.addf %89, %92 : vector<128x1xf32>
    %94 = math.rsqrt %93 : vector<128x1xf32>
    %95 = vector.broadcast %94 : vector<128x1xf32> to vector<128x16xf32>
    %96 = arith.mulf %91, %95 : vector<128x16xf32>
    %97 = vector.broadcast %76 : vector<1x16xf32> to vector<128x16xf32>
    %98 = arith.mulf %96, %97 : vector<128x16xf32>
    %99 = vector.broadcast %78 : vector<1x16xf32> to vector<128x16xf32>
    %100 = arith.addf %98, %99 : vector<128x16xf32>
    %101 = arith.truncf %100 : vector<128x16xf32> to vector<128x16xbf16>
    %c0_32 = arith.constant 0 : index
    %c0_33 = arith.constant 0 : index
    %c0_34 = arith.constant 0 : index
    %102 = vector.load %arg8[%c0_32, %c0_33, %c0_34] : memref<1x16x64xbf16, #tpu.memory_space<vmem>>, vector<1x16x64xbf16>
    %103 = vector.shape_cast %102 : vector<1x16x64xbf16> to vector<16x64xbf16>
    %cst_35 = arith.constant dense<0.000000e+00> : vector<128x64xf32>
    %104 = tpu.matmul %101, %103, %cst_35 {dimension_numbers = #tpu.dot_dimension_numbers<[1], [0], [0], [1], [0, 0, 1, 1], [], []>} : vector<128x16xbf16>, vector<16x64xbf16>, vector<128x64xf32> -> vector<128x64xf32>
    %c0_36 = arith.constant 0 : index
    %c0_37 = arith.constant 0 : index
    %c0_38 = arith.constant 0 : index
    %105 = vector.load %arg9[%c0_36, %c0_37, %c0_38] : memref<1x1x64xf32, #tpu.memory_space<vmem>>, vector<1x1x64xf32>
    %106 = vector.shape_cast %105 : vector<1x1x64xf32> to vector<1x64xf32>
    %107 = vector.broadcast %106 : vector<1x64xf32> to vector<128x64xf32>
    %108 = arith.addf %104, %107 : vector<128x64xf32>
    %cst_39 = arith.constant 0.000000e+00 : f32
    %109 = vector.broadcast %cst_39 : f32 to vector<128x64xf32>
    %110 = arith.maximumf %108, %109 : vector<128x64xf32>
    %111 = arith.truncf %110 : vector<128x64xf32> to vector<128x64xbf16>
    %c0_40 = arith.constant 0 : index
    %c0_41 = arith.constant 0 : index
    %c0_42 = arith.constant 0 : index
    %112 = vector.load %arg10[%c0_40, %c0_41, %c0_42] : memref<1x64x16xbf16, #tpu.memory_space<vmem>>, vector<1x64x16xbf16>
    %113 = vector.shape_cast %112 : vector<1x64x16xbf16> to vector<64x16xbf16>
    %cst_43 = arith.constant dense<0.000000e+00> : vector<128x16xf32>
    %114 = tpu.matmul %111, %113, %cst_43 {dimension_numbers = #tpu.dot_dimension_numbers<[1], [0], [0], [1], [0, 0, 1, 1], [], []>} : vector<128x64xbf16>, vector<64x16xbf16>, vector<128x16xf32> -> vector<128x16xf32>
    %c0_44 = arith.constant 0 : index
    %c0_45 = arith.constant 0 : index
    %c0_46 = arith.constant 0 : index
    %115 = vector.load %arg11[%c0_44, %c0_45, %c0_46] : memref<1x1x16xf32, #tpu.memory_space<vmem>>, vector<1x1x16xf32>
    %116 = vector.shape_cast %115 : vector<1x1x16xf32> to vector<1x16xf32>
    %117 = vector.broadcast %116 : vector<1x16xf32> to vector<128x16xf32>
    %118 = arith.addf %114, %117 : vector<128x16xf32>
    %119 = arith.addf %100, %118 : vector<128x16xf32>
    %c0_47 = arith.constant 0 : index
    %c0_48 = arith.constant 0 : index
    %c0_49 = arith.constant 0 : index
    %120 = vector.load %arg12[%c0_47, %c0_48, %c0_49] : memref<1x1x16xf32, #tpu.memory_space<vmem>>, vector<1x1x16xf32>
    %121 = vector.shape_cast %120 : vector<1x1x16xf32> to vector<1x16xf32>
    %c0_50 = arith.constant 0 : index
    %c0_51 = arith.constant 0 : index
    %c0_52 = arith.constant 0 : index
    %122 = vector.load %arg13[%c0_50, %c0_51, %c0_52] : memref<1x1x16xf32, #tpu.memory_space<vmem>>, vector<1x1x16xf32>
    %123 = vector.shape_cast %122 : vector<1x1x16xf32> to vector<1x16xf32>
    %cst_53 = arith.constant dense<0.000000e+00> : vector<128xf32>
    %124 = vector.multi_reduction <add>, %119, %cst_53 [1] : vector<128x16xf32> to vector<128xf32>
    %125 = vector.shape_cast %124 : vector<128xf32> to vector<128x1xf32>
    %cst_54 = arith.constant 1.600000e+01 : f32
    %126 = vector.broadcast %cst_54 : f32 to vector<128x1xf32>
    %127 = arith.divf %125, %126 : vector<128x1xf32>
    %128 = vector.broadcast %127 : vector<128x1xf32> to vector<128x16xf32>
    %129 = arith.subf %119, %128 : vector<128x16xf32>
    %130 = arith.mulf %129, %129 : vector<128x16xf32>
    %cst_55 = arith.constant dense<0.000000e+00> : vector<128xf32>
    %131 = vector.multi_reduction <add>, %130, %cst_55 [1] : vector<128x16xf32> to vector<128xf32>
    %132 = vector.shape_cast %131 : vector<128xf32> to vector<128x1xf32>
    %cst_56 = arith.constant 1.600000e+01 : f32
    %133 = vector.broadcast %cst_56 : f32 to vector<128x1xf32>
    %134 = arith.divf %132, %133 : vector<128x1xf32>
    %135 = vector.broadcast %127 : vector<128x1xf32> to vector<128x16xf32>
    %136 = arith.subf %119, %135 : vector<128x16xf32>
    %cst_57 = arith.constant 9.99999997E-7 : f32
    %137 = vector.broadcast %cst_57 : f32 to vector<128x1xf32>
    %138 = arith.addf %134, %137 : vector<128x1xf32>
    %139 = math.rsqrt %138 : vector<128x1xf32>
    %140 = vector.broadcast %139 : vector<128x1xf32> to vector<128x16xf32>
    %141 = arith.mulf %136, %140 : vector<128x16xf32>
    %142 = vector.broadcast %121 : vector<1x16xf32> to vector<128x16xf32>
    %143 = arith.mulf %141, %142 : vector<128x16xf32>
    %144 = vector.broadcast %123 : vector<1x16xf32> to vector<128x16xf32>
    %145 = arith.addf %143, %144 : vector<128x16xf32>
    %c0_58 = arith.constant 0 : index
    %c0_59 = arith.constant 0 : index
    %146 = vector.load %arg15[%c0_58, %c0_59] : memref<128x16xf32, #tpu.memory_space<vmem>>, vector<128x16xf32>
    tpu.vector_store %arg15[%c0_58, %c0_59], %145 {strides = array<i32>} : memref<128x16xf32, #tpu.memory_space<vmem>>, vector<128x16xf32>,
    %c1_i32 = arith.constant 1 : i32
    %147 = arith.cmpi eq, %arg1, %c1_i32 : i32
    %148 = arith.extui %147 : i1 to i32
    %c0_i32_60 = arith.constant 0 : i32
    %149 = arith.cmpi ne, %148, %c0_i32_60 : i32
    scf.if %149 {
      %150 = vector.shape_cast %145 : vector<128x16xf32> to vector<16x8x16xf32>
      %c0_61 = arith.constant 0 : index
      %c0_62 = arith.constant 0 : index
      %c0_63 = arith.constant 0 : index
      %151 = vector.load %arg14[%c0_61, %c0_62, %c0_63] : memref<16x8x16xf32, #tpu.memory_space<vmem>>, vector<16x8x16xf32>
      tpu.vector_store %arg14[%c0_61, %c0_62, %c0_63], %150 {strides = array<i32>} : memref<16x8x16xf32, #tpu.memory_space<vmem>>, vector<16x8x16xf32>,
    } else {
    }
    return
  }
  func.func @transform_0(%arg0: i32, %arg1: i32) -> (i32, i32, i32) {
    %c0_i32 = arith.constant 0 : i32
    %c0_i32_0 = arith.constant 0 : i32
    %c0_i32_1 = arith.constant 0 : i32
    return %arg0, %c0_i32, %c0_i32_0 : i32, i32, i32
  }
  func.func @transform_1(%arg0: i32, %arg1: i32) -> (i32, i32) {
    %c0_i32 = arith.constant 0 : i32
    %c0_i32_0 = arith.constant 0 : i32
    %c0_i32_1 = arith.constant 0 : i32
    return %c0_i32, %c0_i32_0 : i32, i32
  }
  func.func @transform_2(%arg0: i32, %arg1: i32) -> (i32, i32, i32) {
    %c0_i32 = arith.constant 0 : i32
    %c0_i32_0 = arith.constant 0 : i32
    %c0_i32_1 = arith.constant 0 : i32
    return %arg1, %c0_i32, %c0_i32_0 : i32, i32, i32
  }
  func.func @transform_3(%arg0: i32, %arg1: i32) -> (i32, i32, i32) {
    %c0_i32 = arith.constant 0 : i32
    %c0_i32_0 = arith.constant 0 : i32
    %c0_i32_1 = arith.constant 0 : i32
    return %arg1, %c0_i32, %c0_i32_0 : i32, i32, i32
  }
  func.func @transform_4(%arg0: i32, %arg1: i32) -> (i32, i32, i32) {
    %c0_i32 = arith.constant 0 : i32
    %c0_i32_0 = arith.constant 0 : i32
    %c0_i32_1 = arith.constant 0 : i32
    return %arg1, %c0_i32, %c0_i32_0 : i32, i32, i32
  }
  func.func @transform_5(%arg0: i32, %arg1: i32) -> (i32, i32, i32) {
    %c0_i32 = arith.constant 0 : i32
    %c0_i32_0 = arith.constant 0 : i32
    %c0_i32_1 = arith.constant 0 : i32
    return %arg1, %c0_i32, %c0_i32_0 : i32, i32, i32
  }
  func.func @transform_6(%arg0: i32, %arg1: i32) -> (i32, i32, i32) {
    %c0_i32 = arith.constant 0 : i32
    %c0_i32_0 = arith.constant 0 : i32
    %c0_i32_1 = arith.constant 0 : i32
    return %arg1, %c0_i32, %c0_i32_0 : i32, i32, i32
  }
  func.func @transform_7(%arg0: i32, %arg1: i32) -> (i32, i32, i32) {
    %c0_i32 = arith.constant 0 : i32
    %c0_i32_0 = arith.constant 0 : i32
    %c0_i32_1 = arith.constant 0 : i32
    return %arg1, %c0_i32, %c0_i32_0 : i32, i32, i32
  }
  func.func @transform_8(%arg0: i32, %arg1: i32) -> (i32, i32, i32) {
    %c0_i32 = arith.constant 0 : i32
    %c0_i32_0 = arith.constant 0 : i32
    %c0_i32_1 = arith.constant 0 : i32
    return %arg1, %c0_i32, %c0_i32_0 : i32, i32, i32
  }
  func.func @transform_9(%arg0: i32, %arg1: i32) -> (i32, i32, i32) {
    %c0_i32 = arith.constant 0 : i32
    %c0_i32_0 = arith.constant 0 : i32
    %c0_i32_1 = arith.constant 0 : i32
    return %arg1, %c0_i32, %c0_i32_0 : i32, i32, i32
  }
  func.func @transform_10(%arg0: i32, %arg1: i32) -> (i32, i32, i32) {
    %c0_i32 = arith.constant 0 : i32
    %c0_i32_0 = arith.constant 0 : i32
    %c0_i32_1 = arith.constant 0 : i32
    return %arg1, %c0_i32, %c0_i32_0 : i32, i32, i32
  }
  func.func @transform_11(%arg0: i32, %arg1: i32) -> (i32, i32, i32) {
    %c0_i32 = arith.constant 0 : i32
    %c0_i32_0 = arith.constant 0 : i32
    %c0_i32_1 = arith.constant 0 : i32
    return %arg1, %c0_i32, %c0_i32_0 : i32, i32, i32
  }
  func.func @transform_12(%arg0: i32, %arg1: i32) -> (i32, i32, i32) {
    %c0_i32 = arith.constant 0 : i32
    %c0_i32_0 = arith.constant 0 : i32
    %c0_i32_1 = arith.constant 0 : i32
    return %arg0, %c0_i32, %c0_i32_0 : i32, i32, i32
  }
}

</mosaic_0001>

<llo_original>
// kernel: dpran_forward.5
$region0: #{dpran_forward.5}
  #allocation0 [shape = 'u32[]', space=smem, size = 0x4, offset = 0x4, fixed_abs, tag = 'smem constant byte address 0x4 - core index']
  #allocation1 [shape = 'u32[144,128]{1,0:T(1,128)}', space=vmem, size = 0x12000, scoped, tag = 'internal scratch']
  %s0 = inlined_call_operand.hbm [shape: f32[2,8,8,16], index: 0, kind: input, shape index: {}]
  %s1 = inlined_call_operand.hbm [shape: f32[2,8,8,16], index: 1, kind: input, shape index: {}]
  %s2 = inlined_call_operand.hbm [shape: bf16[16,16], index: 2, kind: input, shape index: {}]
  %s3 = inlined_call_operand.hbm [shape: f32[1,16], index: 3, kind: input, shape index: {}]
  %s4 = inlined_call_operand.hbm [shape: f32[2,8,8,16], index: 4, kind: output, shape index: {}]
  %s5 = sld [smem:[#allocation0]]
  $region65: #{dpran_forward.5} parent=0
    _
  %s7 = ssub.s32 1, %s5
  %s8 = scalar_select 0, %s7, %s5
  $region1: #{dpran_forward.5} parent=0
    #allocation2 [shape = 'u8[65536]{0}', space=vmem, size = 0x10000, scoped, tag = 'input window, operand 0']
    #allocation3 [shape = 's32[2]{0}', space=sflag, size = 0x8, scoped, tag = 'scoped memory for dpran_forward.5']
    #allocation4 [shape = 's32[2]{0}', space=sflag, size = 0x8, scoped, tag = 'scoped memory for dpran_forward.5']
    #allocation5 [shape = 'u8[65536]{0}', space=vmem, size = 0x10000, scoped, tag = 'input window, operand 1']
    #allocation6 [shape = 's32[2]{0}', space=sflag, size = 0x8, scoped, tag = 'scoped memory for dpran_forward.5']
    #allocation7 [shape = 'u8[4096]{0}', space=vmem, size = 0x1000, scoped, tag = 'input window, operand 2, single buffered']
    #allocation8 [shape = 'u8[512]{0}', space=vmem, size = 0x400, scoped, tag = 'input window, operand 3, single buffered']
    #allocation9 [shape = 's32[1]{0}', space=sflag, size = 0x4, scoped, tag = 'scoped memory for dpran_forward.5']
    #allocation10 [shape = 'u8[65536]{0}', space=vmem, size = 0x10000, scoped, tag = 'output window, operand 0']
    %9 = vsyncpa [#allocation3], 0
    %s10 = scalar_lea.sflag [#allocation3], 1
    %11 = vsyncpa %s10, 0
    %12 = vsyncpa [#allocation6], 0
    %s13 = scalar_lea.sflag [#allocation6], 1
    %14 = vsyncpa %s13, 0
    %15 = vsyncpa [#allocation9], 0
    %16 = vsyncpa [#allocation4], 0
    %s17 = scalar_lea.sflag [#allocation4], 1
    %18 = vsyncpa %s17, 0
    loop: start=0, step=1, limit=4
    $region2: #{dpran_forward.5} parent=1 // loop_pre_header
      _
    $region3: #{dpran_forward.5} parent=1 // loop_header
      %s20 = sphi 0, %s24
      %p21 = scmp.ge.s32.totalorder %s20, 4
      %s30 = sphi 0, %s32
      %s33 = sphi 0, %s30
      %s34 = sphi 0, %s33
      %s50 = sphi 0, %s34
      %s56 = sphi 0, %s58
      %s59 = sphi 0, %s56
      %s60 = sphi 0, %s59
      %s76 = sphi 0, %s60
      %s80 = sphi 0, %s80
      %s82 = sphi 0, %s80
      %s83 = sphi 0, %s82
      %s97 = sphi 0, %s83
      %s101 = sphi 0, %s101
      %s103 = sphi 0, %s101
      %s104 = sphi 0, %s103
      %s118 = sphi 0, %s104
      %s124 = sphi 0, %s126
      %s127 = sphi 0, %s124
      %s128 = sphi 0, %s127
      %s144 = sphi 0, %s128
    $region4: #{dpran_forward.5} parent=1 // loop_header_branch
      %23 = sbr.rel (%p21) target = $region8
    $region5: #{dpran_forward.5} parent=1 // loop_body
      %s25 = ssub.s32 %s20, 1
      %s26 = ssub.s32 %s20, 2
      %s27 = sadd.s32 %s20, 1
      %s28 = ssub.s32 %s20, %s27
      %p29 = scmp.eq.s32.totalorder %s28, 0
      %s31 = sadd.s32 %s30, 1
      %s32 = scalar_select %p29, %s30, %s31
      %p35 = pneg %p29
      %p36 = scmp.eq.s32.totalorder %s20, 1
      %p37 = por %p35, %p36
      %p38 = scmp.ne.s32.totalorder %s30, %s33
      %p39 = scmp.eq.s32.totalorder %s20, 0
      %p40 = por %p38, %p39
      %p41 = scmp.ne.s32.totalorder %s30, %s33
      %p42 = scmp.eq.s32.totalorder %s25, 1
      %p43 = por %p41, %p42
      %p44 = scmp.ne.s32.totalorder %s33, %s34
      %p45 = scmp.eq.s32.totalorder %s25, 0
      %p46 = por %p44, %p45
      %p47 = scmp.ne.s32.totalorder %s33, %s34
      %p48 = scmp.eq.s32.totalorder %s26, 1
      %p49 = por %p47, %p48
      %p51 = scmp.ne.s32.totalorder %s34, %s50
      %p52 = scmp.eq.s32.totalorder %s26, 0
      %p53 = por %p51, %p52
      %s54 = ssub.s32 %s20, %s27
      %p55 = scmp.eq.s32.totalorder %s54, 0
      %s57 = sadd.s32 %s56, 1
      %s58 = scalar_select %p55, %s56, %s57
      %p61 = pneg %p55
      %p62 = scmp.eq.s32.totalorder %s20, 1
      %p63 = por %p61, %p62
      %p64 = scmp.ne.s32.totalorder %s56, %s59
      %p65 = scmp.eq.s32.totalorder %s20, 0
      %p66 = por %p64, %p65
      %p67 = scmp.ne.s32.totalorder %s56, %s59
      %p68 = scmp.eq.s32.totalorder %s25, 1
      %p69 = por %p67, %p68
      %p70 = scmp.ne.s32.totalorder %s59, %s60
      %p71 = scmp.eq.s32.totalorder %s25, 0
      %p72 = por %p70, %p71
      %p73 = scmp.ne.s32.totalorder %s59, %s60
      %p74 = scmp.eq.s32.totalorder %s26, 1
      %p75 = por %p73, %p74
      %p77 = scmp.ne.s32.totalorder %s60, %s76
      %p78 = scmp.eq.s32.totalorder %s26, 0
      %p79 = por %p77, %p78
      %s81 = sadd.s32 %s80, 1
      %p84 = scmp.eq.s32.totalorder %s20, 1
      %p85 = scmp.ne.s32.totalorder %s80, %s82
      %p86 = scmp.eq.s32.totalorder %s20, 0
      %p87 = por %p85, %p86
      %p88 = scmp.ne.s32.totalorder %s80, %s82
      %p89 = scmp.eq.s32.totalorder %s25, 1
      %p90 = por %p88, %p89
      %p91 = scmp.ne.s32.totalorder %s82, %s83
      %p92 = scmp.eq.s32.totalorder %s25, 0
      %p93 = por %p91, %p92
      %p94 = scmp.ne.s32.totalorder %s82, %s83
      %p95 = scmp.eq.s32.totalorder %s26, 1
      %p96 = por %p94, %p95
      %p98 = scmp.ne.s32.totalorder %s83, %s97
      %p99 = scmp.eq.s32.totalorder %s26, 0
      %p100 = por %p98, %p99
      %s102 = sadd.s32 %s101, 1
      %p105 = scmp.eq.s32.totalorder %s20, 1
      %p106 = scmp.ne.s32.totalorder %s101, %s103
      %p107 = scmp.eq.s32.totalorder %s20, 0
      %p108 = por %p106, %p107
      %p109 = scmp.ne.s32.totalorder %s101, %s103
      %p110 = scmp.eq.s32.totalorder %s25, 1
      %p111 = por %p109, %p110
      %p112 = scmp.ne.s32.totalorder %s103, %s104
      %p113 = scmp.eq.s32.totalorder %s25, 0
      %p114 = por %p112, %p113
      %p115 = scmp.ne.s32.totalorder %s103, %s104
      %p116 = scmp.eq.s32.totalorder %s26, 1
      %p117 = por %p115, %p116
      %p119 = scmp.ne.s32.totalorder %s104, %s118
      %p120 = scmp.eq.s32.totalorder %s26, 0
      %p121 = por %p119, %p120
      %s122 = ssub.s32 %s20, %s27
      %p123 = scmp.eq.s32.totalorder %s122, 0
      %s125 = sadd.s32 %s124, 1
      %s126 = scalar_select %p123, %s124, %s125
      %p129 = pneg %p123
      %p130 = scmp.eq.s32.totalorder %s20, 1
      %p131 = por %p129, %p130
      %p132 = scmp.ne.s32.totalorder %s124, %s127
      %p133 = scmp.eq.s32.totalorder %s20, 0
      %p134 = por %p132, %p133
      %p135 = scmp.ne.s32.totalorder %s124, %s127
      %p136 = scmp.eq.s32.totalorder %s25, 1
      %p137 = por %p135, %p136
      %p138 = scmp.ne.s32.totalorder %s127, %s128
      %p139 = scmp.eq.s32.totalorder %s25, 0
      %p140 = por %p138, %p139
      %p141 = scmp.ne.s32.totalorder %s127, %s128
      %p142 = scmp.eq.s32.totalorder %s26, 1
      %p143 = por %p141, %p142
      %p145 = scmp.ne.s32.totalorder %s128, %s144
      %p146 = scmp.eq.s32.totalorder %s26, 0
      %p147 = por %p145, %p146
      %p148 = scmp.le.s32.totalorder 1, %s20
      %p149 = scmp.lt.s32.totalorder %s20, 3
      %p150 = pnand %p148, %p149
      %p151 = pneg %p150
      // Predicated region
      $region9: #{dpran_forward.5} parent=5 // pred_check
        _
      $region10: #{dpran_forward.5} parent=5 // pred_check_branch
        %153 = sbr.rel (%p150) target = $region12
      $region11: #{dpran_forward.5} parent=5 // pred_region
        %s154 = ssub.s32 %s20, 1
        // Predicated region
        $region13: #{dpran_forward.5} parent=11 // pred_check
          %p155 = pneg %p93
        $region14: #{dpran_forward.5} parent=11 // pred_check_branch
          %157 = sbr.rel (%p155) target = $region16
        $region15: #{dpran_forward.5} parent=11 // pred_region
          %s159 = ssub.s32 128, 128
          %160 = vsyncadd [#allocation6], %s159
          %s161 = sshll.u32 [#allocation7], 4
          %s162 = int_to_ptr.vmem [resolvable:$true] %s161
          %167 = dma.hbm_to_vmem [thread:$0]  %s2, 128, %s162, [#allocation6], 64, 64, 4
        $region16: #{dpran_forward.5} parent=11 // pred_fallthru
          _
        // Predicated region
        $region17: #{dpran_forward.5} parent=11 // pred_check
          %p168 = pneg %p114
        $region18: #{dpran_forward.5} parent=11 // pred_check_branch
          %170 = sbr.rel (%p168) target = $region20
        $region19: #{dpran_forward.5} parent=11 // pred_region
          %s172 = ssub.s32 16, 16
          %173 = vsyncadd [#allocation9], %s172
          %s175 = sshll.u32 [#allocation8], 4
          %s176 = int_to_ptr.vmem [resolvable:$true] %s175
          %178 = dma.hbm_to_vmem [thread:$0]  %s3, 16, %s176, [#allocation9]
        $region20: #{dpran_forward.5} parent=11 // pred_fallthru
          _
      $region12: #{dpran_forward.5} parent=5 // pred_fallthru
        _
      %p179 = scmp.lt.s32.totalorder %s20, 2
      // Predicated region
      $region21: #{dpran_forward.5} parent=5 // pred_check
        %p180 = pneg %p179
      $region22: #{dpran_forward.5} parent=5 // pred_check_branch
        %182 = sbr.rel (%p180) target = $region24
      $region23: #{dpran_forward.5} parent=5 // pred_region
        // Predicated region
        $region25: #{dpran_forward.5} parent=23 // pred_check
          %p183 = pneg %p40
        $region26: #{dpran_forward.5} parent=23 // pred_check_branch
          %185 = sbr.rel (%p183) target = $region28
        $region27: #{dpran_forward.5} parent=23 // pred_region
          %s186 = sand.u32 %s30, 1
          %s187 = scalar_lea.sflag [#allocation3], %s186
          %s188 = sand.u32 %s30, 1
          %s189 = smul.addr %s188, 64
          %s190 = scalar_lea.vmem [#allocation2], %s189
          %s192 = ssub.s32 1024, 1024
          %193 = vsyncadd %s187, %s192
          %s194 = smul.addr %s20, 8
          %s195 = smul.addr %s194, 128
          %s196 = scalar_lea.hbm %s0, %s195
          %s197 = sshll.u32 %s190, 4
          %s198 = int_to_ptr.vmem [resolvable:$true] %s197
          %203 = dma.hbm_to_vmem [thread:$0]  %s196, 1024, %s198, %s187, 128, 128, 8
        $region28: #{dpran_forward.5} parent=23 // pred_fallthru
          _
        // Predicated region
        $region29: #{dpran_forward.5} parent=23 // pred_check
          %p204 = pneg %p66
        $region30: #{dpran_forward.5} parent=23 // pred_check_branch
          %206 = sbr.rel (%p204) target = $region32
        $region31: #{dpran_forward.5} parent=23 // pred_region
          %s207 = sand.u32 %s20, 1
          %s208 = scalar_lea.sflag [#allocation6], %s207
          %s209 = sand.u32 %s56, 1
          %s210 = smul.addr %s209, 64
          %s211 = scalar_lea.vmem [#allocation5], %s210
          %s213 = ssub.s32 1024, 1024
          %214 = vsyncadd %s208, %s213
          %s215 = smul.addr %s20, 8
          %s216 = smul.addr %s215, 128
          %s217 = scalar_lea.hbm %s1, %s216
          %s218 = sshll.u32 %s211, 4
          %s219 = int_to_ptr.vmem [resolvable:$true] %s218
          %224 = dma.hbm_to_vmem [thread:$0]  %s217, 1024, %s219, %s208, 128, 128, 8
        $region32: #{dpran_forward.5} parent=23 // pred_fallthru
          _
      $region24: #{dpran_forward.5} parent=5 // pred_fallthru
        _
      %p225 = scmp.le.s32.totalorder 1, %s20
      %p226 = scmp.lt.s32.totalorder %s20, 3
      %p227 = pnand %p225, %p226
      %p228 = pneg %p227
      // Predicated region
      $region33: #{dpran_forward.5} parent=5 // pred_check
        _
      $region34: #{dpran_forward.5} parent=5 // pred_check_branch
        %230 = sbr.rel (%p227) target = $region36
      $region35: #{dpran_forward.5} parent=5 // pred_region
        %s231 = ssub.s32 %s20, 1
        %s232 = sand.u32 %s33, 1
        %s233 = scalar_lea.sflag [#allocation3], %s232
        %s234 = sand.u32 %s33, 1
        %s235 = smul.addr %s234, 64
        %s236 = scalar_lea.vmem [#allocation2], %s235
        // Predicated region
        $region37: #{dpran_forward.5} parent=35 // pred_check
          %p237 = pneg %p46
        $region38: #{dpran_forward.5} parent=35 // pred_check_branch
          %239 = sbr.rel (%p237) target = $region40
        $region39: #{dpran_forward.5} parent=35 // pred_region
          %240 = dma.done %s233, 1024
        $region40: #{dpran_forward.5} parent=35 // pred_fallthru
          _
        %s241 = sand.u32 %s25, 1
        %s242 = scalar_lea.sflag [#allocation6], %s241
        %s243 = sand.u32 %s59, 1
        %s244 = smul.addr %s243, 64
        %s245 = scalar_lea.vmem [#allocation5], %s244
        // Predicated region
        $region41: #{dpran_forward.5} parent=35 // pred_check
          %p246 = pneg %p72
        $region42: #{dpran_forward.5} parent=35 // pred_check_branch
          %248 = sbr.rel (%p246) target = $region44
        $region43: #{dpran_forward.5} parent=35 // pred_region
          %249 = dma.done %s242, 1024
        $region44: #{dpran_forward.5} parent=35 // pred_fallthru
          _
        // Predicated region
        $region45: #{dpran_forward.5} parent=35 // pred_check
          %p250 = pneg %p93
        $region46: #{dpran_forward.5} parent=35 // pred_check_branch
          %252 = sbr.rel (%p250) target = $region48
        $region47: #{dpran_forward.5} parent=35 // pred_region
          %253 = dma.done [#allocation6], 128
        $region48: #{dpran_forward.5} parent=35 // pred_fallthru
          _
        // Predicated region
        $region49: #{dpran_forward.5} parent=35 // pred_check
          %p254 = pneg %p114
        $region50: #{dpran_forward.5} parent=35 // pred_check_branch
          %256 = sbr.rel (%p254) target = $region52
        $region51: #{dpran_forward.5} parent=35 // pred_region
          %257 = dma.done [#allocation9], 16
        $region52: #{dpran_forward.5} parent=35 // pred_fallthru
          _
        %s258 = sand.u32 %s33, 1
        %s259 = scalar_lea.sflag [#allocation3], %s258
        %s260 = sand.u32 %s33, 1
        %s261 = smul.addr %s260, 64
        %s262 = scalar_lea.vmem [#allocation2], %s261
        %p263 = pneg %p46
        %p264 = pneg %p43
        %s265 = sand.u32 %s25, 1
        %s266 = scalar_lea.sflag [#allocation6], %s265
        %s267 = sand.u32 %s59, 1
        %s268 = smul.addr %s267, 64
        %s269 = scalar_lea.vmem [#allocation5], %s268
        %p270 = pneg %p72
        %p271 = pneg %p69
        %p272 = pneg %p93
        %p273 = pneg %p90
        %p274 = pneg %p114
        %p275 = pneg %p111
        %p276 = pneg %p140
        %p277 = pneg %p137
        %s278 = sand.u32 %s127, 1
        %s279 = scalar_lea.sflag [#allocation4], %s278
        %s280 = sand.u32 %s127, 1
        %s281 = smul.addr %s280, 64
        %s282 = scalar_lea.vmem [#allocation10], %s281
        %v284 = vld [vmem:[%s236] sm:$0xff]
        %v285 = vld [vmem:[%s236 + $0x8] sm:$0xff]
        %v286 = vld [vmem:[%s236 + $0x10] sm:$0xff]
        %v287 = vld [vmem:[%s236 + $0x18] sm:$0xff]
        %v288 = vld [vmem:[%s236 + $0x20] sm:$0xff]
        %v289 = vld [vmem:[%s236 + $0x28] sm:$0xff]
        %v290 = vld [vmem:[%s236 + $0x30] sm:$0xff]
        %v291 = vld [vmem:[%s236 + $0x38] sm:$0xff]
        %v292 = vpack.c.bf16 %v284, %v284
        %v293 = vpack.c.bf16 %v285, %v285
        %v294 = vpack.c.bf16 %v286, %v286
        %v295 = vpack.c.bf16 %v287, %v287
        %v296 = vpack.c.bf16 %v288, %v288
        %v297 = vpack.c.bf16 %v289, %v289
        %v298 = vpack.c.bf16 %v290, %v290
        %v299 = vpack.c.bf16 %v291, %v291
        %v300 = vld [vmem:[#allocation7] sm:$0xf]
        %v301 = vld [vmem:[#allocation7 + $0x4] sm:$0xf]
        %v302 = vld [vmem:[#allocation8] sm:$0x1]
        %v304 = vlaneseq
        %v305 = vshrl.u32 %v304, 7
        %v306 = vsub.s32 0, %v305
        %v307 = vrot.slane %v302, %v306
        %v317 = vunpack.c.l.b16 %v292
        %v318 = vunpack.c.l.b16 %v293
        %v319 = vunpack.c.l.b16 %v294
        %v320 = vunpack.c.l.b16 %v295
        %v321 = vunpack.c.l.b16 %v296
        %v322 = vunpack.c.l.b16 %v297
        %v323 = vunpack.c.l.b16 %v298
        %v324 = vunpack.c.l.b16 %v299
        %v325 = vpack.c.b16 %v318, %v317
        %v326 = vpack.c.b16 %v320, %v319
        %v327 = vpack.c.b16 %v322, %v321
        %v328 = vpack.c.b16 %v324, %v323
        %v331 = vunpack.c.l.b16 %v300
        %v332 = vunpack.c.l.b16 %v301
        %v333 = vpack.c.b16 %v332, %v331
        %vm335 = vcmask 130048
        %v337 = vsel %vm335, %v325, 0
        %v340 = vsel %vm335, %v326, 0
        %v343 = vsel %vm335, %v327, 0
        %v346 = vsel %vm335, %v328, 0
        %348 = vmatprep.subr.bf16.mxu0 0
        %349 = vmatpush1.bf16.msra.mxu0 %v333
        %350 = vmatprep.subr.bf16.mxu0 0
        %351 = vmatpush1.bf16.msra.mxu0 0
        %352 = vmatprep.subr.bf16.mxu0 0
        %353 = vmatpush1.bf16.msra.mxu0 0
        %354 = vmatprep.subr.bf16.mxu0 0
        %355 = vmatpush1.bf16.msra.mxu0 0
        %356 = vmatprep.subr.bf16.mxu0 0
        %357 = vmatpush1.bf16.msra.mxu0 0
        %358 = vmatprep.subr.bf16.mxu0 0
        %359 = vmatpush1.bf16.msra.mxu0 0
        %360 = vmatprep.subr.bf16.mxu0 0
        %361 = vmatpush1.bf16.msra.mxu0 0
        %362 = vmatprep.subr.bf16.mxu0 0
        %363 = vmatpush1.bf16.msra.mxu0 0
        %364 = vmatprep.subr.bf16.mxu0 0
        %365 = vmatpush1.bf16.msra.mxu0 0
        %366 = vmatprep.subr.bf16.mxu0 0
        %367 = vmatpush1.bf16.msra.mxu0 0
        %368 = vmatprep.subr.bf16.mxu0 0
        %369 = vmatpush1.bf16.msra.mxu0 0
        %370 = vmatprep.subr.bf16.mxu0 0
        %371 = vmatpush1.bf16.msra.mxu0 0
        %372 = vmatprep.subr.bf16.mxu0 0
        %373 = vmatpush1.bf16.msra.mxu0 0
        %374 = vmatprep.subr.bf16.mxu0 0
        %375 = vmatpush1.bf16.msra.mxu0 0
        %376 = vmatprep.subr.bf16.mxu0 0
        %377 = vmatpush1.bf16.msra.mxu0 0
        %378 = vmatprep.subr.bf16.mxu0 0
        %379 = vmatpush1.bf16.msra.mxu0 0
        %380 = vmatprep.mubr.bf16.mxu0 0
        %381 = vmatmul.mubr.bf16.gmra.mrb[0].mxu0 %v337
        %v382 = vpop.f32.mrb[0].mxu0
        %v383 = vadd.f32 %v307, %v382
        %v384 = vpop.f32.mrb[0].mxu0
        %v385 = vpop.f32.mrb[0].mxu0
        %v386 = vadd.f32 %v307, %v385
        %v387 = vpop.f32.mrb[0].mxu0
        %388 = vmatprep.mubr.bf16.mxu0 0
        %389 = vmatmul.mubr.bf16.gmra.mrb[0].mxu0 %v340
        %v390 = vpop.f32.mrb[0].mxu0
        %v391 = vadd.f32 %v307, %v390
        %v392 = vpop.f32.mrb[0].mxu0
        %v393 = vpop.f32.mrb[0].mxu0
        %v394 = vadd.f32 %v307, %v393
        %v395 = vpop.f32.mrb[0].mxu0
        %396 = vmatprep.mubr.bf16.mxu0 0
        %397 = vmatmul.mubr.bf16.gmra.mrb[0].mxu0 %v343
        %v398 = vpop.f32.mrb[0].mxu0
        %v399 = vadd.f32 %v307, %v398
        %v400 = vpop.f32.mrb[0].mxu0
        %v401 = vpop.f32.mrb[0].mxu0
        %v402 = vadd.f32 %v307, %v401
        %v403 = vpop.f32.mrb[0].mxu0
        %404 = vmatprep.mubr.bf16.mxu0 0
        %405 = vmatmul.mubr.bf16.gmra.mrb[0].mxu0 %v346
        %v406 = vpop.f32.mrb[0].mxu0
        %v407 = vadd.f32 %v307, %v406
        %v408 = vpop.f32.mrb[0].mxu0
        %v409 = vpop.f32.mrb[0].mxu0
        %v410 = vadd.f32 %v307, %v409
        %v411 = vpop.f32.mrb[0].mxu0
        %412 = vdwg.mxu0
        %v413 = vsel %vm335, %v383, 0.0
        %v414 = vsel %vm335, %v386, 0.0
        %v415 = vadd.f32 %v413, %v414
        %v416 = vsel %vm335, %v391, 0.0
        %v417 = vadd.f32 %v415, %v416
        %v418 = vsel %vm335, %v394, 0.0
        %v419 = vadd.f32 %v417, %v418
        %v420 = vsel %vm335, %v399, 0.0
        %v421 = vadd.f32 %v419, %v420
        %v422 = vsel %vm335, %v402, 0.0
        %v423 = vadd.f32 %v421, %v422
        %v424 = vsel %vm335, %v407, 0.0
        %v425 = vadd.f32 %v423, %v424
        %v426 = vsel %vm335, %v410, 0.0
        %v427 = vadd.f32 %v425, %v426
        %v428 = vrot.slane %v427, 4
        %v429 = vadd.f32 %v427, %v428
        %v430 = vrot.slane %v429, 2
        %v431 = vadd.f32 %v429, %v430
        %v432 = vrot.slane %v431, 1
        %v433 = vadd.f32 %v431, %v432
        %v434 = vrcp.pop 64.0
        %v435 = vmul.f32 %v433, %v434
        %v436 = vsub.f32 %v383, %v435
        %v437 = vsub.f32 %v386, %v435
        %v438 = vsub.f32 %v391, %v435
        %v439 = vsub.f32 %v394, %v435
        %v440 = vsub.f32 %v399, %v435
        %v441 = vsub.f32 %v402, %v435
        %v442 = vsub.f32 %v407, %v435
        %v443 = vsub.f32 %v410, %v435
        %v444 = vmul.f32 %v436, %v436
        %v445 = vmul.f32 %v437, %v437
        %v446 = vmul.f32 %v438, %v438
        %v447 = vmul.f32 %v439, %v439
        %v448 = vmul.f32 %v440, %v440
        %v449 = vmul.f32 %v441, %v441
        %v450 = vmul.f32 %v442, %v442
        %v451 = vmul.f32 %v443, %v443
        %v452 = vsel %vm335, %v444, 0.0
        %v453 = vsel %vm335, %v445, 0.0
        %v454 = vadd.f32 %v452, %v453
        %v455 = vsel %vm335, %v446, 0.0
        %v456 = vadd.f32 %v454, %v455
        %v457 = vsel %vm335, %v447, 0.0
        %v458 = vadd.f32 %v456, %v457
        %v459 = vsel %vm335, %v448, 0.0
        %v460 = vadd.f32 %v458, %v459
        %v461 = vsel %vm335, %v449, 0.0
        %v462 = vadd.f32 %v460, %v461
        %v463 = vsel %vm335, %v450, 0.0
        %v464 = vadd.f32 %v462, %v463
        %v465 = vsel %vm335, %v451, 0.0
        %v466 = vadd.f32 %v464, %v465
        %v467 = vrot.slane %v466, 4
        %v468 = vadd.f32 %v466, %v467
        %v469 = vrot.slane %v468, 2
        %v470 = vadd.f32 %v468, %v469
        %v471 = vrot.slane %v470, 1
        %v472 = vadd.f32 %v470, %v471
        %v473 = vmul.f32 %v472, %v434
        %v474 = vadd.f32 %v473, 1e-08
        %v475 = vrsqrt.pop %v474
        %v476 = vmul.f32 %v436, %v475
        %v477 = vmul.f32 %v437, %v475
        %v478 = vmul.f32 %v438, %v475
        %v479 = vmul.f32 %v439, %v475
        %v480 = vmul.f32 %v440, %v475
        %v481 = vmul.f32 %v441, %v475
        %v482 = vmul.f32 %v442, %v475
        %v483 = vmul.f32 %v443, %v475
        %v484 = vld [vmem:[%s245] sm:$0xff]
        %v485 = vld [vmem:[%s245 + $0x8] sm:$0xff]
        %v486 = vld [vmem:[%s245 + $0x10] sm:$0xff]
        %v487 = vld [vmem:[%s245 + $0x18] sm:$0xff]
        %v488 = vld [vmem:[%s245 + $0x20] sm:$0xff]
        %v489 = vld [vmem:[%s245 + $0x28] sm:$0xff]
        %v490 = vld [vmem:[%s245 + $0x30] sm:$0xff]
        %v491 = vld [vmem:[%s245 + $0x38] sm:$0xff]
        %v492 = vadd.f32 %v484, %v476
        %v493 = vadd.f32 %v485, %v477
        %v494 = vadd.f32 %v486, %v478
        %v495 = vadd.f32 %v487, %v479
        %v496 = vadd.f32 %v488, %v480
        %v497 = vadd.f32 %v489, %v481
        %v498 = vadd.f32 %v490, %v482
        %v499 = vadd.f32 %v491, %v483
        %500 = vst.msk [vmem:[%s282] sm:$0xff] %vm335, %v492
        %501 = vst.msk [vmem:[%s282 + $0x8] sm:$0xff] %vm335, %v493
        %502 = vst.msk [vmem:[%s282 + $0x10] sm:$0xff] %vm335, %v494
        %503 = vst.msk [vmem:[%s282 + $0x18] sm:$0xff] %vm335, %v495
        %504 = vst.msk [vmem:[%s282 + $0x20] sm:$0xff] %vm335, %v496
        %505 = vst.msk [vmem:[%s282 + $0x28] sm:$0xff] %vm335, %v497
        %506 = vst.msk [vmem:[%s282 + $0x30] sm:$0xff] %vm335, %v498
        %507 = vst.msk [vmem:[%s282 + $0x38] sm:$0xff] %vm335, %v499
        %s508 = sand.u32 %s127, 1
        %s509 = scalar_lea.sflag [#allocation4], %s508
        %s510 = sand.u32 %s127, 1
        %s511 = smul.addr %s510, 64
        %s512 = scalar_lea.vmem [#allocation10], %s511
        // Predicated region
        $region53: #{dpran_forward.5} parent=35 // pred_check
          %p513 = pneg %p137
        $region54: #{dpran_forward.5} parent=35 // pred_check_branch
          %515 = sbr.rel (%p513) target = $region56
        $region55: #{dpran_forward.5} parent=35 // pred_region
          %s517 = ssub.s32 1024, 1024
          %518 = vsyncadd %s509, %s517
          %s519 = smul.addr %s25, 8
          %s520 = smul.addr %s519, 128
          %s521 = scalar_lea.hbm %s4, %s520
          %s522 = sshll.u32 %s512, 4
          %s523 = int_to_ptr.vmem [resolvable:$true] %s522
          %528 = dma.vmem_to_hbm [thread:$0]  %s523, 1024, %s521, %s509, 128, 128, 8
        $region56: #{dpran_forward.5} parent=35 // pred_fallthru
          _
      $region36: #{dpran_forward.5} parent=5 // pred_fallthru
        _
      %p529 = scmp.le.s32.totalorder 2, %s20
      // Predicated region
      $region57: #{dpran_forward.5} parent=5 // pred_check
        %p530 = pneg %p529
      $region58: #{dpran_forward.5} parent=5 // pred_check_branch
        %532 = sbr.rel (%p530) target = $region60
      $region59: #{dpran_forward.5} parent=5 // pred_region
        %s533 = ssub.s32 %s20, 2
        // Predicated region
        $region61: #{dpran_forward.5} parent=59 // pred_check
          %p534 = pneg %p143
        $region62: #{dpran_forward.5} parent=59 // pred_check_branch
          %536 = sbr.rel (%p534) target = $region64
        $region63: #{dpran_forward.5} parent=59 // pred_region
          %s537 = sand.u32 %s128, 1
          %s538 = scalar_lea.sflag [#allocation4], %s537
          %s539 = sand.u32 %s128, 1
          %s540 = smul.addr %s539, 64
          %s541 = scalar_lea.vmem [#allocation10], %s540
          %542 = dma.done %s538, 1024
        $region64: #{dpran_forward.5} parent=59 // pred_fallthru
          _
      $region60: #{dpran_forward.5} parent=5 // pred_fallthru
        _
    $region6: #{dpran_forward.5} parent=1 // loop_footer
      %s24 = sadd.s32 1, %s20
    $region7: #{dpran_forward.5} parent=1 // loop_footer_branch
      %19 = sbr.rel target = $region3
    $region8: #{dpran_forward.5} parent=1 // loop_exit
      _
    %543 = vsyncpa [#allocation3], 1
    %s544 = scalar_lea.sflag [#allocation3], 1
    %545 = vsyncpa %s544, 1
    %546 = vsyncpa [#allocation6], 1
    %s547 = scalar_lea.sflag [#allocation6], 1
    %548 = vsyncpa %s547, 1
    %549 = vsyncpa [#allocation9], 1
    %550 = vsyncpa [#allocation4], 1
    %s551 = scalar_lea.sflag [#allocation4], 1
    %552 = vsyncpa %s551, 1

// kernel: dpran_forward.3
$region0: #{dpran_forward.3}
  #allocation0 [shape = 'u32[]', space=smem, size = 0x4, offset = 0x4, fixed_abs, tag = 'smem constant byte address 0x4 - core index']
  #allocation1 [shape = 'u32[144,128]{1,0:T(1,128)}', space=vmem, size = 0x12000, scoped, tag = 'internal scratch']
  #allocation2 [shape = 'bf16[8,8,32]{2,1,0:T(8,128)(2,1)}', space=vmem, size = 0x4000, scoped, tag = 'scratch operand']
  #allocation3 [shape = 'bf16[8,8,32]{2,1,0:T(8,128)(2,1)}', space=vmem, size = 0x4000, scoped, tag = 'scratch operand']
  #allocation4 [shape = 'f32[8,8,8]{2,1,0:T(8,128)}', space=vmem, size = 0x8000, scoped, tag = 'scratch operand']
  #allocation5 [shape = 'f32[8,8,8]{2,1,0:T(8,128)}', space=vmem, size = 0x8000, scoped, tag = 'scratch operand']
  %s0 = inlined_call_operand.hbm [shape: f32[2,8,8,16], index: 0, kind: input, shape index: {}]
  %s1 = inlined_call_operand.hbm [shape: bf16[16,64], index: 1, kind: input, shape index: {}]
  %s2 = inlined_call_operand.hbm [shape: bf16[8,32], index: 2, kind: input, shape index: {}]
  %s3 = inlined_call_operand.hbm [shape: bf16[8,32], index: 3, kind: input, shape index: {}]
  %s4 = inlined_call_operand.hbm [shape: f32[1,64], index: 4, kind: input, shape index: {}]
  %s5 = inlined_call_operand.hbm [shape: bf16[16,16], index: 5, kind: input, shape index: {}]
  %s6 = inlined_call_operand.hbm [shape: f32[1,16], index: 6, kind: input, shape index: {}]
  %s7 = inlined_call_operand.hbm [shape: f32[2,8,8,16], index: 7, kind: output, shape index: {}]
  %s8 = sld [smem:[#allocation0]]
  $region89: #{dpran_forward.3} parent=0
    _
  %s10 = ssub.s32 1, %s8
  %s11 = scalar_select 0, %s10, %s8
  $region1: #{dpran_forward.3} parent=0
    #allocation6 [shape = 'u8[65536]{0}', space=vmem, size = 0x10000, scoped, tag = 'input window, operand 0']
    #allocation7 [shape = 's32[2]{0}', space=sflag, size = 0x8, scoped, tag = 'scoped memory for dpran_forward.3']
    #allocation8 [shape = 's32[2]{0}', space=sflag, size = 0x8, scoped, tag = 'scoped memory for dpran_forward.3']
    #allocation9 [shape = 'u8[4096]{0}', space=vmem, size = 0x1000, scoped, tag = 'input window, operand 1, single buffered']
    #allocation10 [shape = 's32[1]{0}', space=sflag, size = 0x4, scoped, tag = 'scoped memory for dpran_forward.3']
    #allocation11 [shape = 'u8[2048]{0}', space=vmem, size = 0x800, scoped, tag = 'input window, operand 2, single buffered']
    #allocation12 [shape = 'u8[2048]{0}', space=vmem, size = 0x800, scoped, tag = 'input window, operand 3, single buffered']
    #allocation13 [shape = 's32[1]{0}', space=sflag, size = 0x4, scoped, tag = 'scoped memory for dpran_forward.3']
    #allocation14 [shape = 'u8[512]{0}', space=vmem, size = 0x400, scoped, tag = 'input window, operand 4, single buffered']
    #allocation15 [shape = 'u8[4096]{0}', space=vmem, size = 0x1000, scoped, tag = 'input window, operand 5, single buffered']
    #allocation16 [shape = 's32[1]{0}', space=sflag, size = 0x4, scoped, tag = 'scoped memory for dpran_forward.3']
    #allocation17 [shape = 'u8[512]{0}', space=vmem, size = 0x400, scoped, tag = 'input window, operand 6, single buffered']
    #allocation18 [shape = 'u8[65536]{0}', space=vmem, size = 0x10000, scoped, tag = 'output window, operand 0']
    %12 = vsyncpa [#allocation7], 0
    %s13 = scalar_lea.sflag [#allocation7], 1
    %14 = vsyncpa %s13, 0
    %15 = vsyncpa [#allocation10], 0
    %16 = vsyncpa [#allocation13], 0
    %17 = vsyncpa [#allocation16], 0
    %18 = vsyncpa [#allocation8], 0
    %s19 = scalar_lea.sflag [#allocation8], 1
    %20 = vsyncpa %s19, 0
    loop: start=0, step=1, limit=4
    $region2: #{dpran_forward.3} parent=1 // loop_pre_header
      _
    $region3: #{dpran_forward.3} parent=1 // loop_header
      %s22 = sphi 0, %s26
      %p23 = scmp.ge.s32.totalorder %s22, 4
      %s32 = sphi 0, %s34
      %s35 = sphi 0, %s32
      %s36 = sphi 0, %s35
      %s52 = sphi 0, %s36
      %s56 = sphi 0, %s56
      %s58 = sphi 0, %s56
      %s59 = sphi 0, %s58
      %s73 = sphi 0, %s59
      %s77 = sphi 0, %s77
      %s79 = sphi 0, %s77
      %s80 = sphi 0, %s79
      %s94 = sphi 0, %s80
      %s98 = sphi 0, %s98
      %s100 = sphi 0, %s98
      %s101 = sphi 0, %s100
      %s115 = sphi 0, %s101
      %s119 = sphi 0, %s119
      %s121 = sphi 0, %s119
      %s122 = sphi 0, %s121
      %s136 = sphi 0, %s122
      %s140 = sphi 0, %s140
      %s142 = sphi 0, %s140
      %s143 = sphi 0, %s142
      %s157 = sphi 0, %s143
      %s161 = sphi 0, %s161
      %s163 = sphi 0, %s161
      %s164 = sphi 0, %s163
      %s178 = sphi 0, %s164
      %s184 = sphi 0, %s186
      %s187 = sphi 0, %s184
      %s188 = sphi 0, %s187
      %s204 = sphi 0, %s188
    $region4: #{dpran_forward.3} parent=1 // loop_header_branch
      %25 = sbr.rel (%p23) target = $region8
    $region5: #{dpran_forward.3} parent=1 // loop_body
      %s27 = ssub.s32 %s22, 1
      %s28 = ssub.s32 %s22, 2
      %s29 = sadd.s32 %s22, 1
      %s30 = ssub.s32 %s22, %s29
      %p31 = scmp.eq.s32.totalorder %s30, 0
      %s33 = sadd.s32 %s32, 1
      %s34 = scalar_select %p31, %s32, %s33
      %p37 = pneg %p31
      %p38 = scmp.eq.s32.totalorder %s22, 1
      %p39 = por %p37, %p38
      %p40 = scmp.ne.s32.totalorder %s32, %s35
      %p41 = scmp.eq.s32.totalorder %s22, 0
      %p42 = por %p40, %p41
      %p43 = scmp.ne.s32.totalorder %s32, %s35
      %p44 = scmp.eq.s32.totalorder %s27, 1
      %p45 = por %p43, %p44
      %p46 = scmp.ne.s32.totalorder %s35, %s36
      %p47 = scmp.eq.s32.totalorder %s27, 0
      %p48 = por %p46, %p47
      %p49 = scmp.ne.s32.totalorder %s35, %s36
      %p50 = scmp.eq.s32.totalorder %s28, 1
      %p51 = por %p49, %p50
      %p53 = scmp.ne.s32.totalorder %s36, %s52
      %p54 = scmp.eq.s32.totalorder %s28, 0
      %p55 = por %p53, %p54
      %s57 = sadd.s32 %s56, 1
      %p60 = scmp.eq.s32.totalorder %s22, 1
      %p61 = scmp.ne.s32.totalorder %s56, %s58
      %p62 = scmp.eq.s32.totalorder %s22, 0
      %p63 = por %p61, %p62
      %p64 = scmp.ne.s32.totalorder %s56, %s58
      %p65 = scmp.eq.s32.totalorder %s27, 1
      %p66 = por %p64, %p65
      %p67 = scmp.ne.s32.totalorder %s58, %s59
      %p68 = scmp.eq.s32.totalorder %s27, 0
      %p69 = por %p67, %p68
      %p70 = scmp.ne.s32.totalorder %s58, %s59
      %p71 = scmp.eq.s32.totalorder %s28, 1
      %p72 = por %p70, %p71
      %p74 = scmp.ne.s32.totalorder %s59, %s73
      %p75 = scmp.eq.s32.totalorder %s28, 0
      %p76 = por %p74, %p75
      %s78 = sadd.s32 %s77, 1
      %p81 = scmp.eq.s32.totalorder %s22, 1
      %p82 = scmp.ne.s32.totalorder %s77, %s79
      %p83 = scmp.eq.s32.totalorder %s22, 0
      %p84 = por %p82, %p83
      %p85 = scmp.ne.s32.totalorder %s77, %s79
      %p86 = scmp.eq.s32.totalorder %s27, 1
      %p87 = por %p85, %p86
      %p88 = scmp.ne.s32.totalorder %s79, %s80
      %p89 = scmp.eq.s32.totalorder %s27, 0
      %p90 = por %p88, %p89
      %p91 = scmp.ne.s32.totalorder %s79, %s80
      %p92 = scmp.eq.s32.totalorder %s28, 1
      %p93 = por %p91, %p92
      %p95 = scmp.ne.s32.totalorder %s80, %s94
      %p96 = scmp.eq.s32.totalorder %s28, 0
      %p97 = por %p95, %p96
      %s99 = sadd.s32 %s98, 1
      %p102 = scmp.eq.s32.totalorder %s22, 1
      %p103 = scmp.ne.s32.totalorder %s98, %s100
      %p104 = scmp.eq.s32.totalorder %s22, 0
      %p105 = por %p103, %p104
      %p106 = scmp.ne.s32.totalorder %s98, %s100
      %p107 = scmp.eq.s32.totalorder %s27, 1
      %p108 = por %p106, %p107
      %p109 = scmp.ne.s32.totalorder %s100, %s101
      %p110 = scmp.eq.s32.totalorder %s27, 0
      %p111 = por %p109, %p110
      %p112 = scmp.ne.s32.totalorder %s100, %s101
      %p113 = scmp.eq.s32.totalorder %s28, 1
      %p114 = por %p112, %p113
      %p116 = scmp.ne.s32.totalorder %s101, %s115
      %p117 = scmp.eq.s32.totalorder %s28, 0
      %p118 = por %p116, %p117
      %s120 = sadd.s32 %s119, 1
      %p123 = scmp.eq.s32.totalorder %s22, 1
      %p124 = scmp.ne.s32.totalorder %s119, %s121
      %p125 = scmp.eq.s32.totalorder %s22, 0
      %p126 = por %p124, %p125
      %p127 = scmp.ne.s32.totalorder %s119, %s121
      %p128 = scmp.eq.s32.totalorder %s27, 1
      %p129 = por %p127, %p128
      %p130 = scmp.ne.s32.totalorder %s121, %s122
      %p131 = scmp.eq.s32.totalorder %s27, 0
      %p132 = por %p130, %p131
      %p133 = scmp.ne.s32.totalorder %s121, %s122
      %p134 = scmp.eq.s32.totalorder %s28, 1
      %p135 = por %p133, %p134
      %p137 = scmp.ne.s32.totalorder %s122, %s136
      %p138 = scmp.eq.s32.totalorder %s28, 0
      %p139 = por %p137, %p138
      %s141 = sadd.s32 %s140, 1
      %p144 = scmp.eq.s32.totalorder %s22, 1
      %p145 = scmp.ne.s32.totalorder %s140, %s142
      %p146 = scmp.eq.s32.totalorder %s22, 0
      %p147 = por %p145, %p146
      %p148 = scmp.ne.s32.totalorder %s140, %s142
      %p149 = scmp.eq.s32.totalorder %s27, 1
      %p150 = por %p148, %p149
      %p151 = scmp.ne.s32.totalorder %s142, %s143
      %p152 = scmp.eq.s32.totalorder %s27, 0
      %p153 = por %p151, %p152
      %p154 = scmp.ne.s32.totalorder %s142, %s143
      %p155 = scmp.eq.s32.totalorder %s28, 1
      %p156 = por %p154, %p155
      %p158 = scmp.ne.s32.totalorder %s143, %s157
      %p159 = scmp.eq.s32.totalorder %s28, 0
      %p160 = por %p158, %p159
      %s162 = sadd.s32 %s161, 1
      %p165 = scmp.eq.s32.totalorder %s22, 1
      %p166 = scmp.ne.s32.totalorder %s161, %s163
      %p167 = scmp.eq.s32.totalorder %s22, 0
      %p168 = por %p166, %p167
      %p169 = scmp.ne.s32.totalorder %s161, %s163
      %p170 = scmp.eq.s32.totalorder %s27, 1
      %p171 = por %p169, %p170
      %p172 = scmp.ne.s32.totalorder %s163, %s164
      %p173 = scmp.eq.s32.totalorder %s27, 0
      %p174 = por %p172, %p173
      %p175 = scmp.ne.s32.totalorder %s163, %s164
      %p176 = scmp.eq.s32.totalorder %s28, 1
      %p177 = por %p175, %p176
      %p179 = scmp.ne.s32.totalorder %s164, %s178
      %p180 = scmp.eq.s32.totalorder %s28, 0
      %p181 = por %p179, %p180
      %s182 = ssub.s32 %s22, %s29
      %p183 = scmp.eq.s32.totalorder %s182, 0
      %s185 = sadd.s32 %s184, 1
      %s186 = scalar_select %p183, %s184, %s185
      %p189 = pneg %p183
      %p190 = scmp.eq.s32.totalorder %s22, 1
      %p191 = por %p189, %p190
      %p192 = scmp.ne.s32.totalorder %s184, %s187
      %p193 = scmp.eq.s32.totalorder %s22, 0
      %p194 = por %p192, %p193
      %p195 = scmp.ne.s32.totalorder %s184, %s187
      %p196 = scmp.eq.s32.totalorder %s27, 1
      %p197 = por %p195, %p196
      %p198 = scmp.ne.s32.totalorder %s187, %s188
      %p199 = scmp.eq.s32.totalorder %s27, 0
      %p200 = por %p198, %p199
      %p201 = scmp.ne.s32.totalorder %s187, %s188
      %p202 = scmp.eq.s32.totalorder %s28, 1
      %p203 = por %p201, %p202
      %p205 = scmp.ne.s32.totalorder %s188, %s204
      %p206 = scmp.eq.s32.totalorder %s28, 0
      %p207 = por %p205, %p206
      %p208 = scmp.le.s32.totalorder 1, %s22
      %p209 = scmp.lt.s32.totalorder %s22, 3
      %p210 = pnand %p208, %p209
      %p211 = pneg %p210
      // Predicated region
      $region9: #{dpran_forward.3} parent=5 // pred_check
        _
      $region10: #{dpran_forward.3} parent=5 // pred_check_branch
        %213 = sbr.rel (%p210) target = $region12
      $region11: #{dpran_forward.3} parent=5 // pred_region
        %s214 = ssub.s32 %s22, 1
        // Predicated region
        $region13: #{dpran_forward.3} parent=11 // pred_check
          %p215 = pneg %p69
        $region14: #{dpran_forward.3} parent=11 // pred_check_branch
          %217 = sbr.rel (%p215) target = $region16
        $region15: #{dpran_forward.3} parent=11 // pred_region
          %s219 = ssub.s32 128, 128
          %220 = vsyncadd [#allocation10], %s219
          %s221 = sshll.u32 [#allocation9], 4
          %s222 = int_to_ptr.vmem [resolvable:$true] %s221
          %227 = dma.hbm_to_vmem [thread:$0]  %s1, 128, %s222, [#allocation10], 64, 64, 4
        $region16: #{dpran_forward.3} parent=11 // pred_fallthru
          _
        // Predicated region
        $region17: #{dpran_forward.3} parent=11 // pred_check
          %p228 = pneg %p90
        $region18: #{dpran_forward.3} parent=11 // pred_check_branch
          %230 = sbr.rel (%p228) target = $region20
        $region19: #{dpran_forward.3} parent=11 // pred_region
          %s232 = ssub.s32 64, 64
          %233 = vsyncadd [#allocation10], %s232
          %s235 = sshll.u32 [#allocation11], 4
          %s236 = int_to_ptr.vmem [resolvable:$true] %s235
          %238 = dma.hbm_to_vmem [thread:$0]  %s2, 64, %s236, [#allocation10]
        $region20: #{dpran_forward.3} parent=11 // pred_fallthru
          _
        // Predicated region
        $region21: #{dpran_forward.3} parent=11 // pred_check
          %p239 = pneg %p111
        $region22: #{dpran_forward.3} parent=11 // pred_check_branch
          %241 = sbr.rel (%p239) target = $region24
        $region23: #{dpran_forward.3} parent=11 // pred_region
          %s243 = ssub.s32 64, 64
          %244 = vsyncadd [#allocation13], %s243
          %s246 = sshll.u32 [#allocation12], 4
          %s247 = int_to_ptr.vmem [resolvable:$true] %s246
          %249 = dma.hbm_to_vmem [thread:$0]  %s3, 64, %s247, [#allocation13]
        $region24: #{dpran_forward.3} parent=11 // pred_fallthru
          _
        // Predicated region
        $region25: #{dpran_forward.3} parent=11 // pred_check
          %p250 = pneg %p132
        $region26: #{dpran_forward.3} parent=11 // pred_check_branch
          %252 = sbr.rel (%p250) target = $region28
        $region27: #{dpran_forward.3} parent=11 // pred_region
          %s254 = ssub.s32 16, 16
          %255 = vsyncadd [#allocation13], %s254
          %s257 = sshll.u32 [#allocation14], 4
          %s258 = int_to_ptr.vmem [resolvable:$true] %s257
          %260 = dma.hbm_to_vmem [thread:$0]  %s4, 16, %s258, [#allocation13]
        $region28: #{dpran_forward.3} parent=11 // pred_fallthru
          _
        // Predicated region
        $region29: #{dpran_forward.3} parent=11 // pred_check
          %p261 = pneg %p153
        $region30: #{dpran_forward.3} parent=11 // pred_check_branch
          %263 = sbr.rel (%p261) target = $region32
        $region31: #{dpran_forward.3} parent=11 // pred_region
          %s265 = ssub.s32 128, 128
          %266 = vsyncadd [#allocation16], %s265
          %s267 = sshll.u32 [#allocation15], 4
          %s268 = int_to_ptr.vmem [resolvable:$true] %s267
          %273 = dma.hbm_to_vmem [thread:$0]  %s5, 128, %s268, [#allocation16], 64, 64, 4
        $region32: #{dpran_forward.3} parent=11 // pred_fallthru
          _
        // Predicated region
        $region33: #{dpran_forward.3} parent=11 // pred_check
          %p274 = pneg %p174
        $region34: #{dpran_forward.3} parent=11 // pred_check_branch
          %276 = sbr.rel (%p274) target = $region36
        $region35: #{dpran_forward.3} parent=11 // pred_region
          %s278 = ssub.s32 16, 16
          %279 = vsyncadd [#allocation16], %s278
          %s281 = sshll.u32 [#allocation17], 4
          %s282 = int_to_ptr.vmem [resolvable:$true] %s281
          %284 = dma.hbm_to_vmem [thread:$0]  %s6, 16, %s282, [#allocation16]
        $region36: #{dpran_forward.3} parent=11 // pred_fallthru
          _
      $region12: #{dpran_forward.3} parent=5 // pred_fallthru
        _
      %p285 = scmp.lt.s32.totalorder %s22, 2
      // Predicated region
      $region37: #{dpran_forward.3} parent=5 // pred_check
        %p286 = pneg %p285
      $region38: #{dpran_forward.3} parent=5 // pred_check_branch
        %288 = sbr.rel (%p286) target = $region40
      $region39: #{dpran_forward.3} parent=5 // pred_region
        // Predicated region
        $region41: #{dpran_forward.3} parent=39 // pred_check
          %p289 = pneg %p42
        $region42: #{dpran_forward.3} parent=39 // pred_check_branch
          %291 = sbr.rel (%p289) target = $region44
        $region43: #{dpran_forward.3} parent=39 // pred_region
          %s292 = sand.u32 %s32, 1
          %s293 = scalar_lea.sflag [#allocation7], %s292
          %s294 = sand.u32 %s32, 1
          %s295 = smul.addr %s294, 64
          %s296 = scalar_lea.vmem [#allocation6], %s295
          %s298 = ssub.s32 1024, 1024
          %299 = vsyncadd %s293, %s298
          %s300 = smul.addr %s22, 8
          %s301 = smul.addr %s300, 128
          %s302 = scalar_lea.hbm %s0, %s301
          %s303 = sshll.u32 %s296, 4
          %s304 = int_to_ptr.vmem [resolvable:$true] %s303
          %309 = dma.hbm_to_vmem [thread:$0]  %s302, 1024, %s304, %s293, 128, 128, 8
        $region44: #{dpran_forward.3} parent=39 // pred_fallthru
          _
      $region40: #{dpran_forward.3} parent=5 // pred_fallthru
        _
      %p310 = scmp.le.s32.totalorder 1, %s22
      %p311 = scmp.lt.s32.totalorder %s22, 3
      %p312 = pnand %p310, %p311
      %p313 = pneg %p312
      // Predicated region
      $region45: #{dpran_forward.3} parent=5 // pred_check
        _
      $region46: #{dpran_forward.3} parent=5 // pred_check_branch
        %315 = sbr.rel (%p312) target = $region48
      $region47: #{dpran_forward.3} parent=5 // pred_region
        %s316 = ssub.s32 %s22, 1
        %s317 = sand.u32 %s35, 1
        %s318 = scalar_lea.sflag [#allocation7], %s317
        %s319 = sand.u32 %s35, 1
        %s320 = smul.addr %s319, 64
        %s321 = scalar_lea.vmem [#allocation6], %s320
        // Predicated region
        $region49: #{dpran_forward.3} parent=47 // pred_check
          %p322 = pneg %p48
        $region50: #{dpran_forward.3} parent=47 // pred_check_branch
          %324 = sbr.rel (%p322) target = $region52
        $region51: #{dpran_forward.3} parent=47 // pred_region
          %325 = dma.done %s318, 1024
        $region52: #{dpran_forward.3} parent=47 // pred_fallthru
          _
        // Predicated region
        $region53: #{dpran_forward.3} parent=47 // pred_check
          %p326 = pneg %p69
        $region54: #{dpran_forward.3} parent=47 // pred_check_branch
          %328 = sbr.rel (%p326) target = $region56
        $region55: #{dpran_forward.3} parent=47 // pred_region
          %329 = dma.done [#allocation10], 128
        $region56: #{dpran_forward.3} parent=47 // pred_fallthru
          _
        // Predicated region
        $region57: #{dpran_forward.3} parent=47 // pred_check
          %p330 = pneg %p90
        $region58: #{dpran_forward.3} parent=47 // pred_check_branch
          %332 = sbr.rel (%p330) target = $region60
        $region59: #{dpran_forward.3} parent=47 // pred_region
          %333 = dma.done [#allocation10], 64
        $region60: #{dpran_forward.3} parent=47 // pred_fallthru
          _
        // Predicated region
        $region61: #{dpran_forward.3} parent=47 // pred_check
          %p334 = pneg %p111
        $region62: #{dpran_forward.3} parent=47 // pred_check_branch
          %336 = sbr.rel (%p334) target = $region64
        $region63: #{dpran_forward.3} parent=47 // pred_region
          %337 = dma.done [#allocation13], 64
        $region64: #{dpran_forward.3} parent=47 // pred_fallthru
          _
        // Predicated region
        $region65: #{dpran_forward.3} parent=47 // pred_check
          %p338 = pneg %p132
        $region66: #{dpran_forward.3} parent=47 // pred_check_branch
          %340 = sbr.rel (%p338) target = $region68
        $region67: #{dpran_forward.3} parent=47 // pred_region
          %341 = dma.done [#allocation13], 16
        $region68: #{dpran_forward.3} parent=47 // pred_fallthru
          _
        // Predicated region
        $region69: #{dpran_forward.3} parent=47 // pred_check
          %p342 = pneg %p153
        $region70: #{dpran_forward.3} parent=47 // pred_check_branch
          %344 = sbr.rel (%p342) target = $region72
        $region71: #{dpran_forward.3} parent=47 // pred_region
          %345 = dma.done [#allocation16], 128
        $region72: #{dpran_forward.3} parent=47 // pred_fallthru
          _
        // Predicated region
        $region73: #{dpran_forward.3} parent=47 // pred_check
          %p346 = pneg %p174
        $region74: #{dpran_forward.3} parent=47 // pred_check_branch
          %348 = sbr.rel (%p346) target = $region76
        $region75: #{dpran_forward.3} parent=47 // pred_region
          %349 = dma.done [#allocation16], 16
        $region76: #{dpran_forward.3} parent=47 // pred_fallthru
          _
        %s350 = sand.u32 %s35, 1
        %s351 = scalar_lea.sflag [#allocation7], %s350
        %s352 = sand.u32 %s35, 1
        %s353 = smul.addr %s352, 64
        %s354 = scalar_lea.vmem [#allocation6], %s353
        %p355 = pneg %p48
        %p356 = pneg %p45
        %p357 = pneg %p69
        %p358 = pneg %p66
        %p359 = pneg %p90
        %p360 = pneg %p87
        %p361 = pneg %p111
        %p362 = pneg %p108
        %p363 = pneg %p132
        %p364 = pneg %p129
        %p365 = pneg %p153
        %p366 = pneg %p150
        %p367 = pneg %p174
        %p368 = pneg %p171
        %p369 = pneg %p200
        %p370 = pneg %p197
        %s371 = sand.u32 %s187, 1
        %s372 = scalar_lea.sflag [#allocation8], %s371
        %s373 = sand.u32 %s187, 1
        %s374 = smul.addr %s373, 64
        %s375 = scalar_lea.vmem [#allocation18], %s374
        %v377 = vld [vmem:[%s321] sm:$0xff]
        %v378 = vld [vmem:[%s321 + $0x8] sm:$0xff]
        %v379 = vld [vmem:[%s321 + $0x10] sm:$0xff]
        %v380 = vld [vmem:[%s321 + $0x18] sm:$0xff]
        %v381 = vld [vmem:[%s321 + $0x20] sm:$0xff]
        %v382 = vld [vmem:[%s321 + $0x28] sm:$0xff]
        %v383 = vld [vmem:[%s321 + $0x30] sm:$0xff]
        %v384 = vld [vmem:[%s321 + $0x38] sm:$0xff]
        %v385 = vpack.c.bf16 %v377, %v377
        %v386 = vpack.c.bf16 %v378, %v378
        %v387 = vpack.c.bf16 %v379, %v379
        %v388 = vpack.c.bf16 %v380, %v380
        %v389 = vpack.c.bf16 %v381, %v381
        %v390 = vpack.c.bf16 %v382, %v382
        %v391 = vpack.c.bf16 %v383, %v383
        %v392 = vpack.c.bf16 %v384, %v384
        %v393 = vld [vmem:[#allocation9] sm:$0xf]
        %v394 = vld [vmem:[#allocation9 + $0x4] sm:$0xf]
        %v395 = vld [vmem:[#allocation14] sm:$0x1]
        %v397 = vlaneseq
        %v398 = vshrl.u32 %v397, 7
        %v399 = vsub.s32 0, %v398
        %v400 = vrot.slane %v395, %v399
        %v410 = vunpack.c.l.b16 %v385
        %v411 = vunpack.c.l.b16 %v386
        %v412 = vunpack.c.l.b16 %v387
        %v413 = vunpack.c.l.b16 %v388
        %v414 = vunpack.c.l.b16 %v389
        %v415 = vunpack.c.l.b16 %v390
        %v416 = vunpack.c.l.b16 %v391
        %v417 = vunpack.c.l.b16 %v392
        %v418 = vpack.c.b16 %v411, %v410
        %v419 = vpack.c.b16 %v413, %v412
        %v420 = vpack.c.b16 %v415, %v414
        %v421 = vpack.c.b16 %v417, %v416
        %v424 = vunpack.c.l.b16 %v393
        %v425 = vunpack.c.l.b16 %v394
        %v426 = vpack.c.b16 %v425, %v424
        %vm428 = vcmask 130048
        %v430 = vsel %vm428, %v418, 0
        %v433 = vsel %vm428, %v419, 0
        %v436 = vsel %vm428, %v420, 0
        %v439 = vsel %vm428, %v421, 0
        %441 = vmatprep.subr.bf16.mxu0 0
        %442 = vmatpush1.bf16.msra.mxu0 %v426
        %443 = vmatprep.subr.bf16.mxu0 0
        %444 = vmatpush1.bf16.msra.mxu0 0
        %445 = vmatprep.subr.bf16.mxu0 0
        %446 = vmatpush1.bf16.msra.mxu0 0
        %447 = vmatprep.subr.bf16.mxu0 0
        %448 = vmatpush1.bf16.msra.mxu0 0
        %449 = vmatprep.subr.bf16.mxu0 0
        %450 = vmatpush1.bf16.msra.mxu0 0
        %451 = vmatprep.subr.bf16.mxu0 0
        %452 = vmatpush1.bf16.msra.mxu0 0
        %453 = vmatprep.subr.bf16.mxu0 0
        %454 = vmatpush1.bf16.msra.mxu0 0
        %455 = vmatprep.subr.bf16.mxu0 0
        %456 = vmatpush1.bf16.msra.mxu0 0
        %457 = vmatprep.subr.bf16.mxu0 0
        %458 = vmatpush1.bf16.msra.mxu0 0
        %459 = vmatprep.subr.bf16.mxu0 0
        %460 = vmatpush1.bf16.msra.mxu0 0
        %461 = vmatprep.subr.bf16.mxu0 0
        %462 = vmatpush1.bf16.msra.mxu0 0
        %463 = vmatprep.subr.bf16.mxu0 0
        %464 = vmatpush1.bf16.msra.mxu0 0
        %465 = vmatprep.subr.bf16.mxu0 0
        %466 = vmatpush1.bf16.msra.mxu0 0
        %467 = vmatprep.subr.bf16.mxu0 0
        %468 = vmatpush1.bf16.msra.mxu0 0
        %469 = vmatprep.subr.bf16.mxu0 0
        %470 = vmatpush1.bf16.msra.mxu0 0
        %471 = vmatprep.subr.bf16.mxu0 0
        %472 = vmatpush1.bf16.msra.mxu0 0
        %473 = vmatprep.mubr.bf16.mxu0 0
        %474 = vmatmul.mubr.bf16.gmra.mrb[0].mxu0 %v430
        %v475 = vpop.f32.mrb[0].mxu0
        %v476 = vadd.f32 %v400, %v475
        %v477 = vpop.f32.mrb[0].mxu0
        %v478 = vpop.f32.mrb[0].mxu0
        %v479 = vadd.f32 %v400, %v478
        %v480 = vpop.f32.mrb[0].mxu0
        %481 = vmatprep.mubr.bf16.mxu0 0
        %482 = vmatmul.mubr.bf16.gmra.mrb[0].mxu0 %v433
        %v483 = vpop.f32.mrb[0].mxu0
        %v484 = vadd.f32 %v400, %v483
        %v485 = vpop.f32.mrb[0].mxu0
        %v486 = vpop.f32.mrb[0].mxu0
        %v487 = vadd.f32 %v400, %v486
        %v488 = vpop.f32.mrb[0].mxu0
        %489 = vmatprep.mubr.bf16.mxu0 0
        %490 = vmatmul.mubr.bf16.gmra.mrb[0].mxu0 %v436
        %v491 = vpop.f32.mrb[0].mxu0
        %v492 = vadd.f32 %v400, %v491
        %v493 = vpop.f32.mrb[0].mxu0
        %v494 = vpop.f32.mrb[0].mxu0
        %v495 = vadd.f32 %v400, %v494
        %v496 = vpop.f32.mrb[0].mxu0
        %497 = vmatprep.mubr.bf16.mxu0 0
        %498 = vmatmul.mubr.bf16.gmra.mrb[0].mxu0 %v439
        %v499 = vpop.f32.mrb[0].mxu0
        %v500 = vadd.f32 %v400, %v499
        %v501 = vpop.f32.mrb[0].mxu0
        %v502 = vpop.f32.mrb[0].mxu0
        %v503 = vadd.f32 %v400, %v502
        %v504 = vpop.f32.mrb[0].mxu0
        %505 = vdwg.mxu0
        %v506 = vpack.c.bf16 %v476, %v476
        %v507 = vpack.c.bf16 %v479, %v479
        %v508 = vpack.c.bf16 %v484, %v484
        %v509 = vpack.c.bf16 %v487, %v487
        %v510 = vpack.c.bf16 %v492, %v492
        %v511 = vpack.c.bf16 %v495, %v495
        %v512 = vpack.c.bf16 %v500, %v500
        %v513 = vpack.c.bf16 %v503, %v503
        %vm514 = vcmask 257024
        %515 = vst.msk [vmem:[#allocation2] sm:$0xf] %vm514, %v506
        %516 = vst.msk [vmem:[#allocation2 + $0x4] sm:$0xf] %vm514, %v507
        %517 = vst.msk [vmem:[#allocation2 + $0x8] sm:$0xf] %vm514, %v508
        %518 = vst.msk [vmem:[#allocation2 + $0xc] sm:$0xf] %vm514, %v509
        %519 = vst.msk [vmem:[#allocation2 + $0x10] sm:$0xf] %vm514, %v510
        %520 = vst.msk [vmem:[#allocation2 + $0x14] sm:$0xf] %vm514, %v511
        %521 = vst.msk [vmem:[#allocation2 + $0x18] sm:$0xf] %vm514, %v512
        %522 = vst.msk [vmem:[#allocation2 + $0x1c] sm:$0xf] %vm514, %v513
        %v531 = vunpack.c.l.b16 %v506
        %v532 = vunpack.c.l.b16 %v507
        %v533 = vunpack.c.l.b16 %v508
        %v534 = vunpack.c.l.b16 %v509
        %v535 = vunpack.c.l.b16 %v510
        %v536 = vunpack.c.l.b16 %v511
        %v537 = vunpack.c.l.b16 %v512
        %v538 = vunpack.c.l.b16 %v513
        %v539 = vpack.c.b16 %v531, %v531
        %v540 = vpack.c.b16 %v532, %v532
        %v541 = vpack.c.b16 %v533, %v533
        %v542 = vpack.c.b16 %v534, %v534
        %v543 = vpack.c.b16 %v535, %v535
        %v544 = vpack.c.b16 %v536, %v536
        %v545 = vpack.c.b16 %v537, %v537
        %v546 = vpack.c.b16 %v538, %v538
        %547 = vrot.lane.b32.xlu0 %v539, 96
        %v548 = vpop.permute.xlu0 %547
        %549 = vrot.lane.b32.xlu0 %v540, 96
        %v550 = vpop.permute.xlu0 %549
        %551 = vrot.lane.b32.xlu0 %v541, 96
        %v552 = vpop.permute.xlu0 %551
        %553 = vrot.lane.b32.xlu0 %v542, 96
        %v554 = vpop.permute.xlu0 %553
        %555 = vrot.lane.b32.xlu0 %v543, 96
        %v556 = vpop.permute.xlu0 %555
        %557 = vrot.lane.b32.xlu0 %v544, 96
        %v558 = vpop.permute.xlu0 %557
        %559 = vrot.lane.b32.xlu0 %v545, 96
        %v560 = vpop.permute.xlu0 %559
        %561 = vrot.lane.b32.xlu0 %v546, 96
        %v562 = vpop.permute.xlu0 %561
        %571 = vst.msk [vmem:[#allocation3] sm:$0xf] %vm514, %v548
        %572 = vst.msk [vmem:[#allocation3 + $0x4] sm:$0xf] %vm514, %v550
        %573 = vst.msk [vmem:[#allocation3 + $0x8] sm:$0xf] %vm514, %v552
        %574 = vst.msk [vmem:[#allocation3 + $0xc] sm:$0xf] %vm514, %v554
        %575 = vst.msk [vmem:[#allocation3 + $0x10] sm:$0xf] %vm514, %v556
        %576 = vst.msk [vmem:[#allocation3 + $0x14] sm:$0xf] %vm514, %v558
        %577 = vst.msk [vmem:[#allocation3 + $0x18] sm:$0xf] %vm514, %v560
        %578 = vst.msk [vmem:[#allocation3 + $0x1c] sm:$0xf] %vm514, %v562
        %v579 = vld [vmem:[#allocation11] sm:$0xf]
        %v580 = vld [vmem:[#allocation12] sm:$0xf]
        %vm581 = vcmask 64512
        %v583 = vsel %vm581, 0, 0
        %vm585 = vcmask 1043456
        %v587 = vsel %vm585, %v579, 0
        %589 = vmatprep.subr.bf16.mxu0 0
        %590 = vmatpush1.bf16.msra.mxu0 %v587
        %591 = vmatprep.subr.bf16.mxu0 0
        %592 = vmatpush1.bf16.msra.mxu0 0
        %593 = vmatprep.subr.bf16.mxu0 0
        %594 = vmatpush1.bf16.msra.mxu0 0
        %595 = vmatprep.subr.bf16.mxu0 0
        %596 = vmatpush1.bf16.msra.mxu0 0
        %597 = vmatprep.subr.bf16.mxu0 0
        %598 = vmatpush1.bf16.msra.mxu0 0
        %599 = vmatprep.subr.bf16.mxu0 0
        %600 = vmatpush1.bf16.msra.mxu0 0
        %601 = vmatprep.subr.bf16.mxu0 0
        %602 = vmatpush1.bf16.msra.mxu0 0
        %603 = vmatprep.subr.bf16.mxu0 0
        %604 = vmatpush1.bf16.msra.mxu0 0
        %605 = vmatprep.subr.bf16.mxu0 0
        %606 = vmatpush1.bf16.msra.mxu0 0
        %607 = vmatprep.subr.bf16.mxu0 0
        %608 = vmatpush1.bf16.msra.mxu0 0
        %609 = vmatprep.subr.bf16.mxu0 0
        %610 = vmatpush1.bf16.msra.mxu0 0
        %611 = vmatprep.subr.bf16.mxu0 0
        %612 = vmatpush1.bf16.msra.mxu0 0
        %613 = vmatprep.subr.bf16.mxu0 0
        %614 = vmatpush1.bf16.msra.mxu0 0
        %615 = vmatprep.subr.bf16.mxu0 0
        %616 = vmatpush1.bf16.msra.mxu0 0
        %617 = vmatprep.subr.bf16.mxu0 0
        %618 = vmatpush1.bf16.msra.mxu0 0
        %619 = vmatprep.subr.bf16.mxu0 0
        %620 = vmatpush1.bf16.msra.mxu0 0
        %621 = vmatprep.mubr.bf16.mxu0 0
        %622 = vmatmul.mubr.bf16.gmra.mrb[0].mxu0 %v583
        %v623 = vpop.f32.mrb[0].mxu0
        %v624 = vadd.f32 0.0, %v623
        %v625 = vpop.f32.mrb[0].mxu0
        %v626 = vpop.f32.mrb[0].mxu0
        %v627 = vpop.f32.mrb[0].mxu0
        %628 = vdwg.mxu0
        %v630 = vsel %vm585, %v580, 0
        %632 = vmatprep.subr.bf16.mxu0 0
        %633 = vmatpush1.bf16.msra.mxu0 %v630
        %634 = vmatprep.subr.bf16.mxu0 0
        %635 = vmatpush1.bf16.msra.mxu0 0
        %636 = vmatprep.subr.bf16.mxu0 0
        %637 = vmatpush1.bf16.msra.mxu0 0
        %638 = vmatprep.subr.bf16.mxu0 0
        %639 = vmatpush1.bf16.msra.mxu0 0
        %640 = vmatprep.subr.bf16.mxu0 0
        %641 = vmatpush1.bf16.msra.mxu0 0
        %642 = vmatprep.subr.bf16.mxu0 0
        %643 = vmatpush1.bf16.msra.mxu0 0
        %644 = vmatprep.subr.bf16.mxu0 0
        %645 = vmatpush1.bf16.msra.mxu0 0
        %646 = vmatprep.subr.bf16.mxu0 0
        %647 = vmatpush1.bf16.msra.mxu0 0
        %648 = vmatprep.subr.bf16.mxu0 0
        %649 = vmatpush1.bf16.msra.mxu0 0
        %650 = vmatprep.subr.bf16.mxu0 0
        %651 = vmatpush1.bf16.msra.mxu0 0
        %652 = vmatprep.subr.bf16.mxu0 0
        %653 = vmatpush1.bf16.msra.mxu0 0
        %654 = vmatprep.subr.bf16.mxu0 0
        %655 = vmatpush1.bf16.msra.mxu0 0
        %656 = vmatprep.subr.bf16.mxu0 0
        %657 = vmatpush1.bf16.msra.mxu0 0
        %658 = vmatprep.subr.bf16.mxu0 0
        %659 = vmatpush1.bf16.msra.mxu0 0
        %660 = vmatprep.subr.bf16.mxu0 0
        %661 = vmatpush1.bf16.msra.mxu0 0
        %662 = vmatprep.subr.bf16.mxu0 0
        %663 = vmatpush1.bf16.msra.mxu0 0
        %664 = vmatprep.mubr.bf16.mxu0 0
        %665 = vmatmul.mubr.bf16.gmra.mrb[0].mxu0 %v583
        %v666 = vpop.f32.mrb[0].mxu0
        %v667 = vadd.f32 0.0, %v666
        %v668 = vpop.f32.mrb[0].mxu0
        %v669 = vpop.f32.mrb[0].mxu0
        %v670 = vpop.f32.mrb[0].mxu0
        %671 = vdwg.mxu0
        %v672 = vld [vmem:[#allocation2] sm:$0xf]
        %v673 = vunpack.c.l.bf16 %v672
        %v674 = vadd.f32 %v673, %v624
        %s675 = scalar_lea.vmem [#allocation3], 28
        %v676 = vld [vmem:[%s675] sm:$0xf]
        %v677 = vunpack.c.l.bf16 %v676
        %v678 = vadd.f32 %v677, %v667
        %v679 = vxor.u32 %v674, 2147483648
        %v680 = vmul.f32 %v679, 1.442695
        %v681 = vpow.pop %v680
        %v682 = vadd.f32 %v681, 1.0
        %v683 = vrcp.pop %v682
        %v684 = vmul.f32 1.0, %v683
        %v685 = vtanh.pop %v674
        %v686 = vmul.f32 %v684, 0.0
        %688 = vrot.lane.b32.xlu0 %v685, 104
        %v689 = vpop.permute.xlu0 %688
        %v691 = vmul.f32 %v684, %v689
        %693 = vrot.lane.b32.xlu0 %v691, 8
        %v694 = vpop.permute.xlu0 %693
        %v696 = vadd.f32 %v686, %v694
        %v697 = vtanh.pop %v696
        %699 = vrot.lane.b32.xlu0 %v697, 8
        %v700 = vpop.permute.xlu0 %699
        %v702 = vmul.f32 %v684, %v700
        %v703 = vxor.u32 %v678, 2147483648
        %v704 = vmul.f32 %v703, 1.442695
        %v705 = vpow.pop %v704
        %v706 = vadd.f32 %v705, 1.0
        %v707 = vrcp.pop %v706
        %v708 = vmul.f32 1.0, %v707
        %v709 = vtanh.pop %v678
        %v710 = vmul.f32 %v708, 0.0
        %712 = vrot.lane.b32.xlu0 %v709, 104
        %v713 = vpop.permute.xlu0 %712
        %v715 = vmul.f32 %v708, %v713
        %717 = vrot.lane.b32.xlu0 %v715, 8
        %v718 = vpop.permute.xlu0 %717
        %v720 = vadd.f32 %v710, %v718
        %v721 = vtanh.pop %v720
        %723 = vrot.lane.b32.xlu0 %v721, 8
        %v724 = vpop.permute.xlu0 %723
        %v726 = vmul.f32 %v708, %v724
        %728 = vrot.lane.b32.xlu0 %v702, 112
        %v729 = vpop.permute.xlu0 %728
        %731 = vst.msk [vmem:[#allocation4] sm:$0xff] %vm581, %v729
        %733 = vrot.lane.b32.xlu0 %v726, 112
        %v734 = vpop.permute.xlu0 %733
        %s736 = scalar_lea.vmem [#allocation5], 56
        %737 = vst.msk [vmem:[%s736] sm:$0xff] %vm581, %v734
        %v738 = vpack.c.bf16 %v702, %v702
        %740 = vrot.lane.b32.xlu0 %v738, 112
        %v741 = vpop.permute.xlu0 %740
        %v743 = vsel %vm581, %v741, 0
        %745 = vmatprep.subr.bf16.mxu0 0
        %746 = vmatpush1.bf16.msra.mxu0 %v587
        %747 = vmatprep.subr.bf16.mxu0 0
        %748 = vmatpush1.bf16.msra.mxu0 0
        %749 = vmatprep.subr.bf16.mxu0 0
        %750 = vmatpush1.bf16.msra.mxu0 0
        %751 = vmatprep.subr.bf16.mxu0 0
        %752 = vmatpush1.bf16.msra.mxu0 0
        %753 = vmatprep.subr.bf16.mxu0 0
        %754 = vmatpush1.bf16.msra.mxu0 0
        %755 = vmatprep.subr.bf16.mxu0 0
        %756 = vmatpush1.bf16.msra.mxu0 0
        %757 = vmatprep.subr.bf16.mxu0 0
        %758 = vmatpush1.bf16.msra.mxu0 0
        %759 = vmatprep.subr.bf16.mxu0 0
        %760 = vmatpush1.bf16.msra.mxu0 0
        %761 = vmatprep.subr.bf16.mxu0 0
        %762 = vmatpush1.bf16.msra.mxu0 0
        %763 = vmatprep.subr.bf16.mxu0 0
        %764 = vmatpush1.bf16.msra.mxu0 0
        %765 = vmatprep.subr.bf16.mxu0 0
        %766 = vmatpush1.bf16.msra.mxu0 0
        %767 = vmatprep.subr.bf16.mxu0 0
        %768 = vmatpush1.bf16.msra.mxu0 0
        %769 = vmatprep.subr.bf16.mxu0 0
        %770 = vmatpush1.bf16.msra.mxu0 0
        %771 = vmatprep.subr.bf16.mxu0 0
        %772 = vmatpush1.bf16.msra.mxu0 0
        %773 = vmatprep.subr.bf16.mxu0 0
        %774 = vmatpush1.bf16.msra.mxu0 0
        %775 = vmatprep.subr.bf16.mxu0 0
        %776 = vmatpush1.bf16.msra.mxu0 0
        %777 = vmatprep.mubr.bf16.mxu0 0
        %778 = vmatmul.mubr.bf16.gmra.mrb[0].mxu0 %v743
        %v779 = vpop.f32.mrb[0].mxu0
        %v780 = vadd.f32 0.0, %v779
        %v781 = vpop.f32.mrb[0].mxu0
        %v782 = vpop.f32.mrb[0].mxu0
        %v783 = vpop.f32.mrb[0].mxu0
        %784 = vdwg.mxu0
        %v785 = vpack.c.bf16 %v726, %v726
        %787 = vrot.lane.b32.xlu0 %v785, 112
        %v788 = vpop.permute.xlu0 %787
        %v790 = vsel %vm581, %v788, 0
        %792 = vmatprep.subr.bf16.mxu0 0
        %793 = vmatpush1.bf16.msra.mxu0 %v630
        %794 = vmatprep.subr.bf16.mxu0 0
        %795 = vmatpush1.bf16.msra.mxu0 0
        %796 = vmatprep.subr.bf16.mxu0 0
        %797 = vmatpush1.bf16.msra.mxu0 0
        %798 = vmatprep.subr.bf16.mxu0 0
        %799 = vmatpush1.bf16.msra.mxu0 0
        %800 = vmatprep.subr.bf16.mxu0 0
        %801 = vmatpush1.bf16.msra.mxu0 0
        %802 = vmatprep.subr.bf16.mxu0 0
        %803 = vmatpush1.bf16.msra.mxu0 0
        %804 = vmatprep.subr.bf16.mxu0 0
        %805 = vmatpush1.bf16.msra.mxu0 0
        %806 = vmatprep.subr.bf16.mxu0 0
        %807 = vmatpush1.bf16.msra.mxu0 0
        %808 = vmatprep.subr.bf16.mxu0 0
        %809 = vmatpush1.bf16.msra.mxu0 0
        %810 = vmatprep.subr.bf16.mxu0 0
        %811 = vmatpush1.bf16.msra.mxu0 0
        %812 = vmatprep.subr.bf16.mxu0 0
        %813 = vmatpush1.bf16.msra.mxu0 0
        %814 = vmatprep.subr.bf16.mxu0 0
        %815 = vmatpush1.bf16.msra.mxu0 0
        %816 = vmatprep.subr.bf16.mxu0 0
        %817 = vmatpush1.bf16.msra.mxu0 0
        %818 = vmatprep.subr.bf16.mxu0 0
        %819 = vmatpush1.bf16.msra.mxu0 0
        %820 = vmatprep.subr.bf16.mxu0 0
        %821 = vmatpush1.bf16.msra.mxu0 0
        %822 = vmatprep.subr.bf16.mxu0 0
        %823 = vmatpush1.bf16.msra.mxu0 0
        %824 = vmatprep.mubr.bf16.mxu0 0
        %825 = vmatmul.mubr.bf16.gmra.mrb[0].mxu0 %v790
        %v826 = vpop.f32.mrb[0].mxu0
        %v827 = vadd.f32 0.0, %v826
        %v828 = vpop.f32.mrb[0].mxu0
        %v829 = vpop.f32.mrb[0].mxu0
        %v830 = vpop.f32.mrb[0].mxu0
        %831 = vdwg.mxu0
        %s832 = scalar_lea.vmem [#allocation2], 4
        %v833 = vld [vmem:[%s832] sm:$0xf]
        %v834 = vunpack.c.l.bf16 %v833
        %v835 = vadd.f32 %v834, %v780
        %s836 = scalar_lea.vmem [#allocation3], 24
        %v837 = vld [vmem:[%s836] sm:$0xf]
        %v838 = vunpack.c.l.bf16 %v837
        %v839 = vadd.f32 %v838, %v827
        %v840 = vxor.u32 %v835, 2147483648
        %v841 = vmul.f32 %v840, 1.442695
        %v842 = vpow.pop %v841
        %v843 = vadd.f32 %v842, 1.0
        %v844 = vrcp.pop %v843
        %v845 = vmul.f32 1.0, %v844
        %v846 = vtanh.pop %v835
        %v847 = vmul.f32 %v845, %v696
        %849 = vrot.lane.b32.xlu0 %v846, 104
        %v850 = vpop.permute.xlu0 %849
        %v852 = vmul.f32 %v845, %v850
        %854 = vrot.lane.b32.xlu0 %v852, 8
        %v855 = vpop.permute.xlu0 %854
        %v857 = vadd.f32 %v847, %v855
        %v858 = vtanh.pop %v857
        %860 = vrot.lane.b32.xlu0 %v858, 8
        %v861 = vpop.permute.xlu0 %860
        %v863 = vmul.f32 %v845, %v861
        %v864 = vxor.u32 %v839, 2147483648
        %v865 = vmul.f32 %v864, 1.442695
        %v866 = vpow.pop %v865
        %v867 = vadd.f32 %v866, 1.0
        %v868 = vrcp.pop %v867
        %v869 = vmul.f32 1.0, %v868
        %v870 = vtanh.pop %v839
        %v871 = vmul.f32 %v869, %v720
        %873 = vrot.lane.b32.xlu0 %v870, 104
        %v874 = vpop.permute.xlu0 %873
        %v876 = vmul.f32 %v869, %v874
        %878 = vrot.lane.b32.xlu0 %v876, 8
        %v879 = vpop.permute.xlu0 %878
        %v881 = vadd.f32 %v871, %v879
        %v882 = vtanh.pop %v881
        %884 = vrot.lane.b32.xlu0 %v882, 8
        %v885 = vpop.permute.xlu0 %884
        %v887 = vmul.f32 %v869, %v885
        %889 = vrot.lane.b32.xlu0 %v863, 112
        %v890 = vpop.permute.xlu0 %889
        %s892 = scalar_lea.vmem [#allocation4], 8
        %893 = vst.msk [vmem:[%s892] sm:$0xff] %vm581, %v890
        %895 = vrot.lane.b32.xlu0 %v887, 112
        %v896 = vpop.permute.xlu0 %895
        %s898 = scalar_lea.vmem [#allocation5], 48
        %899 = vst.msk [vmem:[%s898] sm:$0xff] %vm581, %v896
        %v900 = vpack.c.bf16 %v863, %v863
        %902 = vrot.lane.b32.xlu0 %v900, 112
        %v903 = vpop.permute.xlu0 %902
        %v905 = vsel %vm581, %v903, 0
        %907 = vmatprep.subr.bf16.mxu0 0
        %908 = vmatpush1.bf16.msra.mxu0 %v587
        %909 = vmatprep.subr.bf16.mxu0 0
        %910 = vmatpush1.bf16.msra.mxu0 0
        %911 = vmatprep.subr.bf16.mxu0 0
        %912 = vmatpush1.bf16.msra.mxu0 0
        %913 = vmatprep.subr.bf16.mxu0 0
        %914 = vmatpush1.bf16.msra.mxu0 0
        %915 = vmatprep.subr.bf16.mxu0 0
        %916 = vmatpush1.bf16.msra.mxu0 0
        %917 = vmatprep.subr.bf16.mxu0 0
        %918 = vmatpush1.bf16.msra.mxu0 0
        %919 = vmatprep.subr.bf16.mxu0 0
        %920 = vmatpush1.bf16.msra.mxu0 0
        %921 = vmatprep.subr.bf16.mxu0 0
        %922 = vmatpush1.bf16.msra.mxu0 0
        %923 = vmatprep.subr.bf16.mxu0 0
        %924 = vmatpush1.bf16.msra.mxu0 0
        %925 = vmatprep.subr.bf16.mxu0 0
        %926 = vmatpush1.bf16.msra.mxu0 0
        %927 = vmatprep.subr.bf16.mxu0 0
        %928 = vmatpush1.bf16.msra.mxu0 0
        %929 = vmatprep.subr.bf16.mxu0 0
        %930 = vmatpush1.bf16.msra.mxu0 0
        %931 = vmatprep.subr.bf16.mxu0 0
        %932 = vmatpush1.bf16.msra.mxu0 0
        %933 = vmatprep.subr.bf16.mxu0 0
        %934 = vmatpush1.bf16.msra.mxu0 0
        %935 = vmatprep.subr.bf16.mxu0 0
        %936 = vmatpush1.bf16.msra.mxu0 0
        %937 = vmatprep.subr.bf16.mxu0 0
        %938 = vmatpush1.bf16.msra.mxu0 0
        %939 = vmatprep.mubr.bf16.mxu0 0
        %940 = vmatmul.mubr.bf16.gmra.mrb[0].mxu0 %v905
        %v941 = vpop.f32.mrb[0].mxu0
        %v942 = vadd.f32 0.0, %v941
        %v943 = vpop.f32.mrb[0].mxu0
        %v944 = vpop.f32.mrb[0].mxu0
        %v945 = vpop.f32.mrb[0].mxu0
        %946 = vdwg.mxu0
        %v947 = vpack.c.bf16 %v887, %v887
        %949 = vrot.lane.b32.xlu0 %v947, 112
        %v950 = vpop.permute.xlu0 %949
        %v952 = vsel %vm581, %v950, 0
        %954 = vmatprep.subr.bf16.mxu0 0
        %955 = vmatpush1.bf16.msra.mxu0 %v630
        %956 = vmatprep.subr.bf16.mxu0 0
        %957 = vmatpush1.bf16.msra.mxu0 0
        %958 = vmatprep.subr.bf16.mxu0 0
        %959 = vmatpush1.bf16.msra.mxu0 0
        %960 = vmatprep.subr.bf16.mxu0 0
        %961 = vmatpush1.bf16.msra.mxu0 0
        %962 = vmatprep.subr.bf16.mxu0 0
        %963 = vmatpush1.bf16.msra.mxu0 0
        %964 = vmatprep.subr.bf16.mxu0 0
        %965 = vmatpush1.bf16.msra.mxu0 0
        %966 = vmatprep.subr.bf16.mxu0 0
        %967 = vmatpush1.bf16.msra.mxu0 0
        %968 = vmatprep.subr.bf16.mxu0 0
        %969 = vmatpush1.bf16.msra.mxu0 0
        %970 = vmatprep.subr.bf16.mxu0 0
        %971 = vmatpush1.bf16.msra.mxu0 0
        %972 = vmatprep.subr.bf16.mxu0 0
        %973 = vmatpush1.bf16.msra.mxu0 0
        %974 = vmatprep.subr.bf16.mxu0 0
        %975 = vmatpush1.bf16.msra.mxu0 0
        %976 = vmatprep.subr.bf16.mxu0 0
        %977 = vmatpush1.bf16.msra.mxu0 0
        %978 = vmatprep.subr.bf16.mxu0 0
        %979 = vmatpush1.bf16.msra.mxu0 0
        %980 = vmatprep.subr.bf16.mxu0 0
        %981 = vmatpush1.bf16.msra.mxu0 0
        %982 = vmatprep.subr.bf16.mxu0 0
        %983 = vmatpush1.bf16.msra.mxu0 0
        %984 = vmatprep.subr.bf16.mxu0 0
        %985 = vmatpush1.bf16.msra.mxu0 0
        %986 = vmatprep.mubr.bf16.mxu0 0
        %987 = vmatmul.mubr.bf16.gmra.mrb[0].mxu0 %v952
        %v988 = vpop.f32.mrb[0].mxu0
        %v989 = vadd.f32 0.0, %v988
        %v990 = vpop.f32.mrb[0].mxu0
        %v991 = vpop.f32.mrb[0].mxu0
        %v992 = vpop.f32.mrb[0].mxu0
        %993 = vdwg.mxu0
        %s994 = scalar_lea.vmem [#allocation2], 8
        %v995 = vld [vmem:[%s994] sm:$0xf]
        %v996 = vunpack.c.l.bf16 %v995
        %v997 = vadd.f32 %v996, %v942
        %s998 = scalar_lea.vmem [#allocation3], 20
        %v999 = vld [vmem:[%s998] sm:$0xf]
        %v1000 = vunpack.c.l.bf16 %v999
        %v1001 = vadd.f32 %v1000, %v989
        %v1002 = vxor.u32 %v997, 2147483648
        %v1003 = vmul.f32 %v1002, 1.442695
        %v1004 = vpow.pop %v1003
        %v1005 = vadd.f32 %v1004, 1.0
        %v1006 = vrcp.pop %v1005
        %v1007 = vmul.f32 1.0, %v1006
        %v1008 = vtanh.pop %v997
        %v1009 = vmul.f32 %v1007, %v857
        %1011 = vrot.lane.b32.xlu0 %v1008, 104
        %v1012 = vpop.permute.xlu0 %1011
        %v1014 = vmul.f32 %v1007, %v1012
        %1016 = vrot.lane.b32.xlu0 %v1014, 8
        %v1017 = vpop.permute.xlu0 %1016
        %v1019 = vadd.f32 %v1009, %v1017
        %v1020 = vtanh.pop %v1019
        %1022 = vrot.lane.b32.xlu0 %v1020, 8
        %v1023 = vpop.permute.xlu0 %1022
        %v1025 = vmul.f32 %v1007, %v1023
        %v1026 = vxor.u32 %v1001, 2147483648
        %v1027 = vmul.f32 %v1026, 1.442695
        %v1028 = vpow.pop %v1027
        %v1029 = vadd.f32 %v1028, 1.0
        %v1030 = vrcp.pop %v1029
        %v1031 = vmul.f32 1.0, %v1030
        %v1032 = vtanh.pop %v1001
        %v1033 = vmul.f32 %v1031, %v881
        %1035 = vrot.lane.b32.xlu0 %v1032, 104
        %v1036 = vpop.permute.xlu0 %1035
        %v1038 = vmul.f32 %v1031, %v1036
        %1040 = vrot.lane.b32.xlu0 %v1038, 8
        %v1041 = vpop.permute.xlu0 %1040
        %v1043 = vadd.f32 %v1033, %v1041
        %v1044 = vtanh.pop %v1043
        %1046 = vrot.lane.b32.xlu0 %v1044, 8
        %v1047 = vpop.permute.xlu0 %1046
        %v1049 = vmul.f32 %v1031, %v1047
        %1051 = vrot.lane.b32.xlu0 %v1025, 112
        %v1052 = vpop.permute.xlu0 %1051
        %s1054 = scalar_lea.vmem [#allocation4], 16
        %1055 = vst.msk [vmem:[%s1054] sm:$0xff] %vm581, %v1052
        %1057 = vrot.lane.b32.xlu0 %v1049, 112
        %v1058 = vpop.permute.xlu0 %1057
        %s1060 = scalar_lea.vmem [#allocation5], 40
        %1061 = vst.msk [vmem:[%s1060] sm:$0xff] %vm581, %v1058
        %v1062 = vpack.c.bf16 %v1025, %v1025
        %1064 = vrot.lane.b32.xlu0 %v1062, 112
        %v1065 = vpop.permute.xlu0 %1064
        %v1067 = vsel %vm581, %v1065, 0
        %1069 = vmatprep.subr.bf16.mxu0 0
        %1070 = vmatpush1.bf16.msra.mxu0 %v587
        %1071 = vmatprep.subr.bf16.mxu0 0
        %1072 = vmatpush1.bf16.msra.mxu0 0
        %1073 = vmatprep.subr.bf16.mxu0 0
        %1074 = vmatpush1.bf16.msra.mxu0 0
        %1075 = vmatprep.subr.bf16.mxu0 0
        %1076 = vmatpush1.bf16.msra.mxu0 0
        %1077 = vmatprep.subr.bf16.mxu0 0
        %1078 = vmatpush1.bf16.msra.mxu0 0
        %1079 = vmatprep.subr.bf16.mxu0 0
        %1080 = vmatpush1.bf16.msra.mxu0 0
        %1081 = vmatprep.subr.bf16.mxu0 0
        %1082 = vmatpush1.bf16.msra.mxu0 0
        %1083 = vmatprep.subr.bf16.mxu0 0
        %1084 = vmatpush1.bf16.msra.mxu0 0
        %1085 = vmatprep.subr.bf16.mxu0 0
        %1086 = vmatpush1.bf16.msra.mxu0 0
        %1087 = vmatprep.subr.bf16.mxu0 0
        %1088 = vmatpush1.bf16.msra.mxu0 0
        %1089 = vmatprep.subr.bf16.mxu0 0
        %1090 = vmatpush1.bf16.msra.mxu0 0
        %1091 = vmatprep.subr.bf16.mxu0 0
        %1092 = vmatpush1.bf16.msra.mxu0 0
        %1093 = vmatprep.subr.bf16.mxu0 0
        %1094 = vmatpush1.bf16.msra.mxu0 0
        %1095 = vmatprep.subr.bf16.mxu0 0
        %1096 = vmatpush1.bf16.msra.mxu0 0
        %1097 = vmatprep.subr.bf16.mxu0 0
        %1098 = vmatpush1.bf16.msra.mxu0 0
        %1099 = vmatprep.subr.bf16.mxu0 0
        %1100 = vmatpush1.bf16.msra.mxu0 0
        %1101 = vmatprep.mubr.bf16.mxu0 0
        %1102 = vmatmul.mubr.bf16.gmra.mrb[0].mxu0 %v1067
        %v1103 = vpop.f32.mrb[0].mxu0
        %v1104 = vadd.f32 0.0, %v1103
        %v1105 = vpop.f32.mrb[0].mxu0
        %v1106 = vpop.f32.mrb[0].mxu0
        %v1107 = vpop.f32.mrb[0].mxu0
        %1108 = vdwg.mxu0
        %v1109 = vpack.c.bf16 %v1049, %v1049
        %1111 = vrot.lane.b32.xlu0 %v1109, 112
        %v1112 = vpop.permute.xlu0 %1111
        %v1114 = vsel %vm581, %v1112, 0
        %1116 = vmatprep.subr.bf16.mxu0 0
        %1117 = vmatpush1.bf16.msra.mxu0 %v630
        %1118 = vmatprep.subr.bf16.mxu0 0
        %1119 = vmatpush1.bf16.msra.mxu0 0
        %1120 = vmatprep.subr.bf16.mxu0 0
        %1121 = vmatpush1.bf16.msra.mxu0 0
        %1122 = vmatprep.subr.bf16.mxu0 0
        %1123 = vmatpush1.bf16.msra.mxu0 0
        %1124 = vmatprep.subr.bf16.mxu0 0
        %1125 = vmatpush1.bf16.msra.mxu0 0
        %1126 = vmatprep.subr.bf16.mxu0 0
        %1127 = vmatpush1.bf16.msra.mxu0 0
        %1128 = vmatprep.subr.bf16.mxu0 0
        %1129 = vmatpush1.bf16.msra.mxu0 0
        %1130 = vmatprep.subr.bf16.mxu0 0
        %1131 = vmatpush1.bf16.msra.mxu0 0
        %1132 = vmatprep.subr.bf16.mxu0 0
        %1133 = vmatpush1.bf16.msra.mxu0 0
        %1134 = vmatprep.subr.bf16.mxu0 0
        %1135 = vmatpush1.bf16.msra.mxu0 0
        %1136 = vmatprep.subr.bf16.mxu0 0
        %1137 = vmatpush1.bf16.msra.mxu0 0
        %1138 = vmatprep.subr.bf16.mxu0 0
        %1139 = vmatpush1.bf16.msra.mxu0 0
        %1140 = vmatprep.subr.bf16.mxu0 0
        %1141 = vmatpush1.bf16.msra.mxu0 0
        %1142 = vmatprep.subr.bf16.mxu0 0
        %1143 = vmatpush1.bf16.msra.mxu0 0
        %1144 = vmatprep.subr.bf16.mxu0 0
        %1145 = vmatpush1.bf16.msra.mxu0 0
        %1146 = vmatprep.subr.bf16.mxu0 0
        %1147 = vmatpush1.bf16.msra.mxu0 0
        %1148 = vmatprep.mubr.bf16.mxu0 0
        %1149 = vmatmul.mubr.bf16.gmra.mrb[0].mxu0 %v1114
        %v1150 = vpop.f32.mrb[0].mxu0
        %v1151 = vadd.f32 0.0, %v1150
        %v1152 = vpop.f32.mrb[0].mxu0
        %v1153 = vpop.f32.mrb[0].mxu0
        %v1154 = vpop.f32.mrb[0].mxu0
        %1155 = vdwg.mxu0
        %s1156 = scalar_lea.vmem [#allocation2], 12
        %v1157 = vld [vmem:[%s1156] sm:$0xf]
        %v1158 = vunpack.c.l.bf16 %v1157
        %v1159 = vadd.f32 %v1158, %v1104
        %s1160 = scalar_lea.vmem [#allocation3], 16
        %v1161 = vld [vmem:[%s1160] sm:$0xf]
        %v1162 = vunpack.c.l.bf16 %v1161
        %v1163 = vadd.f32 %v1162, %v1151
        %v1164 = vxor.u32 %v1159, 2147483648
        %v1165 = vmul.f32 %v1164, 1.442695
        %v1166 = vpow.pop %v1165
        %v1167 = vadd.f32 %v1166, 1.0
        %v1168 = vrcp.pop %v1167
        %v1169 = vmul.f32 1.0, %v1168
        %v1170 = vtanh.pop %v1159
        %v1171 = vmul.f32 %v1169, %v1019
        %1173 = vrot.lane.b32.xlu0 %v1170, 104
        %v1174 = vpop.permute.xlu0 %1173
        %v1176 = vmul.f32 %v1169, %v1174
        %1178 = vrot.lane.b32.xlu0 %v1176, 8
        %v1179 = vpop.permute.xlu0 %1178
        %v1181 = vadd.f32 %v1171, %v1179
        %v1182 = vtanh.pop %v1181
        %1184 = vrot.lane.b32.xlu0 %v1182, 8
        %v1185 = vpop.permute.xlu0 %1184
        %v1187 = vmul.f32 %v1169, %v1185
        %v1188 = vxor.u32 %v1163, 2147483648
        %v1189 = vmul.f32 %v1188, 1.442695
        %v1190 = vpow.pop %v1189
        %v1191 = vadd.f32 %v1190, 1.0
        %v1192 = vrcp.pop %v1191
        %v1193 = vmul.f32 1.0, %v1192
        %v1194 = vtanh.pop %v1163
        %v1195 = vmul.f32 %v1193, %v1043
        %1197 = vrot.lane.b32.xlu0 %v1194, 104
        %v1198 = vpop.permute.xlu0 %1197
        %v1200 = vmul.f32 %v1193, %v1198
        %1202 = vrot.lane.b32.xlu0 %v1200, 8
        %v1203 = vpop.permute.xlu0 %1202
        %v1205 = vadd.f32 %v1195, %v1203
        %v1206 = vtanh.pop %v1205
        %1208 = vrot.lane.b32.xlu0 %v1206, 8
        %v1209 = vpop.permute.xlu0 %1208
        %v1211 = vmul.f32 %v1193, %v1209
        %1213 = vrot.lane.b32.xlu0 %v1187, 112
        %v1214 = vpop.permute.xlu0 %1213
        %s1216 = scalar_lea.vmem [#allocation4], 24
        %1217 = vst.msk [vmem:[%s1216] sm:$0xff] %vm581, %v1214
        %1219 = vrot.lane.b32.xlu0 %v1211, 112
        %v1220 = vpop.permute.xlu0 %1219
        %s1222 = scalar_lea.vmem [#allocation5], 32
        %1223 = vst.msk [vmem:[%s1222] sm:$0xff] %vm581, %v1220
        %v1224 = vpack.c.bf16 %v1187, %v1187
        %1226 = vrot.lane.b32.xlu0 %v1224, 112
        %v1227 = vpop.permute.xlu0 %1226
        %v1229 = vsel %vm581, %v1227, 0
        %1231 = vmatprep.subr.bf16.mxu0 0
        %1232 = vmatpush1.bf16.msra.mxu0 %v587
        %1233 = vmatprep.subr.bf16.mxu0 0
        %1234 = vmatpush1.bf16.msra.mxu0 0
        %1235 = vmatprep.subr.bf16.mxu0 0
        %1236 = vmatpush1.bf16.msra.mxu0 0
        %1237 = vmatprep.subr.bf16.mxu0 0
        %1238 = vmatpush1.bf16.msra.mxu0 0
        %1239 = vmatprep.subr.bf16.mxu0 0
        %1240 = vmatpush1.bf16.msra.mxu0 0
        %1241 = vmatprep.subr.bf16.mxu0 0
        %1242 = vmatpush1.bf16.msra.mxu0 0
        %1243 = vmatprep.subr.bf16.mxu0 0
        %1244 = vmatpush1.bf16.msra.mxu0 0
        %1245 = vmatprep.subr.bf16.mxu0 0
        %1246 = vmatpush1.bf16.msra.mxu0 0
        %1247 = vmatprep.subr.bf16.mxu0 0
        %1248 = vmatpush1.bf16.msra.mxu0 0
        %1249 = vmatprep.subr.bf16.mxu0 0
        %1250 = vmatpush1.bf16.msra.mxu0 0
        %1251 = vmatprep.subr.bf16.mxu0 0
        %1252 = vmatpush1.bf16.msra.mxu0 0
        %1253 = vmatprep.subr.bf16.mxu0 0
        %1254 = vmatpush1.bf16.msra.mxu0 0
        %1255 = vmatprep.subr.bf16.mxu0 0
        %1256 = vmatpush1.bf16.msra.mxu0 0
        %1257 = vmatprep.subr.bf16.mxu0 0
        %1258 = vmatpush1.bf16.msra.mxu0 0
        %1259 = vmatprep.subr.bf16.mxu0 0
        %1260 = vmatpush1.bf16.msra.mxu0 0
        %1261 = vmatprep.subr.bf16.mxu0 0
        %1262 = vmatpush1.bf16.msra.mxu0 0
        %1263 = vmatprep.mubr.bf16.mxu0 0
        %1264 = vmatmul.mubr.bf16.gmra.mrb[0].mxu0 %v1229
        %v1265 = vpop.f32.mrb[0].mxu0
        %v1266 = vadd.f32 0.0, %v1265
        %v1267 = vpop.f32.mrb[0].mxu0
        %v1268 = vpop.f32.mrb[0].mxu0
        %v1269 = vpop.f32.mrb[0].mxu0
        %1270 = vdwg.mxu0
        %v1271 = vpack.c.bf16 %v1211, %v1211
        %1273 = vrot.lane.b32.xlu0 %v1271, 112
        %v1274 = vpop.permute.xlu0 %1273
        %v1276 = vsel %vm581, %v1274, 0
        %1278 = vmatprep.subr.bf16.mxu0 0
        %1279 = vmatpush1.bf16.msra.mxu0 %v630
        %1280 = vmatprep.subr.bf16.mxu0 0
        %1281 = vmatpush1.bf16.msra.mxu0 0
        %1282 = vmatprep.subr.bf16.mxu0 0
        %1283 = vmatpush1.bf16.msra.mxu0 0
        %1284 = vmatprep.subr.bf16.mxu0 0
        %1285 = vmatpush1.bf16.msra.mxu0 0
        %1286 = vmatprep.subr.bf16.mxu0 0
        %1287 = vmatpush1.bf16.msra.mxu0 0
        %1288 = vmatprep.subr.bf16.mxu0 0
        %1289 = vmatpush1.bf16.msra.mxu0 0
        %1290 = vmatprep.subr.bf16.mxu0 0
        %1291 = vmatpush1.bf16.msra.mxu0 0
        %1292 = vmatprep.subr.bf16.mxu0 0
        %1293 = vmatpush1.bf16.msra.mxu0 0
        %1294 = vmatprep.subr.bf16.mxu0 0
        %1295 = vmatpush1.bf16.msra.mxu0 0
        %1296 = vmatprep.subr.bf16.mxu0 0
        %1297 = vmatpush1.bf16.msra.mxu0 0
        %1298 = vmatprep.subr.bf16.mxu0 0
        %1299 = vmatpush1.bf16.msra.mxu0 0
        %1300 = vmatprep.subr.bf16.mxu0 0
        %1301 = vmatpush1.bf16.msra.mxu0 0
        %1302 = vmatprep.subr.bf16.mxu0 0
        %1303 = vmatpush1.bf16.msra.mxu0 0
        %1304 = vmatprep.subr.bf16.mxu0 0
        %1305 = vmatpush1.bf16.msra.mxu0 0
        %1306 = vmatprep.subr.bf16.mxu0 0
        %1307 = vmatpush1.bf16.msra.mxu0 0
        %1308 = vmatprep.subr.bf16.mxu0 0
        %1309 = vmatpush1.bf16.msra.mxu0 0
        %1310 = vmatprep.mubr.bf16.mxu0 0
        %1311 = vmatmul.mubr.bf16.gmra.mrb[0].mxu0 %v1276
        %v1312 = vpop.f32.mrb[0].mxu0
        %v1313 = vadd.f32 0.0, %v1312
        %v1314 = vpop.f32.mrb[0].mxu0
        %v1315 = vpop.f32.mrb[0].mxu0
        %v1316 = vpop.f32.mrb[0].mxu0
        %1317 = vdwg.mxu0
        %s1318 = scalar_lea.vmem [#allocation2], 16
        %v1319 = vld [vmem:[%s1318] sm:$0xf]
        %v1320 = vunpack.c.l.bf16 %v1319
        %v1321 = vadd.f32 %v1320, %v1266
        %s1322 = scalar_lea.vmem [#allocation3], 12
        %v1323 = vld [vmem:[%s1322] sm:$0xf]
        %v1324 = vunpack.c.l.bf16 %v1323
        %v1325 = vadd.f32 %v1324, %v1313
        %v1326 = vxor.u32 %v1321, 2147483648
        %v1327 = vmul.f32 %v1326, 1.442695
        %v1328 = vpow.pop %v1327
        %v1329 = vadd.f32 %v1328, 1.0
        %v1330 = vrcp.pop %v1329
        %v1331 = vmul.f32 1.0, %v1330
        %v1332 = vtanh.pop %v1321
        %v1333 = vmul.f32 %v1331, %v1181
        %1335 = vrot.lane.b32.xlu0 %v1332, 104
        %v1336 = vpop.permute.xlu0 %1335
        %v1338 = vmul.f32 %v1331, %v1336
        %1340 = vrot.lane.b32.xlu0 %v1338, 8
        %v1341 = vpop.permute.xlu0 %1340
        %v1343 = vadd.f32 %v1333, %v1341
        %v1344 = vtanh.pop %v1343
        %1346 = vrot.lane.b32.xlu0 %v1344, 8
        %v1347 = vpop.permute.xlu0 %1346
        %v1349 = vmul.f32 %v1331, %v1347
        %v1350 = vxor.u32 %v1325, 2147483648
        %v1351 = vmul.f32 %v1350, 1.442695
        %v1352 = vpow.pop %v1351
        %v1353 = vadd.f32 %v1352, 1.0
        %v1354 = vrcp.pop %v1353
        %v1355 = vmul.f32 1.0, %v1354
        %v1356 = vtanh.pop %v1325
        %v1357 = vmul.f32 %v1355, %v1205
        %1359 = vrot.lane.b32.xlu0 %v1356, 104
        %v1360 = vpop.permute.xlu0 %1359
        %v1362 = vmul.f32 %v1355, %v1360
        %1364 = vrot.lane.b32.xlu0 %v1362, 8
        %v1365 = vpop.permute.xlu0 %1364
        %v1367 = vadd.f32 %v1357, %v1365
        %v1368 = vtanh.pop %v1367
        %1370 = vrot.lane.b32.xlu0 %v1368, 8
        %v1371 = vpop.permute.xlu0 %1370
        %v1373 = vmul.f32 %v1355, %v1371
        %1375 = vrot.lane.b32.xlu0 %v1349, 112
        %v1376 = vpop.permute.xlu0 %1375
        %s1378 = scalar_lea.vmem [#allocation4], 32
        %1379 = vst.msk [vmem:[%s1378] sm:$0xff] %vm581, %v1376
        %1381 = vrot.lane.b32.xlu0 %v1373, 112
        %v1382 = vpop.permute.xlu0 %1381
        %s1384 = scalar_lea.vmem [#allocation5], 24
        %1385 = vst.msk [vmem:[%s1384] sm:$0xff] %vm581, %v1382
        %v1386 = vpack.c.bf16 %v1349, %v1349
        %1388 = vrot.lane.b32.xlu0 %v1386, 112
        %v1389 = vpop.permute.xlu0 %1388
        %v1391 = vsel %vm581, %v1389, 0
        %1393 = vmatprep.subr.bf16.mxu0 0
        %1394 = vmatpush1.bf16.msra.mxu0 %v587
        %1395 = vmatprep.subr.bf16.mxu0 0
        %1396 = vmatpush1.bf16.msra.mxu0 0
        %1397 = vmatprep.subr.bf16.mxu0 0
        %1398 = vmatpush1.bf16.msra.mxu0 0
        %1399 = vmatprep.subr.bf16.mxu0 0
        %1400 = vmatpush1.bf16.msra.mxu0 0
        %1401 = vmatprep.subr.bf16.mxu0 0
        %1402 = vmatpush1.bf16.msra.mxu0 0
        %1403 = vmatprep.subr.bf16.mxu0 0
        %1404 = vmatpush1.bf16.msra.mxu0 0
        %1405 = vmatprep.subr.bf16.mxu0 0
        %1406 = vmatpush1.bf16.msra.mxu0 0
        %1407 = vmatprep.subr.bf16.mxu0 0
        %1408 = vmatpush1.bf16.msra.mxu0 0
        %1409 = vmatprep.subr.bf16.mxu0 0
        %1410 = vmatpush1.bf16.msra.mxu0 0
        %1411 = vmatprep.subr.bf16.mxu0 0
        %1412 = vmatpush1.bf16.msra.mxu0 0
        %1413 = vmatprep.subr.bf16.mxu0 0
        %1414 = vmatpush1.bf16.msra.mxu0 0
        %1415 = vmatprep.subr.bf16.mxu0 0
        %1416 = vmatpush1.bf16.msra.mxu0 0
        %1417 = vmatprep.subr.bf16.mxu0 0
        %1418 = vmatpush1.bf16.msra.mxu0 0
        %1419 = vmatprep.subr.bf16.mxu0 0
        %1420 = vmatpush1.bf16.msra.mxu0 0
        %1421 = vmatprep.subr.bf16.mxu0 0
        %1422 = vmatpush1.bf16.msra.mxu0 0
        %1423 = vmatprep.subr.bf16.mxu0 0
        %1424 = vmatpush1.bf16.msra.mxu0 0
        %1425 = vmatprep.mubr.bf16.mxu0 0
        %1426 = vmatmul.mubr.bf16.gmra.mrb[0].mxu0 %v1391
        %v1427 = vpop.f32.mrb[0].mxu0
        %v1428 = vadd.f32 0.0, %v1427
        %v1429 = vpop.f32.mrb[0].mxu0
        %v1430 = vpop.f32.mrb[0].mxu0
        %v1431 = vpop.f32.mrb[0].mxu0
        %1432 = vdwg.mxu0
        %v1433 = vpack.c.bf16 %v1373, %v1373
        %1435 = vrot.lane.b32.xlu0 %v1433, 112
        %v1436 = vpop.permute.xlu0 %1435
        %v1438 = vsel %vm581, %v1436, 0
        %1440 = vmatprep.subr.bf16.mxu0 0
        %1441 = vmatpush1.bf16.msra.mxu0 %v630
        %1442 = vmatprep.subr.bf16.mxu0 0
        %1443 = vmatpush1.bf16.msra.mxu0 0
        %1444 = vmatprep.subr.bf16.mxu0 0
        %1445 = vmatpush1.bf16.msra.mxu0 0
        %1446 = vmatprep.subr.bf16.mxu0 0
        %1447 = vmatpush1.bf16.msra.mxu0 0
        %1448 = vmatprep.subr.bf16.mxu0 0
        %1449 = vmatpush1.bf16.msra.mxu0 0
        %1450 = vmatprep.subr.bf16.mxu0 0
        %1451 = vmatpush1.bf16.msra.mxu0 0
        %1452 = vmatprep.subr.bf16.mxu0 0
        %1453 = vmatpush1.bf16.msra.mxu0 0
        %1454 = vmatprep.subr.bf16.mxu0 0
        %1455 = vmatpush1.bf16.msra.mxu0 0
        %1456 = vmatprep.subr.bf16.mxu0 0
        %1457 = vmatpush1.bf16.msra.mxu0 0
        %1458 = vmatprep.subr.bf16.mxu0 0
        %1459 = vmatpush1.bf16.msra.mxu0 0
        %1460 = vmatprep.subr.bf16.mxu0 0
        %1461 = vmatpush1.bf16.msra.mxu0 0
        %1462 = vmatprep.subr.bf16.mxu0 0
        %1463 = vmatpush1.bf16.msra.mxu0 0
        %1464 = vmatprep.subr.bf16.mxu0 0
        %1465 = vmatpush1.bf16.msra.mxu0 0
        %1466 = vmatprep.subr.bf16.mxu0 0
        %1467 = vmatpush1.bf16.msra.mxu0 0
        %1468 = vmatprep.subr.bf16.mxu0 0
        %1469 = vmatpush1.bf16.msra.mxu0 0
        %1470 = vmatprep.subr.bf16.mxu0 0
        %1471 = vmatpush1.bf16.msra.mxu0 0
        %1472 = vmatprep.mubr.bf16.mxu0 0
        %1473 = vmatmul.mubr.bf16.gmra.mrb[0].mxu0 %v1438
        %v1474 = vpop.f32.mrb[0].mxu0
        %v1475 = vadd.f32 0.0, %v1474
        %v1476 = vpop.f32.mrb[0].mxu0
        %v1477 = vpop.f32.mrb[0].mxu0
        %v1478 = vpop.f32.mrb[0].mxu0
        %1479 = vdwg.mxu0
        %s1480 = scalar_lea.vmem [#allocation2], 20
        %v1481 = vld [vmem:[%s1480] sm:$0xf]
        %v1482 = vunpack.c.l.bf16 %v1481
        %v1483 = vadd.f32 %v1482, %v1428
        %s1484 = scalar_lea.vmem [#allocation3], 8
        %v1485 = vld [vmem:[%s1484] sm:$0xf]
        %v1486 = vunpack.c.l.bf16 %v1485
        %v1487 = vadd.f32 %v1486, %v1475
        %v1488 = vxor.u32 %v1483, 2147483648
        %v1489 = vmul.f32 %v1488, 1.442695
        %v1490 = vpow.pop %v1489
        %v1491 = vadd.f32 %v1490, 1.0
        %v1492 = vrcp.pop %v1491
        %v1493 = vmul.f32 1.0, %v1492
        %v1494 = vtanh.pop %v1483
        %v1495 = vmul.f32 %v1493, %v1343
        %1497 = vrot.lane.b32.xlu0 %v1494, 104
        %v1498 = vpop.permute.xlu0 %1497
        %v1500 = vmul.f32 %v1493, %v1498
        %1502 = vrot.lane.b32.xlu0 %v1500, 8
        %v1503 = vpop.permute.xlu0 %1502
        %v1505 = vadd.f32 %v1495, %v1503
        %v1506 = vtanh.pop %v1505
        %1508 = vrot.lane.b32.xlu0 %v1506, 8
        %v1509 = vpop.permute.xlu0 %1508
        %v1511 = vmul.f32 %v1493, %v1509
        %v1512 = vxor.u32 %v1487, 2147483648
        %v1513 = vmul.f32 %v1512, 1.442695
        %v1514 = vpow.pop %v1513
        %v1515 = vadd.f32 %v1514, 1.0
        %v1516 = vrcp.pop %v1515
        %v1517 = vmul.f32 1.0, %v1516
        %v1518 = vtanh.pop %v1487
        %v1519 = vmul.f32 %v1517, %v1367
        %1521 = vrot.lane.b32.xlu0 %v1518, 104
        %v1522 = vpop.permute.xlu0 %1521
        %v1524 = vmul.f32 %v1517, %v1522
        %1526 = vrot.lane.b32.xlu0 %v1524, 8
        %v1527 = vpop.permute.xlu0 %1526
        %v1529 = vadd.f32 %v1519, %v1527
        %v1530 = vtanh.pop %v1529
        %1532 = vrot.lane.b32.xlu0 %v1530, 8
        %v1533 = vpop.permute.xlu0 %1532
        %v1535 = vmul.f32 %v1517, %v1533
        %1537 = vrot.lane.b32.xlu0 %v1511, 112
        %v1538 = vpop.permute.xlu0 %1537
        %s1540 = scalar_lea.vmem [#allocation4], 40
        %1541 = vst.msk [vmem:[%s1540] sm:$0xff] %vm581, %v1538
        %1543 = vrot.lane.b32.xlu0 %v1535, 112
        %v1544 = vpop.permute.xlu0 %1543
        %s1546 = scalar_lea.vmem [#allocation5], 16
        %1547 = vst.msk [vmem:[%s1546] sm:$0xff] %vm581, %v1544
        %v1548 = vpack.c.bf16 %v1511, %v1511
        %1550 = vrot.lane.b32.xlu0 %v1548, 112
        %v1551 = vpop.permute.xlu0 %1550
        %v1553 = vsel %vm581, %v1551, 0
        %1555 = vmatprep.subr.bf16.mxu0 0
        %1556 = vmatpush1.bf16.msra.mxu0 %v587
        %1557 = vmatprep.subr.bf16.mxu0 0
        %1558 = vmatpush1.bf16.msra.mxu0 0
        %1559 = vmatprep.subr.bf16.mxu0 0
        %1560 = vmatpush1.bf16.msra.mxu0 0
        %1561 = vmatprep.subr.bf16.mxu0 0
        %1562 = vmatpush1.bf16.msra.mxu0 0
        %1563 = vmatprep.subr.bf16.mxu0 0
        %1564 = vmatpush1.bf16.msra.mxu0 0
        %1565 = vmatprep.subr.bf16.mxu0 0
        %1566 = vmatpush1.bf16.msra.mxu0 0
        %1567 = vmatprep.subr.bf16.mxu0 0
        %1568 = vmatpush1.bf16.msra.mxu0 0
        %1569 = vmatprep.subr.bf16.mxu0 0
        %1570 = vmatpush1.bf16.msra.mxu0 0
        %1571 = vmatprep.subr.bf16.mxu0 0
        %1572 = vmatpush1.bf16.msra.mxu0 0
        %1573 = vmatprep.subr.bf16.mxu0 0
        %1574 = vmatpush1.bf16.msra.mxu0 0
        %1575 = vmatprep.subr.bf16.mxu0 0
        %1576 = vmatpush1.bf16.msra.mxu0 0
        %1577 = vmatprep.subr.bf16.mxu0 0
        %1578 = vmatpush1.bf16.msra.mxu0 0
        %1579 = vmatprep.subr.bf16.mxu0 0
        %1580 = vmatpush1.bf16.msra.mxu0 0
        %1581 = vmatprep.subr.bf16.mxu0 0
        %1582 = vmatpush1.bf16.msra.mxu0 0
        %1583 = vmatprep.subr.bf16.mxu0 0
        %1584 = vmatpush1.bf16.msra.mxu0 0
        %1585 = vmatprep.subr.bf16.mxu0 0
        %1586 = vmatpush1.bf16.msra.mxu0 0
        %1587 = vmatprep.mubr.bf16.mxu0 0
        %1588 = vmatmul.mubr.bf16.gmra.mrb[0].mxu0 %v1553
        %v1589 = vpop.f32.mrb[0].mxu0
        %v1590 = vadd.f32 0.0, %v1589
        %v1591 = vpop.f32.mrb[0].mxu0
        %v1592 = vpop.f32.mrb[0].mxu0
        %v1593 = vpop.f32.mrb[0].mxu0
        %1594 = vdwg.mxu0
        %v1595 = vpack.c.bf16 %v1535, %v1535
        %1597 = vrot.lane.b32.xlu0 %v1595, 112
        %v1598 = vpop.permute.xlu0 %1597
        %v1600 = vsel %vm581, %v1598, 0
        %1602 = vmatprep.subr.bf16.mxu0 0
        %1603 = vmatpush1.bf16.msra.mxu0 %v630
        %1604 = vmatprep.subr.bf16.mxu0 0
        %1605 = vmatpush1.bf16.msra.mxu0 0
        %1606 = vmatprep.subr.bf16.mxu0 0
        %1607 = vmatpush1.bf16.msra.mxu0 0
        %1608 = vmatprep.subr.bf16.mxu0 0
        %1609 = vmatpush1.bf16.msra.mxu0 0
        %1610 = vmatprep.subr.bf16.mxu0 0
        %1611 = vmatpush1.bf16.msra.mxu0 0
        %1612 = vmatprep.subr.bf16.mxu0 0
        %1613 = vmatpush1.bf16.msra.mxu0 0
        %1614 = vmatprep.subr.bf16.mxu0 0
        %1615 = vmatpush1.bf16.msra.mxu0 0
        %1616 = vmatprep.subr.bf16.mxu0 0
        %1617 = vmatpush1.bf16.msra.mxu0 0
        %1618 = vmatprep.subr.bf16.mxu0 0
        %1619 = vmatpush1.bf16.msra.mxu0 0
        %1620 = vmatprep.subr.bf16.mxu0 0
        %1621 = vmatpush1.bf16.msra.mxu0 0
        %1622 = vmatprep.subr.bf16.mxu0 0
        %1623 = vmatpush1.bf16.msra.mxu0 0
        %1624 = vmatprep.subr.bf16.mxu0 0
        %1625 = vmatpush1.bf16.msra.mxu0 0
        %1626 = vmatprep.subr.bf16.mxu0 0
        %1627 = vmatpush1.bf16.msra.mxu0 0
        %1628 = vmatprep.subr.bf16.mxu0 0
        %1629 = vmatpush1.bf16.msra.mxu0 0
        %1630 = vmatprep.subr.bf16.mxu0 0
        %1631 = vmatpush1.bf16.msra.mxu0 0
        %1632 = vmatprep.subr.bf16.mxu0 0
        %1633 = vmatpush1.bf16.msra.mxu0 0
        %1634 = vmatprep.mubr.bf16.mxu0 0
        %1635 = vmatmul.mubr.bf16.gmra.mrb[0].mxu0 %v1600
        %v1636 = vpop.f32.mrb[0].mxu0
        %v1637 = vadd.f32 0.0, %v1636
        %v1638 = vpop.f32.mrb[0].mxu0
        %v1639 = vpop.f32.mrb[0].mxu0
        %v1640 = vpop.f32.mrb[0].mxu0
        %1641 = vdwg.mxu0
        %s1642 = scalar_lea.vmem [#allocation2], 24
        %v1643 = vld [vmem:[%s1642] sm:$0xf]
        %v1644 = vunpack.c.l.bf16 %v1643
        %v1645 = vadd.f32 %v1644, %v1590
        %s1646 = scalar_lea.vmem [#allocation3], 4
        %v1647 = vld [vmem:[%s1646] sm:$0xf]
        %v1648 = vunpack.c.l.bf16 %v1647
        %v1649 = vadd.f32 %v1648, %v1637
        %v1650 = vxor.u32 %v1645, 2147483648
        %v1651 = vmul.f32 %v1650, 1.442695
        %v1652 = vpow.pop %v1651
        %v1653 = vadd.f32 %v1652, 1.0
        %v1654 = vrcp.pop %v1653
        %v1655 = vmul.f32 1.0, %v1654
        %v1656 = vtanh.pop %v1645
        %v1657 = vmul.f32 %v1655, %v1505
        %1659 = vrot.lane.b32.xlu0 %v1656, 104
        %v1660 = vpop.permute.xlu0 %1659
        %v1662 = vmul.f32 %v1655, %v1660
        %1664 = vrot.lane.b32.xlu0 %v1662, 8
        %v1665 = vpop.permute.xlu0 %1664
        %v1667 = vadd.f32 %v1657, %v1665
        %v1668 = vtanh.pop %v1667
        %1670 = vrot.lane.b32.xlu0 %v1668, 8
        %v1671 = vpop.permute.xlu0 %1670
        %v1673 = vmul.f32 %v1655, %v1671
        %v1674 = vxor.u32 %v1649, 2147483648
        %v1675 = vmul.f32 %v1674, 1.442695
        %v1676 = vpow.pop %v1675
        %v1677 = vadd.f32 %v1676, 1.0
        %v1678 = vrcp.pop %v1677
        %v1679 = vmul.f32 1.0, %v1678
        %v1680 = vtanh.pop %v1649
        %v1681 = vmul.f32 %v1679, %v1529
        %1683 = vrot.lane.b32.xlu0 %v1680, 104
        %v1684 = vpop.permute.xlu0 %1683
        %v1686 = vmul.f32 %v1679, %v1684
        %1688 = vrot.lane.b32.xlu0 %v1686, 8
        %v1689 = vpop.permute.xlu0 %1688
        %v1691 = vadd.f32 %v1681, %v1689
        %v1692 = vtanh.pop %v1691
        %1694 = vrot.lane.b32.xlu0 %v1692, 8
        %v1695 = vpop.permute.xlu0 %1694
        %v1697 = vmul.f32 %v1679, %v1695
        %1699 = vrot.lane.b32.xlu0 %v1673, 112
        %v1700 = vpop.permute.xlu0 %1699
        %s1702 = scalar_lea.vmem [#allocation4], 48
        %1703 = vst.msk [vmem:[%s1702] sm:$0xff] %vm581, %v1700
        %1705 = vrot.lane.b32.xlu0 %v1697, 112
        %v1706 = vpop.permute.xlu0 %1705
        %s1708 = scalar_lea.vmem [#allocation5], 8
        %1709 = vst.msk [vmem:[%s1708] sm:$0xff] %vm581, %v1706
        %v1710 = vpack.c.bf16 %v1673, %v1673
        %1712 = vrot.lane.b32.xlu0 %v1710, 112
        %v1713 = vpop.permute.xlu0 %1712
        %v1715 = vsel %vm581, %v1713, 0
        %1717 = vmatprep.subr.bf16.mxu0 0
        %1718 = vmatpush1.bf16.msra.mxu0 %v587
        %1719 = vmatprep.subr.bf16.mxu0 0
        %1720 = vmatpush1.bf16.msra.mxu0 0
        %1721 = vmatprep.subr.bf16.mxu0 0
        %1722 = vmatpush1.bf16.msra.mxu0 0
        %1723 = vmatprep.subr.bf16.mxu0 0
        %1724 = vmatpush1.bf16.msra.mxu0 0
        %1725 = vmatprep.subr.bf16.mxu0 0
        %1726 = vmatpush1.bf16.msra.mxu0 0
        %1727 = vmatprep.subr.bf16.mxu0 0
        %1728 = vmatpush1.bf16.msra.mxu0 0
        %1729 = vmatprep.subr.bf16.mxu0 0
        %1730 = vmatpush1.bf16.msra.mxu0 0
        %1731 = vmatprep.subr.bf16.mxu0 0
        %1732 = vmatpush1.bf16.msra.mxu0 0
        %1733 = vmatprep.subr.bf16.mxu0 0
        %1734 = vmatpush1.bf16.msra.mxu0 0
        %1735 = vmatprep.subr.bf16.mxu0 0
        %1736 = vmatpush1.bf16.msra.mxu0 0
        %1737 = vmatprep.subr.bf16.mxu0 0
        %1738 = vmatpush1.bf16.msra.mxu0 0
        %1739 = vmatprep.subr.bf16.mxu0 0
        %1740 = vmatpush1.bf16.msra.mxu0 0
        %1741 = vmatprep.subr.bf16.mxu0 0
        %1742 = vmatpush1.bf16.msra.mxu0 0
        %1743 = vmatprep.subr.bf16.mxu0 0
        %1744 = vmatpush1.bf16.msra.mxu0 0
        %1745 = vmatprep.subr.bf16.mxu0 0
        %1746 = vmatpush1.bf16.msra.mxu0 0
        %1747 = vmatprep.subr.bf16.mxu0 0
        %1748 = vmatpush1.bf16.msra.mxu0 0
        %1749 = vmatprep.mubr.bf16.mxu0 0
        %1750 = vmatmul.mubr.bf16.gmra.mrb[0].mxu0 %v1715
        %v1751 = vpop.f32.mrb[0].mxu0
        %v1752 = vadd.f32 0.0, %v1751
        %v1753 = vpop.f32.mrb[0].mxu0
        %v1754 = vpop.f32.mrb[0].mxu0
        %v1755 = vpop.f32.mrb[0].mxu0
        %1756 = vdwg.mxu0
        %v1757 = vpack.c.bf16 %v1697, %v1697
        %1759 = vrot.lane.b32.xlu0 %v1757, 112
        %v1760 = vpop.permute.xlu0 %1759
        %v1762 = vsel %vm581, %v1760, 0
        %1764 = vmatprep.subr.bf16.mxu0 0
        %1765 = vmatpush1.bf16.msra.mxu0 %v630
        %1766 = vmatprep.subr.bf16.mxu0 0
        %1767 = vmatpush1.bf16.msra.mxu0 0
        %1768 = vmatprep.subr.bf16.mxu0 0
        %1769 = vmatpush1.bf16.msra.mxu0 0
        %1770 = vmatprep.subr.bf16.mxu0 0
        %1771 = vmatpush1.bf16.msra.mxu0 0
        %1772 = vmatprep.subr.bf16.mxu0 0
        %1773 = vmatpush1.bf16.msra.mxu0 0
        %1774 = vmatprep.subr.bf16.mxu0 0
        %1775 = vmatpush1.bf16.msra.mxu0 0
        %1776 = vmatprep.subr.bf16.mxu0 0
        %1777 = vmatpush1.bf16.msra.mxu0 0
        %1778 = vmatprep.subr.bf16.mxu0 0
        %1779 = vmatpush1.bf16.msra.mxu0 0
        %1780 = vmatprep.subr.bf16.mxu0 0
        %1781 = vmatpush1.bf16.msra.mxu0 0
        %1782 = vmatprep.subr.bf16.mxu0 0
        %1783 = vmatpush1.bf16.msra.mxu0 0
        %1784 = vmatprep.subr.bf16.mxu0 0
        %1785 = vmatpush1.bf16.msra.mxu0 0
        %1786 = vmatprep.subr.bf16.mxu0 0
        %1787 = vmatpush1.bf16.msra.mxu0 0
        %1788 = vmatprep.subr.bf16.mxu0 0
        %1789 = vmatpush1.bf16.msra.mxu0 0
        %1790 = vmatprep.subr.bf16.mxu0 0
        %1791 = vmatpush1.bf16.msra.mxu0 0
        %1792 = vmatprep.subr.bf16.mxu0 0
        %1793 = vmatpush1.bf16.msra.mxu0 0
        %1794 = vmatprep.subr.bf16.mxu0 0
        %1795 = vmatpush1.bf16.msra.mxu0 0
        %1796 = vmatprep.mubr.bf16.mxu0 0
        %1797 = vmatmul.mubr.bf16.gmra.mrb[0].mxu0 %v1762
        %v1798 = vpop.f32.mrb[0].mxu0
        %v1799 = vadd.f32 0.0, %v1798
        %v1800 = vpop.f32.mrb[0].mxu0
        %v1801 = vpop.f32.mrb[0].mxu0
        %v1802 = vpop.f32.mrb[0].mxu0
        %1803 = vdwg.mxu0
        %s1804 = scalar_lea.vmem [#allocation2], 28
        %v1805 = vld [vmem:[%s1804] sm:$0xf]
        %v1806 = vunpack.c.l.bf16 %v1805
        %v1807 = vadd.f32 %v1806, %v1752
        %v1808 = vld [vmem:[#allocation3] sm:$0xf]
        %v1809 = vunpack.c.l.bf16 %v1808
        %v1810 = vadd.f32 %v1809, %v1799
        %v1811 = vxor.u32 %v1807, 2147483648
        %v1812 = vmul.f32 %v1811, 1.442695
        %v1813 = vpow.pop %v1812
        %v1814 = vadd.f32 %v1813, 1.0
        %v1815 = vrcp.pop %v1814
        %v1816 = vmul.f32 1.0, %v1815
        %v1817 = vtanh.pop %v1807
        %v1818 = vmul.f32 %v1816, %v1667
        %1820 = vrot.lane.b32.xlu0 %v1817, 104
        %v1821 = vpop.permute.xlu0 %1820
        %v1823 = vmul.f32 %v1816, %v1821
        %1825 = vrot.lane.b32.xlu0 %v1823, 8
        %v1826 = vpop.permute.xlu0 %1825
        %v1828 = vadd.f32 %v1818, %v1826
        %v1829 = vtanh.pop %v1828
        %1831 = vrot.lane.b32.xlu0 %v1829, 8
        %v1832 = vpop.permute.xlu0 %1831
        %v1834 = vmul.f32 %v1816, %v1832
        %v1835 = vxor.u32 %v1810, 2147483648
        %v1836 = vmul.f32 %v1835, 1.442695
        %v1837 = vpow.pop %v1836
        %v1838 = vadd.f32 %v1837, 1.0
        %v1839 = vrcp.pop %v1838
        %v1840 = vmul.f32 1.0, %v1839
        %v1841 = vtanh.pop %v1810
        %v1842 = vmul.f32 %v1840, %v1691
        %1844 = vrot.lane.b32.xlu0 %v1841, 104
        %v1845 = vpop.permute.xlu0 %1844
        %v1847 = vmul.f32 %v1840, %v1845
        %1849 = vrot.lane.b32.xlu0 %v1847, 8
        %v1850 = vpop.permute.xlu0 %1849
        %v1852 = vadd.f32 %v1842, %v1850
        %v1853 = vtanh.pop %v1852
        %1855 = vrot.lane.b32.xlu0 %v1853, 8
        %v1856 = vpop.permute.xlu0 %1855
        %v1858 = vmul.f32 %v1840, %v1856
        %1860 = vrot.lane.b32.xlu0 %v1834, 112
        %v1861 = vpop.permute.xlu0 %1860
        %s1863 = scalar_lea.vmem [#allocation4], 56
        %1864 = vst.msk [vmem:[%s1863] sm:$0xff] %vm581, %v1861
        %1866 = vrot.lane.b32.xlu0 %v1858, 112
        %v1867 = vpop.permute.xlu0 %1866
        %1869 = vst.msk [vmem:[#allocation5] sm:$0xff] %vm581, %v1867
        %v1870 = vld [vmem:[#allocation4] sm:$0xff]
        %v1871 = vld [vmem:[#allocation4 + $0x8] sm:$0xff]
        %v1872 = vld [vmem:[#allocation4 + $0x10] sm:$0xff]
        %v1873 = vld [vmem:[#allocation4 + $0x18] sm:$0xff]
        %v1874 = vld [vmem:[#allocation4 + $0x20] sm:$0xff]
        %v1875 = vld [vmem:[#allocation4 + $0x28] sm:$0xff]
        %v1876 = vld [vmem:[#allocation4 + $0x30] sm:$0xff]
        %v1877 = vld [vmem:[#allocation4 + $0x38] sm:$0xff]
        %v1878 = vpack.c.bf16 %v1871, %v1870
        %v1879 = vpack.c.bf16 %v1873, %v1872
        %v1880 = vpack.c.bf16 %v1875, %v1874
        %v1881 = vpack.c.bf16 %v1877, %v1876
        %v1882 = vld [vmem:[#allocation5] sm:$0xff]
        %v1883 = vld [vmem:[#allocation5 + $0x8] sm:$0xff]
        %v1884 = vld [vmem:[#allocation5 + $0x10] sm:$0xff]
        %v1885 = vld [vmem:[#allocation5 + $0x18] sm:$0xff]
        %v1886 = vld [vmem:[#allocation5 + $0x20] sm:$0xff]
        %v1887 = vld [vmem:[#allocation5 + $0x28] sm:$0xff]
        %v1888 = vld [vmem:[#allocation5 + $0x30] sm:$0xff]
        %v1889 = vld [vmem:[#allocation5 + $0x38] sm:$0xff]
        %v1890 = vpack.c.bf16 %v1883, %v1882
        %v1891 = vpack.c.bf16 %v1885, %v1884
        %v1892 = vpack.c.bf16 %v1887, %v1886
        %v1893 = vpack.c.bf16 %v1889, %v1888
        %v1894 = vld [vmem:[#allocation15] sm:$0xf]
        %v1895 = vld [vmem:[#allocation15 + $0x4] sm:$0xf]
        %v1897 = vsel %vm581, %v1890, 0
        %v1900 = vsel %vm581, %v1891, 0
        %v1903 = vsel %vm581, %v1892, 0
        %v1906 = vsel %vm581, %v1893, 0
        %v1909 = vsel %vm585, %v1895, 0
        %1911 = vmatprep.subr.bf16.mxu0 0
        %1912 = vmatpush1.bf16.msra.mxu0 %v1909
        %1913 = vmatprep.subr.bf16.mxu0 0
        %1914 = vmatpush1.bf16.msra.mxu0 0
        %1915 = vmatprep.subr.bf16.mxu0 0
        %1916 = vmatpush1.bf16.msra.mxu0 0
        %1917 = vmatprep.subr.bf16.mxu0 0
        %1918 = vmatpush1.bf16.msra.mxu0 0
        %1919 = vmatprep.subr.bf16.mxu0 0
        %1920 = vmatpush1.bf16.msra.mxu0 0
        %1921 = vmatprep.subr.bf16.mxu0 0
        %1922 = vmatpush1.bf16.msra.mxu0 0
        %1923 = vmatprep.subr.bf16.mxu0 0
        %1924 = vmatpush1.bf16.msra.mxu0 0
        %1925 = vmatprep.subr.bf16.mxu0 0
        %1926 = vmatpush1.bf16.msra.mxu0 0
        %1927 = vmatprep.subr.bf16.mxu0 0
        %1928 = vmatpush1.bf16.msra.mxu0 0
        %1929 = vmatprep.subr.bf16.mxu0 0
        %1930 = vmatpush1.bf16.msra.mxu0 0
        %1931 = vmatprep.subr.bf16.mxu0 0
        %1932 = vmatpush1.bf16.msra.mxu0 0
        %1933 = vmatprep.subr.bf16.mxu0 0
        %1934 = vmatpush1.bf16.msra.mxu0 0
        %1935 = vmatprep.subr.bf16.mxu0 0
        %1936 = vmatpush1.bf16.msra.mxu0 0
        %1937 = vmatprep.subr.bf16.mxu0 0
        %1938 = vmatpush1.bf16.msra.mxu0 0
        %1939 = vmatprep.subr.bf16.mxu0 0
        %1940 = vmatpush1.bf16.msra.mxu0 0
        %1941 = vmatprep.subr.bf16.mxu0 0
        %1942 = vmatpush1.bf16.msra.mxu0 0
        %1943 = vmatprep.mubr.bf16.mxu0 0
        %1944 = vmatmul.mubr.bf16.gmra.mrb[0].mxu0 %v1897
        %v1945 = vpop.f32.mrb[0].mxu0
        %v1946 = vadd.f32 0.0, %v1945
        %v1947 = vpop.f32.mrb[0].mxu0
        %v1948 = vpop.f32.mrb[0].mxu0
        %v1949 = vadd.f32 0.0, %v1948
        %v1950 = vpop.f32.mrb[0].mxu0
        %1951 = vmatprep.mubr.bf16.mxu0 0
        %1952 = vmatmul.mubr.bf16.gmra.mrb[0].mxu0 %v1900
        %v1953 = vpop.f32.mrb[0].mxu0
        %v1954 = vadd.f32 0.0, %v1953
        %v1955 = vpop.f32.mrb[0].mxu0
        %v1956 = vpop.f32.mrb[0].mxu0
        %v1957 = vadd.f32 0.0, %v1956
        %v1958 = vpop.f32.mrb[0].mxu0
        %1959 = vmatprep.mubr.bf16.mxu0 0
        %1960 = vmatmul.mubr.bf16.gmra.mrb[0].mxu0 %v1903
        %v1961 = vpop.f32.mrb[0].mxu0
        %v1962 = vadd.f32 0.0, %v1961
        %v1963 = vpop.f32.mrb[0].mxu0
        %v1964 = vpop.f32.mrb[0].mxu0
        %v1965 = vadd.f32 0.0, %v1964
        %v1966 = vpop.f32.mrb[0].mxu0
        %1967 = vmatprep.mubr.bf16.mxu0 0
        %1968 = vmatmul.mubr.bf16.gmra.mrb[0].mxu0 %v1906
        %v1969 = vpop.f32.mrb[0].mxu0
        %v1970 = vadd.f32 0.0, %v1969
        %v1971 = vpop.f32.mrb[0].mxu0
        %v1972 = vpop.f32.mrb[0].mxu0
        %v1973 = vadd.f32 0.0, %v1972
        %v1974 = vpop.f32.mrb[0].mxu0
        %1975 = vdwg.mxu0
        %v1977 = vsel %vm581, %v1878, 0
        %v1980 = vsel %vm581, %v1879, 0
        %v1983 = vsel %vm581, %v1880, 0
        %v1986 = vsel %vm581, %v1881, 0
        %v1989 = vsel %vm585, %v1894, 0
        %1991 = vmatprep.subr.bf16.mxu0 0
        %1992 = vmatpush1.bf16.msra.mxu0 %v1989
        %1993 = vmatprep.subr.bf16.mxu0 0
        %1994 = vmatpush1.bf16.msra.mxu0 0
        %1995 = vmatprep.subr.bf16.mxu0 0
        %1996 = vmatpush1.bf16.msra.mxu0 0
        %1997 = vmatprep.subr.bf16.mxu0 0
        %1998 = vmatpush1.bf16.msra.mxu0 0
        %1999 = vmatprep.subr.bf16.mxu0 0
        %2000 = vmatpush1.bf16.msra.mxu0 0
        %2001 = vmatprep.subr.bf16.mxu0 0
        %2002 = vmatpush1.bf16.msra.mxu0 0
        %2003 = vmatprep.subr.bf16.mxu0 0
        %2004 = vmatpush1.bf16.msra.mxu0 0
        %2005 = vmatprep.subr.bf16.mxu0 0
        %2006 = vmatpush1.bf16.msra.mxu0 0
        %2007 = vmatprep.subr.bf16.mxu0 0
        %2008 = vmatpush1.bf16.msra.mxu0 0
        %2009 = vmatprep.subr.bf16.mxu0 0
        %2010 = vmatpush1.bf16.msra.mxu0 0
        %2011 = vmatprep.subr.bf16.mxu0 0
        %2012 = vmatpush1.bf16.msra.mxu0 0
        %2013 = vmatprep.subr.bf16.mxu0 0
        %2014 = vmatpush1.bf16.msra.mxu0 0
        %2015 = vmatprep.subr.bf16.mxu0 0
        %2016 = vmatpush1.bf16.msra.mxu0 0
        %2017 = vmatprep.subr.bf16.mxu0 0
        %2018 = vmatpush1.bf16.msra.mxu0 0
        %2019 = vmatprep.subr.bf16.mxu0 0
        %2020 = vmatpush1.bf16.msra.mxu0 0
        %2021 = vmatprep.subr.bf16.mxu0 0
        %2022 = vmatpush1.bf16.msra.mxu0 0
        %2023 = vmatprep.mubr.bf16.mxu0 0
        %2024 = vmatmul.mubr.bf16.gmra.mrb[0].mxu0 %v1977
        %v2025 = vpop.f32.mrb[0].mxu0
        %v2026 = vadd.f32 %v1946, %v2025
        %v2027 = vpop.f32.mrb[0].mxu0
        %v2028 = vpop.f32.mrb[0].mxu0
        %v2029 = vadd.f32 %v1949, %v2028
        %v2030 = vpop.f32.mrb[0].mxu0
        %2031 = vmatprep.mubr.bf16.mxu0 0
        %2032 = vmatmul.mubr.bf16.gmra.mrb[0].mxu0 %v1980
        %v2033 = vpop.f32.mrb[0].mxu0
        %v2034 = vadd.f32 %v1954, %v2033
        %v2035 = vpop.f32.mrb[0].mxu0
        %v2036 = vpop.f32.mrb[0].mxu0
        %v2037 = vadd.f32 %v1957, %v2036
        %v2038 = vpop.f32.mrb[0].mxu0
        %2039 = vmatprep.mubr.bf16.mxu0 0
        %2040 = vmatmul.mubr.bf16.gmra.mrb[0].mxu0 %v1983
        %v2041 = vpop.f32.mrb[0].mxu0
        %v2042 = vadd.f32 %v1962, %v2041
        %v2043 = vpop.f32.mrb[0].mxu0
        %v2044 = vpop.f32.mrb[0].mxu0
        %v2045 = vadd.f32 %v1965, %v2044
        %v2046 = vpop.f32.mrb[0].mxu0
        %2047 = vmatprep.mubr.bf16.mxu0 0
        %2048 = vmatmul.mubr.bf16.gmra.mrb[0].mxu0 %v1986
        %v2049 = vpop.f32.mrb[0].mxu0
        %v2050 = vadd.f32 %v1970, %v2049
        %v2051 = vpop.f32.mrb[0].mxu0
        %v2052 = vpop.f32.mrb[0].mxu0
        %v2053 = vadd.f32 %v1973, %v2052
        %v2054 = vpop.f32.mrb[0].mxu0
        %2055 = vdwg.mxu0
        %v2056 = vld [vmem:[#allocation17] sm:$0x1]
        %v2058 = vlaneseq
        %v2059 = vshrl.u32 %v2058, 7
        %v2060 = vsub.s32 0, %v2059
        %v2061 = vrot.slane %v2056, %v2060
        %v2063 = vadd.f32 %v2026, %v2061
        %v2064 = vadd.f32 %v2029, %v2061
        %v2065 = vadd.f32 %v2034, %v2061
        %v2066 = vadd.f32 %v2037, %v2061
        %v2067 = vadd.f32 %v2042, %v2061
        %v2068 = vadd.f32 %v2045, %v2061
        %v2069 = vadd.f32 %v2050, %v2061
        %v2070 = vadd.f32 %v2053, %v2061
        %v2071 = vsel %vm428, %v2063, 0.0
        %2072 = vadd.xlane.f32.xlu0 %v2071
        %v2073 = vpop.xlane.xlu0 %2072
        %v2074 = vsel %vm428, %v2064, 0.0
        %2075 = vadd.xlane.f32.xlu0 %v2074
        %v2076 = vpop.xlane.xlu0 %2075
        %v2077 = vsel %vm428, %v2065, 0.0
        %2078 = vadd.xlane.f32.xlu0 %v2077
        %v2079 = vpop.xlane.xlu0 %2078
        %v2080 = vsel %vm428, %v2066, 0.0
        %2081 = vadd.xlane.f32.xlu0 %v2080
        %v2082 = vpop.xlane.xlu0 %2081
        %v2083 = vsel %vm428, %v2067, 0.0
        %2084 = vadd.xlane.f32.xlu0 %v2083
        %v2085 = vpop.xlane.xlu0 %2084
        %v2086 = vsel %vm428, %v2068, 0.0
        %2087 = vadd.xlane.f32.xlu0 %v2086
        %v2088 = vpop.xlane.xlu0 %2087
        %v2089 = vsel %vm428, %v2069, 0.0
        %2090 = vadd.xlane.f32.xlu0 %v2089
        %v2091 = vpop.xlane.xlu0 %2090
        %v2092 = vsel %vm428, %v2070, 0.0
        %2093 = vadd.xlane.f32.xlu0 %v2092
        %v2094 = vpop.xlane.xlu0 %2093
        %v2095 = vrcp.pop 16.0
        %v2096 = vmul.f32 %v2073, %v2095
        %v2097 = vmul.f32 %v2076, %v2095
        %v2098 = vmul.f32 %v2079, %v2095
        %v2099 = vmul.f32 %v2082, %v2095
        %v2100 = vmul.f32 %v2085, %v2095
        %v2101 = vmul.f32 %v2088, %v2095
        %v2102 = vmul.f32 %v2091, %v2095
        %v2103 = vmul.f32 %v2094, %v2095
        %v2104 = vrot.slane %v2096, 4
        %v2105 = vadd.f32 %v2096, %v2104
        %v2106 = vrot.slane %v2105, 2
        %v2107 = vadd.f32 %v2105, %v2106
        %v2108 = vrot.slane %v2107, 1
        %v2109 = vadd.f32 %v2107, %v2108
        %v2110 = vrot.slane %v2097, 4
        %v2111 = vadd.f32 %v2097, %v2110
        %v2112 = vrot.slane %v2111, 2
        %v2113 = vadd.f32 %v2111, %v2112
        %v2114 = vrot.slane %v2113, 1
        %v2115 = vadd.f32 %v2113, %v2114
        %v2116 = vrot.slane %v2098, 4
        %v2117 = vadd.f32 %v2098, %v2116
        %v2118 = vrot.slane %v2117, 2
        %v2119 = vadd.f32 %v2117, %v2118
        %v2120 = vrot.slane %v2119, 1
        %v2121 = vadd.f32 %v2119, %v2120
        %v2122 = vrot.slane %v2099, 4
        %v2123 = vadd.f32 %v2099, %v2122
        %v2124 = vrot.slane %v2123, 2
        %v2125 = vadd.f32 %v2123, %v2124
        %v2126 = vrot.slane %v2125, 1
        %v2127 = vadd.f32 %v2125, %v2126
        %v2128 = vrot.slane %v2100, 4
        %v2129 = vadd.f32 %v2100, %v2128
        %v2130 = vrot.slane %v2129, 2
        %v2131 = vadd.f32 %v2129, %v2130
        %v2132 = vrot.slane %v2131, 1
        %v2133 = vadd.f32 %v2131, %v2132
        %v2134 = vrot.slane %v2101, 4
        %v2135 = vadd.f32 %v2101, %v2134
        %v2136 = vrot.slane %v2135, 2
        %v2137 = vadd.f32 %v2135, %v2136
        %v2138 = vrot.slane %v2137, 1
        %v2139 = vadd.f32 %v2137, %v2138
        %v2140 = vrot.slane %v2102, 4
        %v2141 = vadd.f32 %v2102, %v2140
        %v2142 = vrot.slane %v2141, 2
        %v2143 = vadd.f32 %v2141, %v2142
        %v2144 = vrot.slane %v2143, 1
        %v2145 = vadd.f32 %v2143, %v2144
        %v2146 = vrot.slane %v2103, 4
        %v2147 = vadd.f32 %v2103, %v2146
        %v2148 = vrot.slane %v2147, 2
        %v2149 = vadd.f32 %v2147, %v2148
        %v2150 = vrot.slane %v2149, 1
        %v2151 = vadd.f32 %v2149, %v2150
        %v2152 = vrcp.pop 8.0
        %v2153 = vmul.f32 %v2109, %v2152
        %v2154 = vmul.f32 %v2115, %v2152
        %v2155 = vmul.f32 %v2121, %v2152
        %v2156 = vmul.f32 %v2127, %v2152
        %v2157 = vmul.f32 %v2133, %v2152
        %v2158 = vmul.f32 %v2139, %v2152
        %v2159 = vmul.f32 %v2145, %v2152
        %v2160 = vmul.f32 %v2151, %v2152
        %v2161 = vsub.f32 %v2063, %v2153
        %v2162 = vsub.f32 %v2064, %v2154
        %v2163 = vsub.f32 %v2065, %v2155
        %v2164 = vsub.f32 %v2066, %v2156
        %v2165 = vsub.f32 %v2067, %v2157
        %v2166 = vsub.f32 %v2068, %v2158
        %v2167 = vsub.f32 %v2069, %v2159
        %v2168 = vsub.f32 %v2070, %v2160
        %v2169 = vmul.f32 %v2161, %v2161
        %v2170 = vmul.f32 %v2162, %v2162
        %v2171 = vmul.f32 %v2163, %v2163
        %v2172 = vmul.f32 %v2164, %v2164
        %v2173 = vmul.f32 %v2165, %v2165
        %v2174 = vmul.f32 %v2166, %v2166
        %v2175 = vmul.f32 %v2167, %v2167
        %v2176 = vmul.f32 %v2168, %v2168
        %v2177 = vsel %vm428, %v2169, 0.0
        %2178 = vadd.xlane.f32.xlu0 %v2177
        %v2179 = vpop.xlane.xlu0 %2178
        %v2180 = vsel %vm428, %v2170, 0.0
        %2181 = vadd.xlane.f32.xlu0 %v2180
        %v2182 = vpop.xlane.xlu0 %2181
        %v2183 = vsel %vm428, %v2171, 0.0
        %2184 = vadd.xlane.f32.xlu0 %v2183
        %v2185 = vpop.xlane.xlu0 %2184
        %v2186 = vsel %vm428, %v2172, 0.0
        %2187 = vadd.xlane.f32.xlu0 %v2186
        %v2188 = vpop.xlane.xlu0 %2187
        %v2189 = vsel %vm428, %v2173, 0.0
        %2190 = vadd.xlane.f32.xlu0 %v2189
        %v2191 = vpop.xlane.xlu0 %2190
        %v2192 = vsel %vm428, %v2174, 0.0
        %2193 = vadd.xlane.f32.xlu0 %v2192
        %v2194 = vpop.xlane.xlu0 %2193
        %v2195 = vsel %vm428, %v2175, 0.0
        %2196 = vadd.xlane.f32.xlu0 %v2195
        %v2197 = vpop.xlane.xlu0 %2196
        %v2198 = vsel %vm428, %v2176, 0.0
        %2199 = vadd.xlane.f32.xlu0 %v2198
        %v2200 = vpop.xlane.xlu0 %2199
        %v2201 = vmul.f32 %v2179, %v2095
        %v2202 = vmul.f32 %v2182, %v2095
        %v2203 = vmul.f32 %v2185, %v2095
        %v2204 = vmul.f32 %v2188, %v2095
        %v2205 = vmul.f32 %v2191, %v2095
        %v2206 = vmul.f32 %v2194, %v2095
        %v2207 = vmul.f32 %v2197, %v2095
        %v2208 = vmul.f32 %v2200, %v2095
        %v2209 = vrot.slane %v2201, 4
        %v2210 = vadd.f32 %v2201, %v2209
        %v2211 = vrot.slane %v2210, 2
        %v2212 = vadd.f32 %v2210, %v2211
        %v2213 = vrot.slane %v2212, 1
        %v2214 = vadd.f32 %v2212, %v2213
        %v2215 = vrot.slane %v2202, 4
        %v2216 = vadd.f32 %v2202, %v2215
        %v2217 = vrot.slane %v2216, 2
        %v2218 = vadd.f32 %v2216, %v2217
        %v2219 = vrot.slane %v2218, 1
        %v2220 = vadd.f32 %v2218, %v2219
        %v2221 = vrot.slane %v2203, 4
        %v2222 = vadd.f32 %v2203, %v2221
        %v2223 = vrot.slane %v2222, 2
        %v2224 = vadd.f32 %v2222, %v2223
        %v2225 = vrot.slane %v2224, 1
        %v2226 = vadd.f32 %v2224, %v2225
        %v2227 = vrot.slane %v2204, 4
        %v2228 = vadd.f32 %v2204, %v2227
        %v2229 = vrot.slane %v2228, 2
        %v2230 = vadd.f32 %v2228, %v2229
        %v2231 = vrot.slane %v2230, 1
        %v2232 = vadd.f32 %v2230, %v2231
        %v2233 = vrot.slane %v2205, 4
        %v2234 = vadd.f32 %v2205, %v2233
        %v2235 = vrot.slane %v2234, 2
        %v2236 = vadd.f32 %v2234, %v2235
        %v2237 = vrot.slane %v2236, 1
        %v2238 = vadd.f32 %v2236, %v2237
        %v2239 = vrot.slane %v2206, 4
        %v2240 = vadd.f32 %v2206, %v2239
        %v2241 = vrot.slane %v2240, 2
        %v2242 = vadd.f32 %v2240, %v2241
        %v2243 = vrot.slane %v2242, 1
        %v2244 = vadd.f32 %v2242, %v2243
        %v2245 = vrot.slane %v2207, 4
        %v2246 = vadd.f32 %v2207, %v2245
        %v2247 = vrot.slane %v2246, 2
        %v2248 = vadd.f32 %v2246, %v2247
        %v2249 = vrot.slane %v2248, 1
        %v2250 = vadd.f32 %v2248, %v2249
        %v2251 = vrot.slane %v2208, 4
        %v2252 = vadd.f32 %v2208, %v2251
        %v2253 = vrot.slane %v2252, 2
        %v2254 = vadd.f32 %v2252, %v2253
        %v2255 = vrot.slane %v2254, 1
        %v2256 = vadd.f32 %v2254, %v2255
        %v2257 = vmul.f32 %v2214, %v2152
        %v2258 = vmul.f32 %v2220, %v2152
        %v2259 = vmul.f32 %v2226, %v2152
        %v2260 = vmul.f32 %v2232, %v2152
        %v2261 = vmul.f32 %v2238, %v2152
        %v2262 = vmul.f32 %v2244, %v2152
        %v2263 = vmul.f32 %v2250, %v2152
        %v2264 = vmul.f32 %v2256, %v2152
        %v2265 = vadd.f32 %v2257, 1e-08
        %v2266 = vadd.f32 %v2258, 1e-08
        %v2267 = vadd.f32 %v2259, 1e-08
        %v2268 = vadd.f32 %v2260, 1e-08
        %v2269 = vadd.f32 %v2261, 1e-08
        %v2270 = vadd.f32 %v2262, 1e-08
        %v2271 = vadd.f32 %v2263, 1e-08
        %v2272 = vadd.f32 %v2264, 1e-08
        %v2273 = vrsqrt.pop %v2265
        %v2274 = vrsqrt.pop %v2266
        %v2275 = vrsqrt.pop %v2267
        %v2276 = vrsqrt.pop %v2268
        %v2277 = vrsqrt.pop %v2269
        %v2278 = vrsqrt.pop %v2270
        %v2279 = vrsqrt.pop %v2271
        %v2280 = vrsqrt.pop %v2272
        %v2281 = vmul.f32 %v2161, %v2273
        %v2282 = vmul.f32 %v2162, %v2274
        %v2283 = vmul.f32 %v2163, %v2275
        %v2284 = vmul.f32 %v2164, %v2276
        %v2285 = vmul.f32 %v2165, %v2277
        %v2286 = vmul.f32 %v2166, %v2278
        %v2287 = vmul.f32 %v2167, %v2279
        %v2288 = vmul.f32 %v2168, %v2280
        %v2289 = vld [vmem:[%s321] sm:$0xff]
        %v2290 = vld [vmem:[%s321 + $0x8] sm:$0xff]
        %v2291 = vld [vmem:[%s321 + $0x10] sm:$0xff]
        %v2292 = vld [vmem:[%s321 + $0x18] sm:$0xff]
        %v2293 = vld [vmem:[%s321 + $0x20] sm:$0xff]
        %v2294 = vld [vmem:[%s321 + $0x28] sm:$0xff]
        %v2295 = vld [vmem:[%s321 + $0x30] sm:$0xff]
        %v2296 = vld [vmem:[%s321 + $0x38] sm:$0xff]
        %v2297 = vadd.f32 %v2289, %v2281
        %v2298 = vadd.f32 %v2290, %v2282
        %v2299 = vadd.f32 %v2291, %v2283
        %v2300 = vadd.f32 %v2292, %v2284
        %v2301 = vadd.f32 %v2293, %v2285
        %v2302 = vadd.f32 %v2294, %v2286
        %v2303 = vadd.f32 %v2295, %v2287
        %v2304 = vadd.f32 %v2296, %v2288
        %2305 = vst.msk [vmem:[%s375] sm:$0xff] %vm428, %v2297
        %2306 = vst.msk [vmem:[%s375 + $0x8] sm:$0xff] %vm428, %v2298
        %2307 = vst.msk [vmem:[%s375 + $0x10] sm:$0xff] %vm428, %v2299
        %2308 = vst.msk [vmem:[%s375 + $0x18] sm:$0xff] %vm428, %v2300
        %2309 = vst.msk [vmem:[%s375 + $0x20] sm:$0xff] %vm428, %v2301
        %2310 = vst.msk [vmem:[%s375 + $0x28] sm:$0xff] %vm428, %v2302
        %2311 = vst.msk [vmem:[%s375 + $0x30] sm:$0xff] %vm428, %v2303
        %2312 = vst.msk [vmem:[%s375 + $0x38] sm:$0xff] %vm428, %v2304
        %s2313 = sand.u32 %s187, 1
        %s2314 = scalar_lea.sflag [#allocation8], %s2313
        %s2315 = sand.u32 %s187, 1
        %s2316 = smul.addr %s2315, 64
        %s2317 = scalar_lea.vmem [#allocation18], %s2316
        // Predicated region
        $region77: #{dpran_forward.3} parent=47 // pred_check
          %p2318 = pneg %p197
        $region78: #{dpran_forward.3} parent=47 // pred_check_branch
          %2320 = sbr.rel (%p2318) target = $region80
        $region79: #{dpran_forward.3} parent=47 // pred_region
          %s2322 = ssub.s32 1024, 1024
          %2323 = vsyncadd %s2314, %s2322
          %s2324 = smul.addr %s27, 8
          %s2325 = smul.addr %s2324, 128
          %s2326 = scalar_lea.hbm %s7, %s2325
          %s2327 = sshll.u32 %s2317, 4
          %s2328 = int_to_ptr.vmem [resolvable:$true] %s2327
          %2333 = dma.vmem_to_hbm [thread:$0]  %s2328, 1024, %s2326, %s2314, 128, 128, 8
        $region80: #{dpran_forward.3} parent=47 // pred_fallthru
          _
      $region48: #{dpran_forward.3} parent=5 // pred_fallthru
        _
      %p2334 = scmp.le.s32.totalorder 2, %s22
      // Predicated region
      $region81: #{dpran_forward.3} parent=5 // pred_check
        %p2335 = pneg %p2334
      $region82: #{dpran_forward.3} parent=5 // pred_check_branch
        %2337 = sbr.rel (%p2335) target = $region84
      $region83: #{dpran_forward.3} parent=5 // pred_region
        %s2338 = ssub.s32 %s22, 2
        // Predicated region
        $region85: #{dpran_forward.3} parent=83 // pred_check
          %p2339 = pneg %p203
        $region86: #{dpran_forward.3} parent=83 // pred_check_branch
          %2341 = sbr.rel (%p2339) target = $region88
        $region87: #{dpran_forward.3} parent=83 // pred_region
          %s2342 = sand.u32 %s188, 1
          %s2343 = scalar_lea.sflag [#allocation8], %s2342
          %s2344 = sand.u32 %s188, 1
          %s2345 = smul.addr %s2344, 64
          %s2346 = scalar_lea.vmem [#allocation18], %s2345
          %2347 = dma.done %s2343, 1024
        $region88: #{dpran_forward.3} parent=83 // pred_fallthru
          _
      $region84: #{dpran_forward.3} parent=5 // pred_fallthru
        _
    $region6: #{dpran_forward.3} parent=1 // loop_footer
      %s26 = sadd.s32 1, %s22
    $region7: #{dpran_forward.3} parent=1 // loop_footer_branch
      %21 = sbr.rel target = $region3
    $region8: #{dpran_forward.3} parent=1 // loop_exit
      _
    %2348 = vsyncpa [#allocation7], 1
    %s2349 = scalar_lea.sflag [#allocation7], 1
    %2350 = vsyncpa %s2349, 1
    %2351 = vsyncpa [#allocation10], 1
    %2352 = vsyncpa [#allocation13], 1
    %2353 = vsyncpa [#allocation16], 1
    %2354 = vsyncpa [#allocation8], 1
    %s2355 = scalar_lea.sflag [#allocation8], 1
    %2356 = vsyncpa %s2355, 1

// kernel: dpran_forward.4
$region0: #{dpran_forward.4}
  #allocation0 [shape = 'u32[]', space=smem, size = 0x4, offset = 0x4, fixed_abs, tag = 'smem constant byte address 0x4 - core index']
  #allocation1 [shape = 'u32[144,128]{1,0:T(1,128)}', space=vmem, size = 0x12000, scoped, tag = 'internal scratch']
  #allocation2 [shape = 'f32[128,16]{1,0:T(8,128)}', space=vmem, size = 0x10000, scoped, tag = 'scratch operand']
  %s0 = inlined_call_operand.hbm [shape: f32[16,8,16], index: 0, kind: input, shape index: {}]
  %s1 = inlined_call_operand.hbm [shape: f32[8,16], index: 1, kind: input, shape index: {}]
  %s2 = inlined_call_operand.hbm [shape: bf16[2,16,48], index: 2, kind: input, shape index: {}]
  %s3 = inlined_call_operand.hbm [shape: bf16[2,16,16], index: 3, kind: input, shape index: {}]
  %s4 = inlined_call_operand.hbm [shape: f32[2,1,16], index: 4, kind: input, shape index: {}]
  %s5 = inlined_call_operand.hbm [shape: f32[2,1,16], index: 5, kind: input, shape index: {}]
  %s6 = inlined_call_operand.hbm [shape: bf16[2,16,64], index: 6, kind: input, shape index: {}]
  %s7 = inlined_call_operand.hbm [shape: f32[2,1,64], index: 7, kind: input, shape index: {}]
  %s8 = inlined_call_operand.hbm [shape: bf16[2,64,16], index: 8, kind: input, shape index: {}]
  %s9 = inlined_call_operand.hbm [shape: f32[2,1,16], index: 9, kind: input, shape index: {}]
  %s10 = inlined_call_operand.hbm [shape: f32[2,1,16], index: 10, kind: input, shape index: {}]
  %s11 = inlined_call_operand.hbm [shape: f32[2,1,16], index: 11, kind: input, shape index: {}]
  %s12 = inlined_call_operand.hbm [shape: f32[16,8,16], index: 12, kind: output, shape index: {}]
  %s13 = sld [smem:[#allocation0]]
  $region137: #{dpran_forward.4} parent=0
    _
  %s15 = ssub.s32 1, %s13
  %s16 = scalar_select 0, %s15, %s13
  $region1: #{dpran_forward.4} parent=0
    #allocation3 [shape = 'u8[65536]{0}', space=vmem, size = 0x10000, scoped, tag = 'input window, operand 0, single buffered']
    #allocation4 [shape = 's32[2]{0}', space=sflag, size = 0x8, scoped, tag = 'scoped memory for dpran_forward.4']
    #allocation5 [shape = 's32[2]{0}', space=sflag, size = 0x8, scoped, tag = 'scoped memory for dpran_forward.4']
    #allocation6 [shape = 'u8[4096]{0}', space=vmem, size = 0x1000, scoped, tag = 'input window, operand 1, single buffered']
    #allocation7 [shape = 's32[1]{0}', space=sflag, size = 0x4, scoped, tag = 'scoped memory for dpran_forward.4']
    #allocation8 [shape = 'u8[8192]{0}', space=vmem, size = 0x2000, scoped, tag = 'input window, operand 2']
    #allocation9 [shape = 'u8[8192]{0}', space=vmem, size = 0x2000, scoped, tag = 'input window, operand 3']
    #allocation10 [shape = 'u8[1024]{0}', space=vmem, size = 0x400, scoped, tag = 'input window, operand 4']
    #allocation11 [shape = 'u8[1024]{0}', space=vmem, size = 0x400, scoped, tag = 'input window, operand 5']
    #allocation12 [shape = 'u8[8192]{0}', space=vmem, size = 0x2000, scoped, tag = 'input window, operand 6']
    #allocation13 [shape = 'u8[1024]{0}', space=vmem, size = 0x400, scoped, tag = 'input window, operand 7']
    #allocation14 [shape = 'u8[32768]{0}', space=vmem, size = 0x8000, scoped, tag = 'input window, operand 8']
    #allocation15 [shape = 'u8[1024]{0}', space=vmem, size = 0x400, scoped, tag = 'input window, operand 9']
    #allocation16 [shape = 'u8[1024]{0}', space=vmem, size = 0x400, scoped, tag = 'input window, operand 10']
    #allocation17 [shape = 'u8[1024]{0}', space=vmem, size = 0x400, scoped, tag = 'input window, operand 11']
    #allocation18 [shape = 'u8[65536]{0}', space=vmem, size = 0x10000, scoped, tag = 'output window, operand 0, single buffered']
    %17 = vsyncpa [#allocation4], 0
    %18 = vsyncpa [#allocation7], 0
    %19 = vsyncpa [#allocation5], 0
    loop: start=0, step=1, limit=4
    $region2: #{dpran_forward.4} parent=1 // loop_pre_header
      _
    $region3: #{dpran_forward.4} parent=1 // loop_header
      %s21 = sphi 0, %s25
      %p22 = scmp.ge.s32.totalorder %s21, 4
      %s28 = sphi 0, %s40
      %s29 = sphi 0, %s36
      %s30 = sphi 0, %s28
      %s31 = sphi 0, %s29
      %s32 = sphi 0, %s30
      %s33 = sphi 0, %s31
      %s43 = sphi 0, %s45
      %s46 = sphi 0, %s43
      %s47 = sphi 0, %s46
      %s63 = sphi 0, %s47
      %s67 = sphi 0, %s67
      %s69 = sphi 0, %s67
      %s70 = sphi 0, %s69
      %s84 = sphi 0, %s70
      %s90 = sphi 0, %s92
      %s93 = sphi 0, %s90
      %s94 = sphi 0, %s93
      %s110 = sphi 0, %s94
      %s116 = sphi 0, %s118
      %s119 = sphi 0, %s116
      %s120 = sphi 0, %s119
      %s136 = sphi 0, %s120
      %s142 = sphi 0, %s144
      %s145 = sphi 0, %s142
      %s146 = sphi 0, %s145
      %s162 = sphi 0, %s146
      %s168 = sphi 0, %s170
      %s171 = sphi 0, %s168
      %s172 = sphi 0, %s171
      %s188 = sphi 0, %s172
      %s194 = sphi 0, %s196
      %s197 = sphi 0, %s194
      %s198 = sphi 0, %s197
      %s214 = sphi 0, %s198
      %s220 = sphi 0, %s222
      %s223 = sphi 0, %s220
      %s224 = sphi 0, %s223
      %s240 = sphi 0, %s224
      %s246 = sphi 0, %s248
      %s249 = sphi 0, %s246
      %s250 = sphi 0, %s249
      %s266 = sphi 0, %s250
      %s272 = sphi 0, %s274
      %s275 = sphi 0, %s272
      %s276 = sphi 0, %s275
      %s292 = sphi 0, %s276
      %s298 = sphi 0, %s300
      %s301 = sphi 0, %s298
      %s302 = sphi 0, %s301
      %s318 = sphi 0, %s302
      %s324 = sphi 0, %s326
      %s327 = sphi 0, %s324
      %s328 = sphi 0, %s327
      %s344 = sphi 0, %s328
      %s350 = sphi 0, %s352
      %s353 = sphi 0, %s350
      %s354 = sphi 0, %s353
      %s370 = sphi 0, %s354
    $region4: #{dpran_forward.4} parent=1 // loop_header_branch
      %24 = sbr.rel (%p22) target = $region8
    $region5: #{dpran_forward.4} parent=1 // loop_body
      %s26 = ssub.s32 %s21, 1
      %s27 = ssub.s32 %s21, 2
      %s34 = sadd.s32 1, %s29
      %p35 = scmp.ge.s32.totalorder %s34, 2
      %s36 = scalar_select %p35, 0, %s34
      %s37 = sadd.s32 1, %s28
      %s38 = scalar_select %p35, %s37, %s28
      %p39 = scmp.ge.s32.totalorder %s38, 1
      %s40 = scalar_select %p39, 0, %s38
      %s41 = ssub.s32 %s28, %s40
      %p42 = scmp.eq.s32.totalorder %s41, 0
      %s44 = sadd.s32 %s43, 1
      %s45 = scalar_select %p42, %s43, %s44
      %p48 = pneg %p42
      %p49 = scmp.eq.s32.totalorder %s21, 1
      %p50 = por %p48, %p49
      %p51 = scmp.ne.s32.totalorder %s43, %s46
      %p52 = scmp.eq.s32.totalorder %s21, 0
      %p53 = por %p51, %p52
      %p54 = scmp.ne.s32.totalorder %s43, %s46
      %p55 = scmp.eq.s32.totalorder %s26, 1
      %p56 = por %p54, %p55
      %p57 = scmp.ne.s32.totalorder %s46, %s47
      %p58 = scmp.eq.s32.totalorder %s26, 0
      %p59 = por %p57, %p58
      %p60 = scmp.ne.s32.totalorder %s46, %s47
      %p61 = scmp.eq.s32.totalorder %s27, 1
      %p62 = por %p60, %p61
      %p64 = scmp.ne.s32.totalorder %s47, %s63
      %p65 = scmp.eq.s32.totalorder %s27, 0
      %p66 = por %p64, %p65
      %s68 = sadd.s32 %s67, 1
      %p71 = scmp.eq.s32.totalorder %s21, 1
      %p72 = scmp.ne.s32.totalorder %s67, %s69
      %p73 = scmp.eq.s32.totalorder %s21, 0
      %p74 = por %p72, %p73
      %p75 = scmp.ne.s32.totalorder %s67, %s69
      %p76 = scmp.eq.s32.totalorder %s26, 1
      %p77 = por %p75, %p76
      %p78 = scmp.ne.s32.totalorder %s69, %s70
      %p79 = scmp.eq.s32.totalorder %s26, 0
      %p80 = por %p78, %p79
      %p81 = scmp.ne.s32.totalorder %s69, %s70
      %p82 = scmp.eq.s32.totalorder %s27, 1
      %p83 = por %p81, %p82
      %p85 = scmp.ne.s32.totalorder %s70, %s84
      %p86 = scmp.eq.s32.totalorder %s27, 0
      %p87 = por %p85, %p86
      %s88 = ssub.s32 %s29, %s36
      %p89 = scmp.eq.s32.totalorder %s88, 0
      %s91 = sadd.s32 %s90, 1
      %s92 = scalar_select %p89, %s90, %s91
      %p95 = pneg %p89
      %p96 = scmp.eq.s32.totalorder %s21, 1
      %p97 = por %p95, %p96
      %p98 = scmp.ne.s32.totalorder %s90, %s93
      %p99 = scmp.eq.s32.totalorder %s21, 0
      %p100 = por %p98, %p99
      %p101 = scmp.ne.s32.totalorder %s90, %s93
      %p102 = scmp.eq.s32.totalorder %s26, 1
      %p103 = por %p101, %p102
      %p104 = scmp.ne.s32.totalorder %s93, %s94
      %p105 = scmp.eq.s32.totalorder %s26, 0
      %p106 = por %p104, %p105
      %p107 = scmp.ne.s32.totalorder %s93, %s94
      %p108 = scmp.eq.s32.totalorder %s27, 1
      %p109 = por %p107, %p108
      %p111 = scmp.ne.s32.totalorder %s94, %s110
      %p112 = scmp.eq.s32.totalorder %s27, 0
      %p113 = por %p111, %p112
      %s114 = ssub.s32 %s29, %s36
      %p115 = scmp.eq.s32.totalorder %s114, 0
      %s117 = sadd.s32 %s116, 1
      %s118 = scalar_select %p115, %s116, %s117
      %p121 = pneg %p115
      %p122 = scmp.eq.s32.totalorder %s21, 1
      %p123 = por %p121, %p122
      %p124 = scmp.ne.s32.totalorder %s116, %s119
      %p125 = scmp.eq.s32.totalorder %s21, 0
      %p126 = por %p124, %p125
      %p127 = scmp.ne.s32.totalorder %s116, %s119
      %p128 = scmp.eq.s32.totalorder %s26, 1
      %p129 = por %p127, %p128
      %p130 = scmp.ne.s32.totalorder %s119, %s120
      %p131 = scmp.eq.s32.totalorder %s26, 0
      %p132 = por %p130, %p131
      %p133 = scmp.ne.s32.totalorder %s119, %s120
      %p134 = scmp.eq.s32.totalorder %s27, 1
      %p135 = por %p133, %p134
      %p137 = scmp.ne.s32.totalorder %s120, %s136
      %p138 = scmp.eq.s32.totalorder %s27, 0
      %p139 = por %p137, %p138
      %s140 = ssub.s32 %s29, %s36
      %p141 = scmp.eq.s32.totalorder %s140, 0
      %s143 = sadd.s32 %s142, 1
      %s144 = scalar_select %p141, %s142, %s143
      %p147 = pneg %p141
      %p148 = scmp.eq.s32.totalorder %s21, 1
      %p149 = por %p147, %p148
      %p150 = scmp.ne.s32.totalorder %s142, %s145
      %p151 = scmp.eq.s32.totalorder %s21, 0
      %p152 = por %p150, %p151
      %p153 = scmp.ne.s32.totalorder %s142, %s145
      %p154 = scmp.eq.s32.totalorder %s26, 1
      %p155 = por %p153, %p154
      %p156 = scmp.ne.s32.totalorder %s145, %s146
      %p157 = scmp.eq.s32.totalorder %s26, 0
      %p158 = por %p156, %p157
      %p159 = scmp.ne.s32.totalorder %s145, %s146
      %p160 = scmp.eq.s32.totalorder %s27, 1
      %p161 = por %p159, %p160
      %p163 = scmp.ne.s32.totalorder %s146, %s162
      %p164 = scmp.eq.s32.totalorder %s27, 0
      %p165 = por %p163, %p164
      %s166 = ssub.s32 %s29, %s36
      %p167 = scmp.eq.s32.totalorder %s166, 0
      %s169 = sadd.s32 %s168, 1
      %s170 = scalar_select %p167, %s168, %s169
      %p173 = pneg %p167
      %p174 = scmp.eq.s32.totalorder %s21, 1
      %p175 = por %p173, %p174
      %p176 = scmp.ne.s32.totalorder %s168, %s171
      %p177 = scmp.eq.s32.totalorder %s21, 0
      %p178 = por %p176, %p177
      %p179 = scmp.ne.s32.totalorder %s168, %s171
      %p180 = scmp.eq.s32.totalorder %s26, 1
      %p181 = por %p179, %p180
      %p182 = scmp.ne.s32.totalorder %s171, %s172
      %p183 = scmp.eq.s32.totalorder %s26, 0
      %p184 = por %p182, %p183
      %p185 = scmp.ne.s32.totalorder %s171, %s172
      %p186 = scmp.eq.s32.totalorder %s27, 1
      %p187 = por %p185, %p186
      %p189 = scmp.ne.s32.totalorder %s172, %s188
      %p190 = scmp.eq.s32.totalorder %s27, 0
      %p191 = por %p189, %p190
      %s192 = ssub.s32 %s29, %s36
      %p193 = scmp.eq.s32.totalorder %s192, 0
      %s195 = sadd.s32 %s194, 1
      %s196 = scalar_select %p193, %s194, %s195
      %p199 = pneg %p193
      %p200 = scmp.eq.s32.totalorder %s21, 1
      %p201 = por %p199, %p200
      %p202 = scmp.ne.s32.totalorder %s194, %s197
      %p203 = scmp.eq.s32.totalorder %s21, 0
      %p204 = por %p202, %p203
      %p205 = scmp.ne.s32.totalorder %s194, %s197
      %p206 = scmp.eq.s32.totalorder %s26, 1
      %p207 = por %p205, %p206
      %p208 = scmp.ne.s32.totalorder %s197, %s198
      %p209 = scmp.eq.s32.totalorder %s26, 0
      %p210 = por %p208, %p209
      %p211 = scmp.ne.s32.totalorder %s197, %s198
      %p212 = scmp.eq.s32.totalorder %s27, 1
      %p213 = por %p211, %p212
      %p215 = scmp.ne.s32.totalorder %s198, %s214
      %p216 = scmp.eq.s32.totalorder %s27, 0
      %p217 = por %p215, %p216
      %s218 = ssub.s32 %s29, %s36
      %p219 = scmp.eq.s32.totalorder %s218, 0
      %s221 = sadd.s32 %s220, 1
      %s222 = scalar_select %p219, %s220, %s221
      %p225 = pneg %p219
      %p226 = scmp.eq.s32.totalorder %s21, 1
      %p227 = por %p225, %p226
      %p228 = scmp.ne.s32.totalorder %s220, %s223
      %p229 = scmp.eq.s32.totalorder %s21, 0
      %p230 = por %p228, %p229
      %p231 = scmp.ne.s32.totalorder %s220, %s223
      %p232 = scmp.eq.s32.totalorder %s26, 1
      %p233 = por %p231, %p232
      %p234 = scmp.ne.s32.totalorder %s223, %s224
      %p235 = scmp.eq.s32.totalorder %s26, 0
      %p236 = por %p234, %p235
      %p237 = scmp.ne.s32.totalorder %s223, %s224
      %p238 = scmp.eq.s32.totalorder %s27, 1
      %p239 = por %p237, %p238
      %p241 = scmp.ne.s32.totalorder %s224, %s240
      %p242 = scmp.eq.s32.totalorder %s27, 0
      %p243 = por %p241, %p242
      %s244 = ssub.s32 %s29, %s36
      %p245 = scmp.eq.s32.totalorder %s244, 0
      %s247 = sadd.s32 %s246, 1
      %s248 = scalar_select %p245, %s246, %s247
      %p251 = pneg %p245
      %p252 = scmp.eq.s32.totalorder %s21, 1
      %p253 = por %p251, %p252
      %p254 = scmp.ne.s32.totalorder %s246, %s249
      %p255 = scmp.eq.s32.totalorder %s21, 0
      %p256 = por %p254, %p255
      %p257 = scmp.ne.s32.totalorder %s246, %s249
      %p258 = scmp.eq.s32.totalorder %s26, 1
      %p259 = por %p257, %p258
      %p260 = scmp.ne.s32.totalorder %s249, %s250
      %p261 = scmp.eq.s32.totalorder %s26, 0
      %p262 = por %p260, %p261
      %p263 = scmp.ne.s32.totalorder %s249, %s250
      %p264 = scmp.eq.s32.totalorder %s27, 1
      %p265 = por %p263, %p264
      %p267 = scmp.ne.s32.totalorder %s250, %s266
      %p268 = scmp.eq.s32.totalorder %s27, 0
      %p269 = por %p267, %p268
      %s270 = ssub.s32 %s29, %s36
      %p271 = scmp.eq.s32.totalorder %s270, 0
      %s273 = sadd.s32 %s272, 1
      %s274 = scalar_select %p271, %s272, %s273
      %p277 = pneg %p271
      %p278 = scmp.eq.s32.totalorder %s21, 1
      %p279 = por %p277, %p278
      %p280 = scmp.ne.s32.totalorder %s272, %s275
      %p281 = scmp.eq.s32.totalorder %s21, 0
      %p282 = por %p280, %p281
      %p283 = scmp.ne.s32.totalorder %s272, %s275
      %p284 = scmp.eq.s32.totalorder %s26, 1
      %p285 = por %p283, %p284
      %p286 = scmp.ne.s32.totalorder %s275, %s276
      %p287 = scmp.eq.s32.totalorder %s26, 0
      %p288 = por %p286, %p287
      %p289 = scmp.ne.s32.totalorder %s275, %s276
      %p290 = scmp.eq.s32.totalorder %s27, 1
      %p291 = por %p289, %p290
      %p293 = scmp.ne.s32.totalorder %s276, %s292
      %p294 = scmp.eq.s32.totalorder %s27, 0
      %p295 = por %p293, %p294
      %s296 = ssub.s32 %s29, %s36
      %p297 = scmp.eq.s32.totalorder %s296, 0
      %s299 = sadd.s32 %s298, 1
      %s300 = scalar_select %p297, %s298, %s299
      %p303 = pneg %p297
      %p304 = scmp.eq.s32.totalorder %s21, 1
      %p305 = por %p303, %p304
      %p306 = scmp.ne.s32.totalorder %s298, %s301
      %p307 = scmp.eq.s32.totalorder %s21, 0
      %p308 = por %p306, %p307
      %p309 = scmp.ne.s32.totalorder %s298, %s301
      %p310 = scmp.eq.s32.totalorder %s26, 1
      %p311 = por %p309, %p310
      %p312 = scmp.ne.s32.totalorder %s301, %s302
      %p313 = scmp.eq.s32.totalorder %s26, 0
      %p314 = por %p312, %p313
      %p315 = scmp.ne.s32.totalorder %s301, %s302
      %p316 = scmp.eq.s32.totalorder %s27, 1
      %p317 = por %p315, %p316
      %p319 = scmp.ne.s32.totalorder %s302, %s318
      %p320 = scmp.eq.s32.totalorder %s27, 0
      %p321 = por %p319, %p320
      %s322 = ssub.s32 %s29, %s36
      %p323 = scmp.eq.s32.totalorder %s322, 0
      %s325 = sadd.s32 %s324, 1
      %s326 = scalar_select %p323, %s324, %s325
      %p329 = pneg %p323
      %p330 = scmp.eq.s32.totalorder %s21, 1
      %p331 = por %p329, %p330
      %p332 = scmp.ne.s32.totalorder %s324, %s327
      %p333 = scmp.eq.s32.totalorder %s21, 0
      %p334 = por %p332, %p333
      %p335 = scmp.ne.s32.totalorder %s324, %s327
      %p336 = scmp.eq.s32.totalorder %s26, 1
      %p337 = por %p335, %p336
      %p338 = scmp.ne.s32.totalorder %s327, %s328
      %p339 = scmp.eq.s32.totalorder %s26, 0
      %p340 = por %p338, %p339
      %p341 = scmp.ne.s32.totalorder %s327, %s328
      %p342 = scmp.eq.s32.totalorder %s27, 1
      %p343 = por %p341, %p342
      %p345 = scmp.ne.s32.totalorder %s328, %s344
      %p346 = scmp.eq.s32.totalorder %s27, 0
      %p347 = por %p345, %p346
      %s348 = ssub.s32 %s28, %s40
      %p349 = scmp.eq.s32.totalorder %s348, 0
      %s351 = sadd.s32 %s350, 1
      %s352 = scalar_select %p349, %s350, %s351
      %p355 = pneg %p349
      %p356 = scmp.eq.s32.totalorder %s21, 1
      %p357 = por %p355, %p356
      %p358 = scmp.ne.s32.totalorder %s350, %s353
      %p359 = scmp.eq.s32.totalorder %s21, 0
      %p360 = por %p358, %p359
      %p361 = scmp.ne.s32.totalorder %s350, %s353
      %p362 = scmp.eq.s32.totalorder %s26, 1
      %p363 = por %p361, %p362
      %p364 = scmp.ne.s32.totalorder %s353, %s354
      %p365 = scmp.eq.s32.totalorder %s26, 0
      %p366 = por %p364, %p365
      %p367 = scmp.ne.s32.totalorder %s353, %s354
      %p368 = scmp.eq.s32.totalorder %s27, 1
      %p369 = por %p367, %p368
      %p371 = scmp.ne.s32.totalorder %s354, %s370
      %p372 = scmp.eq.s32.totalorder %s27, 0
      %p373 = por %p371, %p372
      %p374 = scmp.le.s32.totalorder 1, %s21
      %p375 = scmp.lt.s32.totalorder %s21, 3
      %p376 = pnand %p374, %p375
      %p377 = pneg %p376
      // Predicated region
      $region9: #{dpran_forward.4} parent=5 // pred_check
        _
      $region10: #{dpran_forward.4} parent=5 // pred_check_branch
        %379 = sbr.rel (%p376) target = $region12
      $region11: #{dpran_forward.4} parent=5 // pred_region
        %s380 = ssub.s32 %s21, 1
        // Predicated region
        $region13: #{dpran_forward.4} parent=11 // pred_check
          %p381 = pneg %p59
        $region14: #{dpran_forward.4} parent=11 // pred_check_branch
          %383 = sbr.rel (%p381) target = $region16
        $region15: #{dpran_forward.4} parent=11 // pred_region
          %s384 = smul.u32 16, %s30
          %s386 = ssub.s32 2048, 2048
          %387 = vsyncadd [#allocation4], %s386
          %s388 = smul.addr %s384, 128
          %s389 = scalar_lea.hbm %s0, %s388
          %s390 = sshll.u32 [#allocation3], 4
          %s391 = int_to_ptr.vmem [resolvable:$true] %s390
          %396 = dma.hbm_to_vmem [thread:$0]  %s389, 2048, %s391, [#allocation4], 128, 128, 8
        $region16: #{dpran_forward.4} parent=11 // pred_fallthru
          _
        // Predicated region
        $region17: #{dpran_forward.4} parent=11 // pred_check
          %p397 = pneg %p80
        $region18: #{dpran_forward.4} parent=11 // pred_check_branch
          %399 = sbr.rel (%p397) target = $region20
        $region19: #{dpran_forward.4} parent=11 // pred_region
          %s401 = ssub.s32 128, 128
          %402 = vsyncadd [#allocation7], %s401
          %s404 = sshll.u32 [#allocation6], 4
          %s405 = int_to_ptr.vmem [resolvable:$true] %s404
          %407 = dma.hbm_to_vmem [thread:$0]  %s1, 128, %s405, [#allocation7]
        $region20: #{dpran_forward.4} parent=11 // pred_fallthru
          _
      $region12: #{dpran_forward.4} parent=5 // pred_fallthru
        _
      %p408 = scmp.lt.s32.totalorder %s21, 2
      // Predicated region
      $region21: #{dpran_forward.4} parent=5 // pred_check
        %p409 = pneg %p408
      $region22: #{dpran_forward.4} parent=5 // pred_check_branch
        %411 = sbr.rel (%p409) target = $region24
      $region23: #{dpran_forward.4} parent=5 // pred_region
        // Predicated region
        $region25: #{dpran_forward.4} parent=23 // pred_check
          %p412 = pneg %p100
        $region26: #{dpran_forward.4} parent=23 // pred_check_branch
          %414 = sbr.rel (%p412) target = $region28
        $region27: #{dpran_forward.4} parent=23 // pred_region
          %s415 = sand.u32 %s21, 1
          %s416 = scalar_lea.sflag [#allocation4], %s415
          %s417 = sand.u32 %s90, 1
          %s418 = smul.addr %s417, 8
          %s419 = scalar_lea.vmem [#allocation8], %s418
          %s421 = ssub.s32 128, 128
          %422 = vsyncadd %s416, %s421
          %s423 = smul.addr %s29, 2
          %s424 = smul.addr %s423, 64
          %s425 = scalar_lea.hbm %s2, %s424
          %s426 = sshll.u32 %s419, 4
          %s427 = int_to_ptr.vmem [resolvable:$true] %s426
          %432 = dma.hbm_to_vmem [thread:$0]  %s425, 128, %s427, %s416, 64, 64, 4
        $region28: #{dpran_forward.4} parent=23 // pred_fallthru
          _
        // Predicated region
        $region29: #{dpran_forward.4} parent=23 // pred_check
          %p433 = pneg %p126
        $region30: #{dpran_forward.4} parent=23 // pred_check_branch
          %435 = sbr.rel (%p433) target = $region32
        $region31: #{dpran_forward.4} parent=23 // pred_region
          %s436 = sand.u32 %s21, 1
          %s437 = scalar_lea.sflag [#allocation4], %s436
          %s438 = sand.u32 %s116, 1
          %s439 = smul.addr %s438, 8
          %s440 = scalar_lea.vmem [#allocation9], %s439
          %s442 = ssub.s32 128, 128
          %443 = vsyncadd %s437, %s442
          %s444 = smul.addr %s29, 2
          %s445 = smul.addr %s444, 64
          %s446 = scalar_lea.hbm %s3, %s445
          %s447 = sshll.u32 %s440, 4
          %s448 = int_to_ptr.vmem [resolvable:$true] %s447
          %453 = dma.hbm_to_vmem [thread:$0]  %s446, 128, %s448, %s437, 64, 64, 4
        $region32: #{dpran_forward.4} parent=23 // pred_fallthru
          _
        // Predicated region
        $region33: #{dpran_forward.4} parent=23 // pred_check
          %p454 = pneg %p152
        $region34: #{dpran_forward.4} parent=23 // pred_check_branch
          %456 = sbr.rel (%p454) target = $region36
        $region35: #{dpran_forward.4} parent=23 // pred_region
          %s457 = sand.u32 %s21, 1
          %s458 = scalar_lea.sflag [#allocation4], %s457
          %s459 = sand.u32 %s142, 1
          %s460 = scalar_lea.vmem [#allocation10], %s459
          %s462 = ssub.s32 16, 16
          %463 = vsyncadd %s458, %s462
          %s464 = smul.addr %s29, 16
          %s465 = scalar_lea.hbm %s4, %s464
          %s467 = sshll.u32 %s460, 4
          %s468 = int_to_ptr.vmem [resolvable:$true] %s467
          %470 = dma.hbm_to_vmem [thread:$0]  %s465, 16, %s468, %s458
        $region36: #{dpran_forward.4} parent=23 // pred_fallthru
          _
        // Predicated region
        $region37: #{dpran_forward.4} parent=23 // pred_check
          %p471 = pneg %p178
        $region38: #{dpran_forward.4} parent=23 // pred_check_branch
          %473 = sbr.rel (%p471) target = $region40
        $region39: #{dpran_forward.4} parent=23 // pred_region
          %s474 = sand.u32 %s21, 1
          %s475 = scalar_lea.sflag [#allocation4], %s474
          %s476 = sand.u32 %s168, 1
          %s477 = scalar_lea.vmem [#allocation11], %s476
          %s479 = ssub.s32 16, 16
          %480 = vsyncadd %s475, %s479
          %s481 = smul.addr %s29, 16
          %s482 = scalar_lea.hbm %s5, %s481
          %s484 = sshll.u32 %s477, 4
          %s485 = int_to_ptr.vmem [resolvable:$true] %s484
          %487 = dma.hbm_to_vmem [thread:$0]  %s482, 16, %s485, %s475
        $region40: #{dpran_forward.4} parent=23 // pred_fallthru
          _
        // Predicated region
        $region41: #{dpran_forward.4} parent=23 // pred_check
          %p488 = pneg %p204
        $region42: #{dpran_forward.4} parent=23 // pred_check_branch
          %490 = sbr.rel (%p488) target = $region44
        $region43: #{dpran_forward.4} parent=23 // pred_region
          %s491 = sand.u32 %s21, 1
          %s492 = scalar_lea.sflag [#allocation4], %s491
          %s493 = sand.u32 %s194, 1
          %s494 = smul.addr %s493, 8
          %s495 = scalar_lea.vmem [#allocation12], %s494
          %s497 = ssub.s32 128, 128
          %498 = vsyncadd %s492, %s497
          %s499 = smul.addr %s29, 2
          %s500 = smul.addr %s499, 64
          %s501 = scalar_lea.hbm %s6, %s500
          %s502 = sshll.u32 %s495, 4
          %s503 = int_to_ptr.vmem [resolvable:$true] %s502
          %508 = dma.hbm_to_vmem [thread:$0]  %s501, 128, %s503, %s492, 64, 64, 4
        $region44: #{dpran_forward.4} parent=23 // pred_fallthru
          _
        // Predicated region
        $region45: #{dpran_forward.4} parent=23 // pred_check
          %p509 = pneg %p230
        $region46: #{dpran_forward.4} parent=23 // pred_check_branch
          %511 = sbr.rel (%p509) target = $region48
        $region47: #{dpran_forward.4} parent=23 // pred_region
          %s512 = sand.u32 %s21, 1
          %s513 = scalar_lea.sflag [#allocation4], %s512
          %s514 = sand.u32 %s220, 1
          %s515 = scalar_lea.vmem [#allocation13], %s514
          %s517 = ssub.s32 16, 16
          %518 = vsyncadd %s513, %s517
          %s519 = smul.addr %s29, 16
          %s520 = scalar_lea.hbm %s7, %s519
          %s522 = sshll.u32 %s515, 4
          %s523 = int_to_ptr.vmem [resolvable:$true] %s522
          %525 = dma.hbm_to_vmem [thread:$0]  %s520, 16, %s523, %s513
        $region48: #{dpran_forward.4} parent=23 // pred_fallthru
          _
        // Predicated region
        $region49: #{dpran_forward.4} parent=23 // pred_check
          %p526 = pneg %p256
        $region50: #{dpran_forward.4} parent=23 // pred_check_branch
          %528 = sbr.rel (%p526) target = $region52
        $region51: #{dpran_forward.4} parent=23 // pred_region
          %s529 = sand.u32 %s21, 1
          %s530 = scalar_lea.sflag [#allocation4], %s529
          %s531 = sand.u32 %s246, 1
          %s532 = smul.addr %s531, 32
          %s533 = scalar_lea.vmem [#allocation14], %s532
          %s535 = ssub.s32 512, 512
          %536 = vsyncadd %s530, %s535
          %s537 = smul.addr %s29, 8
          %s538 = smul.addr %s537, 64
          %s539 = scalar_lea.hbm %s8, %s538
          %s540 = sshll.u32 %s533, 4
          %s541 = int_to_ptr.vmem [resolvable:$true] %s540
          %546 = dma.hbm_to_vmem [thread:$0]  %s539, 512, %s541, %s530, 64, 64, 4
        $region52: #{dpran_forward.4} parent=23 // pred_fallthru
          _
        // Predicated region
        $region53: #{dpran_forward.4} parent=23 // pred_check
          %p547 = pneg %p282
        $region54: #{dpran_forward.4} parent=23 // pred_check_branch
          %549 = sbr.rel (%p547) target = $region56
        $region55: #{dpran_forward.4} parent=23 // pred_region
          %s550 = sand.u32 %s21, 1
          %s551 = scalar_lea.sflag [#allocation4], %s550
          %s552 = sand.u32 %s272, 1
          %s553 = scalar_lea.vmem [#allocation15], %s552
          %s555 = ssub.s32 16, 16
          %556 = vsyncadd %s551, %s555
          %s557 = smul.addr %s29, 16
          %s558 = scalar_lea.hbm %s9, %s557
          %s560 = sshll.u32 %s553, 4
          %s561 = int_to_ptr.vmem [resolvable:$true] %s560
          %563 = dma.hbm_to_vmem [thread:$0]  %s558, 16, %s561, %s551
        $region56: #{dpran_forward.4} parent=23 // pred_fallthru
          _
        // Predicated region
        $region57: #{dpran_forward.4} parent=23 // pred_check
          %p564 = pneg %p308
        $region58: #{dpran_forward.4} parent=23 // pred_check_branch
          %566 = sbr.rel (%p564) target = $region60
        $region59: #{dpran_forward.4} parent=23 // pred_region
          %s567 = sand.u32 %s21, 1
          %s568 = scalar_lea.sflag [#allocation4], %s567
          %s569 = sand.u32 %s298, 1
          %s570 = scalar_lea.vmem [#allocation16], %s569
          %s572 = ssub.s32 16, 16
          %573 = vsyncadd %s568, %s572
          %s574 = smul.addr %s29, 16
          %s575 = scalar_lea.hbm %s10, %s574
          %s577 = sshll.u32 %s570, 4
          %s578 = int_to_ptr.vmem [resolvable:$true] %s577
          %580 = dma.hbm_to_vmem [thread:$0]  %s575, 16, %s578, %s568
        $region60: #{dpran_forward.4} parent=23 // pred_fallthru
          _
        // Predicated region
        $region61: #{dpran_forward.4} parent=23 // pred_check
          %p581 = pneg %p334
        $region62: #{dpran_forward.4} parent=23 // pred_check_branch
          %583 = sbr.rel (%p581) target = $region64
        $region63: #{dpran_forward.4} parent=23 // pred_region
          %s584 = sand.u32 %s21, 1
          %s585 = scalar_lea.sflag [#allocation4], %s584
          %s586 = sand.u32 %s324, 1
          %s587 = scalar_lea.vmem [#allocation17], %s586
          %s589 = ssub.s32 16, 16
          %590 = vsyncadd %s585, %s589
          %s591 = smul.addr %s29, 16
          %s592 = scalar_lea.hbm %s11, %s591
          %s594 = sshll.u32 %s587, 4
          %s595 = int_to_ptr.vmem [resolvable:$true] %s594
          %597 = dma.hbm_to_vmem [thread:$0]  %s592, 16, %s595, %s585
        $region64: #{dpran_forward.4} parent=23 // pred_fallthru
          _
      $region24: #{dpran_forward.4} parent=5 // pred_fallthru
        _
      %p598 = scmp.le.s32.totalorder 1, %s21
      %p599 = scmp.lt.s32.totalorder %s21, 3
      %p600 = pnand %p598, %p599
      %p601 = pneg %p600
      // Predicated region
      $region65: #{dpran_forward.4} parent=5 // pred_check
        _
      $region66: #{dpran_forward.4} parent=5 // pred_check_branch
        %603 = sbr.rel (%p600) target = $region68
      $region67: #{dpran_forward.4} parent=5 // pred_region
        %s604 = ssub.s32 %s21, 1
        // Predicated region
        $region69: #{dpran_forward.4} parent=67 // pred_check
          %p605 = pneg %p59
        $region70: #{dpran_forward.4} parent=67 // pred_check_branch
          %607 = sbr.rel (%p605) target = $region72
        $region71: #{dpran_forward.4} parent=67 // pred_region
          %608 = dma.done [#allocation4], 2048
        $region72: #{dpran_forward.4} parent=67 // pred_fallthru
          _
        // Predicated region
        $region73: #{dpran_forward.4} parent=67 // pred_check
          %p609 = pneg %p80
        $region74: #{dpran_forward.4} parent=67 // pred_check_branch
          %611 = sbr.rel (%p609) target = $region76
        $region75: #{dpran_forward.4} parent=67 // pred_region
          %612 = dma.done [#allocation7], 128
        $region76: #{dpran_forward.4} parent=67 // pred_fallthru
          _
        %s613 = sand.u32 %s26, 1
        %s614 = scalar_lea.sflag [#allocation4], %s613
        %s615 = sand.u32 %s93, 1
        %s616 = smul.addr %s615, 8
        %s617 = scalar_lea.vmem [#allocation8], %s616
        // Predicated region
        $region77: #{dpran_forward.4} parent=67 // pred_check
          %p618 = pneg %p106
        $region78: #{dpran_forward.4} parent=67 // pred_check_branch
          %620 = sbr.rel (%p618) target = $region80
        $region79: #{dpran_forward.4} parent=67 // pred_region
          %621 = dma.done %s614, 128
        $region80: #{dpran_forward.4} parent=67 // pred_fallthru
          _
        %s622 = sand.u32 %s26, 1
        %s623 = scalar_lea.sflag [#allocation4], %s622
        %s624 = sand.u32 %s119, 1
        %s625 = smul.addr %s624, 8
        %s626 = scalar_lea.vmem [#allocation9], %s625
        // Predicated region
        $region81: #{dpran_forward.4} parent=67 // pred_check
          %p627 = pneg %p132
        $region82: #{dpran_forward.4} parent=67 // pred_check_branch
          %629 = sbr.rel (%p627) target = $region84
        $region83: #{dpran_forward.4} parent=67 // pred_region
          %630 = dma.done %s623, 128
        $region84: #{dpran_forward.4} parent=67 // pred_fallthru
          _
        %s631 = sand.u32 %s26, 1
        %s632 = scalar_lea.sflag [#allocation4], %s631
        %s633 = sand.u32 %s145, 1
        %s634 = scalar_lea.vmem [#allocation10], %s633
        // Predicated region
        $region85: #{dpran_forward.4} parent=67 // pred_check
          %p635 = pneg %p158
        $region86: #{dpran_forward.4} parent=67 // pred_check_branch
          %637 = sbr.rel (%p635) target = $region88
        $region87: #{dpran_forward.4} parent=67 // pred_region
          %638 = dma.done %s632, 16
        $region88: #{dpran_forward.4} parent=67 // pred_fallthru
          _
        %s639 = sand.u32 %s26, 1
        %s640 = scalar_lea.sflag [#allocation4], %s639
        %s641 = sand.u32 %s171, 1
        %s642 = scalar_lea.vmem [#allocation11], %s641
        // Predicated region
        $region89: #{dpran_forward.4} parent=67 // pred_check
          %p643 = pneg %p184
        $region90: #{dpran_forward.4} parent=67 // pred_check_branch
          %645 = sbr.rel (%p643) target = $region92
        $region91: #{dpran_forward.4} parent=67 // pred_region
          %646 = dma.done %s640, 16
        $region92: #{dpran_forward.4} parent=67 // pred_fallthru
          _
        %s647 = sand.u32 %s26, 1
        %s648 = scalar_lea.sflag [#allocation4], %s647
        %s649 = sand.u32 %s197, 1
        %s650 = smul.addr %s649, 8
        %s651 = scalar_lea.vmem [#allocation12], %s650
        // Predicated region
        $region93: #{dpran_forward.4} parent=67 // pred_check
          %p652 = pneg %p210
        $region94: #{dpran_forward.4} parent=67 // pred_check_branch
          %654 = sbr.rel (%p652) target = $region96
        $region95: #{dpran_forward.4} parent=67 // pred_region
          %655 = dma.done %s648, 128
        $region96: #{dpran_forward.4} parent=67 // pred_fallthru
          _
        %s656 = sand.u32 %s26, 1
        %s657 = scalar_lea.sflag [#allocation4], %s656
        %s658 = sand.u32 %s223, 1
        %s659 = scalar_lea.vmem [#allocation13], %s658
        // Predicated region
        $region97: #{dpran_forward.4} parent=67 // pred_check
          %p660 = pneg %p236
        $region98: #{dpran_forward.4} parent=67 // pred_check_branch
          %662 = sbr.rel (%p660) target = $region100
        $region99: #{dpran_forward.4} parent=67 // pred_region
          %663 = dma.done %s657, 16
        $region100: #{dpran_forward.4} parent=67 // pred_fallthru
          _
        %s664 = sand.u32 %s26, 1
        %s665 = scalar_lea.sflag [#allocation4], %s664
        %s666 = sand.u32 %s249, 1
        %s667 = smul.addr %s666, 32
        %s668 = scalar_lea.vmem [#allocation14], %s667
        // Predicated region
        $region101: #{dpran_forward.4} parent=67 // pred_check
          %p669 = pneg %p262
        $region102: #{dpran_forward.4} parent=67 // pred_check_branch
          %671 = sbr.rel (%p669) target = $region104
        $region103: #{dpran_forward.4} parent=67 // pred_region
          %672 = dma.done %s665, 512
        $region104: #{dpran_forward.4} parent=67 // pred_fallthru
          _
        %s673 = sand.u32 %s26, 1
        %s674 = scalar_lea.sflag [#allocation4], %s673
        %s675 = sand.u32 %s275, 1
        %s676 = scalar_lea.vmem [#allocation15], %s675
        // Predicated region
        $region105: #{dpran_forward.4} parent=67 // pred_check
          %p677 = pneg %p288
        $region106: #{dpran_forward.4} parent=67 // pred_check_branch
          %679 = sbr.rel (%p677) target = $region108
        $region107: #{dpran_forward.4} parent=67 // pred_region
          %680 = dma.done %s674, 16
        $region108: #{dpran_forward.4} parent=67 // pred_fallthru
          _
        %s681 = sand.u32 %s26, 1
        %s682 = scalar_lea.sflag [#allocation4], %s681
        %s683 = sand.u32 %s301, 1
        %s684 = scalar_lea.vmem [#allocation16], %s683
        // Predicated region
        $region109: #{dpran_forward.4} parent=67 // pred_check
          %p685 = pneg %p314
        $region110: #{dpran_forward.4} parent=67 // pred_check_branch
          %687 = sbr.rel (%p685) target = $region112
        $region111: #{dpran_forward.4} parent=67 // pred_region
          %688 = dma.done %s682, 16
        $region112: #{dpran_forward.4} parent=67 // pred_fallthru
          _
        %s689 = sand.u32 %s26, 1
        %s690 = scalar_lea.sflag [#allocation4], %s689
        %s691 = sand.u32 %s327, 1
        %s692 = scalar_lea.vmem [#allocation17], %s691
        // Predicated region
        $region113: #{dpran_forward.4} parent=67 // pred_check
          %p693 = pneg %p340
        $region114: #{dpran_forward.4} parent=67 // pred_check_branch
          %695 = sbr.rel (%p693) target = $region116
        $region115: #{dpran_forward.4} parent=67 // pred_region
          %696 = dma.done %s690, 16
        $region116: #{dpran_forward.4} parent=67 // pred_fallthru
          _
        %p697 = pneg %p59
        %p698 = pneg %p56
        %p699 = pneg %p80
        %p700 = pneg %p77
        %s701 = sand.u32 %s26, 1
        %s702 = scalar_lea.sflag [#allocation4], %s701
        %s703 = sand.u32 %s93, 1
        %s704 = smul.addr %s703, 8
        %s705 = scalar_lea.vmem [#allocation8], %s704
        %p706 = pneg %p106
        %p707 = pneg %p103
        %s708 = sand.u32 %s26, 1
        %s709 = scalar_lea.sflag [#allocation4], %s708
        %s710 = sand.u32 %s119, 1
        %s711 = smul.addr %s710, 8
        %s712 = scalar_lea.vmem [#allocation9], %s711
        %p713 = pneg %p132
        %p714 = pneg %p129
        %s715 = sand.u32 %s26, 1
        %s716 = scalar_lea.sflag [#allocation4], %s715
        %s717 = sand.u32 %s145, 1
        %s718 = scalar_lea.vmem [#allocation10], %s717
        %p719 = pneg %p158
        %p720 = pneg %p155
        %s721 = sand.u32 %s26, 1
        %s722 = scalar_lea.sflag [#allocation4], %s721
        %s723 = sand.u32 %s171, 1
        %s724 = scalar_lea.vmem [#allocation11], %s723
        %p725 = pneg %p184
        %p726 = pneg %p181
        %s727 = sand.u32 %s26, 1
        %s728 = scalar_lea.sflag [#allocation4], %s727
        %s729 = sand.u32 %s197, 1
        %s730 = smul.addr %s729, 8
        %s731 = scalar_lea.vmem [#allocation12], %s730
        %p732 = pneg %p210
        %p733 = pneg %p207
        %s734 = sand.u32 %s26, 1
        %s735 = scalar_lea.sflag [#allocation4], %s734
        %s736 = sand.u32 %s223, 1
        %s737 = scalar_lea.vmem [#allocation13], %s736
        %p738 = pneg %p236
        %p739 = pneg %p233
        %s740 = sand.u32 %s26, 1
        %s741 = scalar_lea.sflag [#allocation4], %s740
        %s742 = sand.u32 %s249, 1
        %s743 = smul.addr %s742, 32
        %s744 = scalar_lea.vmem [#allocation14], %s743
        %p745 = pneg %p262
        %p746 = pneg %p259
        %s747 = sand.u32 %s26, 1
        %s748 = scalar_lea.sflag [#allocation4], %s747
        %s749 = sand.u32 %s275, 1
        %s750 = scalar_lea.vmem [#allocation15], %s749
        %p751 = pneg %p288
        %p752 = pneg %p285
        %s753 = sand.u32 %s26, 1
        %s754 = scalar_lea.sflag [#allocation4], %s753
        %s755 = sand.u32 %s301, 1
        %s756 = scalar_lea.vmem [#allocation16], %s755
        %p757 = pneg %p314
        %p758 = pneg %p311
        %s759 = sand.u32 %s26, 1
        %s760 = scalar_lea.sflag [#allocation4], %s759
        %s761 = sand.u32 %s327, 1
        %s762 = scalar_lea.vmem [#allocation17], %s761
        %p763 = pneg %p340
        %p764 = pneg %p337
        %p765 = pneg %p366
        %p766 = pneg %p363
        %s767 = smul.u32 16, %s30
        %s768 = smul.u32 16, %s30
        %p770 = scmp.eq.s32.totalorder %s31, 0
        // Predicated region
        $region117: #{dpran_forward.4} parent=67 // pred_check
          %p771 = pneg %p770
        $region118: #{dpran_forward.4} parent=67 // pred_check_branch
          %773 = sbr.rel (%p771) target = $region120
        $region119: #{dpran_forward.4} parent=67 // pred_region
          %v774 = vld [vmem:[#allocation3] sm:$0xff]
          %v775 = vld [vmem:[#allocation3 + $0x8] sm:$0xff]
          %v776 = vld [vmem:[#allocation3 + $0x10] sm:$0xff]
          %v777 = vld [vmem:[#allocation3 + $0x18] sm:$0xff]
          %v778 = vld [vmem:[#allocation3 + $0x20] sm:$0xff]
          %v779 = vld [vmem:[#allocation3 + $0x28] sm:$0xff]
          %v780 = vld [vmem:[#allocation3 + $0x30] sm:$0xff]
          %v781 = vld [vmem:[#allocation3 + $0x38] sm:$0xff]
          %v782 = vld [vmem:[#allocation3 + $0x40] sm:$0xff]
          %v783 = vld [vmem:[#allocation3 + $0x48] sm:$0xff]
          %v784 = vld [vmem:[#allocation3 + $0x50] sm:$0xff]
          %v785 = vld [vmem:[#allocation3 + $0x58] sm:$0xff]
          %v786 = vld [vmem:[#allocation3 + $0x60] sm:$0xff]
          %v787 = vld [vmem:[#allocation3 + $0x68] sm:$0xff]
          %v788 = vld [vmem:[#allocation3 + $0x70] sm:$0xff]
          %v789 = vld [vmem:[#allocation3 + $0x78] sm:$0xff]
          %v790 = vld [vmem:[#allocation6] sm:$0xff]
          %v791 = vadd.f32 %v774, %v790
          %v792 = vadd.f32 %v775, %v790
          %v793 = vadd.f32 %v776, %v790
          %v794 = vadd.f32 %v777, %v790
          %v795 = vadd.f32 %v778, %v790
          %v796 = vadd.f32 %v779, %v790
          %v797 = vadd.f32 %v780, %v790
          %v798 = vadd.f32 %v781, %v790
          %v799 = vadd.f32 %v782, %v790
          %v800 = vadd.f32 %v783, %v790
          %v801 = vadd.f32 %v784, %v790
          %v802 = vadd.f32 %v785, %v790
          %v803 = vadd.f32 %v786, %v790
          %v804 = vadd.f32 %v787, %v790
          %v805 = vadd.f32 %v788, %v790
          %v806 = vadd.f32 %v789, %v790
          %vm807 = vcmask 130048
          %808 = vst.msk [vmem:[#allocation2] sm:$0xff] %vm807, %v791
          %809 = vst.msk [vmem:[#allocation2 + $0x8] sm:$0xff] %vm807, %v792
          %810 = vst.msk [vmem:[#allocation2 + $0x10] sm:$0xff] %vm807, %v793
          %811 = vst.msk [vmem:[#allocation2 + $0x18] sm:$0xff] %vm807, %v794
          %812 = vst.msk [vmem:[#allocation2 + $0x20] sm:$0xff] %vm807, %v795
          %813 = vst.msk [vmem:[#allocation2 + $0x28] sm:$0xff] %vm807, %v796
          %814 = vst.msk [vmem:[#allocation2 + $0x30] sm:$0xff] %vm807, %v797
          %815 = vst.msk [vmem:[#allocation2 + $0x38] sm:$0xff] %vm807, %v798
          %816 = vst.msk [vmem:[#allocation2 + $0x40] sm:$0xff] %vm807, %v799
          %817 = vst.msk [vmem:[#allocation2 + $0x48] sm:$0xff] %vm807, %v800
          %818 = vst.msk [vmem:[#allocation2 + $0x50] sm:$0xff] %vm807, %v801
          %819 = vst.msk [vmem:[#allocation2 + $0x58] sm:$0xff] %vm807, %v802
          %820 = vst.msk [vmem:[#allocation2 + $0x60] sm:$0xff] %vm807, %v803
          %821 = vst.msk [vmem:[#allocation2 + $0x68] sm:$0xff] %vm807, %v804
          %822 = vst.msk [vmem:[#allocation2 + $0x70] sm:$0xff] %vm807, %v805
          %823 = vst.msk [vmem:[#allocation2 + $0x78] sm:$0xff] %vm807, %v806
        $region120: #{dpran_forward.4} parent=67 // pred_fallthru
          _
        %v824 = vld [vmem:[#allocation2] sm:$0xff]
        %v825 = vld [vmem:[#allocation2 + $0x8] sm:$0xff]
        %v826 = vld [vmem:[#allocation2 + $0x10] sm:$0xff]
        %v827 = vld [vmem:[#allocation2 + $0x18] sm:$0xff]
        %v828 = vld [vmem:[#allocation2 + $0x20] sm:$0xff]
        %v829 = vld [vmem:[#allocation2 + $0x28] sm:$0xff]
        %v830 = vld [vmem:[#allocation2 + $0x30] sm:$0xff]
        %v831 = vld [vmem:[#allocation2 + $0x38] sm:$0xff]
        %v832 = vld [vmem:[#allocation2 + $0x40] sm:$0xff]
        %v833 = vld [vmem:[#allocation2 + $0x48] sm:$0xff]
        %v834 = vld [vmem:[#allocation2 + $0x50] sm:$0xff]
        %v835 = vld [vmem:[#allocation2 + $0x58] sm:$0xff]
        %v836 = vld [vmem:[#allocation2 + $0x60] sm:$0xff]
        %v837 = vld [vmem:[#allocation2 + $0x68] sm:$0xff]
        %v838 = vld [vmem:[#allocation2 + $0x70] sm:$0xff]
        %v839 = vld [vmem:[#allocation2 + $0x78] sm:$0xff]
        %v840 = vpack.c.bf16 %v825, %v824
        %v841 = vpack.c.bf16 %v827, %v826
        %v842 = vpack.c.bf16 %v829, %v828
        %v843 = vpack.c.bf16 %v831, %v830
        %v844 = vpack.c.bf16 %v833, %v832
        %v845 = vpack.c.bf16 %v835, %v834
        %v846 = vpack.c.bf16 %v837, %v836
        %v847 = vpack.c.bf16 %v839, %v838
        %v848 = vld [vmem:[%s617] sm:$0xf]
        %v849 = vld [vmem:[%s617 + $0x4] sm:$0xf]
        %v852 = vunpack.c.l.b16 %v848
        %v853 = vunpack.c.l.b16 %v849
        %v854 = vpack.c.b16 %v853, %v852
        %vm856 = vcmask 130048
        %v858 = vsel %vm856, %v840, 0
        %v861 = vsel %vm856, %v841, 0
        %v864 = vsel %vm856, %v842, 0
        %v867 = vsel %vm856, %v843, 0
        %v870 = vsel %vm856, %v844, 0
        %v873 = vsel %vm856, %v845, 0
        %v876 = vsel %vm856, %v846, 0
        %v879 = vsel %vm856, %v847, 0
        %881 = vmatprep.subr.bf16.mxu0 0
        %882 = vmatpush1.bf16.msra.mxu0 %v854
        %883 = vmatprep.subr.bf16.mxu0 0
        %884 = vmatpush1.bf16.msra.mxu0 0
        %885 = vmatprep.subr.bf16.mxu0 0
        %886 = vmatpush1.bf16.msra.mxu0 0
        %887 = vmatprep.subr.bf16.mxu0 0
        %888 = vmatpush1.bf16.msra.mxu0 0
        %889 = vmatprep.subr.bf16.mxu0 0
        %890 = vmatpush1.bf16.msra.mxu0 0
        %891 = vmatprep.subr.bf16.mxu0 0
        %892 = vmatpush1.bf16.msra.mxu0 0
        %893 = vmatprep.subr.bf16.mxu0 0
        %894 = vmatpush1.bf16.msra.mxu0 0
        %895 = vmatprep.subr.bf16.mxu0 0
        %896 = vmatpush1.bf16.msra.mxu0 0
        %897 = vmatprep.subr.bf16.mxu0 0
        %898 = vmatpush1.bf16.msra.mxu0 0
        %899 = vmatprep.subr.bf16.mxu0 0
        %900 = vmatpush1.bf16.msra.mxu0 0
        %901 = vmatprep.subr.bf16.mxu0 0
        %902 = vmatpush1.bf16.msra.mxu0 0
        %903 = vmatprep.subr.bf16.mxu0 0
        %904 = vmatpush1.bf16.msra.mxu0 0
        %905 = vmatprep.subr.bf16.mxu0 0
        %906 = vmatpush1.bf16.msra.mxu0 0
        %907 = vmatprep.subr.bf16.mxu0 0
        %908 = vmatpush1.bf16.msra.mxu0 0
        %909 = vmatprep.subr.bf16.mxu0 0
        %910 = vmatpush1.bf16.msra.mxu0 0
        %911 = vmatprep.subr.bf16.mxu0 0
        %912 = vmatpush1.bf16.msra.mxu0 0
        %913 = vmatprep.mubr.bf16.mxu0 0
        %914 = vmatmul.mubr.bf16.gmra.mrb[0].mxu0 %v858
        %v915 = vpop.f32.mrb[0].mxu0
        %v916 = vadd.f32 0.0, %v915
        %v917 = vpop.f32.mrb[0].mxu0
        %v918 = vpop.f32.mrb[0].mxu0
        %v919 = vadd.f32 0.0, %v918
        %v920 = vpop.f32.mrb[0].mxu0
        %921 = vmatprep.mubr.bf16.mxu0 0
        %922 = vmatmul.mubr.bf16.gmra.mrb[0].mxu0 %v861
        %v923 = vpop.f32.mrb[0].mxu0
        %v924 = vadd.f32 0.0, %v923
        %v925 = vpop.f32.mrb[0].mxu0
        %v926 = vpop.f32.mrb[0].mxu0
        %v927 = vadd.f32 0.0, %v926
        %v928 = vpop.f32.mrb[0].mxu0
        %929 = vmatprep.mubr.bf16.mxu0 0
        %930 = vmatmul.mubr.bf16.gmra.mrb[0].mxu0 %v864
        %v931 = vpop.f32.mrb[0].mxu0
        %v932 = vadd.f32 0.0, %v931
        %v933 = vpop.f32.mrb[0].mxu0
        %v934 = vpop.f32.mrb[0].mxu0
        %v935 = vadd.f32 0.0, %v934
        %v936 = vpop.f32.mrb[0].mxu0
        %937 = vmatprep.mubr.bf16.mxu0 0
        %938 = vmatmul.mubr.bf16.gmra.mrb[0].mxu0 %v867
        %v939 = vpop.f32.mrb[0].mxu0
        %v940 = vadd.f32 0.0, %v939
        %v941 = vpop.f32.mrb[0].mxu0
        %v942 = vpop.f32.mrb[0].mxu0
        %v943 = vadd.f32 0.0, %v942
        %v944 = vpop.f32.mrb[0].mxu0
        %945 = vmatprep.mubr.bf16.mxu0 0
        %946 = vmatmul.mubr.bf16.gmra.mrb[0].mxu0 %v870
        %v947 = vpop.f32.mrb[0].mxu0
        %v948 = vadd.f32 0.0, %v947
        %v949 = vpop.f32.mrb[0].mxu0
        %v950 = vpop.f32.mrb[0].mxu0
        %v951 = vadd.f32 0.0, %v950
        %v952 = vpop.f32.mrb[0].mxu0
        %953 = vmatprep.mubr.bf16.mxu0 0
        %954 = vmatmul.mubr.bf16.gmra.mrb[0].mxu0 %v873
        %v955 = vpop.f32.mrb[0].mxu0
        %v956 = vadd.f32 0.0, %v955
        %v957 = vpop.f32.mrb[0].mxu0
        %v958 = vpop.f32.mrb[0].mxu0
        %v959 = vadd.f32 0.0, %v958
        %v960 = vpop.f32.mrb[0].mxu0
        %961 = vmatprep.mubr.bf16.mxu0 0
        %962 = vmatmul.mubr.bf16.gmra.mrb[0].mxu0 %v876
        %v963 = vpop.f32.mrb[0].mxu0
        %v964 = vadd.f32 0.0, %v963
        %v965 = vpop.f32.mrb[0].mxu0
        %v966 = vpop.f32.mrb[0].mxu0
        %v967 = vadd.f32 0.0, %v966
        %v968 = vpop.f32.mrb[0].mxu0
        %969 = vmatprep.mubr.bf16.mxu0 0
        %970 = vmatmul.mubr.bf16.gmra.mrb[0].mxu0 %v879
        %v971 = vpop.f32.mrb[0].mxu0
        %v972 = vadd.f32 0.0, %v971
        %v973 = vpop.f32.mrb[0].mxu0
        %v974 = vpop.f32.mrb[0].mxu0
        %v975 = vadd.f32 0.0, %v974
        %v976 = vpop.f32.mrb[0].mxu0
        %977 = vdwg.mxu0
        %v978 = vlaneseq
        %v979 = vshrl.u32 %v978, 7
        %v980 = vlaneseq
        %v981 = vand.u32 %v980, 127
        %vm982 = vcmp.gt.s32.totalorder %v981, %v979
        %v983 = vsel %vm982, -1e+30, 0.0
        %v984 = vpack.c.bf16 %v916, %v916
        %v985 = vpack.c.bf16 %v919, %v919
        %v986 = vpack.c.bf16 %v924, %v924
        %v987 = vpack.c.bf16 %v927, %v927
        %v988 = vpack.c.bf16 %v932, %v932
        %v989 = vpack.c.bf16 %v935, %v935
        %v990 = vpack.c.bf16 %v940, %v940
        %v991 = vpack.c.bf16 %v943, %v943
        %v992 = vpack.c.bf16 %v948, %v948
        %v993 = vpack.c.bf16 %v951, %v951
        %v994 = vpack.c.bf16 %v956, %v956
        %v995 = vpack.c.bf16 %v959, %v959
        %v996 = vpack.c.bf16 %v964, %v964
        %v997 = vpack.c.bf16 %v967, %v967
        %v998 = vpack.c.bf16 %v972, %v972
        %v999 = vpack.c.bf16 %v975, %v975
        %1001 = vrot.lane.b32.xlu0 %v984, 112
        %v1002 = vpop.permute.xlu0 %1001
        %vm1003 = vcmask 64512
        %v1005 = vsel %vm1003, %v984, 0
        %v1008 = vsel %vm1003, %v1002, 0
        %1010 = vmatprep.subr.bf16.mxu0 0
        %1011 = vmatpush1.bf16.xpose.msra.mxu0 %v1008
        %1012 = vmatprep.subr.bf16.mxu0 0
        %1013 = vmatpush1.bf16.xpose.msra.mxu0 0
        %1014 = vmatprep.subr.bf16.mxu0 0
        %1015 = vmatpush1.bf16.xpose.msra.mxu0 0
        %1016 = vmatprep.subr.bf16.mxu0 0
        %1017 = vmatpush1.bf16.xpose.msra.mxu0 0
        %1018 = vmatprep.subr.bf16.mxu0 0
        %1019 = vmatpush1.bf16.xpose.msra.mxu0 0
        %1020 = vmatprep.subr.bf16.mxu0 0
        %1021 = vmatpush1.bf16.xpose.msra.mxu0 0
        %1022 = vmatprep.subr.bf16.mxu0 0
        %1023 = vmatpush1.bf16.xpose.msra.mxu0 0
        %1024 = vmatprep.subr.bf16.mxu0 0
        %1025 = vmatpush1.bf16.xpose.msra.mxu0 0
        %1026 = vmatprep.subr.bf16.mxu0 0
        %1027 = vmatpush1.bf16.xpose.msra.mxu0 0
        %1028 = vmatprep.subr.bf16.mxu0 0
        %1029 = vmatpush1.bf16.xpose.msra.mxu0 0
        %1030 = vmatprep.subr.bf16.mxu0 0
        %1031 = vmatpush1.bf16.xpose.msra.mxu0 0
        %1032 = vmatprep.subr.bf16.mxu0 0
        %1033 = vmatpush1.bf16.xpose.msra.mxu0 0
        %1034 = vmatprep.subr.bf16.mxu0 0
        %1035 = vmatpush1.bf16.xpose.msra.mxu0 0
        %1036 = vmatprep.subr.bf16.mxu0 0
        %1037 = vmatpush1.bf16.xpose.msra.mxu0 0
        %1038 = vmatprep.subr.bf16.mxu0 0
        %1039 = vmatpush1.bf16.xpose.msra.mxu0 0
        %1040 = vmatprep.subr.bf16.mxu0 0
        %1041 = vmatpush1.bf16.xpose.msra.mxu0 0
        %1042 = vmatprep.mubr.bf16.mxu0 0
        %1043 = vmatmul.mubr.bf16.gmra.mrb[0].mxu0 %v1005
        %v1044 = vpop.f32.mrb[0].mxu0
        %v1045 = vadd.f32 0.0, %v1044
        %v1046 = vpop.f32.mrb[0].mxu0
        %v1047 = vpop.f32.mrb[0].mxu0
        %v1048 = vpop.f32.mrb[0].mxu0
        %1049 = vdwg.mxu0
        %1051 = vrot.lane.b32.xlu0 %v985, 112
        %v1052 = vpop.permute.xlu0 %1051
        %v1054 = vsel %vm1003, %v985, 0
        %v1057 = vsel %vm1003, %v1052, 0
        %1059 = vmatprep.subr.bf16.mxu0 0
        %1060 = vmatpush1.bf16.xpose.msra.mxu0 %v1057
        %1061 = vmatprep.subr.bf16.mxu0 0
        %1062 = vmatpush1.bf16.xpose.msra.mxu0 0
        %1063 = vmatprep.subr.bf16.mxu0 0
        %1064 = vmatpush1.bf16.xpose.msra.mxu0 0
        %1065 = vmatprep.subr.bf16.mxu0 0
        %1066 = vmatpush1.bf16.xpose.msra.mxu0 0
        %1067 = vmatprep.subr.bf16.mxu0 0
        %1068 = vmatpush1.bf16.xpose.msra.mxu0 0
        %1069 = vmatprep.subr.bf16.mxu0 0
        %1070 = vmatpush1.bf16.xpose.msra.mxu0 0
        %1071 = vmatprep.subr.bf16.mxu0 0
        %1072 = vmatpush1.bf16.xpose.msra.mxu0 0
        %1073 = vmatprep.subr.bf16.mxu0 0
        %1074 = vmatpush1.bf16.xpose.msra.mxu0 0
        %1075 = vmatprep.subr.bf16.mxu0 0
        %1076 = vmatpush1.bf16.xpose.msra.mxu0 0
        %1077 = vmatprep.subr.bf16.mxu0 0
        %1078 = vmatpush1.bf16.xpose.msra.mxu0 0
        %1079 = vmatprep.subr.bf16.mxu0 0
        %1080 = vmatpush1.bf16.xpose.msra.mxu0 0
        %1081 = vmatprep.subr.bf16.mxu0 0
        %1082 = vmatpush1.bf16.xpose.msra.mxu0 0
        %1083 = vmatprep.subr.bf16.mxu0 0
        %1084 = vmatpush1.bf16.xpose.msra.mxu0 0
        %1085 = vmatprep.subr.bf16.mxu0 0
        %1086 = vmatpush1.bf16.xpose.msra.mxu0 0
        %1087 = vmatprep.subr.bf16.mxu0 0
        %1088 = vmatpush1.bf16.xpose.msra.mxu0 0
        %1089 = vmatprep.subr.bf16.mxu0 0
        %1090 = vmatpush1.bf16.xpose.msra.mxu0 0
        %1091 = vmatprep.mubr.bf16.mxu0 0
        %1092 = vmatmul.mubr.bf16.gmra.mrb[0].mxu0 %v1054
        %v1093 = vpop.f32.mrb[0].mxu0
        %v1094 = vadd.f32 0.0, %v1093
        %v1095 = vpop.f32.mrb[0].mxu0
        %v1096 = vpop.f32.mrb[0].mxu0
        %v1097 = vpop.f32.mrb[0].mxu0
        %1098 = vdwg.mxu0
        %1100 = vrot.lane.b32.xlu0 %v986, 112
        %v1101 = vpop.permute.xlu0 %1100
        %v1103 = vsel %vm1003, %v986, 0
        %v1106 = vsel %vm1003, %v1101, 0
        %1108 = vmatprep.subr.bf16.mxu0 0
        %1109 = vmatpush1.bf16.xpose.msra.mxu0 %v1106
        %1110 = vmatprep.subr.bf16.mxu0 0
        %1111 = vmatpush1.bf16.xpose.msra.mxu0 0
        %1112 = vmatprep.subr.bf16.mxu0 0
        %1113 = vmatpush1.bf16.xpose.msra.mxu0 0
        %1114 = vmatprep.subr.bf16.mxu0 0
        %1115 = vmatpush1.bf16.xpose.msra.mxu0 0
        %1116 = vmatprep.subr.bf16.mxu0 0
        %1117 = vmatpush1.bf16.xpose.msra.mxu0 0
        %1118 = vmatprep.subr.bf16.mxu0 0
        %1119 = vmatpush1.bf16.xpose.msra.mxu0 0
        %1120 = vmatprep.subr.bf16.mxu0 0
        %1121 = vmatpush1.bf16.xpose.msra.mxu0 0
        %1122 = vmatprep.subr.bf16.mxu0 0
        %1123 = vmatpush1.bf16.xpose.msra.mxu0 0
        %1124 = vmatprep.subr.bf16.mxu0 0
        %1125 = vmatpush1.bf16.xpose.msra.mxu0 0
        %1126 = vmatprep.subr.bf16.mxu0 0
        %1127 = vmatpush1.bf16.xpose.msra.mxu0 0
        %1128 = vmatprep.subr.bf16.mxu0 0
        %1129 = vmatpush1.bf16.xpose.msra.mxu0 0
        %1130 = vmatprep.subr.bf16.mxu0 0
        %1131 = vmatpush1.bf16.xpose.msra.mxu0 0
        %1132 = vmatprep.subr.bf16.mxu0 0
        %1133 = vmatpush1.bf16.xpose.msra.mxu0 0
        %1134 = vmatprep.subr.bf16.mxu0 0
        %1135 = vmatpush1.bf16.xpose.msra.mxu0 0
        %1136 = vmatprep.subr.bf16.mxu0 0
        %1137 = vmatpush1.bf16.xpose.msra.mxu0 0
        %1138 = vmatprep.subr.bf16.mxu0 0
        %1139 = vmatpush1.bf16.xpose.msra.mxu0 0
        %1140 = vmatprep.mubr.bf16.mxu0 0
        %1141 = vmatmul.mubr.bf16.gmra.mrb[0].mxu0 %v1103
        %v1142 = vpop.f32.mrb[0].mxu0
        %v1143 = vadd.f32 0.0, %v1142
        %v1144 = vpop.f32.mrb[0].mxu0
        %v1145 = vpop.f32.mrb[0].mxu0
        %v1146 = vpop.f32.mrb[0].mxu0
        %1147 = vdwg.mxu0
        %1149 = vrot.lane.b32.xlu0 %v987, 112
        %v1150 = vpop.permute.xlu0 %1149
        %v1152 = vsel %vm1003, %v987, 0
        %v1155 = vsel %vm1003, %v1150, 0
        %1157 = vmatprep.subr.bf16.mxu0 0
        %1158 = vmatpush1.bf16.xpose.msra.mxu0 %v1155
        %1159 = vmatprep.subr.bf16.mxu0 0
        %1160 = vmatpush1.bf16.xpose.msra.mxu0 0
        %1161 = vmatprep.subr.bf16.mxu0 0
        %1162 = vmatpush1.bf16.xpose.msra.mxu0 0
        %1163 = vmatprep.subr.bf16.mxu0 0
        %1164 = vmatpush1.bf16.xpose.msra.mxu0 0
        %1165 = vmatprep.subr.bf16.mxu0 0
        %1166 = vmatpush1.bf16.xpose.msra.mxu0 0
        %1167 = vmatprep.subr.bf16.mxu0 0
        %1168 = vmatpush1.bf16.xpose.msra.mxu0 0
        %1169 = vmatprep.subr.bf16.mxu0 0
        %1170 = vmatpush1.bf16.xpose.msra.mxu0 0
        %1171 = vmatprep.subr.bf16.mxu0 0
        %1172 = vmatpush1.bf16.xpose.msra.mxu0 0
        %1173 = vmatprep.subr.bf16.mxu0 0
        %1174 = vmatpush1.bf16.xpose.msra.mxu0 0
        %1175 = vmatprep.subr.bf16.mxu0 0
        %1176 = vmatpush1.bf16.xpose.msra.mxu0 0
        %1177 = vmatprep.subr.bf16.mxu0 0
        %1178 = vmatpush1.bf16.xpose.msra.mxu0 0
        %1179 = vmatprep.subr.bf16.mxu0 0
        %1180 = vmatpush1.bf16.xpose.msra.mxu0 0
        %1181 = vmatprep.subr.bf16.mxu0 0
        %1182 = vmatpush1.bf16.xpose.msra.mxu0 0
        %1183 = vmatprep.subr.bf16.mxu0 0
        %1184 = vmatpush1.bf16.xpose.msra.mxu0 0
        %1185 = vmatprep.subr.bf16.mxu0 0
        %1186 = vmatpush1.bf16.xpose.msra.mxu0 0
        %1187 = vmatprep.subr.bf16.mxu0 0
        %1188 = vmatpush1.bf16.xpose.msra.mxu0 0
        %1189 = vmatprep.mubr.bf16.mxu0 0
        %1190 = vmatmul.mubr.bf16.gmra.mrb[0].mxu0 %v1152
        %v1191 = vpop.f32.mrb[0].mxu0
        %v1192 = vadd.f32 0.0, %v1191
        %v1193 = vpop.f32.mrb[0].mxu0
        %v1194 = vpop.f32.mrb[0].mxu0
        %v1195 = vpop.f32.mrb[0].mxu0
        %1196 = vdwg.mxu0
        %1198 = vrot.lane.b32.xlu0 %v988, 112
        %v1199 = vpop.permute.xlu0 %1198
        %v1201 = vsel %vm1003, %v988, 0
        %v1204 = vsel %vm1003, %v1199, 0
        %1206 = vmatprep.subr.bf16.mxu0 0
        %1207 = vmatpush1.bf16.xpose.msra.mxu0 %v1204
        %1208 = vmatprep.subr.bf16.mxu0 0
        %1209 = vmatpush1.bf16.xpose.msra.mxu0 0
        %1210 = vmatprep.subr.bf16.mxu0 0
        %1211 = vmatpush1.bf16.xpose.msra.mxu0 0
        %1212 = vmatprep.subr.bf16.mxu0 0
        %1213 = vmatpush1.bf16.xpose.msra.mxu0 0
        %1214 = vmatprep.subr.bf16.mxu0 0
        %1215 = vmatpush1.bf16.xpose.msra.mxu0 0
        %1216 = vmatprep.subr.bf16.mxu0 0
        %1217 = vmatpush1.bf16.xpose.msra.mxu0 0
        %1218 = vmatprep.subr.bf16.mxu0 0
        %1219 = vmatpush1.bf16.xpose.msra.mxu0 0
        %1220 = vmatprep.subr.bf16.mxu0 0
        %1221 = vmatpush1.bf16.xpose.msra.mxu0 0
        %1222 = vmatprep.subr.bf16.mxu0 0
        %1223 = vmatpush1.bf16.xpose.msra.mxu0 0
        %1224 = vmatprep.subr.bf16.mxu0 0
        %1225 = vmatpush1.bf16.xpose.msra.mxu0 0
        %1226 = vmatprep.subr.bf16.mxu0 0
        %1227 = vmatpush1.bf16.xpose.msra.mxu0 0
        %1228 = vmatprep.subr.bf16.mxu0 0
        %1229 = vmatpush1.bf16.xpose.msra.mxu0 0
        %1230 = vmatprep.subr.bf16.mxu0 0
        %1231 = vmatpush1.bf16.xpose.msra.mxu0 0
        %1232 = vmatprep.subr.bf16.mxu0 0
        %1233 = vmatpush1.bf16.xpose.msra.mxu0 0
        %1234 = vmatprep.subr.bf16.mxu0 0
        %1235 = vmatpush1.bf16.xpose.msra.mxu0 0
        %1236 = vmatprep.subr.bf16.mxu0 0
        %1237 = vmatpush1.bf16.xpose.msra.mxu0 0
        %1238 = vmatprep.mubr.bf16.mxu0 0
        %1239 = vmatmul.mubr.bf16.gmra.mrb[0].mxu0 %v1201
        %v1240 = vpop.f32.mrb[0].mxu0
        %v1241 = vadd.f32 0.0, %v1240
        %v1242 = vpop.f32.mrb[0].mxu0
        %v1243 = vpop.f32.mrb[0].mxu0
        %v1244 = vpop.f32.mrb[0].mxu0
        %1245 = vdwg.mxu0
        %1247 = vrot.lane.b32.xlu0 %v989, 112
        %v1248 = vpop.permute.xlu0 %1247
        %v1250 = vsel %vm1003, %v989, 0
        %v1253 = vsel %vm1003, %v1248, 0
        %1255 = vmatprep.subr.bf16.mxu0 0
        %1256 = vmatpush1.bf16.xpose.msra.mxu0 %v1253
        %1257 = vmatprep.subr.bf16.mxu0 0
        %1258 = vmatpush1.bf16.xpose.msra.mxu0 0
        %1259 = vmatprep.subr.bf16.mxu0 0
        %1260 = vmatpush1.bf16.xpose.msra.mxu0 0
        %1261 = vmatprep.subr.bf16.mxu0 0
        %1262 = vmatpush1.bf16.xpose.msra.mxu0 0
        %1263 = vmatprep.subr.bf16.mxu0 0
        %1264 = vmatpush1.bf16.xpose.msra.mxu0 0
        %1265 = vmatprep.subr.bf16.mxu0 0
        %1266 = vmatpush1.bf16.xpose.msra.mxu0 0
        %1267 = vmatprep.subr.bf16.mxu0 0
        %1268 = vmatpush1.bf16.xpose.msra.mxu0 0
        %1269 = vmatprep.subr.bf16.mxu0 0
        %1270 = vmatpush1.bf16.xpose.msra.mxu0 0
        %1271 = vmatprep.subr.bf16.mxu0 0
        %1272 = vmatpush1.bf16.xpose.msra.mxu0 0
        %1273 = vmatprep.subr.bf16.mxu0 0
        %1274 = vmatpush1.bf16.xpose.msra.mxu0 0
        %1275 = vmatprep.subr.bf16.mxu0 0
        %1276 = vmatpush1.bf16.xpose.msra.mxu0 0
        %1277 = vmatprep.subr.bf16.mxu0 0
        %1278 = vmatpush1.bf16.xpose.msra.mxu0 0
        %1279 = vmatprep.subr.bf16.mxu0 0
        %1280 = vmatpush1.bf16.xpose.msra.mxu0 0
        %1281 = vmatprep.subr.bf16.mxu0 0
        %1282 = vmatpush1.bf16.xpose.msra.mxu0 0
        %1283 = vmatprep.subr.bf16.mxu0 0
        %1284 = vmatpush1.bf16.xpose.msra.mxu0 0
        %1285 = vmatprep.subr.bf16.mxu0 0
        %1286 = vmatpush1.bf16.xpose.msra.mxu0 0
        %1287 = vmatprep.mubr.bf16.mxu0 0
        %1288 = vmatmul.mubr.bf16.gmra.mrb[0].mxu0 %v1250
        %v1289 = vpop.f32.mrb[0].mxu0
        %v1290 = vadd.f32 0.0, %v1289
        %v1291 = vpop.f32.mrb[0].mxu0
        %v1292 = vpop.f32.mrb[0].mxu0
        %v1293 = vpop.f32.mrb[0].mxu0
        %1294 = vdwg.mxu0
        %1296 = vrot.lane.b32.xlu0 %v990, 112
        %v1297 = vpop.permute.xlu0 %1296
        %v1299 = vsel %vm1003, %v990, 0
        %v1302 = vsel %vm1003, %v1297, 0
        %1304 = vmatprep.subr.bf16.mxu0 0
        %1305 = vmatpush1.bf16.xpose.msra.mxu0 %v1302
        %1306 = vmatprep.subr.bf16.mxu0 0
        %1307 = vmatpush1.bf16.xpose.msra.mxu0 0
        %1308 = vmatprep.subr.bf16.mxu0 0
        %1309 = vmatpush1.bf16.xpose.msra.mxu0 0
        %1310 = vmatprep.subr.bf16.mxu0 0
        %1311 = vmatpush1.bf16.xpose.msra.mxu0 0
        %1312 = vmatprep.subr.bf16.mxu0 0
        %1313 = vmatpush1.bf16.xpose.msra.mxu0 0
        %1314 = vmatprep.subr.bf16.mxu0 0
        %1315 = vmatpush1.bf16.xpose.msra.mxu0 0
        %1316 = vmatprep.subr.bf16.mxu0 0
        %1317 = vmatpush1.bf16.xpose.msra.mxu0 0
        %1318 = vmatprep.subr.bf16.mxu0 0
        %1319 = vmatpush1.bf16.xpose.msra.mxu0 0
        %1320 = vmatprep.subr.bf16.mxu0 0
        %1321 = vmatpush1.bf16.xpose.msra.mxu0 0
        %1322 = vmatprep.subr.bf16.mxu0 0
        %1323 = vmatpush1.bf16.xpose.msra.mxu0 0
        %1324 = vmatprep.subr.bf16.mxu0 0
        %1325 = vmatpush1.bf16.xpose.msra.mxu0 0
        %1326 = vmatprep.subr.bf16.mxu0 0
        %1327 = vmatpush1.bf16.xpose.msra.mxu0 0
        %1328 = vmatprep.subr.bf16.mxu0 0
        %1329 = vmatpush1.bf16.xpose.msra.mxu0 0
        %1330 = vmatprep.subr.bf16.mxu0 0
        %1331 = vmatpush1.bf16.xpose.msra.mxu0 0
        %1332 = vmatprep.subr.bf16.mxu0 0
        %1333 = vmatpush1.bf16.xpose.msra.mxu0 0
        %1334 = vmatprep.subr.bf16.mxu0 0
        %1335 = vmatpush1.bf16.xpose.msra.mxu0 0
        %1336 = vmatprep.mubr.bf16.mxu0 0
        %1337 = vmatmul.mubr.bf16.gmra.mrb[0].mxu0 %v1299
        %v1338 = vpop.f32.mrb[0].mxu0
        %v1339 = vadd.f32 0.0, %v1338
        %v1340 = vpop.f32.mrb[0].mxu0
        %v1341 = vpop.f32.mrb[0].mxu0
        %v1342 = vpop.f32.mrb[0].mxu0
        %1343 = vdwg.mxu0
        %1345 = vrot.lane.b32.xlu0 %v991, 112
        %v1346 = vpop.permute.xlu0 %1345
        %v1348 = vsel %vm1003, %v991, 0
        %v1351 = vsel %vm1003, %v1346, 0
        %1353 = vmatprep.subr.bf16.mxu0 0
        %1354 = vmatpush1.bf16.xpose.msra.mxu0 %v1351
        %1355 = vmatprep.subr.bf16.mxu0 0
        %1356 = vmatpush1.bf16.xpose.msra.mxu0 0
        %1357 = vmatprep.subr.bf16.mxu0 0
        %1358 = vmatpush1.bf16.xpose.msra.mxu0 0
        %1359 = vmatprep.subr.bf16.mxu0 0
        %1360 = vmatpush1.bf16.xpose.msra.mxu0 0
        %1361 = vmatprep.subr.bf16.mxu0 0
        %1362 = vmatpush1.bf16.xpose.msra.mxu0 0
        %1363 = vmatprep.subr.bf16.mxu0 0
        %1364 = vmatpush1.bf16.xpose.msra.mxu0 0
        %1365 = vmatprep.subr.bf16.mxu0 0
        %1366 = vmatpush1.bf16.xpose.msra.mxu0 0
        %1367 = vmatprep.subr.bf16.mxu0 0
        %1368 = vmatpush1.bf16.xpose.msra.mxu0 0
        %1369 = vmatprep.subr.bf16.mxu0 0
        %1370 = vmatpush1.bf16.xpose.msra.mxu0 0
        %1371 = vmatprep.subr.bf16.mxu0 0
        %1372 = vmatpush1.bf16.xpose.msra.mxu0 0
        %1373 = vmatprep.subr.bf16.mxu0 0
        %1374 = vmatpush1.bf16.xpose.msra.mxu0 0
        %1375 = vmatprep.subr.bf16.mxu0 0
        %1376 = vmatpush1.bf16.xpose.msra.mxu0 0
        %1377 = vmatprep.subr.bf16.mxu0 0
        %1378 = vmatpush1.bf16.xpose.msra.mxu0 0
        %1379 = vmatprep.subr.bf16.mxu0 0
        %1380 = vmatpush1.bf16.xpose.msra.mxu0 0
        %1381 = vmatprep.subr.bf16.mxu0 0
        %1382 = vmatpush1.bf16.xpose.msra.mxu0 0
        %1383 = vmatprep.subr.bf16.mxu0 0
        %1384 = vmatpush1.bf16.xpose.msra.mxu0 0
        %1385 = vmatprep.mubr.bf16.mxu0 0
        %1386 = vmatmul.mubr.bf16.gmra.mrb[0].mxu0 %v1348
        %v1387 = vpop.f32.mrb[0].mxu0
        %v1388 = vadd.f32 0.0, %v1387
        %v1389 = vpop.f32.mrb[0].mxu0
        %v1390 = vpop.f32.mrb[0].mxu0
        %v1391 = vpop.f32.mrb[0].mxu0
        %1392 = vdwg.mxu0
        %1394 = vrot.lane.b32.xlu0 %v992, 112
        %v1395 = vpop.permute.xlu0 %1394
        %v1397 = vsel %vm1003, %v992, 0
        %v1400 = vsel %vm1003, %v1395, 0
        %1402 = vmatprep.subr.bf16.mxu0 0
        %1403 = vmatpush1.bf16.xpose.msra.mxu0 %v1400
        %1404 = vmatprep.subr.bf16.mxu0 0
        %1405 = vmatpush1.bf16.xpose.msra.mxu0 0
        %1406 = vmatprep.subr.bf16.mxu0 0
        %1407 = vmatpush1.bf16.xpose.msra.mxu0 0
        %1408 = vmatprep.subr.bf16.mxu0 0
        %1409 = vmatpush1.bf16.xpose.msra.mxu0 0
        %1410 = vmatprep.subr.bf16.mxu0 0
        %1411 = vmatpush1.bf16.xpose.msra.mxu0 0
        %1412 = vmatprep.subr.bf16.mxu0 0
        %1413 = vmatpush1.bf16.xpose.msra.mxu0 0
        %1414 = vmatprep.subr.bf16.mxu0 0
        %1415 = vmatpush1.bf16.xpose.msra.mxu0 0
        %1416 = vmatprep.subr.bf16.mxu0 0
        %1417 = vmatpush1.bf16.xpose.msra.mxu0 0
        %1418 = vmatprep.subr.bf16.mxu0 0
        %1419 = vmatpush1.bf16.xpose.msra.mxu0 0
        %1420 = vmatprep.subr.bf16.mxu0 0
        %1421 = vmatpush1.bf16.xpose.msra.mxu0 0
        %1422 = vmatprep.subr.bf16.mxu0 0
        %1423 = vmatpush1.bf16.xpose.msra.mxu0 0
        %1424 = vmatprep.subr.bf16.mxu0 0
        %1425 = vmatpush1.bf16.xpose.msra.mxu0 0
        %1426 = vmatprep.subr.bf16.mxu0 0
        %1427 = vmatpush1.bf16.xpose.msra.mxu0 0
        %1428 = vmatprep.subr.bf16.mxu0 0
        %1429 = vmatpush1.bf16.xpose.msra.mxu0 0
        %1430 = vmatprep.subr.bf16.mxu0 0
        %1431 = vmatpush1.bf16.xpose.msra.mxu0 0
        %1432 = vmatprep.subr.bf16.mxu0 0
        %1433 = vmatpush1.bf16.xpose.msra.mxu0 0
        %1434 = vmatprep.mubr.bf16.mxu0 0
        %1435 = vmatmul.mubr.bf16.gmra.mrb[0].mxu0 %v1397
        %v1436 = vpop.f32.mrb[0].mxu0
        %v1437 = vadd.f32 0.0, %v1436
        %v1438 = vpop.f32.mrb[0].mxu0
        %v1439 = vpop.f32.mrb[0].mxu0
        %v1440 = vpop.f32.mrb[0].mxu0
        %1441 = vdwg.mxu0
        %1443 = vrot.lane.b32.xlu0 %v993, 112
        %v1444 = vpop.permute.xlu0 %1443
        %v1446 = vsel %vm1003, %v993, 0
        %v1449 = vsel %vm1003, %v1444, 0
        %1451 = vmatprep.subr.bf16.mxu0 0
        %1452 = vmatpush1.bf16.xpose.msra.mxu0 %v1449
        %1453 = vmatprep.subr.bf16.mxu0 0
        %1454 = vmatpush1.bf16.xpose.msra.mxu0 0
        %1455 = vmatprep.subr.bf16.mxu0 0
        %1456 = vmatpush1.bf16.xpose.msra.mxu0 0
        %1457 = vmatprep.subr.bf16.mxu0 0
        %1458 = vmatpush1.bf16.xpose.msra.mxu0 0
        %1459 = vmatprep.subr.bf16.mxu0 0
        %1460 = vmatpush1.bf16.xpose.msra.mxu0 0
        %1461 = vmatprep.subr.bf16.mxu0 0
        %1462 = vmatpush1.bf16.xpose.msra.mxu0 0
        %1463 = vmatprep.subr.bf16.mxu0 0
        %1464 = vmatpush1.bf16.xpose.msra.mxu0 0
        %1465 = vmatprep.subr.bf16.mxu0 0
        %1466 = vmatpush1.bf16.xpose.msra.mxu0 0
        %1467 = vmatprep.subr.bf16.mxu0 0
        %1468 = vmatpush1.bf16.xpose.msra.mxu0 0
        %1469 = vmatprep.subr.bf16.mxu0 0
        %1470 = vmatpush1.bf16.xpose.msra.mxu0 0
        %1471 = vmatprep.subr.bf16.mxu0 0
        %1472 = vmatpush1.bf16.xpose.msra.mxu0 0
        %1473 = vmatprep.subr.bf16.mxu0 0
        %1474 = vmatpush1.bf16.xpose.msra.mxu0 0
        %1475 = vmatprep.subr.bf16.mxu0 0
        %1476 = vmatpush1.bf16.xpose.msra.mxu0 0
        %1477 = vmatprep.subr.bf16.mxu0 0
        %1478 = vmatpush1.bf16.xpose.msra.mxu0 0
        %1479 = vmatprep.subr.bf16.mxu0 0
        %1480 = vmatpush1.bf16.xpose.msra.mxu0 0
        %1481 = vmatprep.subr.bf16.mxu0 0
        %1482 = vmatpush1.bf16.xpose.msra.mxu0 0
        %1483 = vmatprep.mubr.bf16.mxu0 0
        %1484 = vmatmul.mubr.bf16.gmra.mrb[0].mxu0 %v1446
        %v1485 = vpop.f32.mrb[0].mxu0
        %v1486 = vadd.f32 0.0, %v1485
        %v1487 = vpop.f32.mrb[0].mxu0
        %v1488 = vpop.f32.mrb[0].mxu0
        %v1489 = vpop.f32.mrb[0].mxu0
        %1490 = vdwg.mxu0
        %1492 = vrot.lane.b32.xlu0 %v994, 112
        %v1493 = vpop.permute.xlu0 %1492
        %v1495 = vsel %vm1003, %v994, 0
        %v1498 = vsel %vm1003, %v1493, 0
        %1500 = vmatprep.subr.bf16.mxu0 0
        %1501 = vmatpush1.bf16.xpose.msra.mxu0 %v1498
        %1502 = vmatprep.subr.bf16.mxu0 0
        %1503 = vmatpush1.bf16.xpose.msra.mxu0 0
        %1504 = vmatprep.subr.bf16.mxu0 0
        %1505 = vmatpush1.bf16.xpose.msra.mxu0 0
        %1506 = vmatprep.subr.bf16.mxu0 0
        %1507 = vmatpush1.bf16.xpose.msra.mxu0 0
        %1508 = vmatprep.subr.bf16.mxu0 0
        %1509 = vmatpush1.bf16.xpose.msra.mxu0 0
        %1510 = vmatprep.subr.bf16.mxu0 0
        %1511 = vmatpush1.bf16.xpose.msra.mxu0 0
        %1512 = vmatprep.subr.bf16.mxu0 0
        %1513 = vmatpush1.bf16.xpose.msra.mxu0 0
        %1514 = vmatprep.subr.bf16.mxu0 0
        %1515 = vmatpush1.bf16.xpose.msra.mxu0 0
        %1516 = vmatprep.subr.bf16.mxu0 0
        %1517 = vmatpush1.bf16.xpose.msra.mxu0 0
        %1518 = vmatprep.subr.bf16.mxu0 0
        %1519 = vmatpush1.bf16.xpose.msra.mxu0 0
        %1520 = vmatprep.subr.bf16.mxu0 0
        %1521 = vmatpush1.bf16.xpose.msra.mxu0 0
        %1522 = vmatprep.subr.bf16.mxu0 0
        %1523 = vmatpush1.bf16.xpose.msra.mxu0 0
        %1524 = vmatprep.subr.bf16.mxu0 0
        %1525 = vmatpush1.bf16.xpose.msra.mxu0 0
        %1526 = vmatprep.subr.bf16.mxu0 0
        %1527 = vmatpush1.bf16.xpose.msra.mxu0 0
        %1528 = vmatprep.subr.bf16.mxu0 0
        %1529 = vmatpush1.bf16.xpose.msra.mxu0 0
        %1530 = vmatprep.subr.bf16.mxu0 0
        %1531 = vmatpush1.bf16.xpose.msra.mxu0 0
        %1532 = vmatprep.mubr.bf16.mxu0 0
        %1533 = vmatmul.mubr.bf16.gmra.mrb[0].mxu0 %v1495
        %v1534 = vpop.f32.mrb[0].mxu0
        %v1535 = vadd.f32 0.0, %v1534
        %v1536 = vpop.f32.mrb[0].mxu0
        %v1537 = vpop.f32.mrb[0].mxu0
        %v1538 = vpop.f32.mrb[0].mxu0
        %1539 = vdwg.mxu0
        %1541 = vrot.lane.b32.xlu0 %v995, 112
        %v1542 = vpop.permute.xlu0 %1541
        %v1544 = vsel %vm1003, %v995, 0
        %v1547 = vsel %vm1003, %v1542, 0
        %1549 = vmatprep.subr.bf16.mxu0 0
        %1550 = vmatpush1.bf16.xpose.msra.mxu0 %v1547
        %1551 = vmatprep.subr.bf16.mxu0 0
        %1552 = vmatpush1.bf16.xpose.msra.mxu0 0
        %1553 = vmatprep.subr.bf16.mxu0 0
        %1554 = vmatpush1.bf16.xpose.msra.mxu0 0
        %1555 = vmatprep.subr.bf16.mxu0 0
        %1556 = vmatpush1.bf16.xpose.msra.mxu0 0
        %1557 = vmatprep.subr.bf16.mxu0 0
        %1558 = vmatpush1.bf16.xpose.msra.mxu0 0
        %1559 = vmatprep.subr.bf16.mxu0 0
        %1560 = vmatpush1.bf16.xpose.msra.mxu0 0
        %1561 = vmatprep.subr.bf16.mxu0 0
        %1562 = vmatpush1.bf16.xpose.msra.mxu0 0
        %1563 = vmatprep.subr.bf16.mxu0 0
        %1564 = vmatpush1.bf16.xpose.msra.mxu0 0
        %1565 = vmatprep.subr.bf16.mxu0 0
        %1566 = vmatpush1.bf16.xpose.msra.mxu0 0
        %1567 = vmatprep.subr.bf16.mxu0 0
        %1568 = vmatpush1.bf16.xpose.msra.mxu0 0
        %1569 = vmatprep.subr.bf16.mxu0 0
        %1570 = vmatpush1.bf16.xpose.msra.mxu0 0
        %1571 = vmatprep.subr.bf16.mxu0 0
        %1572 = vmatpush1.bf16.xpose.msra.mxu0 0
        %1573 = vmatprep.subr.bf16.mxu0 0
        %1574 = vmatpush1.bf16.xpose.msra.mxu0 0
        %1575 = vmatprep.subr.bf16.mxu0 0
        %1576 = vmatpush1.bf16.xpose.msra.mxu0 0
        %1577 = vmatprep.subr.bf16.mxu0 0
        %1578 = vmatpush1.bf16.xpose.msra.mxu0 0
        %1579 = vmatprep.subr.bf16.mxu0 0
        %1580 = vmatpush1.bf16.xpose.msra.mxu0 0
        %1581 = vmatprep.mubr.bf16.mxu0 0
        %1582 = vmatmul.mubr.bf16.gmra.mrb[0].mxu0 %v1544
        %v1583 = vpop.f32.mrb[0].mxu0
        %v1584 = vadd.f32 0.0, %v1583
        %v1585 = vpop.f32.mrb[0].mxu0
        %v1586 = vpop.f32.mrb[0].mxu0
        %v1587 = vpop.f32.mrb[0].mxu0
        %1588 = vdwg.mxu0
        %1590 = vrot.lane.b32.xlu0 %v996, 112
        %v1591 = vpop.permute.xlu0 %1590
        %v1593 = vsel %vm1003, %v996, 0
        %v1596 = vsel %vm1003, %v1591, 0
        %1598 = vmatprep.subr.bf16.mxu0 0
        %1599 = vmatpush1.bf16.xpose.msra.mxu0 %v1596
        %1600 = vmatprep.subr.bf16.mxu0 0
        %1601 = vmatpush1.bf16.xpose.msra.mxu0 0
        %1602 = vmatprep.subr.bf16.mxu0 0
        %1603 = vmatpush1.bf16.xpose.msra.mxu0 0
        %1604 = vmatprep.subr.bf16.mxu0 0
        %1605 = vmatpush1.bf16.xpose.msra.mxu0 0
        %1606 = vmatprep.subr.bf16.mxu0 0
        %1607 = vmatpush1.bf16.xpose.msra.mxu0 0
        %1608 = vmatprep.subr.bf16.mxu0 0
        %1609 = vmatpush1.bf16.xpose.msra.mxu0 0
        %1610 = vmatprep.subr.bf16.mxu0 0
        %1611 = vmatpush1.bf16.xpose.msra.mxu0 0
        %1612 = vmatprep.subr.bf16.mxu0 0
        %1613 = vmatpush1.bf16.xpose.msra.mxu0 0
        %1614 = vmatprep.subr.bf16.mxu0 0
        %1615 = vmatpush1.bf16.xpose.msra.mxu0 0
        %1616 = vmatprep.subr.bf16.mxu0 0
        %1617 = vmatpush1.bf16.xpose.msra.mxu0 0
        %1618 = vmatprep.subr.bf16.mxu0 0
        %1619 = vmatpush1.bf16.xpose.msra.mxu0 0
        %1620 = vmatprep.subr.bf16.mxu0 0
        %1621 = vmatpush1.bf16.xpose.msra.mxu0 0
        %1622 = vmatprep.subr.bf16.mxu0 0
        %1623 = vmatpush1.bf16.xpose.msra.mxu0 0
        %1624 = vmatprep.subr.bf16.mxu0 0
        %1625 = vmatpush1.bf16.xpose.msra.mxu0 0
        %1626 = vmatprep.subr.bf16.mxu0 0
        %1627 = vmatpush1.bf16.xpose.msra.mxu0 0
        %1628 = vmatprep.subr.bf16.mxu0 0
        %1629 = vmatpush1.bf16.xpose.msra.mxu0 0
        %1630 = vmatprep.mubr.bf16.mxu0 0
        %1631 = vmatmul.mubr.bf16.gmra.mrb[0].mxu0 %v1593
        %v1632 = vpop.f32.mrb[0].mxu0
        %v1633 = vadd.f32 0.0, %v1632
        %v1634 = vpop.f32.mrb[0].mxu0
        %v1635 = vpop.f32.mrb[0].mxu0
        %v1636 = vpop.f32.mrb[0].mxu0
        %1637 = vdwg.mxu0
        %1639 = vrot.lane.b32.xlu0 %v997, 112
        %v1640 = vpop.permute.xlu0 %1639
        %v1642 = vsel %vm1003, %v997, 0
        %v1645 = vsel %vm1003, %v1640, 0
        %1647 = vmatprep.subr.bf16.mxu0 0
        %1648 = vmatpush1.bf16.xpose.msra.mxu0 %v1645
        %1649 = vmatprep.subr.bf16.mxu0 0
        %1650 = vmatpush1.bf16.xpose.msra.mxu0 0
        %1651 = vmatprep.subr.bf16.mxu0 0
        %1652 = vmatpush1.bf16.xpose.msra.mxu0 0
        %1653 = vmatprep.subr.bf16.mxu0 0
        %1654 = vmatpush1.bf16.xpose.msra.mxu0 0
        %1655 = vmatprep.subr.bf16.mxu0 0
        %1656 = vmatpush1.bf16.xpose.msra.mxu0 0
        %1657 = vmatprep.subr.bf16.mxu0 0
        %1658 = vmatpush1.bf16.xpose.msra.mxu0 0
        %1659 = vmatprep.subr.bf16.mxu0 0
        %1660 = vmatpush1.bf16.xpose.msra.mxu0 0
        %1661 = vmatprep.subr.bf16.mxu0 0
        %1662 = vmatpush1.bf16.xpose.msra.mxu0 0
        %1663 = vmatprep.subr.bf16.mxu0 0
        %1664 = vmatpush1.bf16.xpose.msra.mxu0 0
        %1665 = vmatprep.subr.bf16.mxu0 0
        %1666 = vmatpush1.bf16.xpose.msra.mxu0 0
        %1667 = vmatprep.subr.bf16.mxu0 0
        %1668 = vmatpush1.bf16.xpose.msra.mxu0 0
        %1669 = vmatprep.subr.bf16.mxu0 0
        %1670 = vmatpush1.bf16.xpose.msra.mxu0 0
        %1671 = vmatprep.subr.bf16.mxu0 0
        %1672 = vmatpush1.bf16.xpose.msra.mxu0 0
        %1673 = vmatprep.subr.bf16.mxu0 0
        %1674 = vmatpush1.bf16.xpose.msra.mxu0 0
        %1675 = vmatprep.subr.bf16.mxu0 0
        %1676 = vmatpush1.bf16.xpose.msra.mxu0 0
        %1677 = vmatprep.subr.bf16.mxu0 0
        %1678 = vmatpush1.bf16.xpose.msra.mxu0 0
        %1679 = vmatprep.mubr.bf16.mxu0 0
        %1680 = vmatmul.mubr.bf16.gmra.mrb[0].mxu0 %v1642
        %v1681 = vpop.f32.mrb[0].mxu0
        %v1682 = vadd.f32 0.0, %v1681
        %v1683 = vpop.f32.mrb[0].mxu0
        %v1684 = vpop.f32.mrb[0].mxu0
        %v1685 = vpop.f32.mrb[0].mxu0
        %1686 = vdwg.mxu0
        %1688 = vrot.lane.b32.xlu0 %v998, 112
        %v1689 = vpop.permute.xlu0 %1688
        %v1691 = vsel %vm1003, %v998, 0
        %v1694 = vsel %vm1003, %v1689, 0
        %1696 = vmatprep.subr.bf16.mxu0 0
        %1697 = vmatpush1.bf16.xpose.msra.mxu0 %v1694
        %1698 = vmatprep.subr.bf16.mxu0 0
        %1699 = vmatpush1.bf16.xpose.msra.mxu0 0
        %1700 = vmatprep.subr.bf16.mxu0 0
        %1701 = vmatpush1.bf16.xpose.msra.mxu0 0
        %1702 = vmatprep.subr.bf16.mxu0 0
        %1703 = vmatpush1.bf16.xpose.msra.mxu0 0
        %1704 = vmatprep.subr.bf16.mxu0 0
        %1705 = vmatpush1.bf16.xpose.msra.mxu0 0
        %1706 = vmatprep.subr.bf16.mxu0 0
        %1707 = vmatpush1.bf16.xpose.msra.mxu0 0
        %1708 = vmatprep.subr.bf16.mxu0 0
        %1709 = vmatpush1.bf16.xpose.msra.mxu0 0
        %1710 = vmatprep.subr.bf16.mxu0 0
        %1711 = vmatpush1.bf16.xpose.msra.mxu0 0
        %1712 = vmatprep.subr.bf16.mxu0 0
        %1713 = vmatpush1.bf16.xpose.msra.mxu0 0
        %1714 = vmatprep.subr.bf16.mxu0 0
        %1715 = vmatpush1.bf16.xpose.msra.mxu0 0
        %1716 = vmatprep.subr.bf16.mxu0 0
        %1717 = vmatpush1.bf16.xpose.msra.mxu0 0
        %1718 = vmatprep.subr.bf16.mxu0 0
        %1719 = vmatpush1.bf16.xpose.msra.mxu0 0
        %1720 = vmatprep.subr.bf16.mxu0 0
        %1721 = vmatpush1.bf16.xpose.msra.mxu0 0
        %1722 = vmatprep.subr.bf16.mxu0 0
        %1723 = vmatpush1.bf16.xpose.msra.mxu0 0
        %1724 = vmatprep.subr.bf16.mxu0 0
        %1725 = vmatpush1.bf16.xpose.msra.mxu0 0
        %1726 = vmatprep.subr.bf16.mxu0 0
        %1727 = vmatpush1.bf16.xpose.msra.mxu0 0
        %1728 = vmatprep.mubr.bf16.mxu0 0
        %1729 = vmatmul.mubr.bf16.gmra.mrb[0].mxu0 %v1691
        %v1730 = vpop.f32.mrb[0].mxu0
        %v1731 = vadd.f32 0.0, %v1730
        %v1732 = vpop.f32.mrb[0].mxu0
        %v1733 = vpop.f32.mrb[0].mxu0
        %v1734 = vpop.f32.mrb[0].mxu0
        %1735 = vdwg.mxu0
        %1737 = vrot.lane.b32.xlu0 %v999, 112
        %v1738 = vpop.permute.xlu0 %1737
        %v1740 = vsel %vm1003, %v999, 0
        %v1743 = vsel %vm1003, %v1738, 0
        %1745 = vmatprep.subr.bf16.mxu0 0
        %1746 = vmatpush1.bf16.xpose.msra.mxu0 %v1743
        %1747 = vmatprep.subr.bf16.mxu0 0
        %1748 = vmatpush1.bf16.xpose.msra.mxu0 0
        %1749 = vmatprep.subr.bf16.mxu0 0
        %1750 = vmatpush1.bf16.xpose.msra.mxu0 0
        %1751 = vmatprep.subr.bf16.mxu0 0
        %1752 = vmatpush1.bf16.xpose.msra.mxu0 0
        %1753 = vmatprep.subr.bf16.mxu0 0
        %1754 = vmatpush1.bf16.xpose.msra.mxu0 0
        %1755 = vmatprep.subr.bf16.mxu0 0
        %1756 = vmatpush1.bf16.xpose.msra.mxu0 0
        %1757 = vmatprep.subr.bf16.mxu0 0
        %1758 = vmatpush1.bf16.xpose.msra.mxu0 0
        %1759 = vmatprep.subr.bf16.mxu0 0
        %1760 = vmatpush1.bf16.xpose.msra.mxu0 0
        %1761 = vmatprep.subr.bf16.mxu0 0
        %1762 = vmatpush1.bf16.xpose.msra.mxu0 0
        %1763 = vmatprep.subr.bf16.mxu0 0
        %1764 = vmatpush1.bf16.xpose.msra.mxu0 0
        %1765 = vmatprep.subr.bf16.mxu0 0
        %1766 = vmatpush1.bf16.xpose.msra.mxu0 0
        %1767 = vmatprep.subr.bf16.mxu0 0
        %1768 = vmatpush1.bf16.xpose.msra.mxu0 0
        %1769 = vmatprep.subr.bf16.mxu0 0
        %1770 = vmatpush1.bf16.xpose.msra.mxu0 0
        %1771 = vmatprep.subr.bf16.mxu0 0
        %1772 = vmatpush1.bf16.xpose.msra.mxu0 0
        %1773 = vmatprep.subr.bf16.mxu0 0
        %1774 = vmatpush1.bf16.xpose.msra.mxu0 0
        %1775 = vmatprep.subr.bf16.mxu0 0
        %1776 = vmatpush1.bf16.xpose.msra.mxu0 0
        %1777 = vmatprep.mubr.bf16.mxu0 0
        %1778 = vmatmul.mubr.bf16.gmra.mrb[0].mxu0 %v1740
        %v1779 = vpop.f32.mrb[0].mxu0
        %v1780 = vadd.f32 0.0, %v1779
        %v1781 = vpop.f32.mrb[0].mxu0
        %v1782 = vpop.f32.mrb[0].mxu0
        %v1783 = vpop.f32.mrb[0].mxu0
        %1784 = vdwg.mxu0
        %v1785 = vmul.f32 %v1045, 0.35355338
        %v1786 = vmul.f32 %v1094, 0.35355338
        %v1787 = vmul.f32 %v1143, 0.35355338
        %v1788 = vmul.f32 %v1192, 0.35355338
        %v1789 = vmul.f32 %v1241, 0.35355338
        %v1790 = vmul.f32 %v1290, 0.35355338
        %v1791 = vmul.f32 %v1339, 0.35355338
        %v1792 = vmul.f32 %v1388, 0.35355338
        %v1793 = vmul.f32 %v1437, 0.35355338
        %v1794 = vmul.f32 %v1486, 0.35355338
        %v1795 = vmul.f32 %v1535, 0.35355338
        %v1796 = vmul.f32 %v1584, 0.35355338
        %v1797 = vmul.f32 %v1633, 0.35355338
        %v1798 = vmul.f32 %v1682, 0.35355338
        %v1799 = vmul.f32 %v1731, 0.35355338
        %v1800 = vmul.f32 %v1780, 0.35355338
        %v1801 = vadd.f32 %v1785, %v983
        %v1802 = vadd.f32 %v1786, %v983
        %v1803 = vadd.f32 %v1787, %v983
        %v1804 = vadd.f32 %v1788, %v983
        %v1805 = vadd.f32 %v1789, %v983
        %v1806 = vadd.f32 %v1790, %v983
        %v1807 = vadd.f32 %v1791, %v983
        %v1808 = vadd.f32 %v1792, %v983
        %v1809 = vadd.f32 %v1793, %v983
        %v1810 = vadd.f32 %v1794, %v983
        %v1811 = vadd.f32 %v1795, %v983
        %v1812 = vadd.f32 %v1796, %v983
        %v1813 = vadd.f32 %v1797, %v983
        %v1814 = vadd.f32 %v1798, %v983
        %v1815 = vadd.f32 %v1799, %v983
        %v1816 = vadd.f32 %v1800, %v983
        %v1817 = vsel %vm1003, %v1801, -inf
        %1818 = vmax.xlane.f32.xlu0 %v1817
        %v1819 = vpop.xlane.xlu0 %1818
        %v1820 = vsel %vm1003, %v1802, -inf
        %1821 = vmax.xlane.f32.xlu0 %v1820
        %v1822 = vpop.xlane.xlu0 %1821
        %v1823 = vsel %vm1003, %v1803, -inf
        %1824 = vmax.xlane.f32.xlu0 %v1823
        %v1825 = vpop.xlane.xlu0 %1824
        %v1826 = vsel %vm1003, %v1804, -inf
        %1827 = vmax.xlane.f32.xlu0 %v1826
        %v1828 = vpop.xlane.xlu0 %1827
        %v1829 = vsel %vm1003, %v1805, -inf
        %1830 = vmax.xlane.f32.xlu0 %v1829
        %v1831 = vpop.xlane.xlu0 %1830
        %v1832 = vsel %vm1003, %v1806, -inf
        %1833 = vmax.xlane.f32.xlu0 %v1832
        %v1834 = vpop.xlane.xlu0 %1833
        %v1835 = vsel %vm1003, %v1807, -inf
        %1836 = vmax.xlane.f32.xlu0 %v1835
        %v1837 = vpop.xlane.xlu0 %1836
        %v1838 = vsel %vm1003, %v1808, -inf
        %1839 = vmax.xlane.f32.xlu0 %v1838
        %v1840 = vpop.xlane.xlu0 %1839
        %v1841 = vsel %vm1003, %v1809, -inf
        %1842 = vmax.xlane.f32.xlu0 %v1841
        %v1843 = vpop.xlane.xlu0 %1842
        %v1844 = vsel %vm1003, %v1810, -inf
        %1845 = vmax.xlane.f32.xlu0 %v1844
        %v1846 = vpop.xlane.xlu0 %1845
        %v1847 = vsel %vm1003, %v1811, -inf
        %1848 = vmax.xlane.f32.xlu0 %v1847
        %v1849 = vpop.xlane.xlu0 %1848
        %v1850 = vsel %vm1003, %v1812, -inf
        %1851 = vmax.xlane.f32.xlu0 %v1850
        %v1852 = vpop.xlane.xlu0 %1851
        %v1853 = vsel %vm1003, %v1813, -inf
        %1854 = vmax.xlane.f32.xlu0 %v1853
        %v1855 = vpop.xlane.xlu0 %1854
        %v1856 = vsel %vm1003, %v1814, -inf
        %1857 = vmax.xlane.f32.xlu0 %v1856
        %v1858 = vpop.xlane.xlu0 %1857
        %v1859 = vsel %vm1003, %v1815, -inf
        %1860 = vmax.xlane.f32.xlu0 %v1859
        %v1861 = vpop.xlane.xlu0 %1860
        %v1862 = vsel %vm1003, %v1816, -inf
        %1863 = vmax.xlane.f32.xlu0 %v1862
        %v1864 = vpop.xlane.xlu0 %1863
        %v1865 = vsub.f32 %v1801, %v1819
        %v1866 = vsub.f32 %v1802, %v1822
        %v1867 = vsub.f32 %v1803, %v1825
        %v1868 = vsub.f32 %v1804, %v1828
        %v1869 = vsub.f32 %v1805, %v1831
        %v1870 = vsub.f32 %v1806, %v1834
        %v1871 = vsub.f32 %v1807, %v1837
        %v1872 = vsub.f32 %v1808, %v1840
        %v1873 = vsub.f32 %v1809, %v1843
        %v1874 = vsub.f32 %v1810, %v1846
        %v1875 = vsub.f32 %v1811, %v1849
        %v1876 = vsub.f32 %v1812, %v1852
        %v1877 = vsub.f32 %v1813, %v1855
        %v1878 = vsub.f32 %v1814, %v1858
        %v1879 = vsub.f32 %v1815, %v1861
        %v1880 = vsub.f32 %v1816, %v1864
        %v1881 = vmul.f32 %v1865, 1.442695
        %v1882 = vpow.pop %v1881
        %v1883 = vmul.f32 %v1866, 1.442695
        %v1884 = vpow.pop %v1883
        %v1885 = vmul.f32 %v1867, 1.442695
        %v1886 = vpow.pop %v1885
        %v1887 = vmul.f32 %v1868, 1.442695
        %v1888 = vpow.pop %v1887
        %v1889 = vmul.f32 %v1869, 1.442695
        %v1890 = vpow.pop %v1889
        %v1891 = vmul.f32 %v1870, 1.442695
        %v1892 = vpow.pop %v1891
        %v1893 = vmul.f32 %v1871, 1.442695
        %v1894 = vpow.pop %v1893
        %v1895 = vmul.f32 %v1872, 1.442695
        %v1896 = vpow.pop %v1895
        %v1897 = vmul.f32 %v1873, 1.442695
        %v1898 = vpow.pop %v1897
        %v1899 = vmul.f32 %v1874, 1.442695
        %v1900 = vpow.pop %v1899
        %v1901 = vmul.f32 %v1875, 1.442695
        %v1902 = vpow.pop %v1901
        %v1903 = vmul.f32 %v1876, 1.442695
        %v1904 = vpow.pop %v1903
        %v1905 = vmul.f32 %v1877, 1.442695
        %v1906 = vpow.pop %v1905
        %v1907 = vmul.f32 %v1878, 1.442695
        %v1908 = vpow.pop %v1907
        %v1909 = vmul.f32 %v1879, 1.442695
        %v1910 = vpow.pop %v1909
        %v1911 = vmul.f32 %v1880, 1.442695
        %v1912 = vpow.pop %v1911
        %v1913 = vsel %vm1003, %v1882, 0.0
        %1914 = vadd.xlane.f32.xlu0 %v1913
        %v1915 = vpop.xlane.xlu0 %1914
        %v1916 = vsel %vm1003, %v1884, 0.0
        %1917 = vadd.xlane.f32.xlu0 %v1916
        %v1918 = vpop.xlane.xlu0 %1917
        %v1919 = vsel %vm1003, %v1886, 0.0
        %1920 = vadd.xlane.f32.xlu0 %v1919
        %v1921 = vpop.xlane.xlu0 %1920
        %v1922 = vsel %vm1003, %v1888, 0.0
        %1923 = vadd.xlane.f32.xlu0 %v1922
        %v1924 = vpop.xlane.xlu0 %1923
        %v1925 = vsel %vm1003, %v1890, 0.0
        %1926 = vadd.xlane.f32.xlu0 %v1925
        %v1927 = vpop.xlane.xlu0 %1926
        %v1928 = vsel %vm1003, %v1892, 0.0
        %1929 = vadd.xlane.f32.xlu0 %v1928
        %v1930 = vpop.xlane.xlu0 %1929
        %v1931 = vsel %vm1003, %v1894, 0.0
        %1932 = vadd.xlane.f32.xlu0 %v1931
        %v1933 = vpop.xlane.xlu0 %1932
        %v1934 = vsel %vm1003, %v1896, 0.0
        %1935 = vadd.xlane.f32.xlu0 %v1934
        %v1936 = vpop.xlane.xlu0 %1935
        %v1937 = vsel %vm1003, %v1898, 0.0
        %1938 = vadd.xlane.f32.xlu0 %v1937
        %v1939 = vpop.xlane.xlu0 %1938
        %v1940 = vsel %vm1003, %v1900, 0.0
        %1941 = vadd.xlane.f32.xlu0 %v1940
        %v1942 = vpop.xlane.xlu0 %1941
        %v1943 = vsel %vm1003, %v1902, 0.0
        %1944 = vadd.xlane.f32.xlu0 %v1943
        %v1945 = vpop.xlane.xlu0 %1944
        %v1946 = vsel %vm1003, %v1904, 0.0
        %1947 = vadd.xlane.f32.xlu0 %v1946
        %v1948 = vpop.xlane.xlu0 %1947
        %v1949 = vsel %vm1003, %v1906, 0.0
        %1950 = vadd.xlane.f32.xlu0 %v1949
        %v1951 = vpop.xlane.xlu0 %1950
        %v1952 = vsel %vm1003, %v1908, 0.0
        %1953 = vadd.xlane.f32.xlu0 %v1952
        %v1954 = vpop.xlane.xlu0 %1953
        %v1955 = vsel %vm1003, %v1910, 0.0
        %1956 = vadd.xlane.f32.xlu0 %v1955
        %v1957 = vpop.xlane.xlu0 %1956
        %v1958 = vsel %vm1003, %v1912, 0.0
        %1959 = vadd.xlane.f32.xlu0 %v1958
        %v1960 = vpop.xlane.xlu0 %1959
        %v1961 = vrcp.pop %v1915
        %v1962 = vrcp.pop %v1918
        %v1963 = vrcp.pop %v1921
        %v1964 = vrcp.pop %v1924
        %v1965 = vrcp.pop %v1927
        %v1966 = vrcp.pop %v1930
        %v1967 = vrcp.pop %v1933
        %v1968 = vrcp.pop %v1936
        %v1969 = vrcp.pop %v1939
        %v1970 = vrcp.pop %v1942
        %v1971 = vrcp.pop %v1945
        %v1972 = vrcp.pop %v1948
        %v1973 = vrcp.pop %v1951
        %v1974 = vrcp.pop %v1954
        %v1975 = vrcp.pop %v1957
        %v1976 = vrcp.pop %v1960
        %v1977 = vmul.f32 %v1882, %v1961
        %v1978 = vmul.f32 %v1884, %v1962
        %v1979 = vmul.f32 %v1886, %v1963
        %v1980 = vmul.f32 %v1888, %v1964
        %v1981 = vmul.f32 %v1890, %v1965
        %v1982 = vmul.f32 %v1892, %v1966
        %v1983 = vmul.f32 %v1894, %v1967
        %v1984 = vmul.f32 %v1896, %v1968
        %v1985 = vmul.f32 %v1898, %v1969
        %v1986 = vmul.f32 %v1900, %v1970
        %v1987 = vmul.f32 %v1902, %v1971
        %v1988 = vmul.f32 %v1904, %v1972
        %v1989 = vmul.f32 %v1906, %v1973
        %v1990 = vmul.f32 %v1908, %v1974
        %v1991 = vmul.f32 %v1910, %v1975
        %v1992 = vmul.f32 %v1912, %v1976
        %v1993 = vpack.c.bf16 %v1977, %v1977
        %v1994 = vpack.c.bf16 %v1978, %v1978
        %v1995 = vpack.c.bf16 %v1979, %v1979
        %v1996 = vpack.c.bf16 %v1980, %v1980
        %v1997 = vpack.c.bf16 %v1981, %v1981
        %v1998 = vpack.c.bf16 %v1982, %v1982
        %v1999 = vpack.c.bf16 %v1983, %v1983
        %v2000 = vpack.c.bf16 %v1984, %v1984
        %v2001 = vpack.c.bf16 %v1985, %v1985
        %v2002 = vpack.c.bf16 %v1986, %v1986
        %v2003 = vpack.c.bf16 %v1987, %v1987
        %v2004 = vpack.c.bf16 %v1988, %v1988
        %v2005 = vpack.c.bf16 %v1989, %v1989
        %v2006 = vpack.c.bf16 %v1990, %v1990
        %v2007 = vpack.c.bf16 %v1991, %v1991
        %v2008 = vpack.c.bf16 %v1992, %v1992
        %2009 = vrot.lane.b32.xlu0 %v984, 96
        %v2010 = vpop.permute.xlu0 %2009
        %v2012 = vsel %vm1003, %v1993, 0
        %vm2014 = vcmask 1043456
        %v2016 = vsel %vm2014, %v2010, 0
        %2018 = vmatprep.subr.bf16.mxu0 0
        %2019 = vmatpush1.bf16.msra.mxu0 %v2016
        %2020 = vmatprep.subr.bf16.mxu0 0
        %2021 = vmatpush1.bf16.msra.mxu0 0
        %2022 = vmatprep.subr.bf16.mxu0 0
        %2023 = vmatpush1.bf16.msra.mxu0 0
        %2024 = vmatprep.subr.bf16.mxu0 0
        %2025 = vmatpush1.bf16.msra.mxu0 0
        %2026 = vmatprep.subr.bf16.mxu0 0
        %2027 = vmatpush1.bf16.msra.mxu0 0
        %2028 = vmatprep.subr.bf16.mxu0 0
        %2029 = vmatpush1.bf16.msra.mxu0 0
        %2030 = vmatprep.subr.bf16.mxu0 0
        %2031 = vmatpush1.bf16.msra.mxu0 0
        %2032 = vmatprep.subr.bf16.mxu0 0
        %2033 = vmatpush1.bf16.msra.mxu0 0
        %2034 = vmatprep.subr.bf16.mxu0 0
        %2035 = vmatpush1.bf16.msra.mxu0 0
        %2036 = vmatprep.subr.bf16.mxu0 0
        %2037 = vmatpush1.bf16.msra.mxu0 0
        %2038 = vmatprep.subr.bf16.mxu0 0
        %2039 = vmatpush1.bf16.msra.mxu0 0
        %2040 = vmatprep.subr.bf16.mxu0 0
        %2041 = vmatpush1.bf16.msra.mxu0 0
        %2042 = vmatprep.subr.bf16.mxu0 0
        %2043 = vmatpush1.bf16.msra.mxu0 0
        %2044 = vmatprep.subr.bf16.mxu0 0
        %2045 = vmatpush1.bf16.msra.mxu0 0
        %2046 = vmatprep.subr.bf16.mxu0 0
        %2047 = vmatpush1.bf16.msra.mxu0 0
        %2048 = vmatprep.subr.bf16.mxu0 0
        %2049 = vmatpush1.bf16.msra.mxu0 0
        %2050 = vmatprep.mubr.bf16.mxu0 0
        %2051 = vmatmul.mubr.bf16.gmra.mrb[0].mxu0 %v2012
        %v2052 = vpop.f32.mrb[0].mxu0
        %v2053 = vadd.f32 0.0, %v2052
        %v2054 = vpop.f32.mrb[0].mxu0
        %v2055 = vpop.f32.mrb[0].mxu0
        %v2056 = vpop.f32.mrb[0].mxu0
        %2057 = vdwg.mxu0
        %2058 = vrot.lane.b32.xlu0 %v985, 96
        %v2059 = vpop.permute.xlu0 %2058
        %v2061 = vsel %vm1003, %v1994, 0
        %v2064 = vsel %vm2014, %v2059, 0
        %2066 = vmatprep.subr.bf16.mxu0 0
        %2067 = vmatpush1.bf16.msra.mxu0 %v2064
        %2068 = vmatprep.subr.bf16.mxu0 0
        %2069 = vmatpush1.bf16.msra.mxu0 0
        %2070 = vmatprep.subr.bf16.mxu0 0
        %2071 = vmatpush1.bf16.msra.mxu0 0
        %2072 = vmatprep.subr.bf16.mxu0 0
        %2073 = vmatpush1.bf16.msra.mxu0 0
        %2074 = vmatprep.subr.bf16.mxu0 0
        %2075 = vmatpush1.bf16.msra.mxu0 0
        %2076 = vmatprep.subr.bf16.mxu0 0
        %2077 = vmatpush1.bf16.msra.mxu0 0
        %2078 = vmatprep.subr.bf16.mxu0 0
        %2079 = vmatpush1.bf16.msra.mxu0 0
        %2080 = vmatprep.subr.bf16.mxu0 0
        %2081 = vmatpush1.bf16.msra.mxu0 0
        %2082 = vmatprep.subr.bf16.mxu0 0
        %2083 = vmatpush1.bf16.msra.mxu0 0
        %2084 = vmatprep.subr.bf16.mxu0 0
        %2085 = vmatpush1.bf16.msra.mxu0 0
        %2086 = vmatprep.subr.bf16.mxu0 0
        %2087 = vmatpush1.bf16.msra.mxu0 0
        %2088 = vmatprep.subr.bf16.mxu0 0
        %2089 = vmatpush1.bf16.msra.mxu0 0
        %2090 = vmatprep.subr.bf16.mxu0 0
        %2091 = vmatpush1.bf16.msra.mxu0 0
        %2092 = vmatprep.subr.bf16.mxu0 0
        %2093 = vmatpush1.bf16.msra.mxu0 0
        %2094 = vmatprep.subr.bf16.mxu0 0
        %2095 = vmatpush1.bf16.msra.mxu0 0
        %2096 = vmatprep.subr.bf16.mxu0 0
        %2097 = vmatpush1.bf16.msra.mxu0 0
        %2098 = vmatprep.mubr.bf16.mxu0 0
        %2099 = vmatmul.mubr.bf16.gmra.mrb[0].mxu0 %v2061
        %v2100 = vpop.f32.mrb[0].mxu0
        %v2101 = vadd.f32 0.0, %v2100
        %v2102 = vpop.f32.mrb[0].mxu0
        %v2103 = vpop.f32.mrb[0].mxu0
        %v2104 = vpop.f32.mrb[0].mxu0
        %2105 = vdwg.mxu0
        %2106 = vrot.lane.b32.xlu0 %v986, 96
        %v2107 = vpop.permute.xlu0 %2106
        %v2109 = vsel %vm1003, %v1995, 0
        %v2112 = vsel %vm2014, %v2107, 0
        %2114 = vmatprep.subr.bf16.mxu0 0
        %2115 = vmatpush1.bf16.msra.mxu0 %v2112
        %2116 = vmatprep.subr.bf16.mxu0 0
        %2117 = vmatpush1.bf16.msra.mxu0 0
        %2118 = vmatprep.subr.bf16.mxu0 0
        %2119 = vmatpush1.bf16.msra.mxu0 0
        %2120 = vmatprep.subr.bf16.mxu0 0
        %2121 = vmatpush1.bf16.msra.mxu0 0
        %2122 = vmatprep.subr.bf16.mxu0 0
        %2123 = vmatpush1.bf16.msra.mxu0 0
        %2124 = vmatprep.subr.bf16.mxu0 0
        %2125 = vmatpush1.bf16.msra.mxu0 0
        %2126 = vmatprep.subr.bf16.mxu0 0
        %2127 = vmatpush1.bf16.msra.mxu0 0
        %2128 = vmatprep.subr.bf16.mxu0 0
        %2129 = vmatpush1.bf16.msra.mxu0 0
        %2130 = vmatprep.subr.bf16.mxu0 0
        %2131 = vmatpush1.bf16.msra.mxu0 0
        %2132 = vmatprep.subr.bf16.mxu0 0
        %2133 = vmatpush1.bf16.msra.mxu0 0
        %2134 = vmatprep.subr.bf16.mxu0 0
        %2135 = vmatpush1.bf16.msra.mxu0 0
        %2136 = vmatprep.subr.bf16.mxu0 0
        %2137 = vmatpush1.bf16.msra.mxu0 0
        %2138 = vmatprep.subr.bf16.mxu0 0
        %2139 = vmatpush1.bf16.msra.mxu0 0
        %2140 = vmatprep.subr.bf16.mxu0 0
        %2141 = vmatpush1.bf16.msra.mxu0 0
        %2142 = vmatprep.subr.bf16.mxu0 0
        %2143 = vmatpush1.bf16.msra.mxu0 0
        %2144 = vmatprep.subr.bf16.mxu0 0
        %2145 = vmatpush1.bf16.msra.mxu0 0
        %2146 = vmatprep.mubr.bf16.mxu0 0
        %2147 = vmatmul.mubr.bf16.gmra.mrb[0].mxu0 %v2109
        %v2148 = vpop.f32.mrb[0].mxu0
        %v2149 = vadd.f32 0.0, %v2148
        %v2150 = vpop.f32.mrb[0].mxu0
        %v2151 = vpop.f32.mrb[0].mxu0
        %v2152 = vpop.f32.mrb[0].mxu0
        %2153 = vdwg.mxu0
        %2154 = vrot.lane.b32.xlu0 %v987, 96
        %v2155 = vpop.permute.xlu0 %2154
        %v2157 = vsel %vm1003, %v1996, 0
        %v2160 = vsel %vm2014, %v2155, 0
        %2162 = vmatprep.subr.bf16.mxu0 0
        %2163 = vmatpush1.bf16.msra.mxu0 %v2160
        %2164 = vmatprep.subr.bf16.mxu0 0
        %2165 = vmatpush1.bf16.msra.mxu0 0
        %2166 = vmatprep.subr.bf16.mxu0 0
        %2167 = vmatpush1.bf16.msra.mxu0 0
        %2168 = vmatprep.subr.bf16.mxu0 0
        %2169 = vmatpush1.bf16.msra.mxu0 0
        %2170 = vmatprep.subr.bf16.mxu0 0
        %2171 = vmatpush1.bf16.msra.mxu0 0
        %2172 = vmatprep.subr.bf16.mxu0 0
        %2173 = vmatpush1.bf16.msra.mxu0 0
        %2174 = vmatprep.subr.bf16.mxu0 0
        %2175 = vmatpush1.bf16.msra.mxu0 0
        %2176 = vmatprep.subr.bf16.mxu0 0
        %2177 = vmatpush1.bf16.msra.mxu0 0
        %2178 = vmatprep.subr.bf16.mxu0 0
        %2179 = vmatpush1.bf16.msra.mxu0 0
        %2180 = vmatprep.subr.bf16.mxu0 0
        %2181 = vmatpush1.bf16.msra.mxu0 0
        %2182 = vmatprep.subr.bf16.mxu0 0
        %2183 = vmatpush1.bf16.msra.mxu0 0
        %2184 = vmatprep.subr.bf16.mxu0 0
        %2185 = vmatpush1.bf16.msra.mxu0 0
        %2186 = vmatprep.subr.bf16.mxu0 0
        %2187 = vmatpush1.bf16.msra.mxu0 0
        %2188 = vmatprep.subr.bf16.mxu0 0
        %2189 = vmatpush1.bf16.msra.mxu0 0
        %2190 = vmatprep.subr.bf16.mxu0 0
        %2191 = vmatpush1.bf16.msra.mxu0 0
        %2192 = vmatprep.subr.bf16.mxu0 0
        %2193 = vmatpush1.bf16.msra.mxu0 0
        %2194 = vmatprep.mubr.bf16.mxu0 0
        %2195 = vmatmul.mubr.bf16.gmra.mrb[0].mxu0 %v2157
        %v2196 = vpop.f32.mrb[0].mxu0
        %v2197 = vadd.f32 0.0, %v2196
        %v2198 = vpop.f32.mrb[0].mxu0
        %v2199 = vpop.f32.mrb[0].mxu0
        %v2200 = vpop.f32.mrb[0].mxu0
        %2201 = vdwg.mxu0
        %2202 = vrot.lane.b32.xlu0 %v988, 96
        %v2203 = vpop.permute.xlu0 %2202
        %v2205 = vsel %vm1003, %v1997, 0
        %v2208 = vsel %vm2014, %v2203, 0
        %2210 = vmatprep.subr.bf16.mxu0 0
        %2211 = vmatpush1.bf16.msra.mxu0 %v2208
        %2212 = vmatprep.subr.bf16.mxu0 0
        %2213 = vmatpush1.bf16.msra.mxu0 0
        %2214 = vmatprep.subr.bf16.mxu0 0
        %2215 = vmatpush1.bf16.msra.mxu0 0
        %2216 = vmatprep.subr.bf16.mxu0 0
        %2217 = vmatpush1.bf16.msra.mxu0 0
        %2218 = vmatprep.subr.bf16.mxu0 0
        %2219 = vmatpush1.bf16.msra.mxu0 0
        %2220 = vmatprep.subr.bf16.mxu0 0
        %2221 = vmatpush1.bf16.msra.mxu0 0
        %2222 = vmatprep.subr.bf16.mxu0 0
        %2223 = vmatpush1.bf16.msra.mxu0 0
        %2224 = vmatprep.subr.bf16.mxu0 0
        %2225 = vmatpush1.bf16.msra.mxu0 0
        %2226 = vmatprep.subr.bf16.mxu0 0
        %2227 = vmatpush1.bf16.msra.mxu0 0
        %2228 = vmatprep.subr.bf16.mxu0 0
        %2229 = vmatpush1.bf16.msra.mxu0 0
        %2230 = vmatprep.subr.bf16.mxu0 0
        %2231 = vmatpush1.bf16.msra.mxu0 0
        %2232 = vmatprep.subr.bf16.mxu0 0
        %2233 = vmatpush1.bf16.msra.mxu0 0
        %2234 = vmatprep.subr.bf16.mxu0 0
        %2235 = vmatpush1.bf16.msra.mxu0 0
        %2236 = vmatprep.subr.bf16.mxu0 0
        %2237 = vmatpush1.bf16.msra.mxu0 0
        %2238 = vmatprep.subr.bf16.mxu0 0
        %2239 = vmatpush1.bf16.msra.mxu0 0
        %2240 = vmatprep.subr.bf16.mxu0 0
        %2241 = vmatpush1.bf16.msra.mxu0 0
        %2242 = vmatprep.mubr.bf16.mxu0 0
        %2243 = vmatmul.mubr.bf16.gmra.mrb[0].mxu0 %v2205
        %v2244 = vpop.f32.mrb[0].mxu0
        %v2245 = vadd.f32 0.0, %v2244
        %v2246 = vpop.f32.mrb[0].mxu0
        %v2247 = vpop.f32.mrb[0].mxu0
        %v2248 = vpop.f32.mrb[0].mxu0
        %2249 = vdwg.mxu0
        %2250 = vrot.lane.b32.xlu0 %v989, 96
        %v2251 = vpop.permute.xlu0 %2250
        %v2253 = vsel %vm1003, %v1998, 0
        %v2256 = vsel %vm2014, %v2251, 0
        %2258 = vmatprep.subr.bf16.mxu0 0
        %2259 = vmatpush1.bf16.msra.mxu0 %v2256
        %2260 = vmatprep.subr.bf16.mxu0 0
        %2261 = vmatpush1.bf16.msra.mxu0 0
        %2262 = vmatprep.subr.bf16.mxu0 0
        %2263 = vmatpush1.bf16.msra.mxu0 0
        %2264 = vmatprep.subr.bf16.mxu0 0
        %2265 = vmatpush1.bf16.msra.mxu0 0
        %2266 = vmatprep.subr.bf16.mxu0 0
        %2267 = vmatpush1.bf16.msra.mxu0 0
        %2268 = vmatprep.subr.bf16.mxu0 0
        %2269 = vmatpush1.bf16.msra.mxu0 0
        %2270 = vmatprep.subr.bf16.mxu0 0
        %2271 = vmatpush1.bf16.msra.mxu0 0
        %2272 = vmatprep.subr.bf16.mxu0 0
        %2273 = vmatpush1.bf16.msra.mxu0 0
        %2274 = vmatprep.subr.bf16.mxu0 0
        %2275 = vmatpush1.bf16.msra.mxu0 0
        %2276 = vmatprep.subr.bf16.mxu0 0
        %2277 = vmatpush1.bf16.msra.mxu0 0
        %2278 = vmatprep.subr.bf16.mxu0 0
        %2279 = vmatpush1.bf16.msra.mxu0 0
        %2280 = vmatprep.subr.bf16.mxu0 0
        %2281 = vmatpush1.bf16.msra.mxu0 0
        %2282 = vmatprep.subr.bf16.mxu0 0
        %2283 = vmatpush1.bf16.msra.mxu0 0
        %2284 = vmatprep.subr.bf16.mxu0 0
        %2285 = vmatpush1.bf16.msra.mxu0 0
        %2286 = vmatprep.subr.bf16.mxu0 0
        %2287 = vmatpush1.bf16.msra.mxu0 0
        %2288 = vmatprep.subr.bf16.mxu0 0
        %2289 = vmatpush1.bf16.msra.mxu0 0
        %2290 = vmatprep.mubr.bf16.mxu0 0
        %2291 = vmatmul.mubr.bf16.gmra.mrb[0].mxu0 %v2253
        %v2292 = vpop.f32.mrb[0].mxu0
        %v2293 = vadd.f32 0.0, %v2292
        %v2294 = vpop.f32.mrb[0].mxu0
        %v2295 = vpop.f32.mrb[0].mxu0
        %v2296 = vpop.f32.mrb[0].mxu0
        %2297 = vdwg.mxu0
        %2298 = vrot.lane.b32.xlu0 %v990, 96
        %v2299 = vpop.permute.xlu0 %2298
        %v2301 = vsel %vm1003, %v1999, 0
        %v2304 = vsel %vm2014, %v2299, 0
        %2306 = vmatprep.subr.bf16.mxu0 0
        %2307 = vmatpush1.bf16.msra.mxu0 %v2304
        %2308 = vmatprep.subr.bf16.mxu0 0
        %2309 = vmatpush1.bf16.msra.mxu0 0
        %2310 = vmatprep.subr.bf16.mxu0 0
        %2311 = vmatpush1.bf16.msra.mxu0 0
        %2312 = vmatprep.subr.bf16.mxu0 0
        %2313 = vmatpush1.bf16.msra.mxu0 0
        %2314 = vmatprep.subr.bf16.mxu0 0
        %2315 = vmatpush1.bf16.msra.mxu0 0
        %2316 = vmatprep.subr.bf16.mxu0 0
        %2317 = vmatpush1.bf16.msra.mxu0 0
        %2318 = vmatprep.subr.bf16.mxu0 0
        %2319 = vmatpush1.bf16.msra.mxu0 0
        %2320 = vmatprep.subr.bf16.mxu0 0
        %2321 = vmatpush1.bf16.msra.mxu0 0
        %2322 = vmatprep.subr.bf16.mxu0 0
        %2323 = vmatpush1.bf16.msra.mxu0 0
        %2324 = vmatprep.subr.bf16.mxu0 0
        %2325 = vmatpush1.bf16.msra.mxu0 0
        %2326 = vmatprep.subr.bf16.mxu0 0
        %2327 = vmatpush1.bf16.msra.mxu0 0
        %2328 = vmatprep.subr.bf16.mxu0 0
        %2329 = vmatpush1.bf16.msra.mxu0 0
        %2330 = vmatprep.subr.bf16.mxu0 0
        %2331 = vmatpush1.bf16.msra.mxu0 0
        %2332 = vmatprep.subr.bf16.mxu0 0
        %2333 = vmatpush1.bf16.msra.mxu0 0
        %2334 = vmatprep.subr.bf16.mxu0 0
        %2335 = vmatpush1.bf16.msra.mxu0 0
        %2336 = vmatprep.subr.bf16.mxu0 0
        %2337 = vmatpush1.bf16.msra.mxu0 0
        %2338 = vmatprep.mubr.bf16.mxu0 0
        %2339 = vmatmul.mubr.bf16.gmra.mrb[0].mxu0 %v2301
        %v2340 = vpop.f32.mrb[0].mxu0
        %v2341 = vadd.f32 0.0, %v2340
        %v2342 = vpop.f32.mrb[0].mxu0
        %v2343 = vpop.f32.mrb[0].mxu0
        %v2344 = vpop.f32.mrb[0].mxu0
        %2345 = vdwg.mxu0
        %2346 = vrot.lane.b32.xlu0 %v991, 96
        %v2347 = vpop.permute.xlu0 %2346
        %v2349 = vsel %vm1003, %v2000, 0
        %v2352 = vsel %vm2014, %v2347, 0
        %2354 = vmatprep.subr.bf16.mxu0 0
        %2355 = vmatpush1.bf16.msra.mxu0 %v2352
        %2356 = vmatprep.subr.bf16.mxu0 0
        %2357 = vmatpush1.bf16.msra.mxu0 0
        %2358 = vmatprep.subr.bf16.mxu0 0
        %2359 = vmatpush1.bf16.msra.mxu0 0
        %2360 = vmatprep.subr.bf16.mxu0 0
        %2361 = vmatpush1.bf16.msra.mxu0 0
        %2362 = vmatprep.subr.bf16.mxu0 0
        %2363 = vmatpush1.bf16.msra.mxu0 0
        %2364 = vmatprep.subr.bf16.mxu0 0
        %2365 = vmatpush1.bf16.msra.mxu0 0
        %2366 = vmatprep.subr.bf16.mxu0 0
        %2367 = vmatpush1.bf16.msra.mxu0 0
        %2368 = vmatprep.subr.bf16.mxu0 0
        %2369 = vmatpush1.bf16.msra.mxu0 0
        %2370 = vmatprep.subr.bf16.mxu0 0
        %2371 = vmatpush1.bf16.msra.mxu0 0
        %2372 = vmatprep.subr.bf16.mxu0 0
        %2373 = vmatpush1.bf16.msra.mxu0 0
        %2374 = vmatprep.subr.bf16.mxu0 0
        %2375 = vmatpush1.bf16.msra.mxu0 0
        %2376 = vmatprep.subr.bf16.mxu0 0
        %2377 = vmatpush1.bf16.msra.mxu0 0
        %2378 = vmatprep.subr.bf16.mxu0 0
        %2379 = vmatpush1.bf16.msra.mxu0 0
        %2380 = vmatprep.subr.bf16.mxu0 0
        %2381 = vmatpush1.bf16.msra.mxu0 0
        %2382 = vmatprep.subr.bf16.mxu0 0
        %2383 = vmatpush1.bf16.msra.mxu0 0
        %2384 = vmatprep.subr.bf16.mxu0 0
        %2385 = vmatpush1.bf16.msra.mxu0 0
        %2386 = vmatprep.mubr.bf16.mxu0 0
        %2387 = vmatmul.mubr.bf16.gmra.mrb[0].mxu0 %v2349
        %v2388 = vpop.f32.mrb[0].mxu0
        %v2389 = vadd.f32 0.0, %v2388
        %v2390 = vpop.f32.mrb[0].mxu0
        %v2391 = vpop.f32.mrb[0].mxu0
        %v2392 = vpop.f32.mrb[0].mxu0
        %2393 = vdwg.mxu0
        %2394 = vrot.lane.b32.xlu0 %v992, 96
        %v2395 = vpop.permute.xlu0 %2394
        %v2397 = vsel %vm1003, %v2001, 0
        %v2400 = vsel %vm2014, %v2395, 0
        %2402 = vmatprep.subr.bf16.mxu0 0
        %2403 = vmatpush1.bf16.msra.mxu0 %v2400
        %2404 = vmatprep.subr.bf16.mxu0 0
        %2405 = vmatpush1.bf16.msra.mxu0 0
        %2406 = vmatprep.subr.bf16.mxu0 0
        %2407 = vmatpush1.bf16.msra.mxu0 0
        %2408 = vmatprep.subr.bf16.mxu0 0
        %2409 = vmatpush1.bf16.msra.mxu0 0
        %2410 = vmatprep.subr.bf16.mxu0 0
        %2411 = vmatpush1.bf16.msra.mxu0 0
        %2412 = vmatprep.subr.bf16.mxu0 0
        %2413 = vmatpush1.bf16.msra.mxu0 0
        %2414 = vmatprep.subr.bf16.mxu0 0
        %2415 = vmatpush1.bf16.msra.mxu0 0
        %2416 = vmatprep.subr.bf16.mxu0 0
        %2417 = vmatpush1.bf16.msra.mxu0 0
        %2418 = vmatprep.subr.bf16.mxu0 0
        %2419 = vmatpush1.bf16.msra.mxu0 0
        %2420 = vmatprep.subr.bf16.mxu0 0
        %2421 = vmatpush1.bf16.msra.mxu0 0
        %2422 = vmatprep.subr.bf16.mxu0 0
        %2423 = vmatpush1.bf16.msra.mxu0 0
        %2424 = vmatprep.subr.bf16.mxu0 0
        %2425 = vmatpush1.bf16.msra.mxu0 0
        %2426 = vmatprep.subr.bf16.mxu0 0
        %2427 = vmatpush1.bf16.msra.mxu0 0
        %2428 = vmatprep.subr.bf16.mxu0 0
        %2429 = vmatpush1.bf16.msra.mxu0 0
        %2430 = vmatprep.subr.bf16.mxu0 0
        %2431 = vmatpush1.bf16.msra.mxu0 0
        %2432 = vmatprep.subr.bf16.mxu0 0
        %2433 = vmatpush1.bf16.msra.mxu0 0
        %2434 = vmatprep.mubr.bf16.mxu0 0
        %2435 = vmatmul.mubr.bf16.gmra.mrb[0].mxu0 %v2397
        %v2436 = vpop.f32.mrb[0].mxu0
        %v2437 = vadd.f32 0.0, %v2436
        %v2438 = vpop.f32.mrb[0].mxu0
        %v2439 = vpop.f32.mrb[0].mxu0
        %v2440 = vpop.f32.mrb[0].mxu0
        %2441 = vdwg.mxu0
        %2442 = vrot.lane.b32.xlu0 %v993, 96
        %v2443 = vpop.permute.xlu0 %2442
        %v2445 = vsel %vm1003, %v2002, 0
        %v2448 = vsel %vm2014, %v2443, 0
        %2450 = vmatprep.subr.bf16.mxu0 0
        %2451 = vmatpush1.bf16.msra.mxu0 %v2448
        %2452 = vmatprep.subr.bf16.mxu0 0
        %2453 = vmatpush1.bf16.msra.mxu0 0
        %2454 = vmatprep.subr.bf16.mxu0 0
        %2455 = vmatpush1.bf16.msra.mxu0 0
        %2456 = vmatprep.subr.bf16.mxu0 0
        %2457 = vmatpush1.bf16.msra.mxu0 0
        %2458 = vmatprep.subr.bf16.mxu0 0
        %2459 = vmatpush1.bf16.msra.mxu0 0
        %2460 = vmatprep.subr.bf16.mxu0 0
        %2461 = vmatpush1.bf16.msra.mxu0 0
        %2462 = vmatprep.subr.bf16.mxu0 0
        %2463 = vmatpush1.bf16.msra.mxu0 0
        %2464 = vmatprep.subr.bf16.mxu0 0
        %2465 = vmatpush1.bf16.msra.mxu0 0
        %2466 = vmatprep.subr.bf16.mxu0 0
        %2467 = vmatpush1.bf16.msra.mxu0 0
        %2468 = vmatprep.subr.bf16.mxu0 0
        %2469 = vmatpush1.bf16.msra.mxu0 0
        %2470 = vmatprep.subr.bf16.mxu0 0
        %2471 = vmatpush1.bf16.msra.mxu0 0
        %2472 = vmatprep.subr.bf16.mxu0 0
        %2473 = vmatpush1.bf16.msra.mxu0 0
        %2474 = vmatprep.subr.bf16.mxu0 0
        %2475 = vmatpush1.bf16.msra.mxu0 0
        %2476 = vmatprep.subr.bf16.mxu0 0
        %2477 = vmatpush1.bf16.msra.mxu0 0
        %2478 = vmatprep.subr.bf16.mxu0 0
        %2479 = vmatpush1.bf16.msra.mxu0 0
        %2480 = vmatprep.subr.bf16.mxu0 0
        %2481 = vmatpush1.bf16.msra.mxu0 0
        %2482 = vmatprep.mubr.bf16.mxu0 0
        %2483 = vmatmul.mubr.bf16.gmra.mrb[0].mxu0 %v2445
        %v2484 = vpop.f32.mrb[0].mxu0
        %v2485 = vadd.f32 0.0, %v2484
        %v2486 = vpop.f32.mrb[0].mxu0
        %v2487 = vpop.f32.mrb[0].mxu0
        %v2488 = vpop.f32.mrb[0].mxu0
        %2489 = vdwg.mxu0
        %2490 = vrot.lane.b32.xlu0 %v994, 96
        %v2491 = vpop.permute.xlu0 %2490
        %v2493 = vsel %vm1003, %v2003, 0
        %v2496 = vsel %vm2014, %v2491, 0
        %2498 = vmatprep.subr.bf16.mxu0 0
        %2499 = vmatpush1.bf16.msra.mxu0 %v2496
        %2500 = vmatprep.subr.bf16.mxu0 0
        %2501 = vmatpush1.bf16.msra.mxu0 0
        %2502 = vmatprep.subr.bf16.mxu0 0
        %2503 = vmatpush1.bf16.msra.mxu0 0
        %2504 = vmatprep.subr.bf16.mxu0 0
        %2505 = vmatpush1.bf16.msra.mxu0 0
        %2506 = vmatprep.subr.bf16.mxu0 0
        %2507 = vmatpush1.bf16.msra.mxu0 0
        %2508 = vmatprep.subr.bf16.mxu0 0
        %2509 = vmatpush1.bf16.msra.mxu0 0
        %2510 = vmatprep.subr.bf16.mxu0 0
        %2511 = vmatpush1.bf16.msra.mxu0 0
        %2512 = vmatprep.subr.bf16.mxu0 0
        %2513 = vmatpush1.bf16.msra.mxu0 0
        %2514 = vmatprep.subr.bf16.mxu0 0
        %2515 = vmatpush1.bf16.msra.mxu0 0
        %2516 = vmatprep.subr.bf16.mxu0 0
        %2517 = vmatpush1.bf16.msra.mxu0 0
        %2518 = vmatprep.subr.bf16.mxu0 0
        %2519 = vmatpush1.bf16.msra.mxu0 0
        %2520 = vmatprep.subr.bf16.mxu0 0
        %2521 = vmatpush1.bf16.msra.mxu0 0
        %2522 = vmatprep.subr.bf16.mxu0 0
        %2523 = vmatpush1.bf16.msra.mxu0 0
        %2524 = vmatprep.subr.bf16.mxu0 0
        %2525 = vmatpush1.bf16.msra.mxu0 0
        %2526 = vmatprep.subr.bf16.mxu0 0
        %2527 = vmatpush1.bf16.msra.mxu0 0
        %2528 = vmatprep.subr.bf16.mxu0 0
        %2529 = vmatpush1.bf16.msra.mxu0 0
        %2530 = vmatprep.mubr.bf16.mxu0 0
        %2531 = vmatmul.mubr.bf16.gmra.mrb[0].mxu0 %v2493
        %v2532 = vpop.f32.mrb[0].mxu0
        %v2533 = vadd.f32 0.0, %v2532
        %v2534 = vpop.f32.mrb[0].mxu0
        %v2535 = vpop.f32.mrb[0].mxu0
        %v2536 = vpop.f32.mrb[0].mxu0
        %2537 = vdwg.mxu0
        %2538 = vrot.lane.b32.xlu0 %v995, 96
        %v2539 = vpop.permute.xlu0 %2538
        %v2541 = vsel %vm1003, %v2004, 0
        %v2544 = vsel %vm2014, %v2539, 0
        %2546 = vmatprep.subr.bf16.mxu0 0
        %2547 = vmatpush1.bf16.msra.mxu0 %v2544
        %2548 = vmatprep.subr.bf16.mxu0 0
        %2549 = vmatpush1.bf16.msra.mxu0 0
        %2550 = vmatprep.subr.bf16.mxu0 0
        %2551 = vmatpush1.bf16.msra.mxu0 0
        %2552 = vmatprep.subr.bf16.mxu0 0
        %2553 = vmatpush1.bf16.msra.mxu0 0
        %2554 = vmatprep.subr.bf16.mxu0 0
        %2555 = vmatpush1.bf16.msra.mxu0 0
        %2556 = vmatprep.subr.bf16.mxu0 0
        %2557 = vmatpush1.bf16.msra.mxu0 0
        %2558 = vmatprep.subr.bf16.mxu0 0
        %2559 = vmatpush1.bf16.msra.mxu0 0
        %2560 = vmatprep.subr.bf16.mxu0 0
        %2561 = vmatpush1.bf16.msra.mxu0 0
        %2562 = vmatprep.subr.bf16.mxu0 0
        %2563 = vmatpush1.bf16.msra.mxu0 0
        %2564 = vmatprep.subr.bf16.mxu0 0
        %2565 = vmatpush1.bf16.msra.mxu0 0
        %2566 = vmatprep.subr.bf16.mxu0 0
        %2567 = vmatpush1.bf16.msra.mxu0 0
        %2568 = vmatprep.subr.bf16.mxu0 0
        %2569 = vmatpush1.bf16.msra.mxu0 0
        %2570 = vmatprep.subr.bf16.mxu0 0
        %2571 = vmatpush1.bf16.msra.mxu0 0
        %2572 = vmatprep.subr.bf16.mxu0 0
        %2573 = vmatpush1.bf16.msra.mxu0 0
        %2574 = vmatprep.subr.bf16.mxu0 0
        %2575 = vmatpush1.bf16.msra.mxu0 0
        %2576 = vmatprep.subr.bf16.mxu0 0
        %2577 = vmatpush1.bf16.msra.mxu0 0
        %2578 = vmatprep.mubr.bf16.mxu0 0
        %2579 = vmatmul.mubr.bf16.gmra.mrb[0].mxu0 %v2541
        %v2580 = vpop.f32.mrb[0].mxu0
        %v2581 = vadd.f32 0.0, %v2580
        %v2582 = vpop.f32.mrb[0].mxu0
        %v2583 = vpop.f32.mrb[0].mxu0
        %v2584 = vpop.f32.mrb[0].mxu0
        %2585 = vdwg.mxu0
        %2586 = vrot.lane.b32.xlu0 %v996, 96
        %v2587 = vpop.permute.xlu0 %2586
        %v2589 = vsel %vm1003, %v2005, 0
        %v2592 = vsel %vm2014, %v2587, 0
        %2594 = vmatprep.subr.bf16.mxu0 0
        %2595 = vmatpush1.bf16.msra.mxu0 %v2592
        %2596 = vmatprep.subr.bf16.mxu0 0
        %2597 = vmatpush1.bf16.msra.mxu0 0
        %2598 = vmatprep.subr.bf16.mxu0 0
        %2599 = vmatpush1.bf16.msra.mxu0 0
        %2600 = vmatprep.subr.bf16.mxu0 0
        %2601 = vmatpush1.bf16.msra.mxu0 0
        %2602 = vmatprep.subr.bf16.mxu0 0
        %2603 = vmatpush1.bf16.msra.mxu0 0
        %2604 = vmatprep.subr.bf16.mxu0 0
        %2605 = vmatpush1.bf16.msra.mxu0 0
        %2606 = vmatprep.subr.bf16.mxu0 0
        %2607 = vmatpush1.bf16.msra.mxu0 0
        %2608 = vmatprep.subr.bf16.mxu0 0
        %2609 = vmatpush1.bf16.msra.mxu0 0
        %2610 = vmatprep.subr.bf16.mxu0 0
        %2611 = vmatpush1.bf16.msra.mxu0 0
        %2612 = vmatprep.subr.bf16.mxu0 0
        %2613 = vmatpush1.bf16.msra.mxu0 0
        %2614 = vmatprep.subr.bf16.mxu0 0
        %2615 = vmatpush1.bf16.msra.mxu0 0
        %2616 = vmatprep.subr.bf16.mxu0 0
        %2617 = vmatpush1.bf16.msra.mxu0 0
        %2618 = vmatprep.subr.bf16.mxu0 0
        %2619 = vmatpush1.bf16.msra.mxu0 0
        %2620 = vmatprep.subr.bf16.mxu0 0
        %2621 = vmatpush1.bf16.msra.mxu0 0
        %2622 = vmatprep.subr.bf16.mxu0 0
        %2623 = vmatpush1.bf16.msra.mxu0 0
        %2624 = vmatprep.subr.bf16.mxu0 0
        %2625 = vmatpush1.bf16.msra.mxu0 0
        %2626 = vmatprep.mubr.bf16.mxu0 0
        %2627 = vmatmul.mubr.bf16.gmra.mrb[0].mxu0 %v2589
        %v2628 = vpop.f32.mrb[0].mxu0
        %v2629 = vadd.f32 0.0, %v2628
        %v2630 = vpop.f32.mrb[0].mxu0
        %v2631 = vpop.f32.mrb[0].mxu0
        %v2632 = vpop.f32.mrb[0].mxu0
        %2633 = vdwg.mxu0
        %2634 = vrot.lane.b32.xlu0 %v997, 96
        %v2635 = vpop.permute.xlu0 %2634
        %v2637 = vsel %vm1003, %v2006, 0
        %v2640 = vsel %vm2014, %v2635, 0
        %2642 = vmatprep.subr.bf16.mxu0 0
        %2643 = vmatpush1.bf16.msra.mxu0 %v2640
        %2644 = vmatprep.subr.bf16.mxu0 0
        %2645 = vmatpush1.bf16.msra.mxu0 0
        %2646 = vmatprep.subr.bf16.mxu0 0
        %2647 = vmatpush1.bf16.msra.mxu0 0
        %2648 = vmatprep.subr.bf16.mxu0 0
        %2649 = vmatpush1.bf16.msra.mxu0 0
        %2650 = vmatprep.subr.bf16.mxu0 0
        %2651 = vmatpush1.bf16.msra.mxu0 0
        %2652 = vmatprep.subr.bf16.mxu0 0
        %2653 = vmatpush1.bf16.msra.mxu0 0
        %2654 = vmatprep.subr.bf16.mxu0 0
        %2655 = vmatpush1.bf16.msra.mxu0 0
        %2656 = vmatprep.subr.bf16.mxu0 0
        %2657 = vmatpush1.bf16.msra.mxu0 0
        %2658 = vmatprep.subr.bf16.mxu0 0
        %2659 = vmatpush1.bf16.msra.mxu0 0
        %2660 = vmatprep.subr.bf16.mxu0 0
        %2661 = vmatpush1.bf16.msra.mxu0 0
        %2662 = vmatprep.subr.bf16.mxu0 0
        %2663 = vmatpush1.bf16.msra.mxu0 0
        %2664 = vmatprep.subr.bf16.mxu0 0
        %2665 = vmatpush1.bf16.msra.mxu0 0
        %2666 = vmatprep.subr.bf16.mxu0 0
        %2667 = vmatpush1.bf16.msra.mxu0 0
        %2668 = vmatprep.subr.bf16.mxu0 0
        %2669 = vmatpush1.bf16.msra.mxu0 0
        %2670 = vmatprep.subr.bf16.mxu0 0
        %2671 = vmatpush1.bf16.msra.mxu0 0
        %2672 = vmatprep.subr.bf16.mxu0 0
        %2673 = vmatpush1.bf16.msra.mxu0 0
        %2674 = vmatprep.mubr.bf16.mxu0 0
        %2675 = vmatmul.mubr.bf16.gmra.mrb[0].mxu0 %v2637
        %v2676 = vpop.f32.mrb[0].mxu0
        %v2677 = vadd.f32 0.0, %v2676
        %v2678 = vpop.f32.mrb[0].mxu0
        %v2679 = vpop.f32.mrb[0].mxu0
        %v2680 = vpop.f32.mrb[0].mxu0
        %2681 = vdwg.mxu0
        %2682 = vrot.lane.b32.xlu0 %v998, 96
        %v2683 = vpop.permute.xlu0 %2682
        %v2685 = vsel %vm1003, %v2007, 0
        %v2688 = vsel %vm2014, %v2683, 0
        %2690 = vmatprep.subr.bf16.mxu0 0
        %2691 = vmatpush1.bf16.msra.mxu0 %v2688
        %2692 = vmatprep.subr.bf16.mxu0 0
        %2693 = vmatpush1.bf16.msra.mxu0 0
        %2694 = vmatprep.subr.bf16.mxu0 0
        %2695 = vmatpush1.bf16.msra.mxu0 0
        %2696 = vmatprep.subr.bf16.mxu0 0
        %2697 = vmatpush1.bf16.msra.mxu0 0
        %2698 = vmatprep.subr.bf16.mxu0 0
        %2699 = vmatpush1.bf16.msra.mxu0 0
        %2700 = vmatprep.subr.bf16.mxu0 0
        %2701 = vmatpush1.bf16.msra.mxu0 0
        %2702 = vmatprep.subr.bf16.mxu0 0
        %2703 = vmatpush1.bf16.msra.mxu0 0
        %2704 = vmatprep.subr.bf16.mxu0 0
        %2705 = vmatpush1.bf16.msra.mxu0 0
        %2706 = vmatprep.subr.bf16.mxu0 0
        %2707 = vmatpush1.bf16.msra.mxu0 0
        %2708 = vmatprep.subr.bf16.mxu0 0
        %2709 = vmatpush1.bf16.msra.mxu0 0
        %2710 = vmatprep.subr.bf16.mxu0 0
        %2711 = vmatpush1.bf16.msra.mxu0 0
        %2712 = vmatprep.subr.bf16.mxu0 0
        %2713 = vmatpush1.bf16.msra.mxu0 0
        %2714 = vmatprep.subr.bf16.mxu0 0
        %2715 = vmatpush1.bf16.msra.mxu0 0
        %2716 = vmatprep.subr.bf16.mxu0 0
        %2717 = vmatpush1.bf16.msra.mxu0 0
        %2718 = vmatprep.subr.bf16.mxu0 0
        %2719 = vmatpush1.bf16.msra.mxu0 0
        %2720 = vmatprep.subr.bf16.mxu0 0
        %2721 = vmatpush1.bf16.msra.mxu0 0
        %2722 = vmatprep.mubr.bf16.mxu0 0
        %2723 = vmatmul.mubr.bf16.gmra.mrb[0].mxu0 %v2685
        %v2724 = vpop.f32.mrb[0].mxu0
        %v2725 = vadd.f32 0.0, %v2724
        %v2726 = vpop.f32.mrb[0].mxu0
        %v2727 = vpop.f32.mrb[0].mxu0
        %v2728 = vpop.f32.mrb[0].mxu0
        %2729 = vdwg.mxu0
        %2730 = vrot.lane.b32.xlu0 %v999, 96
        %v2731 = vpop.permute.xlu0 %2730
        %v2733 = vsel %vm1003, %v2008, 0
        %v2736 = vsel %vm2014, %v2731, 0
        %2738 = vmatprep.subr.bf16.mxu0 0
        %2739 = vmatpush1.bf16.msra.mxu0 %v2736
        %2740 = vmatprep.subr.bf16.mxu0 0
        %2741 = vmatpush1.bf16.msra.mxu0 0
        %2742 = vmatprep.subr.bf16.mxu0 0
        %2743 = vmatpush1.bf16.msra.mxu0 0
        %2744 = vmatprep.subr.bf16.mxu0 0
        %2745 = vmatpush1.bf16.msra.mxu0 0
        %2746 = vmatprep.subr.bf16.mxu0 0
        %2747 = vmatpush1.bf16.msra.mxu0 0
        %2748 = vmatprep.subr.bf16.mxu0 0
        %2749 = vmatpush1.bf16.msra.mxu0 0
        %2750 = vmatprep.subr.bf16.mxu0 0
        %2751 = vmatpush1.bf16.msra.mxu0 0
        %2752 = vmatprep.subr.bf16.mxu0 0
        %2753 = vmatpush1.bf16.msra.mxu0 0
        %2754 = vmatprep.subr.bf16.mxu0 0
        %2755 = vmatpush1.bf16.msra.mxu0 0
        %2756 = vmatprep.subr.bf16.mxu0 0
        %2757 = vmatpush1.bf16.msra.mxu0 0
        %2758 = vmatprep.subr.bf16.mxu0 0
        %2759 = vmatpush1.bf16.msra.mxu0 0
        %2760 = vmatprep.subr.bf16.mxu0 0
        %2761 = vmatpush1.bf16.msra.mxu0 0
        %2762 = vmatprep.subr.bf16.mxu0 0
        %2763 = vmatpush1.bf16.msra.mxu0 0
        %2764 = vmatprep.subr.bf16.mxu0 0
        %2765 = vmatpush1.bf16.msra.mxu0 0
        %2766 = vmatprep.subr.bf16.mxu0 0
        %2767 = vmatpush1.bf16.msra.mxu0 0
        %2768 = vmatprep.subr.bf16.mxu0 0
        %2769 = vmatpush1.bf16.msra.mxu0 0
        %2770 = vmatprep.mubr.bf16.mxu0 0
        %2771 = vmatmul.mubr.bf16.gmra.mrb[0].mxu0 %v2733
        %v2772 = vpop.f32.mrb[0].mxu0
        %v2773 = vadd.f32 0.0, %v2772
        %v2774 = vpop.f32.mrb[0].mxu0
        %v2775 = vpop.f32.mrb[0].mxu0
        %v2776 = vpop.f32.mrb[0].mxu0
        %2777 = vdwg.mxu0
        %2778 = vrot.lane.b32.xlu0 %v984, 120
        %v2779 = vpop.permute.xlu0 %2778
        %2780 = vrot.lane.b32.xlu0 %v984, 104
        %v2781 = vpop.permute.xlu0 %2780
        %v2783 = vsel %vm1003, %v2779, 0
        %v2786 = vsel %vm1003, %v2781, 0
        %2788 = vmatprep.subr.bf16.mxu0 0
        %2789 = vmatpush1.bf16.xpose.msra.mxu0 %v2786
        %2790 = vmatprep.subr.bf16.mxu0 0
        %2791 = vmatpush1.bf16.xpose.msra.mxu0 0
        %2792 = vmatprep.subr.bf16.mxu0 0
        %2793 = vmatpush1.bf16.xpose.msra.mxu0 0
        %2794 = vmatprep.subr.bf16.mxu0 0
        %2795 = vmatpush1.bf16.xpose.msra.mxu0 0
        %2796 = vmatprep.subr.bf16.mxu0 0
        %2797 = vmatpush1.bf16.xpose.msra.mxu0 0
        %2798 = vmatprep.subr.bf16.mxu0 0
        %2799 = vmatpush1.bf16.xpose.msra.mxu0 0
        %2800 = vmatprep.subr.bf16.mxu0 0
        %2801 = vmatpush1.bf16.xpose.msra.mxu0 0
        %2802 = vmatprep.subr.bf16.mxu0 0
        %2803 = vmatpush1.bf16.xpose.msra.mxu0 0
        %2804 = vmatprep.subr.bf16.mxu0 0
        %2805 = vmatpush1.bf16.xpose.msra.mxu0 0
        %2806 = vmatprep.subr.bf16.mxu0 0
        %2807 = vmatpush1.bf16.xpose.msra.mxu0 0
        %2808 = vmatprep.subr.bf16.mxu0 0
        %2809 = vmatpush1.bf16.xpose.msra.mxu0 0
        %2810 = vmatprep.subr.bf16.mxu0 0
        %2811 = vmatpush1.bf16.xpose.msra.mxu0 0
        %2812 = vmatprep.subr.bf16.mxu0 0
        %2813 = vmatpush1.bf16.xpose.msra.mxu0 0
        %2814 = vmatprep.subr.bf16.mxu0 0
        %2815 = vmatpush1.bf16.xpose.msra.mxu0 0
        %2816 = vmatprep.subr.bf16.mxu0 0
        %2817 = vmatpush1.bf16.xpose.msra.mxu0 0
        %2818 = vmatprep.subr.bf16.mxu0 0
        %2819 = vmatpush1.bf16.xpose.msra.mxu0 0
        %2820 = vmatprep.mubr.bf16.mxu0 0
        %2821 = vmatmul.mubr.bf16.gmra.mrb[0].mxu0 %v2783
        %v2822 = vpop.f32.mrb[0].mxu0
        %v2823 = vadd.f32 0.0, %v2822
        %v2824 = vpop.f32.mrb[0].mxu0
        %v2825 = vpop.f32.mrb[0].mxu0
        %v2826 = vpop.f32.mrb[0].mxu0
        %2827 = vdwg.mxu0
        %2828 = vrot.lane.b32.xlu0 %v985, 120
        %v2829 = vpop.permute.xlu0 %2828
        %2830 = vrot.lane.b32.xlu0 %v985, 104
        %v2831 = vpop.permute.xlu0 %2830
        %v2833 = vsel %vm1003, %v2829, 0
        %v2836 = vsel %vm1003, %v2831, 0
        %2838 = vmatprep.subr.bf16.mxu0 0
        %2839 = vmatpush1.bf16.xpose.msra.mxu0 %v2836
        %2840 = vmatprep.subr.bf16.mxu0 0
        %2841 = vmatpush1.bf16.xpose.msra.mxu0 0
        %2842 = vmatprep.subr.bf16.mxu0 0
        %2843 = vmatpush1.bf16.xpose.msra.mxu0 0
        %2844 = vmatprep.subr.bf16.mxu0 0
        %2845 = vmatpush1.bf16.xpose.msra.mxu0 0
        %2846 = vmatprep.subr.bf16.mxu0 0
        %2847 = vmatpush1.bf16.xpose.msra.mxu0 0
        %2848 = vmatprep.subr.bf16.mxu0 0
        %2849 = vmatpush1.bf16.xpose.msra.mxu0 0
        %2850 = vmatprep.subr.bf16.mxu0 0
        %2851 = vmatpush1.bf16.xpose.msra.mxu0 0
        %2852 = vmatprep.subr.bf16.mxu0 0
        %2853 = vmatpush1.bf16.xpose.msra.mxu0 0
        %2854 = vmatprep.subr.bf16.mxu0 0
        %2855 = vmatpush1.bf16.xpose.msra.mxu0 0
        %2856 = vmatprep.subr.bf16.mxu0 0
        %2857 = vmatpush1.bf16.xpose.msra.mxu0 0
        %2858 = vmatprep.subr.bf16.mxu0 0
        %2859 = vmatpush1.bf16.xpose.msra.mxu0 0
        %2860 = vmatprep.subr.bf16.mxu0 0
        %2861 = vmatpush1.bf16.xpose.msra.mxu0 0
        %2862 = vmatprep.subr.bf16.mxu0 0
        %2863 = vmatpush1.bf16.xpose.msra.mxu0 0
        %2864 = vmatprep.subr.bf16.mxu0 0
        %2865 = vmatpush1.bf16.xpose.msra.mxu0 0
        %2866 = vmatprep.subr.bf16.mxu0 0
        %2867 = vmatpush1.bf16.xpose.msra.mxu0 0
        %2868 = vmatprep.subr.bf16.mxu0 0
        %2869 = vmatpush1.bf16.xpose.msra.mxu0 0
        %2870 = vmatprep.mubr.bf16.mxu0 0
        %2871 = vmatmul.mubr.bf16.gmra.mrb[0].mxu0 %v2833
        %v2872 = vpop.f32.mrb[0].mxu0
        %v2873 = vadd.f32 0.0, %v2872
        %v2874 = vpop.f32.mrb[0].mxu0
        %v2875 = vpop.f32.mrb[0].mxu0
        %v2876 = vpop.f32.mrb[0].mxu0
        %2877 = vdwg.mxu0
        %2878 = vrot.lane.b32.xlu0 %v986, 120
        %v2879 = vpop.permute.xlu0 %2878
        %2880 = vrot.lane.b32.xlu0 %v986, 104
        %v2881 = vpop.permute.xlu0 %2880
        %v2883 = vsel %vm1003, %v2879, 0
        %v2886 = vsel %vm1003, %v2881, 0
        %2888 = vmatprep.subr.bf16.mxu0 0
        %2889 = vmatpush1.bf16.xpose.msra.mxu0 %v2886
        %2890 = vmatprep.subr.bf16.mxu0 0
        %2891 = vmatpush1.bf16.xpose.msra.mxu0 0
        %2892 = vmatprep.subr.bf16.mxu0 0
        %2893 = vmatpush1.bf16.xpose.msra.mxu0 0
        %2894 = vmatprep.subr.bf16.mxu0 0
        %2895 = vmatpush1.bf16.xpose.msra.mxu0 0
        %2896 = vmatprep.subr.bf16.mxu0 0
        %2897 = vmatpush1.bf16.xpose.msra.mxu0 0
        %2898 = vmatprep.subr.bf16.mxu0 0
        %2899 = vmatpush1.bf16.xpose.msra.mxu0 0
        %2900 = vmatprep.subr.bf16.mxu0 0
        %2901 = vmatpush1.bf16.xpose.msra.mxu0 0
        %2902 = vmatprep.subr.bf16.mxu0 0
        %2903 = vmatpush1.bf16.xpose.msra.mxu0 0
        %2904 = vmatprep.subr.bf16.mxu0 0
        %2905 = vmatpush1.bf16.xpose.msra.mxu0 0
        %2906 = vmatprep.subr.bf16.mxu0 0
        %2907 = vmatpush1.bf16.xpose.msra.mxu0 0
        %2908 = vmatprep.subr.bf16.mxu0 0
        %2909 = vmatpush1.bf16.xpose.msra.mxu0 0
        %2910 = vmatprep.subr.bf16.mxu0 0
        %2911 = vmatpush1.bf16.xpose.msra.mxu0 0
        %2912 = vmatprep.subr.bf16.mxu0 0
        %2913 = vmatpush1.bf16.xpose.msra.mxu0 0
        %2914 = vmatprep.subr.bf16.mxu0 0
        %2915 = vmatpush1.bf16.xpose.msra.mxu0 0
        %2916 = vmatprep.subr.bf16.mxu0 0
        %2917 = vmatpush1.bf16.xpose.msra.mxu0 0
        %2918 = vmatprep.subr.bf16.mxu0 0
        %2919 = vmatpush1.bf16.xpose.msra.mxu0 0
        %2920 = vmatprep.mubr.bf16.mxu0 0
        %2921 = vmatmul.mubr.bf16.gmra.mrb[0].mxu0 %v2883
        %v2922 = vpop.f32.mrb[0].mxu0
        %v2923 = vadd.f32 0.0, %v2922
        %v2924 = vpop.f32.mrb[0].mxu0
        %v2925 = vpop.f32.mrb[0].mxu0
        %v2926 = vpop.f32.mrb[0].mxu0
        %2927 = vdwg.mxu0
        %2928 = vrot.lane.b32.xlu0 %v987, 120
        %v2929 = vpop.permute.xlu0 %2928
        %2930 = vrot.lane.b32.xlu0 %v987, 104
        %v2931 = vpop.permute.xlu0 %2930
        %v2933 = vsel %vm1003, %v2929, 0
        %v2936 = vsel %vm1003, %v2931, 0
        %2938 = vmatprep.subr.bf16.mxu0 0
        %2939 = vmatpush1.bf16.xpose.msra.mxu0 %v2936
        %2940 = vmatprep.subr.bf16.mxu0 0
        %2941 = vmatpush1.bf16.xpose.msra.mxu0 0
        %2942 = vmatprep.subr.bf16.mxu0 0
        %2943 = vmatpush1.bf16.xpose.msra.mxu0 0
        %2944 = vmatprep.subr.bf16.mxu0 0
        %2945 = vmatpush1.bf16.xpose.msra.mxu0 0
        %2946 = vmatprep.subr.bf16.mxu0 0
        %2947 = vmatpush1.bf16.xpose.msra.mxu0 0
        %2948 = vmatprep.subr.bf16.mxu0 0
        %2949 = vmatpush1.bf16.xpose.msra.mxu0 0
        %2950 = vmatprep.subr.bf16.mxu0 0
        %2951 = vmatpush1.bf16.xpose.msra.mxu0 0
        %2952 = vmatprep.subr.bf16.mxu0 0
        %2953 = vmatpush1.bf16.xpose.msra.mxu0 0
        %2954 = vmatprep.subr.bf16.mxu0 0
        %2955 = vmatpush1.bf16.xpose.msra.mxu0 0
        %2956 = vmatprep.subr.bf16.mxu0 0
        %2957 = vmatpush1.bf16.xpose.msra.mxu0 0
        %2958 = vmatprep.subr.bf16.mxu0 0
        %2959 = vmatpush1.bf16.xpose.msra.mxu0 0
        %2960 = vmatprep.subr.bf16.mxu0 0
        %2961 = vmatpush1.bf16.xpose.msra.mxu0 0
        %2962 = vmatprep.subr.bf16.mxu0 0
        %2963 = vmatpush1.bf16.xpose.msra.mxu0 0
        %2964 = vmatprep.subr.bf16.mxu0 0
        %2965 = vmatpush1.bf16.xpose.msra.mxu0 0
        %2966 = vmatprep.subr.bf16.mxu0 0
        %2967 = vmatpush1.bf16.xpose.msra.mxu0 0
        %2968 = vmatprep.subr.bf16.mxu0 0
        %2969 = vmatpush1.bf16.xpose.msra.mxu0 0
        %2970 = vmatprep.mubr.bf16.mxu0 0
        %2971 = vmatmul.mubr.bf16.gmra.mrb[0].mxu0 %v2933
        %v2972 = vpop.f32.mrb[0].mxu0
        %v2973 = vadd.f32 0.0, %v2972
        %v2974 = vpop.f32.mrb[0].mxu0
        %v2975 = vpop.f32.mrb[0].mxu0
        %v2976 = vpop.f32.mrb[0].mxu0
        %2977 = vdwg.mxu0
        %2978 = vrot.lane.b32.xlu0 %v988, 120
        %v2979 = vpop.permute.xlu0 %2978
        %2980 = vrot.lane.b32.xlu0 %v988, 104
        %v2981 = vpop.permute.xlu0 %2980
        %v2983 = vsel %vm1003, %v2979, 0
        %v2986 = vsel %vm1003, %v2981, 0
        %2988 = vmatprep.subr.bf16.mxu0 0
        %2989 = vmatpush1.bf16.xpose.msra.mxu0 %v2986
        %2990 = vmatprep.subr.bf16.mxu0 0
        %2991 = vmatpush1.bf16.xpose.msra.mxu0 0
        %2992 = vmatprep.subr.bf16.mxu0 0
        %2993 = vmatpush1.bf16.xpose.msra.mxu0 0
        %2994 = vmatprep.subr.bf16.mxu0 0
        %2995 = vmatpush1.bf16.xpose.msra.mxu0 0
        %2996 = vmatprep.subr.bf16.mxu0 0
        %2997 = vmatpush1.bf16.xpose.msra.mxu0 0
        %2998 = vmatprep.subr.bf16.mxu0 0
        %2999 = vmatpush1.bf16.xpose.msra.mxu0 0
        %3000 = vmatprep.subr.bf16.mxu0 0
        %3001 = vmatpush1.bf16.xpose.msra.mxu0 0
        %3002 = vmatprep.subr.bf16.mxu0 0
        %3003 = vmatpush1.bf16.xpose.msra.mxu0 0
        %3004 = vmatprep.subr.bf16.mxu0 0
        %3005 = vmatpush1.bf16.xpose.msra.mxu0 0
        %3006 = vmatprep.subr.bf16.mxu0 0
        %3007 = vmatpush1.bf16.xpose.msra.mxu0 0
        %3008 = vmatprep.subr.bf16.mxu0 0
        %3009 = vmatpush1.bf16.xpose.msra.mxu0 0
        %3010 = vmatprep.subr.bf16.mxu0 0
        %3011 = vmatpush1.bf16.xpose.msra.mxu0 0
        %3012 = vmatprep.subr.bf16.mxu0 0
        %3013 = vmatpush1.bf16.xpose.msra.mxu0 0
        %3014 = vmatprep.subr.bf16.mxu0 0
        %3015 = vmatpush1.bf16.xpose.msra.mxu0 0
        %3016 = vmatprep.subr.bf16.mxu0 0
        %3017 = vmatpush1.bf16.xpose.msra.mxu0 0
        %3018 = vmatprep.subr.bf16.mxu0 0
        %3019 = vmatpush1.bf16.xpose.msra.mxu0 0
        %3020 = vmatprep.mubr.bf16.mxu0 0
        %3021 = vmatmul.mubr.bf16.gmra.mrb[0].mxu0 %v2983
        %v3022 = vpop.f32.mrb[0].mxu0
        %v3023 = vadd.f32 0.0, %v3022
        %v3024 = vpop.f32.mrb[0].mxu0
        %v3025 = vpop.f32.mrb[0].mxu0
        %v3026 = vpop.f32.mrb[0].mxu0
        %3027 = vdwg.mxu0
        %3028 = vrot.lane.b32.xlu0 %v989, 120
        %v3029 = vpop.permute.xlu0 %3028
        %3030 = vrot.lane.b32.xlu0 %v989, 104
        %v3031 = vpop.permute.xlu0 %3030
        %v3033 = vsel %vm1003, %v3029, 0
        %v3036 = vsel %vm1003, %v3031, 0
        %3038 = vmatprep.subr.bf16.mxu0 0
        %3039 = vmatpush1.bf16.xpose.msra.mxu0 %v3036
        %3040 = vmatprep.subr.bf16.mxu0 0
        %3041 = vmatpush1.bf16.xpose.msra.mxu0 0
        %3042 = vmatprep.subr.bf16.mxu0 0
        %3043 = vmatpush1.bf16.xpose.msra.mxu0 0
        %3044 = vmatprep.subr.bf16.mxu0 0
        %3045 = vmatpush1.bf16.xpose.msra.mxu0 0
        %3046 = vmatprep.subr.bf16.mxu0 0
        %3047 = vmatpush1.bf16.xpose.msra.mxu0 0
        %3048 = vmatprep.subr.bf16.mxu0 0
        %3049 = vmatpush1.bf16.xpose.msra.mxu0 0
        %3050 = vmatprep.subr.bf16.mxu0 0
        %3051 = vmatpush1.bf16.xpose.msra.mxu0 0
        %3052 = vmatprep.subr.bf16.mxu0 0
        %3053 = vmatpush1.bf16.xpose.msra.mxu0 0
        %3054 = vmatprep.subr.bf16.mxu0 0
        %3055 = vmatpush1.bf16.xpose.msra.mxu0 0
        %3056 = vmatprep.subr.bf16.mxu0 0
        %3057 = vmatpush1.bf16.xpose.msra.mxu0 0
        %3058 = vmatprep.subr.bf16.mxu0 0
        %3059 = vmatpush1.bf16.xpose.msra.mxu0 0
        %3060 = vmatprep.subr.bf16.mxu0 0
        %3061 = vmatpush1.bf16.xpose.msra.mxu0 0
        %3062 = vmatprep.subr.bf16.mxu0 0
        %3063 = vmatpush1.bf16.xpose.msra.mxu0 0
        %3064 = vmatprep.subr.bf16.mxu0 0
        %3065 = vmatpush1.bf16.xpose.msra.mxu0 0
        %3066 = vmatprep.subr.bf16.mxu0 0
        %3067 = vmatpush1.bf16.xpose.msra.mxu0 0
        %3068 = vmatprep.subr.bf16.mxu0 0
        %3069 = vmatpush1.bf16.xpose.msra.mxu0 0
        %3070 = vmatprep.mubr.bf16.mxu0 0
        %3071 = vmatmul.mubr.bf16.gmra.mrb[0].mxu0 %v3033
        %v3072 = vpop.f32.mrb[0].mxu0
        %v3073 = vadd.f32 0.0, %v3072
        %v3074 = vpop.f32.mrb[0].mxu0
        %v3075 = vpop.f32.mrb[0].mxu0
        %v3076 = vpop.f32.mrb[0].mxu0
        %3077 = vdwg.mxu0
        %3078 = vrot.lane.b32.xlu0 %v990, 120
        %v3079 = vpop.permute.xlu0 %3078
        %3080 = vrot.lane.b32.xlu0 %v990, 104
        %v3081 = vpop.permute.xlu0 %3080
        %v3083 = vsel %vm1003, %v3079, 0
        %v3086 = vsel %vm1003, %v3081, 0
        %3088 = vmatprep.subr.bf16.mxu0 0
        %3089 = vmatpush1.bf16.xpose.msra.mxu0 %v3086
        %3090 = vmatprep.subr.bf16.mxu0 0
        %3091 = vmatpush1.bf16.xpose.msra.mxu0 0
        %3092 = vmatprep.subr.bf16.mxu0 0
        %3093 = vmatpush1.bf16.xpose.msra.mxu0 0
        %3094 = vmatprep.subr.bf16.mxu0 0
        %3095 = vmatpush1.bf16.xpose.msra.mxu0 0
        %3096 = vmatprep.subr.bf16.mxu0 0
        %3097 = vmatpush1.bf16.xpose.msra.mxu0 0
        %3098 = vmatprep.subr.bf16.mxu0 0
        %3099 = vmatpush1.bf16.xpose.msra.mxu0 0
        %3100 = vmatprep.subr.bf16.mxu0 0
        %3101 = vmatpush1.bf16.xpose.msra.mxu0 0
        %3102 = vmatprep.subr.bf16.mxu0 0
        %3103 = vmatpush1.bf16.xpose.msra.mxu0 0
        %3104 = vmatprep.subr.bf16.mxu0 0
        %3105 = vmatpush1.bf16.xpose.msra.mxu0 0
        %3106 = vmatprep.subr.bf16.mxu0 0
        %3107 = vmatpush1.bf16.xpose.msra.mxu0 0
        %3108 = vmatprep.subr.bf16.mxu0 0
        %3109 = vmatpush1.bf16.xpose.msra.mxu0 0
        %3110 = vmatprep.subr.bf16.mxu0 0
        %3111 = vmatpush1.bf16.xpose.msra.mxu0 0
        %3112 = vmatprep.subr.bf16.mxu0 0
        %3113 = vmatpush1.bf16.xpose.msra.mxu0 0
        %3114 = vmatprep.subr.bf16.mxu0 0
        %3115 = vmatpush1.bf16.xpose.msra.mxu0 0
        %3116 = vmatprep.subr.bf16.mxu0 0
        %3117 = vmatpush1.bf16.xpose.msra.mxu0 0
        %3118 = vmatprep.subr.bf16.mxu0 0
        %3119 = vmatpush1.bf16.xpose.msra.mxu0 0
        %3120 = vmatprep.mubr.bf16.mxu0 0
        %3121 = vmatmul.mubr.bf16.gmra.mrb[0].mxu0 %v3083
        %v3122 = vpop.f32.mrb[0].mxu0
        %v3123 = vadd.f32 0.0, %v3122
        %v3124 = vpop.f32.mrb[0].mxu0
        %v3125 = vpop.f32.mrb[0].mxu0
        %v3126 = vpop.f32.mrb[0].mxu0
        %3127 = vdwg.mxu0
        %3128 = vrot.lane.b32.xlu0 %v991, 120
        %v3129 = vpop.permute.xlu0 %3128
        %3130 = vrot.lane.b32.xlu0 %v991, 104
        %v3131 = vpop.permute.xlu0 %3130
        %v3133 = vsel %vm1003, %v3129, 0
        %v3136 = vsel %vm1003, %v3131, 0
        %3138 = vmatprep.subr.bf16.mxu0 0
        %3139 = vmatpush1.bf16.xpose.msra.mxu0 %v3136
        %3140 = vmatprep.subr.bf16.mxu0 0
        %3141 = vmatpush1.bf16.xpose.msra.mxu0 0
        %3142 = vmatprep.subr.bf16.mxu0 0
        %3143 = vmatpush1.bf16.xpose.msra.mxu0 0
        %3144 = vmatprep.subr.bf16.mxu0 0
        %3145 = vmatpush1.bf16.xpose.msra.mxu0 0
        %3146 = vmatprep.subr.bf16.mxu0 0
        %3147 = vmatpush1.bf16.xpose.msra.mxu0 0
        %3148 = vmatprep.subr.bf16.mxu0 0
        %3149 = vmatpush1.bf16.xpose.msra.mxu0 0
        %3150 = vmatprep.subr.bf16.mxu0 0
        %3151 = vmatpush1.bf16.xpose.msra.mxu0 0
        %3152 = vmatprep.subr.bf16.mxu0 0
        %3153 = vmatpush1.bf16.xpose.msra.mxu0 0
        %3154 = vmatprep.subr.bf16.mxu0 0
        %3155 = vmatpush1.bf16.xpose.msra.mxu0 0
        %3156 = vmatprep.subr.bf16.mxu0 0
        %3157 = vmatpush1.bf16.xpose.msra.mxu0 0
        %3158 = vmatprep.subr.bf16.mxu0 0
        %3159 = vmatpush1.bf16.xpose.msra.mxu0 0
        %3160 = vmatprep.subr.bf16.mxu0 0
        %3161 = vmatpush1.bf16.xpose.msra.mxu0 0
        %3162 = vmatprep.subr.bf16.mxu0 0
        %3163 = vmatpush1.bf16.xpose.msra.mxu0 0
        %3164 = vmatprep.subr.bf16.mxu0 0
        %3165 = vmatpush1.bf16.xpose.msra.mxu0 0
        %3166 = vmatprep.subr.bf16.mxu0 0
        %3167 = vmatpush1.bf16.xpose.msra.mxu0 0
        %3168 = vmatprep.subr.bf16.mxu0 0
        %3169 = vmatpush1.bf16.xpose.msra.mxu0 0
        %3170 = vmatprep.mubr.bf16.mxu0 0
        %3171 = vmatmul.mubr.bf16.gmra.mrb[0].mxu0 %v3133
        %v3172 = vpop.f32.mrb[0].mxu0
        %v3173 = vadd.f32 0.0, %v3172
        %v3174 = vpop.f32.mrb[0].mxu0
        %v3175 = vpop.f32.mrb[0].mxu0
        %v3176 = vpop.f32.mrb[0].mxu0
        %3177 = vdwg.mxu0
        %3178 = vrot.lane.b32.xlu0 %v992, 120
        %v3179 = vpop.permute.xlu0 %3178
        %3180 = vrot.lane.b32.xlu0 %v992, 104
        %v3181 = vpop.permute.xlu0 %3180
        %v3183 = vsel %vm1003, %v3179, 0
        %v3186 = vsel %vm1003, %v3181, 0
        %3188 = vmatprep.subr.bf16.mxu0 0
        %3189 = vmatpush1.bf16.xpose.msra.mxu0 %v3186
        %3190 = vmatprep.subr.bf16.mxu0 0
        %3191 = vmatpush1.bf16.xpose.msra.mxu0 0
        %3192 = vmatprep.subr.bf16.mxu0 0
        %3193 = vmatpush1.bf16.xpose.msra.mxu0 0
        %3194 = vmatprep.subr.bf16.mxu0 0
        %3195 = vmatpush1.bf16.xpose.msra.mxu0 0
        %3196 = vmatprep.subr.bf16.mxu0 0
        %3197 = vmatpush1.bf16.xpose.msra.mxu0 0
        %3198 = vmatprep.subr.bf16.mxu0 0
        %3199 = vmatpush1.bf16.xpose.msra.mxu0 0
        %3200 = vmatprep.subr.bf16.mxu0 0
        %3201 = vmatpush1.bf16.xpose.msra.mxu0 0
        %3202 = vmatprep.subr.bf16.mxu0 0
        %3203 = vmatpush1.bf16.xpose.msra.mxu0 0
        %3204 = vmatprep.subr.bf16.mxu0 0
        %3205 = vmatpush1.bf16.xpose.msra.mxu0 0
        %3206 = vmatprep.subr.bf16.mxu0 0
        %3207 = vmatpush1.bf16.xpose.msra.mxu0 0
        %3208 = vmatprep.subr.bf16.mxu0 0
        %3209 = vmatpush1.bf16.xpose.msra.mxu0 0
        %3210 = vmatprep.subr.bf16.mxu0 0
        %3211 = vmatpush1.bf16.xpose.msra.mxu0 0
        %3212 = vmatprep.subr.bf16.mxu0 0
        %3213 = vmatpush1.bf16.xpose.msra.mxu0 0
        %3214 = vmatprep.subr.bf16.mxu0 0
        %3215 = vmatpush1.bf16.xpose.msra.mxu0 0
        %3216 = vmatprep.subr.bf16.mxu0 0
        %3217 = vmatpush1.bf16.xpose.msra.mxu0 0
        %3218 = vmatprep.subr.bf16.mxu0 0
        %3219 = vmatpush1.bf16.xpose.msra.mxu0 0
        %3220 = vmatprep.mubr.bf16.mxu0 0
        %3221 = vmatmul.mubr.bf16.gmra.mrb[0].mxu0 %v3183
        %v3222 = vpop.f32.mrb[0].mxu0
        %v3223 = vadd.f32 0.0, %v3222
        %v3224 = vpop.f32.mrb[0].mxu0
        %v3225 = vpop.f32.mrb[0].mxu0
        %v3226 = vpop.f32.mrb[0].mxu0
        %3227 = vdwg.mxu0
        %3228 = vrot.lane.b32.xlu0 %v993, 120
        %v3229 = vpop.permute.xlu0 %3228
        %3230 = vrot.lane.b32.xlu0 %v993, 104
        %v3231 = vpop.permute.xlu0 %3230
        %v3233 = vsel %vm1003, %v3229, 0
        %v3236 = vsel %vm1003, %v3231, 0
        %3238 = vmatprep.subr.bf16.mxu0 0
        %3239 = vmatpush1.bf16.xpose.msra.mxu0 %v3236
        %3240 = vmatprep.subr.bf16.mxu0 0
        %3241 = vmatpush1.bf16.xpose.msra.mxu0 0
        %3242 = vmatprep.subr.bf16.mxu0 0
        %3243 = vmatpush1.bf16.xpose.msra.mxu0 0
        %3244 = vmatprep.subr.bf16.mxu0 0
        %3245 = vmatpush1.bf16.xpose.msra.mxu0 0
        %3246 = vmatprep.subr.bf16.mxu0 0
        %3247 = vmatpush1.bf16.xpose.msra.mxu0 0
        %3248 = vmatprep.subr.bf16.mxu0 0
        %3249 = vmatpush1.bf16.xpose.msra.mxu0 0
        %3250 = vmatprep.subr.bf16.mxu0 0
        %3251 = vmatpush1.bf16.xpose.msra.mxu0 0
        %3252 = vmatprep.subr.bf16.mxu0 0
        %3253 = vmatpush1.bf16.xpose.msra.mxu0 0
        %3254 = vmatprep.subr.bf16.mxu0 0
        %3255 = vmatpush1.bf16.xpose.msra.mxu0 0
        %3256 = vmatprep.subr.bf16.mxu0 0
        %3257 = vmatpush1.bf16.xpose.msra.mxu0 0
        %3258 = vmatprep.subr.bf16.mxu0 0
        %3259 = vmatpush1.bf16.xpose.msra.mxu0 0
        %3260 = vmatprep.subr.bf16.mxu0 0
        %3261 = vmatpush1.bf16.xpose.msra.mxu0 0
        %3262 = vmatprep.subr.bf16.mxu0 0
        %3263 = vmatpush1.bf16.xpose.msra.mxu0 0
        %3264 = vmatprep.subr.bf16.mxu0 0
        %3265 = vmatpush1.bf16.xpose.msra.mxu0 0
        %3266 = vmatprep.subr.bf16.mxu0 0
        %3267 = vmatpush1.bf16.xpose.msra.mxu0 0
        %3268 = vmatprep.subr.bf16.mxu0 0
        %3269 = vmatpush1.bf16.xpose.msra.mxu0 0
        %3270 = vmatprep.mubr.bf16.mxu0 0
        %3271 = vmatmul.mubr.bf16.gmra.mrb[0].mxu0 %v3233
        %v3272 = vpop.f32.mrb[0].mxu0
        %v3273 = vadd.f32 0.0, %v3272
        %v3274 = vpop.f32.mrb[0].mxu0
        %v3275 = vpop.f32.mrb[0].mxu0
        %v3276 = vpop.f32.mrb[0].mxu0
        %3277 = vdwg.mxu0
        %3278 = vrot.lane.b32.xlu0 %v994, 120
        %v3279 = vpop.permute.xlu0 %3278
        %3280 = vrot.lane.b32.xlu0 %v994, 104
        %v3281 = vpop.permute.xlu0 %3280
        %v3283 = vsel %vm1003, %v3279, 0
        %v3286 = vsel %vm1003, %v3281, 0
        %3288 = vmatprep.subr.bf16.mxu0 0
        %3289 = vmatpush1.bf16.xpose.msra.mxu0 %v3286
        %3290 = vmatprep.subr.bf16.mxu0 0
        %3291 = vmatpush1.bf16.xpose.msra.mxu0 0
        %3292 = vmatprep.subr.bf16.mxu0 0
        %3293 = vmatpush1.bf16.xpose.msra.mxu0 0
        %3294 = vmatprep.subr.bf16.mxu0 0
        %3295 = vmatpush1.bf16.xpose.msra.mxu0 0
        %3296 = vmatprep.subr.bf16.mxu0 0
        %3297 = vmatpush1.bf16.xpose.msra.mxu0 0
        %3298 = vmatprep.subr.bf16.mxu0 0
        %3299 = vmatpush1.bf16.xpose.msra.mxu0 0
        %3300 = vmatprep.subr.bf16.mxu0 0
        %3301 = vmatpush1.bf16.xpose.msra.mxu0 0
        %3302 = vmatprep.subr.bf16.mxu0 0
        %3303 = vmatpush1.bf16.xpose.msra.mxu0 0
        %3304 = vmatprep.subr.bf16.mxu0 0
        %3305 = vmatpush1.bf16.xpose.msra.mxu0 0
        %3306 = vmatprep.subr.bf16.mxu0 0
        %3307 = vmatpush1.bf16.xpose.msra.mxu0 0
        %3308 = vmatprep.subr.bf16.mxu0 0
        %3309 = vmatpush1.bf16.xpose.msra.mxu0 0
        %3310 = vmatprep.subr.bf16.mxu0 0
        %3311 = vmatpush1.bf16.xpose.msra.mxu0 0
        %3312 = vmatprep.subr.bf16.mxu0 0
        %3313 = vmatpush1.bf16.xpose.msra.mxu0 0
        %3314 = vmatprep.subr.bf16.mxu0 0
        %3315 = vmatpush1.bf16.xpose.msra.mxu0 0
        %3316 = vmatprep.subr.bf16.mxu0 0
        %3317 = vmatpush1.bf16.xpose.msra.mxu0 0
        %3318 = vmatprep.subr.bf16.mxu0 0
        %3319 = vmatpush1.bf16.xpose.msra.mxu0 0
        %3320 = vmatprep.mubr.bf16.mxu0 0
        %3321 = vmatmul.mubr.bf16.gmra.mrb[0].mxu0 %v3283
        %v3322 = vpop.f32.mrb[0].mxu0
        %v3323 = vadd.f32 0.0, %v3322
        %v3324 = vpop.f32.mrb[0].mxu0
        %v3325 = vpop.f32.mrb[0].mxu0
        %v3326 = vpop.f32.mrb[0].mxu0
        %3327 = vdwg.mxu0
        %3328 = vrot.lane.b32.xlu0 %v995, 120
        %v3329 = vpop.permute.xlu0 %3328
        %3330 = vrot.lane.b32.xlu0 %v995, 104
        %v3331 = vpop.permute.xlu0 %3330
        %v3333 = vsel %vm1003, %v3329, 0
        %v3336 = vsel %vm1003, %v3331, 0
        %3338 = vmatprep.subr.bf16.mxu0 0
        %3339 = vmatpush1.bf16.xpose.msra.mxu0 %v3336
        %3340 = vmatprep.subr.bf16.mxu0 0
        %3341 = vmatpush1.bf16.xpose.msra.mxu0 0
        %3342 = vmatprep.subr.bf16.mxu0 0
        %3343 = vmatpush1.bf16.xpose.msra.mxu0 0
        %3344 = vmatprep.subr.bf16.mxu0 0
        %3345 = vmatpush1.bf16.xpose.msra.mxu0 0
        %3346 = vmatprep.subr.bf16.mxu0 0
        %3347 = vmatpush1.bf16.xpose.msra.mxu0 0
        %3348 = vmatprep.subr.bf16.mxu0 0
        %3349 = vmatpush1.bf16.xpose.msra.mxu0 0
        %3350 = vmatprep.subr.bf16.mxu0 0
        %3351 = vmatpush1.bf16.xpose.msra.mxu0 0
        %3352 = vmatprep.subr.bf16.mxu0 0
        %3353 = vmatpush1.bf16.xpose.msra.mxu0 0
        %3354 = vmatprep.subr.bf16.mxu0 0
        %3355 = vmatpush1.bf16.xpose.msra.mxu0 0
        %3356 = vmatprep.subr.bf16.mxu0 0
        %3357 = vmatpush1.bf16.xpose.msra.mxu0 0
        %3358 = vmatprep.subr.bf16.mxu0 0
        %3359 = vmatpush1.bf16.xpose.msra.mxu0 0
        %3360 = vmatprep.subr.bf16.mxu0 0
        %3361 = vmatpush1.bf16.xpose.msra.mxu0 0
        %3362 = vmatprep.subr.bf16.mxu0 0
        %3363 = vmatpush1.bf16.xpose.msra.mxu0 0
        %3364 = vmatprep.subr.bf16.mxu0 0
        %3365 = vmatpush1.bf16.xpose.msra.mxu0 0
        %3366 = vmatprep.subr.bf16.mxu0 0
        %3367 = vmatpush1.bf16.xpose.msra.mxu0 0
        %3368 = vmatprep.subr.bf16.mxu0 0
        %3369 = vmatpush1.bf16.xpose.msra.mxu0 0
        %3370 = vmatprep.mubr.bf16.mxu0 0
        %3371 = vmatmul.mubr.bf16.gmra.mrb[0].mxu0 %v3333
        %v3372 = vpop.f32.mrb[0].mxu0
        %v3373 = vadd.f32 0.0, %v3372
        %v3374 = vpop.f32.mrb[0].mxu0
        %v3375 = vpop.f32.mrb[0].mxu0
        %v3376 = vpop.f32.mrb[0].mxu0
        %3377 = vdwg.mxu0
        %3378 = vrot.lane.b32.xlu0 %v996, 120
        %v3379 = vpop.permute.xlu0 %3378
        %3380 = vrot.lane.b32.xlu0 %v996, 104
        %v3381 = vpop.permute.xlu0 %3380
        %v3383 = vsel %vm1003, %v3379, 0
        %v3386 = vsel %vm1003, %v3381, 0
        %3388 = vmatprep.subr.bf16.mxu0 0
        %3389 = vmatpush1.bf16.xpose.msra.mxu0 %v3386
        %3390 = vmatprep.subr.bf16.mxu0 0
        %3391 = vmatpush1.bf16.xpose.msra.mxu0 0
        %3392 = vmatprep.subr.bf16.mxu0 0
        %3393 = vmatpush1.bf16.xpose.msra.mxu0 0
        %3394 = vmatprep.subr.bf16.mxu0 0
        %3395 = vmatpush1.bf16.xpose.msra.mxu0 0
        %3396 = vmatprep.subr.bf16.mxu0 0
        %3397 = vmatpush1.bf16.xpose.msra.mxu0 0
        %3398 = vmatprep.subr.bf16.mxu0 0
        %3399 = vmatpush1.bf16.xpose.msra.mxu0 0
        %3400 = vmatprep.subr.bf16.mxu0 0
        %3401 = vmatpush1.bf16.xpose.msra.mxu0 0
        %3402 = vmatprep.subr.bf16.mxu0 0
        %3403 = vmatpush1.bf16.xpose.msra.mxu0 0
        %3404 = vmatprep.subr.bf16.mxu0 0
        %3405 = vmatpush1.bf16.xpose.msra.mxu0 0
        %3406 = vmatprep.subr.bf16.mxu0 0
        %3407 = vmatpush1.bf16.xpose.msra.mxu0 0
        %3408 = vmatprep.subr.bf16.mxu0 0
        %3409 = vmatpush1.bf16.xpose.msra.mxu0 0
        %3410 = vmatprep.subr.bf16.mxu0 0
        %3411 = vmatpush1.bf16.xpose.msra.mxu0 0
        %3412 = vmatprep.subr.bf16.mxu0 0
        %3413 = vmatpush1.bf16.xpose.msra.mxu0 0
        %3414 = vmatprep.subr.bf16.mxu0 0
        %3415 = vmatpush1.bf16.xpose.msra.mxu0 0
        %3416 = vmatprep.subr.bf16.mxu0 0
        %3417 = vmatpush1.bf16.xpose.msra.mxu0 0
        %3418 = vmatprep.subr.bf16.mxu0 0
        %3419 = vmatpush1.bf16.xpose.msra.mxu0 0
        %3420 = vmatprep.mubr.bf16.mxu0 0
        %3421 = vmatmul.mubr.bf16.gmra.mrb[0].mxu0 %v3383
        %v3422 = vpop.f32.mrb[0].mxu0
        %v3423 = vadd.f32 0.0, %v3422
        %v3424 = vpop.f32.mrb[0].mxu0
        %v3425 = vpop.f32.mrb[0].mxu0
        %v3426 = vpop.f32.mrb[0].mxu0
        %3427 = vdwg.mxu0
        %3428 = vrot.lane.b32.xlu0 %v997, 120
        %v3429 = vpop.permute.xlu0 %3428
        %3430 = vrot.lane.b32.xlu0 %v997, 104
        %v3431 = vpop.permute.xlu0 %3430
        %v3433 = vsel %vm1003, %v3429, 0
        %v3436 = vsel %vm1003, %v3431, 0
        %3438 = vmatprep.subr.bf16.mxu0 0
        %3439 = vmatpush1.bf16.xpose.msra.mxu0 %v3436
        %3440 = vmatprep.subr.bf16.mxu0 0
        %3441 = vmatpush1.bf16.xpose.msra.mxu0 0
        %3442 = vmatprep.subr.bf16.mxu0 0
        %3443 = vmatpush1.bf16.xpose.msra.mxu0 0
        %3444 = vmatprep.subr.bf16.mxu0 0
        %3445 = vmatpush1.bf16.xpose.msra.mxu0 0
        %3446 = vmatprep.subr.bf16.mxu0 0
        %3447 = vmatpush1.bf16.xpose.msra.mxu0 0
        %3448 = vmatprep.subr.bf16.mxu0 0
        %3449 = vmatpush1.bf16.xpose.msra.mxu0 0
        %3450 = vmatprep.subr.bf16.mxu0 0
        %3451 = vmatpush1.bf16.xpose.msra.mxu0 0
        %3452 = vmatprep.subr.bf16.mxu0 0
        %3453 = vmatpush1.bf16.xpose.msra.mxu0 0
        %3454 = vmatprep.subr.bf16.mxu0 0
        %3455 = vmatpush1.bf16.xpose.msra.mxu0 0
        %3456 = vmatprep.subr.bf16.mxu0 0
        %3457 = vmatpush1.bf16.xpose.msra.mxu0 0
        %3458 = vmatprep.subr.bf16.mxu0 0
        %3459 = vmatpush1.bf16.xpose.msra.mxu0 0
        %3460 = vmatprep.subr.bf16.mxu0 0
        %3461 = vmatpush1.bf16.xpose.msra.mxu0 0
        %3462 = vmatprep.subr.bf16.mxu0 0
        %3463 = vmatpush1.bf16.xpose.msra.mxu0 0
        %3464 = vmatprep.subr.bf16.mxu0 0
        %3465 = vmatpush1.bf16.xpose.msra.mxu0 0
        %3466 = vmatprep.subr.bf16.mxu0 0
        %3467 = vmatpush1.bf16.xpose.msra.mxu0 0
        %3468 = vmatprep.subr.bf16.mxu0 0
        %3469 = vmatpush1.bf16.xpose.msra.mxu0 0
        %3470 = vmatprep.mubr.bf16.mxu0 0
        %3471 = vmatmul.mubr.bf16.gmra.mrb[0].mxu0 %v3433
        %v3472 = vpop.f32.mrb[0].mxu0
        %v3473 = vadd.f32 0.0, %v3472
        %v3474 = vpop.f32.mrb[0].mxu0
        %v3475 = vpop.f32.mrb[0].mxu0
        %v3476 = vpop.f32.mrb[0].mxu0
        %3477 = vdwg.mxu0
        %3478 = vrot.lane.b32.xlu0 %v998, 120
        %v3479 = vpop.permute.xlu0 %3478
        %3480 = vrot.lane.b32.xlu0 %v998, 104
        %v3481 = vpop.permute.xlu0 %3480
        %v3483 = vsel %vm1003, %v3479, 0
        %v3486 = vsel %vm1003, %v3481, 0
        %3488 = vmatprep.subr.bf16.mxu0 0
        %3489 = vmatpush1.bf16.xpose.msra.mxu0 %v3486
        %3490 = vmatprep.subr.bf16.mxu0 0
        %3491 = vmatpush1.bf16.xpose.msra.mxu0 0
        %3492 = vmatprep.subr.bf16.mxu0 0
        %3493 = vmatpush1.bf16.xpose.msra.mxu0 0
        %3494 = vmatprep.subr.bf16.mxu0 0
        %3495 = vmatpush1.bf16.xpose.msra.mxu0 0
        %3496 = vmatprep.subr.bf16.mxu0 0
        %3497 = vmatpush1.bf16.xpose.msra.mxu0 0
        %3498 = vmatprep.subr.bf16.mxu0 0
        %3499 = vmatpush1.bf16.xpose.msra.mxu0 0
        %3500 = vmatprep.subr.bf16.mxu0 0
        %3501 = vmatpush1.bf16.xpose.msra.mxu0 0
        %3502 = vmatprep.subr.bf16.mxu0 0
        %3503 = vmatpush1.bf16.xpose.msra.mxu0 0
        %3504 = vmatprep.subr.bf16.mxu0 0
        %3505 = vmatpush1.bf16.xpose.msra.mxu0 0
        %3506 = vmatprep.subr.bf16.mxu0 0
        %3507 = vmatpush1.bf16.xpose.msra.mxu0 0
        %3508 = vmatprep.subr.bf16.mxu0 0
        %3509 = vmatpush1.bf16.xpose.msra.mxu0 0
        %3510 = vmatprep.subr.bf16.mxu0 0
        %3511 = vmatpush1.bf16.xpose.msra.mxu0 0
        %3512 = vmatprep.subr.bf16.mxu0 0
        %3513 = vmatpush1.bf16.xpose.msra.mxu0 0
        %3514 = vmatprep.subr.bf16.mxu0 0
        %3515 = vmatpush1.bf16.xpose.msra.mxu0 0
        %3516 = vmatprep.subr.bf16.mxu0 0
        %3517 = vmatpush1.bf16.xpose.msra.mxu0 0
        %3518 = vmatprep.subr.bf16.mxu0 0
        %3519 = vmatpush1.bf16.xpose.msra.mxu0 0
        %3520 = vmatprep.mubr.bf16.mxu0 0
        %3521 = vmatmul.mubr.bf16.gmra.mrb[0].mxu0 %v3483
        %v3522 = vpop.f32.mrb[0].mxu0
        %v3523 = vadd.f32 0.0, %v3522
        %v3524 = vpop.f32.mrb[0].mxu0
        %v3525 = vpop.f32.mrb[0].mxu0
        %v3526 = vpop.f32.mrb[0].mxu0
        %3527 = vdwg.mxu0
        %3528 = vrot.lane.b32.xlu0 %v999, 120
        %v3529 = vpop.permute.xlu0 %3528
        %3530 = vrot.lane.b32.xlu0 %v999, 104
        %v3531 = vpop.permute.xlu0 %3530
        %v3533 = vsel %vm1003, %v3529, 0
        %v3536 = vsel %vm1003, %v3531, 0
        %3538 = vmatprep.subr.bf16.mxu0 0
        %3539 = vmatpush1.bf16.xpose.msra.mxu0 %v3536
        %3540 = vmatprep.subr.bf16.mxu0 0
        %3541 = vmatpush1.bf16.xpose.msra.mxu0 0
        %3542 = vmatprep.subr.bf16.mxu0 0
        %3543 = vmatpush1.bf16.xpose.msra.mxu0 0
        %3544 = vmatprep.subr.bf16.mxu0 0
        %3545 = vmatpush1.bf16.xpose.msra.mxu0 0
        %3546 = vmatprep.subr.bf16.mxu0 0
        %3547 = vmatpush1.bf16.xpose.msra.mxu0 0
        %3548 = vmatprep.subr.bf16.mxu0 0
        %3549 = vmatpush1.bf16.xpose.msra.mxu0 0
        %3550 = vmatprep.subr.bf16.mxu0 0
        %3551 = vmatpush1.bf16.xpose.msra.mxu0 0
        %3552 = vmatprep.subr.bf16.mxu0 0
        %3553 = vmatpush1.bf16.xpose.msra.mxu0 0
        %3554 = vmatprep.subr.bf16.mxu0 0
        %3555 = vmatpush1.bf16.xpose.msra.mxu0 0
        %3556 = vmatprep.subr.bf16.mxu0 0
        %3557 = vmatpush1.bf16.xpose.msra.mxu0 0
        %3558 = vmatprep.subr.bf16.mxu0 0
        %3559 = vmatpush1.bf16.xpose.msra.mxu0 0
        %3560 = vmatprep.subr.bf16.mxu0 0
        %3561 = vmatpush1.bf16.xpose.msra.mxu0 0
        %3562 = vmatprep.subr.bf16.mxu0 0
        %3563 = vmatpush1.bf16.xpose.msra.mxu0 0
        %3564 = vmatprep.subr.bf16.mxu0 0
        %3565 = vmatpush1.bf16.xpose.msra.mxu0 0
        %3566 = vmatprep.subr.bf16.mxu0 0
        %3567 = vmatpush1.bf16.xpose.msra.mxu0 0
        %3568 = vmatprep.subr.bf16.mxu0 0
        %3569 = vmatpush1.bf16.xpose.msra.mxu0 0
        %3570 = vmatprep.mubr.bf16.mxu0 0
        %3571 = vmatmul.mubr.bf16.gmra.mrb[0].mxu0 %v3533
        %v3572 = vpop.f32.mrb[0].mxu0
        %v3573 = vadd.f32 0.0, %v3572
        %v3574 = vpop.f32.mrb[0].mxu0
        %v3575 = vpop.f32.mrb[0].mxu0
        %v3576 = vpop.f32.mrb[0].mxu0
        %3577 = vdwg.mxu0
        %v3578 = vmul.f32 %v2823, 0.35355338
        %v3579 = vmul.f32 %v2873, 0.35355338
        %v3580 = vmul.f32 %v2923, 0.35355338
        %v3581 = vmul.f32 %v2973, 0.35355338
        %v3582 = vmul.f32 %v3023, 0.35355338
        %v3583 = vmul.f32 %v3073, 0.35355338
        %v3584 = vmul.f32 %v3123, 0.35355338
        %v3585 = vmul.f32 %v3173, 0.35355338
        %v3586 = vmul.f32 %v3223, 0.35355338
        %v3587 = vmul.f32 %v3273, 0.35355338
        %v3588 = vmul.f32 %v3323, 0.35355338
        %v3589 = vmul.f32 %v3373, 0.35355338
        %v3590 = vmul.f32 %v3423, 0.35355338
        %v3591 = vmul.f32 %v3473, 0.35355338
        %v3592 = vmul.f32 %v3523, 0.35355338
        %v3593 = vmul.f32 %v3573, 0.35355338
        %v3594 = vadd.f32 %v3578, %v983
        %v3595 = vadd.f32 %v3579, %v983
        %v3596 = vadd.f32 %v3580, %v983
        %v3597 = vadd.f32 %v3581, %v983
        %v3598 = vadd.f32 %v3582, %v983
        %v3599 = vadd.f32 %v3583, %v983
        %v3600 = vadd.f32 %v3584, %v983
        %v3601 = vadd.f32 %v3585, %v983
        %v3602 = vadd.f32 %v3586, %v983
        %v3603 = vadd.f32 %v3587, %v983
        %v3604 = vadd.f32 %v3588, %v983
        %v3605 = vadd.f32 %v3589, %v983
        %v3606 = vadd.f32 %v3590, %v983
        %v3607 = vadd.f32 %v3591, %v983
        %v3608 = vadd.f32 %v3592, %v983
        %v3609 = vadd.f32 %v3593, %v983
        %v3610 = vsel %vm1003, %v3594, -inf
        %3611 = vmax.xlane.f32.xlu0 %v3610
        %v3612 = vpop.xlane.xlu0 %3611
        %v3613 = vsel %vm1003, %v3595, -inf
        %3614 = vmax.xlane.f32.xlu0 %v3613
        %v3615 = vpop.xlane.xlu0 %3614
        %v3616 = vsel %vm1003, %v3596, -inf
        %3617 = vmax.xlane.f32.xlu0 %v3616
        %v3618 = vpop.xlane.xlu0 %3617
        %v3619 = vsel %vm1003, %v3597, -inf
        %3620 = vmax.xlane.f32.xlu0 %v3619
        %v3621 = vpop.xlane.xlu0 %3620
        %v3622 = vsel %vm1003, %v3598, -inf
        %3623 = vmax.xlane.f32.xlu0 %v3622
        %v3624 = vpop.xlane.xlu0 %3623
        %v3625 = vsel %vm1003, %v3599, -inf
        %3626 = vmax.xlane.f32.xlu0 %v3625
        %v3627 = vpop.xlane.xlu0 %3626
        %v3628 = vsel %vm1003, %v3600, -inf
        %3629 = vmax.xlane.f32.xlu0 %v3628
        %v3630 = vpop.xlane.xlu0 %3629
        %v3631 = vsel %vm1003, %v3601, -inf
        %3632 = vmax.xlane.f32.xlu0 %v3631
        %v3633 = vpop.xlane.xlu0 %3632
        %v3634 = vsel %vm1003, %v3602, -inf
        %3635 = vmax.xlane.f32.xlu0 %v3634
        %v3636 = vpop.xlane.xlu0 %3635
        %v3637 = vsel %vm1003, %v3603, -inf
        %3638 = vmax.xlane.f32.xlu0 %v3637
        %v3639 = vpop.xlane.xlu0 %3638
        %v3640 = vsel %vm1003, %v3604, -inf
        %3641 = vmax.xlane.f32.xlu0 %v3640
        %v3642 = vpop.xlane.xlu0 %3641
        %v3643 = vsel %vm1003, %v3605, -inf
        %3644 = vmax.xlane.f32.xlu0 %v3643
        %v3645 = vpop.xlane.xlu0 %3644
        %v3646 = vsel %vm1003, %v3606, -inf
        %3647 = vmax.xlane.f32.xlu0 %v3646
        %v3648 = vpop.xlane.xlu0 %3647
        %v3649 = vsel %vm1003, %v3607, -inf
        %3650 = vmax.xlane.f32.xlu0 %v3649
        %v3651 = vpop.xlane.xlu0 %3650
        %v3652 = vsel %vm1003, %v3608, -inf
        %3653 = vmax.xlane.f32.xlu0 %v3652
        %v3654 = vpop.xlane.xlu0 %3653
        %v3655 = vsel %vm1003, %v3609, -inf
        %3656 = vmax.xlane.f32.xlu0 %v3655
        %v3657 = vpop.xlane.xlu0 %3656
        %v3658 = vsub.f32 %v3594, %v3612
        %v3659 = vsub.f32 %v3595, %v3615
        %v3660 = vsub.f32 %v3596, %v3618
        %v3661 = vsub.f32 %v3597, %v3621
        %v3662 = vsub.f32 %v3598, %v3624
        %v3663 = vsub.f32 %v3599, %v3627
        %v3664 = vsub.f32 %v3600, %v3630
        %v3665 = vsub.f32 %v3601, %v3633
        %v3666 = vsub.f32 %v3602, %v3636
        %v3667 = vsub.f32 %v3603, %v3639
        %v3668 = vsub.f32 %v3604, %v3642
        %v3669 = vsub.f32 %v3605, %v3645
        %v3670 = vsub.f32 %v3606, %v3648
        %v3671 = vsub.f32 %v3607, %v3651
        %v3672 = vsub.f32 %v3608, %v3654
        %v3673 = vsub.f32 %v3609, %v3657
        %v3674 = vmul.f32 %v3658, 1.442695
        %v3675 = vpow.pop %v3674
        %v3676 = vmul.f32 %v3659, 1.442695
        %v3677 = vpow.pop %v3676
        %v3678 = vmul.f32 %v3660, 1.442695
        %v3679 = vpow.pop %v3678
        %v3680 = vmul.f32 %v3661, 1.442695
        %v3681 = vpow.pop %v3680
        %v3682 = vmul.f32 %v3662, 1.442695
        %v3683 = vpow.pop %v3682
        %v3684 = vmul.f32 %v3663, 1.442695
        %v3685 = vpow.pop %v3684
        %v3686 = vmul.f32 %v3664, 1.442695
        %v3687 = vpow.pop %v3686
        %v3688 = vmul.f32 %v3665, 1.442695
        %v3689 = vpow.pop %v3688
        %v3690 = vmul.f32 %v3666, 1.442695
        %v3691 = vpow.pop %v3690
        %v3692 = vmul.f32 %v3667, 1.442695
        %v3693 = vpow.pop %v3692
        %v3694 = vmul.f32 %v3668, 1.442695
        %v3695 = vpow.pop %v3694
        %v3696 = vmul.f32 %v3669, 1.442695
        %v3697 = vpow.pop %v3696
        %v3698 = vmul.f32 %v3670, 1.442695
        %v3699 = vpow.pop %v3698
        %v3700 = vmul.f32 %v3671, 1.442695
        %v3701 = vpow.pop %v3700
        %v3702 = vmul.f32 %v3672, 1.442695
        %v3703 = vpow.pop %v3702
        %v3704 = vmul.f32 %v3673, 1.442695
        %v3705 = vpow.pop %v3704
        %v3706 = vsel %vm1003, %v3675, 0.0
        %3707 = vadd.xlane.f32.xlu0 %v3706
        %v3708 = vpop.xlane.xlu0 %3707
        %v3709 = vsel %vm1003, %v3677, 0.0
        %3710 = vadd.xlane.f32.xlu0 %v3709
        %v3711 = vpop.xlane.xlu0 %3710
        %v3712 = vsel %vm1003, %v3679, 0.0
        %3713 = vadd.xlane.f32.xlu0 %v3712
        %v3714 = vpop.xlane.xlu0 %3713
        %v3715 = vsel %vm1003, %v3681, 0.0
        %3716 = vadd.xlane.f32.xlu0 %v3715
        %v3717 = vpop.xlane.xlu0 %3716
        %v3718 = vsel %vm1003, %v3683, 0.0
        %3719 = vadd.xlane.f32.xlu0 %v3718
        %v3720 = vpop.xlane.xlu0 %3719
        %v3721 = vsel %vm1003, %v3685, 0.0
        %3722 = vadd.xlane.f32.xlu0 %v3721
        %v3723 = vpop.xlane.xlu0 %3722
        %v3724 = vsel %vm1003, %v3687, 0.0
        %3725 = vadd.xlane.f32.xlu0 %v3724
        %v3726 = vpop.xlane.xlu0 %3725
        %v3727 = vsel %vm1003, %v3689, 0.0
        %3728 = vadd.xlane.f32.xlu0 %v3727
        %v3729 = vpop.xlane.xlu0 %3728
        %v3730 = vsel %vm1003, %v3691, 0.0
        %3731 = vadd.xlane.f32.xlu0 %v3730
        %v3732 = vpop.xlane.xlu0 %3731
        %v3733 = vsel %vm1003, %v3693, 0.0
        %3734 = vadd.xlane.f32.xlu0 %v3733
        %v3735 = vpop.xlane.xlu0 %3734
        %v3736 = vsel %vm1003, %v3695, 0.0
        %3737 = vadd.xlane.f32.xlu0 %v3736
        %v3738 = vpop.xlane.xlu0 %3737
        %v3739 = vsel %vm1003, %v3697, 0.0
        %3740 = vadd.xlane.f32.xlu0 %v3739
        %v3741 = vpop.xlane.xlu0 %3740
        %v3742 = vsel %vm1003, %v3699, 0.0
        %3743 = vadd.xlane.f32.xlu0 %v3742
        %v3744 = vpop.xlane.xlu0 %3743
        %v3745 = vsel %vm1003, %v3701, 0.0
        %3746 = vadd.xlane.f32.xlu0 %v3745
        %v3747 = vpop.xlane.xlu0 %3746
        %v3748 = vsel %vm1003, %v3703, 0.0
        %3749 = vadd.xlane.f32.xlu0 %v3748
        %v3750 = vpop.xlane.xlu0 %3749
        %v3751 = vsel %vm1003, %v3705, 0.0
        %3752 = vadd.xlane.f32.xlu0 %v3751
        %v3753 = vpop.xlane.xlu0 %3752
        %v3754 = vrcp.pop %v3708
        %v3755 = vrcp.pop %v3711
        %v3756 = vrcp.pop %v3714
        %v3757 = vrcp.pop %v3717
        %v3758 = vrcp.pop %v3720
        %v3759 = vrcp.pop %v3723
        %v3760 = vrcp.pop %v3726
        %v3761 = vrcp.pop %v3729
        %v3762 = vrcp.pop %v3732
        %v3763 = vrcp.pop %v3735
        %v3764 = vrcp.pop %v3738
        %v3765 = vrcp.pop %v3741
        %v3766 = vrcp.pop %v3744
        %v3767 = vrcp.pop %v3747
        %v3768 = vrcp.pop %v3750
        %v3769 = vrcp.pop %v3753
        %v3770 = vmul.f32 %v3675, %v3754
        %v3771 = vmul.f32 %v3677, %v3755
        %v3772 = vmul.f32 %v3679, %v3756
        %v3773 = vmul.f32 %v3681, %v3757
        %v3774 = vmul.f32 %v3683, %v3758
        %v3775 = vmul.f32 %v3685, %v3759
        %v3776 = vmul.f32 %v3687, %v3760
        %v3777 = vmul.f32 %v3689, %v3761
        %v3778 = vmul.f32 %v3691, %v3762
        %v3779 = vmul.f32 %v3693, %v3763
        %v3780 = vmul.f32 %v3695, %v3764
        %v3781 = vmul.f32 %v3697, %v3765
        %v3782 = vmul.f32 %v3699, %v3766
        %v3783 = vmul.f32 %v3701, %v3767
        %v3784 = vmul.f32 %v3703, %v3768
        %v3785 = vmul.f32 %v3705, %v3769
        %v3786 = vpack.c.bf16 %v3770, %v3770
        %v3787 = vpack.c.bf16 %v3771, %v3771
        %v3788 = vpack.c.bf16 %v3772, %v3772
        %v3789 = vpack.c.bf16 %v3773, %v3773
        %v3790 = vpack.c.bf16 %v3774, %v3774
        %v3791 = vpack.c.bf16 %v3775, %v3775
        %v3792 = vpack.c.bf16 %v3776, %v3776
        %v3793 = vpack.c.bf16 %v3777, %v3777
        %v3794 = vpack.c.bf16 %v3778, %v3778
        %v3795 = vpack.c.bf16 %v3779, %v3779
        %v3796 = vpack.c.bf16 %v3780, %v3780
        %v3797 = vpack.c.bf16 %v3781, %v3781
        %v3798 = vpack.c.bf16 %v3782, %v3782
        %v3799 = vpack.c.bf16 %v3783, %v3783
        %v3800 = vpack.c.bf16 %v3784, %v3784
        %v3801 = vpack.c.bf16 %v3785, %v3785
        %3802 = vrot.lane.b32.xlu0 %v984, 88
        %v3803 = vpop.permute.xlu0 %3802
        %v3805 = vsel %vm1003, %v3786, 0
        %v3808 = vsel %vm2014, %v3803, 0
        %3810 = vmatprep.subr.bf16.mxu0 0
        %3811 = vmatpush1.bf16.msra.mxu0 %v3808
        %3812 = vmatprep.subr.bf16.mxu0 0
        %3813 = vmatpush1.bf16.msra.mxu0 0
        %3814 = vmatprep.subr.bf16.mxu0 0
        %3815 = vmatpush1.bf16.msra.mxu0 0
        %3816 = vmatprep.subr.bf16.mxu0 0
        %3817 = vmatpush1.bf16.msra.mxu0 0
        %3818 = vmatprep.subr.bf16.mxu0 0
        %3819 = vmatpush1.bf16.msra.mxu0 0
        %3820 = vmatprep.subr.bf16.mxu0 0
        %3821 = vmatpush1.bf16.msra.mxu0 0
        %3822 = vmatprep.subr.bf16.mxu0 0
        %3823 = vmatpush1.bf16.msra.mxu0 0
        %3824 = vmatprep.subr.bf16.mxu0 0
        %3825 = vmatpush1.bf16.msra.mxu0 0
        %3826 = vmatprep.subr.bf16.mxu0 0
        %3827 = vmatpush1.bf16.msra.mxu0 0
        %3828 = vmatprep.subr.bf16.mxu0 0
        %3829 = vmatpush1.bf16.msra.mxu0 0
        %3830 = vmatprep.subr.bf16.mxu0 0
        %3831 = vmatpush1.bf16.msra.mxu0 0
        %3832 = vmatprep.subr.bf16.mxu0 0
        %3833 = vmatpush1.bf16.msra.mxu0 0
        %3834 = vmatprep.subr.bf16.mxu0 0
        %3835 = vmatpush1.bf16.msra.mxu0 0
        %3836 = vmatprep.subr.bf16.mxu0 0
        %3837 = vmatpush1.bf16.msra.mxu0 0
        %3838 = vmatprep.subr.bf16.mxu0 0
        %3839 = vmatpush1.bf16.msra.mxu0 0
        %3840 = vmatprep.subr.bf16.mxu0 0
        %3841 = vmatpush1.bf16.msra.mxu0 0
        %3842 = vmatprep.mubr.bf16.mxu0 0
        %3843 = vmatmul.mubr.bf16.gmra.mrb[0].mxu0 %v3805
        %v3844 = vpop.f32.mrb[0].mxu0
        %v3845 = vadd.f32 0.0, %v3844
        %v3846 = vpop.f32.mrb[0].mxu0
        %v3847 = vpop.f32.mrb[0].mxu0
        %v3848 = vpop.f32.mrb[0].mxu0
        %3849 = vdwg.mxu0
        %3850 = vrot.lane.b32.xlu0 %v985, 88
        %v3851 = vpop.permute.xlu0 %3850
        %v3853 = vsel %vm1003, %v3787, 0
        %v3856 = vsel %vm2014, %v3851, 0
        %3858 = vmatprep.subr.bf16.mxu0 0
        %3859 = vmatpush1.bf16.msra.mxu0 %v3856
        %3860 = vmatprep.subr.bf16.mxu0 0
        %3861 = vmatpush1.bf16.msra.mxu0 0
        %3862 = vmatprep.subr.bf16.mxu0 0
        %3863 = vmatpush1.bf16.msra.mxu0 0
        %3864 = vmatprep.subr.bf16.mxu0 0
        %3865 = vmatpush1.bf16.msra.mxu0 0
        %3866 = vmatprep.subr.bf16.mxu0 0
        %3867 = vmatpush1.bf16.msra.mxu0 0
        %3868 = vmatprep.subr.bf16.mxu0 0
        %3869 = vmatpush1.bf16.msra.mxu0 0
        %3870 = vmatprep.subr.bf16.mxu0 0
        %3871 = vmatpush1.bf16.msra.mxu0 0
        %3872 = vmatprep.subr.bf16.mxu0 0
        %3873 = vmatpush1.bf16.msra.mxu0 0
        %3874 = vmatprep.subr.bf16.mxu0 0
        %3875 = vmatpush1.bf16.msra.mxu0 0
        %3876 = vmatprep.subr.bf16.mxu0 0
        %3877 = vmatpush1.bf16.msra.mxu0 0
        %3878 = vmatprep.subr.bf16.mxu0 0
        %3879 = vmatpush1.bf16.msra.mxu0 0
        %3880 = vmatprep.subr.bf16.mxu0 0
        %3881 = vmatpush1.bf16.msra.mxu0 0
        %3882 = vmatprep.subr.bf16.mxu0 0
        %3883 = vmatpush1.bf16.msra.mxu0 0
        %3884 = vmatprep.subr.bf16.mxu0 0
        %3885 = vmatpush1.bf16.msra.mxu0 0
        %3886 = vmatprep.subr.bf16.mxu0 0
        %3887 = vmatpush1.bf16.msra.mxu0 0
        %3888 = vmatprep.subr.bf16.mxu0 0
        %3889 = vmatpush1.bf16.msra.mxu0 0
        %3890 = vmatprep.mubr.bf16.mxu0 0
        %3891 = vmatmul.mubr.bf16.gmra.mrb[0].mxu0 %v3853
        %v3892 = vpop.f32.mrb[0].mxu0
        %v3893 = vadd.f32 0.0, %v3892
        %v3894 = vpop.f32.mrb[0].mxu0
        %v3895 = vpop.f32.mrb[0].mxu0
        %v3896 = vpop.f32.mrb[0].mxu0
        %3897 = vdwg.mxu0
        %3898 = vrot.lane.b32.xlu0 %v986, 88
        %v3899 = vpop.permute.xlu0 %3898
        %v3901 = vsel %vm1003, %v3788, 0
        %v3904 = vsel %vm2014, %v3899, 0
        %3906 = vmatprep.subr.bf16.mxu0 0
        %3907 = vmatpush1.bf16.msra.mxu0 %v3904
        %3908 = vmatprep.subr.bf16.mxu0 0
        %3909 = vmatpush1.bf16.msra.mxu0 0
        %3910 = vmatprep.subr.bf16.mxu0 0
        %3911 = vmatpush1.bf16.msra.mxu0 0
        %3912 = vmatprep.subr.bf16.mxu0 0
        %3913 = vmatpush1.bf16.msra.mxu0 0
        %3914 = vmatprep.subr.bf16.mxu0 0
        %3915 = vmatpush1.bf16.msra.mxu0 0
        %3916 = vmatprep.subr.bf16.mxu0 0
        %3917 = vmatpush1.bf16.msra.mxu0 0
        %3918 = vmatprep.subr.bf16.mxu0 0
        %3919 = vmatpush1.bf16.msra.mxu0 0
        %3920 = vmatprep.subr.bf16.mxu0 0
        %3921 = vmatpush1.bf16.msra.mxu0 0
        %3922 = vmatprep.subr.bf16.mxu0 0
        %3923 = vmatpush1.bf16.msra.mxu0 0
        %3924 = vmatprep.subr.bf16.mxu0 0
        %3925 = vmatpush1.bf16.msra.mxu0 0
        %3926 = vmatprep.subr.bf16.mxu0 0
        %3927 = vmatpush1.bf16.msra.mxu0 0
        %3928 = vmatprep.subr.bf16.mxu0 0
        %3929 = vmatpush1.bf16.msra.mxu0 0
        %3930 = vmatprep.subr.bf16.mxu0 0
        %3931 = vmatpush1.bf16.msra.mxu0 0
        %3932 = vmatprep.subr.bf16.mxu0 0
        %3933 = vmatpush1.bf16.msra.mxu0 0
        %3934 = vmatprep.subr.bf16.mxu0 0
        %3935 = vmatpush1.bf16.msra.mxu0 0
        %3936 = vmatprep.subr.bf16.mxu0 0
        %3937 = vmatpush1.bf16.msra.mxu0 0
        %3938 = vmatprep.mubr.bf16.mxu0 0
        %3939 = vmatmul.mubr.bf16.gmra.mrb[0].mxu0 %v3901
        %v3940 = vpop.f32.mrb[0].mxu0
        %v3941 = vadd.f32 0.0, %v3940
        %v3942 = vpop.f32.mrb[0].mxu0
        %v3943 = vpop.f32.mrb[0].mxu0
        %v3944 = vpop.f32.mrb[0].mxu0
        %3945 = vdwg.mxu0
        %3946 = vrot.lane.b32.xlu0 %v987, 88
        %v3947 = vpop.permute.xlu0 %3946
        %v3949 = vsel %vm1003, %v3789, 0
        %v3952 = vsel %vm2014, %v3947, 0
        %3954 = vmatprep.subr.bf16.mxu0 0
        %3955 = vmatpush1.bf16.msra.mxu0 %v3952
        %3956 = vmatprep.subr.bf16.mxu0 0
        %3957 = vmatpush1.bf16.msra.mxu0 0
        %3958 = vmatprep.subr.bf16.mxu0 0
        %3959 = vmatpush1.bf16.msra.mxu0 0
        %3960 = vmatprep.subr.bf16.mxu0 0
        %3961 = vmatpush1.bf16.msra.mxu0 0
        %3962 = vmatprep.subr.bf16.mxu0 0
        %3963 = vmatpush1.bf16.msra.mxu0 0
        %3964 = vmatprep.subr.bf16.mxu0 0
        %3965 = vmatpush1.bf16.msra.mxu0 0
        %3966 = vmatprep.subr.bf16.mxu0 0
        %3967 = vmatpush1.bf16.msra.mxu0 0
        %3968 = vmatprep.subr.bf16.mxu0 0
        %3969 = vmatpush1.bf16.msra.mxu0 0
        %3970 = vmatprep.subr.bf16.mxu0 0
        %3971 = vmatpush1.bf16.msra.mxu0 0
        %3972 = vmatprep.subr.bf16.mxu0 0
        %3973 = vmatpush1.bf16.msra.mxu0 0
        %3974 = vmatprep.subr.bf16.mxu0 0
        %3975 = vmatpush1.bf16.msra.mxu0 0
        %3976 = vmatprep.subr.bf16.mxu0 0
        %3977 = vmatpush1.bf16.msra.mxu0 0
        %3978 = vmatprep.subr.bf16.mxu0 0
        %3979 = vmatpush1.bf16.msra.mxu0 0
        %3980 = vmatprep.subr.bf16.mxu0 0
        %3981 = vmatpush1.bf16.msra.mxu0 0
        %3982 = vmatprep.subr.bf16.mxu0 0
        %3983 = vmatpush1.bf16.msra.mxu0 0
        %3984 = vmatprep.subr.bf16.mxu0 0
        %3985 = vmatpush1.bf16.msra.mxu0 0
        %3986 = vmatprep.mubr.bf16.mxu0 0
        %3987 = vmatmul.mubr.bf16.gmra.mrb[0].mxu0 %v3949
        %v3988 = vpop.f32.mrb[0].mxu0
        %v3989 = vadd.f32 0.0, %v3988
        %v3990 = vpop.f32.mrb[0].mxu0
        %v3991 = vpop.f32.mrb[0].mxu0
        %v3992 = vpop.f32.mrb[0].mxu0
        %3993 = vdwg.mxu0
        %3994 = vrot.lane.b32.xlu0 %v988, 88
        %v3995 = vpop.permute.xlu0 %3994
        %v3997 = vsel %vm1003, %v3790, 0
        %v4000 = vsel %vm2014, %v3995, 0
        %4002 = vmatprep.subr.bf16.mxu0 0
        %4003 = vmatpush1.bf16.msra.mxu0 %v4000
        %4004 = vmatprep.subr.bf16.mxu0 0
        %4005 = vmatpush1.bf16.msra.mxu0 0
        %4006 = vmatprep.subr.bf16.mxu0 0
        %4007 = vmatpush1.bf16.msra.mxu0 0
        %4008 = vmatprep.subr.bf16.mxu0 0
        %4009 = vmatpush1.bf16.msra.mxu0 0
        %4010 = vmatprep.subr.bf16.mxu0 0
        %4011 = vmatpush1.bf16.msra.mxu0 0
        %4012 = vmatprep.subr.bf16.mxu0 0
        %4013 = vmatpush1.bf16.msra.mxu0 0
        %4014 = vmatprep.subr.bf16.mxu0 0
        %4015 = vmatpush1.bf16.msra.mxu0 0
        %4016 = vmatprep.subr.bf16.mxu0 0
        %4017 = vmatpush1.bf16.msra.mxu0 0
        %4018 = vmatprep.subr.bf16.mxu0 0
        %4019 = vmatpush1.bf16.msra.mxu0 0
        %4020 = vmatprep.subr.bf16.mxu0 0
        %4021 = vmatpush1.bf16.msra.mxu0 0
        %4022 = vmatprep.subr.bf16.mxu0 0
        %4023 = vmatpush1.bf16.msra.mxu0 0
        %4024 = vmatprep.subr.bf16.mxu0 0
        %4025 = vmatpush1.bf16.msra.mxu0 0
        %4026 = vmatprep.subr.bf16.mxu0 0
        %4027 = vmatpush1.bf16.msra.mxu0 0
        %4028 = vmatprep.subr.bf16.mxu0 0
        %4029 = vmatpush1.bf16.msra.mxu0 0
        %4030 = vmatprep.subr.bf16.mxu0 0
        %4031 = vmatpush1.bf16.msra.mxu0 0
        %4032 = vmatprep.subr.bf16.mxu0 0
        %4033 = vmatpush1.bf16.msra.mxu0 0
        %4034 = vmatprep.mubr.bf16.mxu0 0
        %4035 = vmatmul.mubr.bf16.gmra.mrb[0].mxu0 %v3997
        %v4036 = vpop.f32.mrb[0].mxu0
        %v4037 = vadd.f32 0.0, %v4036
        %v4038 = vpop.f32.mrb[0].mxu0
        %v4039 = vpop.f32.mrb[0].mxu0
        %v4040 = vpop.f32.mrb[0].mxu0
        %4041 = vdwg.mxu0
        %4042 = vrot.lane.b32.xlu0 %v989, 88
        %v4043 = vpop.permute.xlu0 %4042
        %v4045 = vsel %vm1003, %v3791, 0
        %v4048 = vsel %vm2014, %v4043, 0
        %4050 = vmatprep.subr.bf16.mxu0 0
        %4051 = vmatpush1.bf16.msra.mxu0 %v4048
        %4052 = vmatprep.subr.bf16.mxu0 0
        %4053 = vmatpush1.bf16.msra.mxu0 0
        %4054 = vmatprep.subr.bf16.mxu0 0
        %4055 = vmatpush1.bf16.msra.mxu0 0
        %4056 = vmatprep.subr.bf16.mxu0 0
        %4057 = vmatpush1.bf16.msra.mxu0 0
        %4058 = vmatprep.subr.bf16.mxu0 0
        %4059 = vmatpush1.bf16.msra.mxu0 0
        %4060 = vmatprep.subr.bf16.mxu0 0
        %4061 = vmatpush1.bf16.msra.mxu0 0
        %4062 = vmatprep.subr.bf16.mxu0 0
        %4063 = vmatpush1.bf16.msra.mxu0 0
        %4064 = vmatprep.subr.bf16.mxu0 0
        %4065 = vmatpush1.bf16.msra.mxu0 0
        %4066 = vmatprep.subr.bf16.mxu0 0
        %4067 = vmatpush1.bf16.msra.mxu0 0
        %4068 = vmatprep.subr.bf16.mxu0 0
        %4069 = vmatpush1.bf16.msra.mxu0 0
        %4070 = vmatprep.subr.bf16.mxu0 0
        %4071 = vmatpush1.bf16.msra.mxu0 0
        %4072 = vmatprep.subr.bf16.mxu0 0
        %4073 = vmatpush1.bf16.msra.mxu0 0
        %4074 = vmatprep.subr.bf16.mxu0 0
        %4075 = vmatpush1.bf16.msra.mxu0 0
        %4076 = vmatprep.subr.bf16.mxu0 0
        %4077 = vmatpush1.bf16.msra.mxu0 0
        %4078 = vmatprep.subr.bf16.mxu0 0
        %4079 = vmatpush1.bf16.msra.mxu0 0
        %4080 = vmatprep.subr.bf16.mxu0 0
        %4081 = vmatpush1.bf16.msra.mxu0 0
        %4082 = vmatprep.mubr.bf16.mxu0 0
        %4083 = vmatmul.mubr.bf16.gmra.mrb[0].mxu0 %v4045
        %v4084 = vpop.f32.mrb[0].mxu0
        %v4085 = vadd.f32 0.0, %v4084
        %v4086 = vpop.f32.mrb[0].mxu0
        %v4087 = vpop.f32.mrb[0].mxu0
        %v4088 = vpop.f32.mrb[0].mxu0
        %4089 = vdwg.mxu0
        %4090 = vrot.lane.b32.xlu0 %v990, 88
        %v4091 = vpop.permute.xlu0 %4090
        %v4093 = vsel %vm1003, %v3792, 0
        %v4096 = vsel %vm2014, %v4091, 0
        %4098 = vmatprep.subr.bf16.mxu0 0
        %4099 = vmatpush1.bf16.msra.mxu0 %v4096
        %4100 = vmatprep.subr.bf16.mxu0 0
        %4101 = vmatpush1.bf16.msra.mxu0 0
        %4102 = vmatprep.subr.bf16.mxu0 0
        %4103 = vmatpush1.bf16.msra.mxu0 0
        %4104 = vmatprep.subr.bf16.mxu0 0
        %4105 = vmatpush1.bf16.msra.mxu0 0
        %4106 = vmatprep.subr.bf16.mxu0 0
        %4107 = vmatpush1.bf16.msra.mxu0 0
        %4108 = vmatprep.subr.bf16.mxu0 0
        %4109 = vmatpush1.bf16.msra.mxu0 0
        %4110 = vmatprep.subr.bf16.mxu0 0
        %4111 = vmatpush1.bf16.msra.mxu0 0
        %4112 = vmatprep.subr.bf16.mxu0 0
        %4113 = vmatpush1.bf16.msra.mxu0 0
        %4114 = vmatprep.subr.bf16.mxu0 0
        %4115 = vmatpush1.bf16.msra.mxu0 0
        %4116 = vmatprep.subr.bf16.mxu0 0
        %4117 = vmatpush1.bf16.msra.mxu0 0
        %4118 = vmatprep.subr.bf16.mxu0 0
        %4119 = vmatpush1.bf16.msra.mxu0 0
        %4120 = vmatprep.subr.bf16.mxu0 0
        %4121 = vmatpush1.bf16.msra.mxu0 0
        %4122 = vmatprep.subr.bf16.mxu0 0
        %4123 = vmatpush1.bf16.msra.mxu0 0
        %4124 = vmatprep.subr.bf16.mxu0 0
        %4125 = vmatpush1.bf16.msra.mxu0 0
        %4126 = vmatprep.subr.bf16.mxu0 0
        %4127 = vmatpush1.bf16.msra.mxu0 0
        %4128 = vmatprep.subr.bf16.mxu0 0
        %4129 = vmatpush1.bf16.msra.mxu0 0
        %4130 = vmatprep.mubr.bf16.mxu0 0
        %4131 = vmatmul.mubr.bf16.gmra.mrb[0].mxu0 %v4093
        %v4132 = vpop.f32.mrb[0].mxu0
        %v4133 = vadd.f32 0.0, %v4132
        %v4134 = vpop.f32.mrb[0].mxu0
        %v4135 = vpop.f32.mrb[0].mxu0
        %v4136 = vpop.f32.mrb[0].mxu0
        %4137 = vdwg.mxu0
        %4138 = vrot.lane.b32.xlu0 %v991, 88
        %v4139 = vpop.permute.xlu0 %4138
        %v4141 = vsel %vm1003, %v3793, 0
        %v4144 = vsel %vm2014, %v4139, 0
        %4146 = vmatprep.subr.bf16.mxu0 0
        %4147 = vmatpush1.bf16.msra.mxu0 %v4144
        %4148 = vmatprep.subr.bf16.mxu0 0
        %4149 = vmatpush1.bf16.msra.mxu0 0
        %4150 = vmatprep.subr.bf16.mxu0 0
        %4151 = vmatpush1.bf16.msra.mxu0 0
        %4152 = vmatprep.subr.bf16.mxu0 0
        %4153 = vmatpush1.bf16.msra.mxu0 0
        %4154 = vmatprep.subr.bf16.mxu0 0
        %4155 = vmatpush1.bf16.msra.mxu0 0
        %4156 = vmatprep.subr.bf16.mxu0 0
        %4157 = vmatpush1.bf16.msra.mxu0 0
        %4158 = vmatprep.subr.bf16.mxu0 0
        %4159 = vmatpush1.bf16.msra.mxu0 0
        %4160 = vmatprep.subr.bf16.mxu0 0
        %4161 = vmatpush1.bf16.msra.mxu0 0
        %4162 = vmatprep.subr.bf16.mxu0 0
        %4163 = vmatpush1.bf16.msra.mxu0 0
        %4164 = vmatprep.subr.bf16.mxu0 0
        %4165 = vmatpush1.bf16.msra.mxu0 0
        %4166 = vmatprep.subr.bf16.mxu0 0
        %4167 = vmatpush1.bf16.msra.mxu0 0
        %4168 = vmatprep.subr.bf16.mxu0 0
        %4169 = vmatpush1.bf16.msra.mxu0 0
        %4170 = vmatprep.subr.bf16.mxu0 0
        %4171 = vmatpush1.bf16.msra.mxu0 0
        %4172 = vmatprep.subr.bf16.mxu0 0
        %4173 = vmatpush1.bf16.msra.mxu0 0
        %4174 = vmatprep.subr.bf16.mxu0 0
        %4175 = vmatpush1.bf16.msra.mxu0 0
        %4176 = vmatprep.subr.bf16.mxu0 0
        %4177 = vmatpush1.bf16.msra.mxu0 0
        %4178 = vmatprep.mubr.bf16.mxu0 0
        %4179 = vmatmul.mubr.bf16.gmra.mrb[0].mxu0 %v4141
        %v4180 = vpop.f32.mrb[0].mxu0
        %v4181 = vadd.f32 0.0, %v4180
        %v4182 = vpop.f32.mrb[0].mxu0
        %v4183 = vpop.f32.mrb[0].mxu0
        %v4184 = vpop.f32.mrb[0].mxu0
        %4185 = vdwg.mxu0
        %4186 = vrot.lane.b32.xlu0 %v992, 88
        %v4187 = vpop.permute.xlu0 %4186
        %v4189 = vsel %vm1003, %v3794, 0
        %v4192 = vsel %vm2014, %v4187, 0
        %4194 = vmatprep.subr.bf16.mxu0 0
        %4195 = vmatpush1.bf16.msra.mxu0 %v4192
        %4196 = vmatprep.subr.bf16.mxu0 0
        %4197 = vmatpush1.bf16.msra.mxu0 0
        %4198 = vmatprep.subr.bf16.mxu0 0
        %4199 = vmatpush1.bf16.msra.mxu0 0
        %4200 = vmatprep.subr.bf16.mxu0 0
        %4201 = vmatpush1.bf16.msra.mxu0 0
        %4202 = vmatprep.subr.bf16.mxu0 0
        %4203 = vmatpush1.bf16.msra.mxu0 0
        %4204 = vmatprep.subr.bf16.mxu0 0
        %4205 = vmatpush1.bf16.msra.mxu0 0
        %4206 = vmatprep.subr.bf16.mxu0 0
        %4207 = vmatpush1.bf16.msra.mxu0 0
        %4208 = vmatprep.subr.bf16.mxu0 0
        %4209 = vmatpush1.bf16.msra.mxu0 0
        %4210 = vmatprep.subr.bf16.mxu0 0
        %4211 = vmatpush1.bf16.msra.mxu0 0
        %4212 = vmatprep.subr.bf16.mxu0 0
        %4213 = vmatpush1.bf16.msra.mxu0 0
        %4214 = vmatprep.subr.bf16.mxu0 0
        %4215 = vmatpush1.bf16.msra.mxu0 0
        %4216 = vmatprep.subr.bf16.mxu0 0
        %4217 = vmatpush1.bf16.msra.mxu0 0
        %4218 = vmatprep.subr.bf16.mxu0 0
        %4219 = vmatpush1.bf16.msra.mxu0 0
        %4220 = vmatprep.subr.bf16.mxu0 0
        %4221 = vmatpush1.bf16.msra.mxu0 0
        %4222 = vmatprep.subr.bf16.mxu0 0
        %4223 = vmatpush1.bf16.msra.mxu0 0
        %4224 = vmatprep.subr.bf16.mxu0 0
        %4225 = vmatpush1.bf16.msra.mxu0 0
        %4226 = vmatprep.mubr.bf16.mxu0 0
        %4227 = vmatmul.mubr.bf16.gmra.mrb[0].mxu0 %v4189
        %v4228 = vpop.f32.mrb[0].mxu0
        %v4229 = vadd.f32 0.0, %v4228
        %v4230 = vpop.f32.mrb[0].mxu0
        %v4231 = vpop.f32.mrb[0].mxu0
        %v4232 = vpop.f32.mrb[0].mxu0
        %4233 = vdwg.mxu0
        %4234 = vrot.lane.b32.xlu0 %v993, 88
        %v4235 = vpop.permute.xlu0 %4234
        %v4237 = vsel %vm1003, %v3795, 0
        %v4240 = vsel %vm2014, %v4235, 0
        %4242 = vmatprep.subr.bf16.mxu0 0
        %4243 = vmatpush1.bf16.msra.mxu0 %v4240
        %4244 = vmatprep.subr.bf16.mxu0 0
        %4245 = vmatpush1.bf16.msra.mxu0 0
        %4246 = vmatprep.subr.bf16.mxu0 0
        %4247 = vmatpush1.bf16.msra.mxu0 0
        %4248 = vmatprep.subr.bf16.mxu0 0
        %4249 = vmatpush1.bf16.msra.mxu0 0
        %4250 = vmatprep.subr.bf16.mxu0 0
        %4251 = vmatpush1.bf16.msra.mxu0 0
        %4252 = vmatprep.subr.bf16.mxu0 0
        %4253 = vmatpush1.bf16.msra.mxu0 0
        %4254 = vmatprep.subr.bf16.mxu0 0
        %4255 = vmatpush1.bf16.msra.mxu0 0
        %4256 = vmatprep.subr.bf16.mxu0 0
        %4257 = vmatpush1.bf16.msra.mxu0 0
        %4258 = vmatprep.subr.bf16.mxu0 0
        %4259 = vmatpush1.bf16.msra.mxu0 0
        %4260 = vmatprep.subr.bf16.mxu0 0
        %4261 = vmatpush1.bf16.msra.mxu0 0
        %4262 = vmatprep.subr.bf16.mxu0 0
        %4263 = vmatpush1.bf16.msra.mxu0 0
        %4264 = vmatprep.subr.bf16.mxu0 0
        %4265 = vmatpush1.bf16.msra.mxu0 0
        %4266 = vmatprep.subr.bf16.mxu0 0
        %4267 = vmatpush1.bf16.msra.mxu0 0
        %4268 = vmatprep.subr.bf16.mxu0 0
        %4269 = vmatpush1.bf16.msra.mxu0 0
        %4270 = vmatprep.subr.bf16.mxu0 0
        %4271 = vmatpush1.bf16.msra.mxu0 0
        %4272 = vmatprep.subr.bf16.mxu0 0
        %4273 = vmatpush1.bf16.msra.mxu0 0
        %4274 = vmatprep.mubr.bf16.mxu0 0
        %4275 = vmatmul.mubr.bf16.gmra.mrb[0].mxu0 %v4237
        %v4276 = vpop.f32.mrb[0].mxu0
        %v4277 = vadd.f32 0.0, %v4276
        %v4278 = vpop.f32.mrb[0].mxu0
        %v4279 = vpop.f32.mrb[0].mxu0
        %v4280 = vpop.f32.mrb[0].mxu0
        %4281 = vdwg.mxu0
        %4282 = vrot.lane.b32.xlu0 %v994, 88
        %v4283 = vpop.permute.xlu0 %4282
        %v4285 = vsel %vm1003, %v3796, 0
        %v4288 = vsel %vm2014, %v4283, 0
        %4290 = vmatprep.subr.bf16.mxu0 0
        %4291 = vmatpush1.bf16.msra.mxu0 %v4288
        %4292 = vmatprep.subr.bf16.mxu0 0
        %4293 = vmatpush1.bf16.msra.mxu0 0
        %4294 = vmatprep.subr.bf16.mxu0 0
        %4295 = vmatpush1.bf16.msra.mxu0 0
        %4296 = vmatprep.subr.bf16.mxu0 0
        %4297 = vmatpush1.bf16.msra.mxu0 0
        %4298 = vmatprep.subr.bf16.mxu0 0
        %4299 = vmatpush1.bf16.msra.mxu0 0
        %4300 = vmatprep.subr.bf16.mxu0 0
        %4301 = vmatpush1.bf16.msra.mxu0 0
        %4302 = vmatprep.subr.bf16.mxu0 0
        %4303 = vmatpush1.bf16.msra.mxu0 0
        %4304 = vmatprep.subr.bf16.mxu0 0
        %4305 = vmatpush1.bf16.msra.mxu0 0
        %4306 = vmatprep.subr.bf16.mxu0 0
        %4307 = vmatpush1.bf16.msra.mxu0 0
        %4308 = vmatprep.subr.bf16.mxu0 0
        %4309 = vmatpush1.bf16.msra.mxu0 0
        %4310 = vmatprep.subr.bf16.mxu0 0
        %4311 = vmatpush1.bf16.msra.mxu0 0
        %4312 = vmatprep.subr.bf16.mxu0 0
        %4313 = vmatpush1.bf16.msra.mxu0 0
        %4314 = vmatprep.subr.bf16.mxu0 0
        %4315 = vmatpush1.bf16.msra.mxu0 0
        %4316 = vmatprep.subr.bf16.mxu0 0
        %4317 = vmatpush1.bf16.msra.mxu0 0
        %4318 = vmatprep.subr.bf16.mxu0 0
        %4319 = vmatpush1.bf16.msra.mxu0 0
        %4320 = vmatprep.subr.bf16.mxu0 0
        %4321 = vmatpush1.bf16.msra.mxu0 0
        %4322 = vmatprep.mubr.bf16.mxu0 0
        %4323 = vmatmul.mubr.bf16.gmra.mrb[0].mxu0 %v4285
        %v4324 = vpop.f32.mrb[0].mxu0
        %v4325 = vadd.f32 0.0, %v4324
        %v4326 = vpop.f32.mrb[0].mxu0
        %v4327 = vpop.f32.mrb[0].mxu0
        %v4328 = vpop.f32.mrb[0].mxu0
        %4329 = vdwg.mxu0
        %4330 = vrot.lane.b32.xlu0 %v995, 88
        %v4331 = vpop.permute.xlu0 %4330
        %v4333 = vsel %vm1003, %v3797, 0
        %v4336 = vsel %vm2014, %v4331, 0
        %4338 = vmatprep.subr.bf16.mxu0 0
        %4339 = vmatpush1.bf16.msra.mxu0 %v4336
        %4340 = vmatprep.subr.bf16.mxu0 0
        %4341 = vmatpush1.bf16.msra.mxu0 0
        %4342 = vmatprep.subr.bf16.mxu0 0
        %4343 = vmatpush1.bf16.msra.mxu0 0
        %4344 = vmatprep.subr.bf16.mxu0 0
        %4345 = vmatpush1.bf16.msra.mxu0 0
        %4346 = vmatprep.subr.bf16.mxu0 0
        %4347 = vmatpush1.bf16.msra.mxu0 0
        %4348 = vmatprep.subr.bf16.mxu0 0
        %4349 = vmatpush1.bf16.msra.mxu0 0
        %4350 = vmatprep.subr.bf16.mxu0 0
        %4351 = vmatpush1.bf16.msra.mxu0 0
        %4352 = vmatprep.subr.bf16.mxu0 0
        %4353 = vmatpush1.bf16.msra.mxu0 0
        %4354 = vmatprep.subr.bf16.mxu0 0
        %4355 = vmatpush1.bf16.msra.mxu0 0
        %4356 = vmatprep.subr.bf16.mxu0 0
        %4357 = vmatpush1.bf16.msra.mxu0 0
        %4358 = vmatprep.subr.bf16.mxu0 0
        %4359 = vmatpush1.bf16.msra.mxu0 0
        %4360 = vmatprep.subr.bf16.mxu0 0
        %4361 = vmatpush1.bf16.msra.mxu0 0
        %4362 = vmatprep.subr.bf16.mxu0 0
        %4363 = vmatpush1.bf16.msra.mxu0 0
        %4364 = vmatprep.subr.bf16.mxu0 0
        %4365 = vmatpush1.bf16.msra.mxu0 0
        %4366 = vmatprep.subr.bf16.mxu0 0
        %4367 = vmatpush1.bf16.msra.mxu0 0
        %4368 = vmatprep.subr.bf16.mxu0 0
        %4369 = vmatpush1.bf16.msra.mxu0 0
        %4370 = vmatprep.mubr.bf16.mxu0 0
        %4371 = vmatmul.mubr.bf16.gmra.mrb[0].mxu0 %v4333
        %v4372 = vpop.f32.mrb[0].mxu0
        %v4373 = vadd.f32 0.0, %v4372
        %v4374 = vpop.f32.mrb[0].mxu0
        %v4375 = vpop.f32.mrb[0].mxu0
        %v4376 = vpop.f32.mrb[0].mxu0
        %4377 = vdwg.mxu0
        %4378 = vrot.lane.b32.xlu0 %v996, 88
        %v4379 = vpop.permute.xlu0 %4378
        %v4381 = vsel %vm1003, %v3798, 0
        %v4384 = vsel %vm2014, %v4379, 0
        %4386 = vmatprep.subr.bf16.mxu0 0
        %4387 = vmatpush1.bf16.msra.mxu0 %v4384
        %4388 = vmatprep.subr.bf16.mxu0 0
        %4389 = vmatpush1.bf16.msra.mxu0 0
        %4390 = vmatprep.subr.bf16.mxu0 0
        %4391 = vmatpush1.bf16.msra.mxu0 0
        %4392 = vmatprep.subr.bf16.mxu0 0
        %4393 = vmatpush1.bf16.msra.mxu0 0
        %4394 = vmatprep.subr.bf16.mxu0 0
        %4395 = vmatpush1.bf16.msra.mxu0 0
        %4396 = vmatprep.subr.bf16.mxu0 0
        %4397 = vmatpush1.bf16.msra.mxu0 0
        %4398 = vmatprep.subr.bf16.mxu0 0
        %4399 = vmatpush1.bf16.msra.mxu0 0
        %4400 = vmatprep.subr.bf16.mxu0 0
        %4401 = vmatpush1.bf16.msra.mxu0 0
        %4402 = vmatprep.subr.bf16.mxu0 0
        %4403 = vmatpush1.bf16.msra.mxu0 0
        %4404 = vmatprep.subr.bf16.mxu0 0
        %4405 = vmatpush1.bf16.msra.mxu0 0
        %4406 = vmatprep.subr.bf16.mxu0 0
        %4407 = vmatpush1.bf16.msra.mxu0 0
        %4408 = vmatprep.subr.bf16.mxu0 0
        %4409 = vmatpush1.bf16.msra.mxu0 0
        %4410 = vmatprep.subr.bf16.mxu0 0
        %4411 = vmatpush1.bf16.msra.mxu0 0
        %4412 = vmatprep.subr.bf16.mxu0 0
        %4413 = vmatpush1.bf16.msra.mxu0 0
        %4414 = vmatprep.subr.bf16.mxu0 0
        %4415 = vmatpush1.bf16.msra.mxu0 0
        %4416 = vmatprep.subr.bf16.mxu0 0
        %4417 = vmatpush1.bf16.msra.mxu0 0
        %4418 = vmatprep.mubr.bf16.mxu0 0
        %4419 = vmatmul.mubr.bf16.gmra.mrb[0].mxu0 %v4381
        %v4420 = vpop.f32.mrb[0].mxu0
        %v4421 = vadd.f32 0.0, %v4420
        %v4422 = vpop.f32.mrb[0].mxu0
        %v4423 = vpop.f32.mrb[0].mxu0
        %v4424 = vpop.f32.mrb[0].mxu0
        %4425 = vdwg.mxu0
        %4426 = vrot.lane.b32.xlu0 %v997, 88
        %v4427 = vpop.permute.xlu0 %4426
        %v4429 = vsel %vm1003, %v3799, 0
        %v4432 = vsel %vm2014, %v4427, 0
        %4434 = vmatprep.subr.bf16.mxu0 0
        %4435 = vmatpush1.bf16.msra.mxu0 %v4432
        %4436 = vmatprep.subr.bf16.mxu0 0
        %4437 = vmatpush1.bf16.msra.mxu0 0
        %4438 = vmatprep.subr.bf16.mxu0 0
        %4439 = vmatpush1.bf16.msra.mxu0 0
        %4440 = vmatprep.subr.bf16.mxu0 0
        %4441 = vmatpush1.bf16.msra.mxu0 0
        %4442 = vmatprep.subr.bf16.mxu0 0
        %4443 = vmatpush1.bf16.msra.mxu0 0
        %4444 = vmatprep.subr.bf16.mxu0 0
        %4445 = vmatpush1.bf16.msra.mxu0 0
        %4446 = vmatprep.subr.bf16.mxu0 0
        %4447 = vmatpush1.bf16.msra.mxu0 0
        %4448 = vmatprep.subr.bf16.mxu0 0
        %4449 = vmatpush1.bf16.msra.mxu0 0
        %4450 = vmatprep.subr.bf16.mxu0 0
        %4451 = vmatpush1.bf16.msra.mxu0 0
        %4452 = vmatprep.subr.bf16.mxu0 0
        %4453 = vmatpush1.bf16.msra.mxu0 0
        %4454 = vmatprep.subr.bf16.mxu0 0
        %4455 = vmatpush1.bf16.msra.mxu0 0
        %4456 = vmatprep.subr.bf16.mxu0 0
        %4457 = vmatpush1.bf16.msra.mxu0 0
        %4458 = vmatprep.subr.bf16.mxu0 0
        %4459 = vmatpush1.bf16.msra.mxu0 0
        %4460 = vmatprep.subr.bf16.mxu0 0
        %4461 = vmatpush1.bf16.msra.mxu0 0
        %4462 = vmatprep.subr.bf16.mxu0 0
        %4463 = vmatpush1.bf16.msra.mxu0 0
        %4464 = vmatprep.subr.bf16.mxu0 0
        %4465 = vmatpush1.bf16.msra.mxu0 0
        %4466 = vmatprep.mubr.bf16.mxu0 0
        %4467 = vmatmul.mubr.bf16.gmra.mrb[0].mxu0 %v4429
        %v4468 = vpop.f32.mrb[0].mxu0
        %v4469 = vadd.f32 0.0, %v4468
        %v4470 = vpop.f32.mrb[0].mxu0
        %v4471 = vpop.f32.mrb[0].mxu0
        %v4472 = vpop.f32.mrb[0].mxu0
        %4473 = vdwg.mxu0
        %4474 = vrot.lane.b32.xlu0 %v998, 88
        %v4475 = vpop.permute.xlu0 %4474
        %v4477 = vsel %vm1003, %v3800, 0
        %v4480 = vsel %vm2014, %v4475, 0
        %4482 = vmatprep.subr.bf16.mxu0 0
        %4483 = vmatpush1.bf16.msra.mxu0 %v4480
        %4484 = vmatprep.subr.bf16.mxu0 0
        %4485 = vmatpush1.bf16.msra.mxu0 0
        %4486 = vmatprep.subr.bf16.mxu0 0
        %4487 = vmatpush1.bf16.msra.mxu0 0
        %4488 = vmatprep.subr.bf16.mxu0 0
        %4489 = vmatpush1.bf16.msra.mxu0 0
        %4490 = vmatprep.subr.bf16.mxu0 0
        %4491 = vmatpush1.bf16.msra.mxu0 0
        %4492 = vmatprep.subr.bf16.mxu0 0
        %4493 = vmatpush1.bf16.msra.mxu0 0
        %4494 = vmatprep.subr.bf16.mxu0 0
        %4495 = vmatpush1.bf16.msra.mxu0 0
        %4496 = vmatprep.subr.bf16.mxu0 0
        %4497 = vmatpush1.bf16.msra.mxu0 0
        %4498 = vmatprep.subr.bf16.mxu0 0
        %4499 = vmatpush1.bf16.msra.mxu0 0
        %4500 = vmatprep.subr.bf16.mxu0 0
        %4501 = vmatpush1.bf16.msra.mxu0 0
        %4502 = vmatprep.subr.bf16.mxu0 0
        %4503 = vmatpush1.bf16.msra.mxu0 0
        %4504 = vmatprep.subr.bf16.mxu0 0
        %4505 = vmatpush1.bf16.msra.mxu0 0
        %4506 = vmatprep.subr.bf16.mxu0 0
        %4507 = vmatpush1.bf16.msra.mxu0 0
        %4508 = vmatprep.subr.bf16.mxu0 0
        %4509 = vmatpush1.bf16.msra.mxu0 0
        %4510 = vmatprep.subr.bf16.mxu0 0
        %4511 = vmatpush1.bf16.msra.mxu0 0
        %4512 = vmatprep.subr.bf16.mxu0 0
        %4513 = vmatpush1.bf16.msra.mxu0 0
        %4514 = vmatprep.mubr.bf16.mxu0 0
        %4515 = vmatmul.mubr.bf16.gmra.mrb[0].mxu0 %v4477
        %v4516 = vpop.f32.mrb[0].mxu0
        %v4517 = vadd.f32 0.0, %v4516
        %v4518 = vpop.f32.mrb[0].mxu0
        %v4519 = vpop.f32.mrb[0].mxu0
        %v4520 = vpop.f32.mrb[0].mxu0
        %4521 = vdwg.mxu0
        %4522 = vrot.lane.b32.xlu0 %v999, 88
        %v4523 = vpop.permute.xlu0 %4522
        %v4525 = vsel %vm1003, %v3801, 0
        %v4528 = vsel %vm2014, %v4523, 0
        %4530 = vmatprep.subr.bf16.mxu0 0
        %4531 = vmatpush1.bf16.msra.mxu0 %v4528
        %4532 = vmatprep.subr.bf16.mxu0 0
        %4533 = vmatpush1.bf16.msra.mxu0 0
        %4534 = vmatprep.subr.bf16.mxu0 0
        %4535 = vmatpush1.bf16.msra.mxu0 0
        %4536 = vmatprep.subr.bf16.mxu0 0
        %4537 = vmatpush1.bf16.msra.mxu0 0
        %4538 = vmatprep.subr.bf16.mxu0 0
        %4539 = vmatpush1.bf16.msra.mxu0 0
        %4540 = vmatprep.subr.bf16.mxu0 0
        %4541 = vmatpush1.bf16.msra.mxu0 0
        %4542 = vmatprep.subr.bf16.mxu0 0
        %4543 = vmatpush1.bf16.msra.mxu0 0
        %4544 = vmatprep.subr.bf16.mxu0 0
        %4545 = vmatpush1.bf16.msra.mxu0 0
        %4546 = vmatprep.subr.bf16.mxu0 0
        %4547 = vmatpush1.bf16.msra.mxu0 0
        %4548 = vmatprep.subr.bf16.mxu0 0
        %4549 = vmatpush1.bf16.msra.mxu0 0
        %4550 = vmatprep.subr.bf16.mxu0 0
        %4551 = vmatpush1.bf16.msra.mxu0 0
        %4552 = vmatprep.subr.bf16.mxu0 0
        %4553 = vmatpush1.bf16.msra.mxu0 0
        %4554 = vmatprep.subr.bf16.mxu0 0
        %4555 = vmatpush1.bf16.msra.mxu0 0
        %4556 = vmatprep.subr.bf16.mxu0 0
        %4557 = vmatpush1.bf16.msra.mxu0 0
        %4558 = vmatprep.subr.bf16.mxu0 0
        %4559 = vmatpush1.bf16.msra.mxu0 0
        %4560 = vmatprep.subr.bf16.mxu0 0
        %4561 = vmatpush1.bf16.msra.mxu0 0
        %4562 = vmatprep.mubr.bf16.mxu0 0
        %4563 = vmatmul.mubr.bf16.gmra.mrb[0].mxu0 %v4525
        %v4564 = vpop.f32.mrb[0].mxu0
        %v4565 = vadd.f32 0.0, %v4564
        %v4566 = vpop.f32.mrb[0].mxu0
        %v4567 = vpop.f32.mrb[0].mxu0
        %v4568 = vpop.f32.mrb[0].mxu0
        %4569 = vdwg.mxu0
        %4586 = vrot.lane.b32.xlu0 %v3845, 8
        %v4587 = vpop.permute.xlu0 %4586
        %4588 = vrot.lane.b32.xlu0 %v3893, 8
        %v4589 = vpop.permute.xlu0 %4588
        %4590 = vrot.lane.b32.xlu0 %v3941, 8
        %v4591 = vpop.permute.xlu0 %4590
        %4592 = vrot.lane.b32.xlu0 %v3989, 8
        %v4593 = vpop.permute.xlu0 %4592
        %4594 = vrot.lane.b32.xlu0 %v4037, 8
        %v4595 = vpop.permute.xlu0 %4594
        %4596 = vrot.lane.b32.xlu0 %v4085, 8
        %v4597 = vpop.permute.xlu0 %4596
        %4598 = vrot.lane.b32.xlu0 %v4133, 8
        %v4599 = vpop.permute.xlu0 %4598
        %4600 = vrot.lane.b32.xlu0 %v4181, 8
        %v4601 = vpop.permute.xlu0 %4600
        %4602 = vrot.lane.b32.xlu0 %v4229, 8
        %v4603 = vpop.permute.xlu0 %4602
        %4604 = vrot.lane.b32.xlu0 %v4277, 8
        %v4605 = vpop.permute.xlu0 %4604
        %4606 = vrot.lane.b32.xlu0 %v4325, 8
        %v4607 = vpop.permute.xlu0 %4606
        %4608 = vrot.lane.b32.xlu0 %v4373, 8
        %v4609 = vpop.permute.xlu0 %4608
        %4610 = vrot.lane.b32.xlu0 %v4421, 8
        %v4611 = vpop.permute.xlu0 %4610
        %4612 = vrot.lane.b32.xlu0 %v4469, 8
        %v4613 = vpop.permute.xlu0 %4612
        %4614 = vrot.lane.b32.xlu0 %v4517, 8
        %v4615 = vpop.permute.xlu0 %4614
        %4616 = vrot.lane.b32.xlu0 %v4565, 8
        %v4617 = vpop.permute.xlu0 %4616
        %v4634 = vsel %vm1003, %v2053, %v4587
        %v4635 = vsel %vm1003, %v2101, %v4589
        %v4636 = vsel %vm1003, %v2149, %v4591
        %v4637 = vsel %vm1003, %v2197, %v4593
        %v4638 = vsel %vm1003, %v2245, %v4595
        %v4639 = vsel %vm1003, %v2293, %v4597
        %v4640 = vsel %vm1003, %v2341, %v4599
        %v4641 = vsel %vm1003, %v2389, %v4601
        %v4642 = vsel %vm1003, %v2437, %v4603
        %v4643 = vsel %vm1003, %v2485, %v4605
        %v4644 = vsel %vm1003, %v2533, %v4607
        %v4645 = vsel %vm1003, %v2581, %v4609
        %v4646 = vsel %vm1003, %v2629, %v4611
        %v4647 = vsel %vm1003, %v2677, %v4613
        %v4648 = vsel %vm1003, %v2725, %v4615
        %v4649 = vsel %vm1003, %v2773, %v4617
        %v4650 = vpack.c.bf16 %v4635, %v4634
        %v4651 = vpack.c.bf16 %v4637, %v4636
        %v4652 = vpack.c.bf16 %v4639, %v4638
        %v4653 = vpack.c.bf16 %v4641, %v4640
        %v4654 = vpack.c.bf16 %v4643, %v4642
        %v4655 = vpack.c.bf16 %v4645, %v4644
        %v4656 = vpack.c.bf16 %v4647, %v4646
        %v4657 = vpack.c.bf16 %v4649, %v4648
        %v4658 = vld [vmem:[%s626] sm:$0xf]
        %v4659 = vld [vmem:[%s626 + $0x4] sm:$0xf]
        %v4662 = vunpack.c.l.b16 %v4658
        %v4663 = vunpack.c.l.b16 %v4659
        %v4664 = vpack.c.b16 %v4663, %v4662
        %v4667 = vsel %vm856, %v4650, 0
        %v4670 = vsel %vm856, %v4651, 0
        %v4673 = vsel %vm856, %v4652, 0
        %v4676 = vsel %vm856, %v4653, 0
        %v4679 = vsel %vm856, %v4654, 0
        %v4682 = vsel %vm856, %v4655, 0
        %v4685 = vsel %vm856, %v4656, 0
        %v4688 = vsel %vm856, %v4657, 0
        %4690 = vmatprep.subr.bf16.mxu0 0
        %4691 = vmatpush1.bf16.msra.mxu0 %v4664
        %4692 = vmatprep.subr.bf16.mxu0 0
        %4693 = vmatpush1.bf16.msra.mxu0 0
        %4694 = vmatprep.subr.bf16.mxu0 0
        %4695 = vmatpush1.bf16.msra.mxu0 0
        %4696 = vmatprep.subr.bf16.mxu0 0
        %4697 = vmatpush1.bf16.msra.mxu0 0
        %4698 = vmatprep.subr.bf16.mxu0 0
        %4699 = vmatpush1.bf16.msra.mxu0 0
        %4700 = vmatprep.subr.bf16.mxu0 0
        %4701 = vmatpush1.bf16.msra.mxu0 0
        %4702 = vmatprep.subr.bf16.mxu0 0
        %4703 = vmatpush1.bf16.msra.mxu0 0
        %4704 = vmatprep.subr.bf16.mxu0 0
        %4705 = vmatpush1.bf16.msra.mxu0 0
        %4706 = vmatprep.subr.bf16.mxu0 0
        %4707 = vmatpush1.bf16.msra.mxu0 0
        %4708 = vmatprep.subr.bf16.mxu0 0
        %4709 = vmatpush1.bf16.msra.mxu0 0
        %4710 = vmatprep.subr.bf16.mxu0 0
        %4711 = vmatpush1.bf16.msra.mxu0 0
        %4712 = vmatprep.subr.bf16.mxu0 0
        %4713 = vmatpush1.bf16.msra.mxu0 0
        %4714 = vmatprep.subr.bf16.mxu0 0
        %4715 = vmatpush1.bf16.msra.mxu0 0
        %4716 = vmatprep.subr.bf16.mxu0 0
        %4717 = vmatpush1.bf16.msra.mxu0 0
        %4718 = vmatprep.subr.bf16.mxu0 0
        %4719 = vmatpush1.bf16.msra.mxu0 0
        %4720 = vmatprep.subr.bf16.mxu0 0
        %4721 = vmatpush1.bf16.msra.mxu0 0
        %4722 = vmatprep.mubr.bf16.mxu0 0
        %4723 = vmatmul.mubr.bf16.gmra.mrb[0].mxu0 %v4667
        %v4724 = vpop.f32.mrb[0].mxu0
        %v4725 = vadd.f32 0.0, %v4724
        %v4726 = vpop.f32.mrb[0].mxu0
        %v4727 = vpop.f32.mrb[0].mxu0
        %v4728 = vadd.f32 0.0, %v4727
        %v4729 = vpop.f32.mrb[0].mxu0
        %4730 = vmatprep.mubr.bf16.mxu0 0
        %4731 = vmatmul.mubr.bf16.gmra.mrb[0].mxu0 %v4670
        %v4732 = vpop.f32.mrb[0].mxu0
        %v4733 = vadd.f32 0.0, %v4732
        %v4734 = vpop.f32.mrb[0].mxu0
        %v4735 = vpop.f32.mrb[0].mxu0
        %v4736 = vadd.f32 0.0, %v4735
        %v4737 = vpop.f32.mrb[0].mxu0
        %4738 = vmatprep.mubr.bf16.mxu0 0
        %4739 = vmatmul.mubr.bf16.gmra.mrb[0].mxu0 %v4673
        %v4740 = vpop.f32.mrb[0].mxu0
        %v4741 = vadd.f32 0.0, %v4740
        %v4742 = vpop.f32.mrb[0].mxu0
        %v4743 = vpop.f32.mrb[0].mxu0
        %v4744 = vadd.f32 0.0, %v4743
        %v4745 = vpop.f32.mrb[0].mxu0
        %4746 = vmatprep.mubr.bf16.mxu0 0
        %4747 = vmatmul.mubr.bf16.gmra.mrb[0].mxu0 %v4676
        %v4748 = vpop.f32.mrb[0].mxu0
        %v4749 = vadd.f32 0.0, %v4748
        %v4750 = vpop.f32.mrb[0].mxu0
        %v4751 = vpop.f32.mrb[0].mxu0
        %v4752 = vadd.f32 0.0, %v4751
        %v4753 = vpop.f32.mrb[0].mxu0
        %4754 = vmatprep.mubr.bf16.mxu0 0
        %4755 = vmatmul.mubr.bf16.gmra.mrb[0].mxu0 %v4679
        %v4756 = vpop.f32.mrb[0].mxu0
        %v4757 = vadd.f32 0.0, %v4756
        %v4758 = vpop.f32.mrb[0].mxu0
        %v4759 = vpop.f32.mrb[0].mxu0
        %v4760 = vadd.f32 0.0, %v4759
        %v4761 = vpop.f32.mrb[0].mxu0
        %4762 = vmatprep.mubr.bf16.mxu0 0
        %4763 = vmatmul.mubr.bf16.gmra.mrb[0].mxu0 %v4682
        %v4764 = vpop.f32.mrb[0].mxu0
        %v4765 = vadd.f32 0.0, %v4764
        %v4766 = vpop.f32.mrb[0].mxu0
        %v4767 = vpop.f32.mrb[0].mxu0
        %v4768 = vadd.f32 0.0, %v4767
        %v4769 = vpop.f32.mrb[0].mxu0
        %4770 = vmatprep.mubr.bf16.mxu0 0
        %4771 = vmatmul.mubr.bf16.gmra.mrb[0].mxu0 %v4685
        %v4772 = vpop.f32.mrb[0].mxu0
        %v4773 = vadd.f32 0.0, %v4772
        %v4774 = vpop.f32.mrb[0].mxu0
        %v4775 = vpop.f32.mrb[0].mxu0
        %v4776 = vadd.f32 0.0, %v4775
        %v4777 = vpop.f32.mrb[0].mxu0
        %4778 = vmatprep.mubr.bf16.mxu0 0
        %4779 = vmatmul.mubr.bf16.gmra.mrb[0].mxu0 %v4688
        %v4780 = vpop.f32.mrb[0].mxu0
        %v4781 = vadd.f32 0.0, %v4780
        %v4782 = vpop.f32.mrb[0].mxu0
        %v4783 = vpop.f32.mrb[0].mxu0
        %v4784 = vadd.f32 0.0, %v4783
        %v4785 = vpop.f32.mrb[0].mxu0
        %4786 = vdwg.mxu0
        %v4787 = vadd.f32 %v824, %v4725
        %v4788 = vadd.f32 %v825, %v4728
        %v4789 = vadd.f32 %v826, %v4733
        %v4790 = vadd.f32 %v827, %v4736
        %v4791 = vadd.f32 %v828, %v4741
        %v4792 = vadd.f32 %v829, %v4744
        %v4793 = vadd.f32 %v830, %v4749
        %v4794 = vadd.f32 %v831, %v4752
        %v4795 = vadd.f32 %v832, %v4757
        %v4796 = vadd.f32 %v833, %v4760
        %v4797 = vadd.f32 %v834, %v4765
        %v4798 = vadd.f32 %v835, %v4768
        %v4799 = vadd.f32 %v836, %v4773
        %v4800 = vadd.f32 %v837, %v4776
        %v4801 = vadd.f32 %v838, %v4781
        %v4802 = vadd.f32 %v839, %v4784
        %v4803 = vld [vmem:[%s634] sm:$0x1]
        %v4804 = vld [vmem:[%s642] sm:$0x1]
        %v4805 = vsel %vm856, %v4787, 0.0
        %4806 = vadd.xlane.f32.xlu0 %v4805
        %v4807 = vpop.xlane.xlu0 %4806
        %v4808 = vsel %vm856, %v4788, 0.0
        %4809 = vadd.xlane.f32.xlu0 %v4808
        %v4810 = vpop.xlane.xlu0 %4809
        %v4811 = vsel %vm856, %v4789, 0.0
        %4812 = vadd.xlane.f32.xlu0 %v4811
        %v4813 = vpop.xlane.xlu0 %4812
        %v4814 = vsel %vm856, %v4790, 0.0
        %4815 = vadd.xlane.f32.xlu0 %v4814
        %v4816 = vpop.xlane.xlu0 %4815
        %v4817 = vsel %vm856, %v4791, 0.0
        %4818 = vadd.xlane.f32.xlu0 %v4817
        %v4819 = vpop.xlane.xlu0 %4818
        %v4820 = vsel %vm856, %v4792, 0.0
        %4821 = vadd.xlane.f32.xlu0 %v4820
        %v4822 = vpop.xlane.xlu0 %4821
        %v4823 = vsel %vm856, %v4793, 0.0
        %4824 = vadd.xlane.f32.xlu0 %v4823
        %v4825 = vpop.xlane.xlu0 %4824
        %v4826 = vsel %vm856, %v4794, 0.0
        %4827 = vadd.xlane.f32.xlu0 %v4826
        %v4828 = vpop.xlane.xlu0 %4827
        %v4829 = vsel %vm856, %v4795, 0.0
        %4830 = vadd.xlane.f32.xlu0 %v4829
        %v4831 = vpop.xlane.xlu0 %4830
        %v4832 = vsel %vm856, %v4796, 0.0
        %4833 = vadd.xlane.f32.xlu0 %v4832
        %v4834 = vpop.xlane.xlu0 %4833
        %v4835 = vsel %vm856, %v4797, 0.0
        %4836 = vadd.xlane.f32.xlu0 %v4835
        %v4837 = vpop.xlane.xlu0 %4836
        %v4838 = vsel %vm856, %v4798, 0.0
        %4839 = vadd.xlane.f32.xlu0 %v4838
        %v4840 = vpop.xlane.xlu0 %4839
        %v4841 = vsel %vm856, %v4799, 0.0
        %4842 = vadd.xlane.f32.xlu0 %v4841
        %v4843 = vpop.xlane.xlu0 %4842
        %v4844 = vsel %vm856, %v4800, 0.0
        %4845 = vadd.xlane.f32.xlu0 %v4844
        %v4846 = vpop.xlane.xlu0 %4845
        %v4847 = vsel %vm856, %v4801, 0.0
        %4848 = vadd.xlane.f32.xlu0 %v4847
        %v4849 = vpop.xlane.xlu0 %4848
        %v4850 = vsel %vm856, %v4802, 0.0
        %4851 = vadd.xlane.f32.xlu0 %v4850
        %v4852 = vpop.xlane.xlu0 %4851
        %v4853 = vrcp.pop 16.0
        %v4854 = vmul.f32 %v4807, %v4853
        %v4855 = vmul.f32 %v4810, %v4853
        %v4856 = vmul.f32 %v4813, %v4853
        %v4857 = vmul.f32 %v4816, %v4853
        %v4858 = vmul.f32 %v4819, %v4853
        %v4859 = vmul.f32 %v4822, %v4853
        %v4860 = vmul.f32 %v4825, %v4853
        %v4861 = vmul.f32 %v4828, %v4853
        %v4862 = vmul.f32 %v4831, %v4853
        %v4863 = vmul.f32 %v4834, %v4853
        %v4864 = vmul.f32 %v4837, %v4853
        %v4865 = vmul.f32 %v4840, %v4853
        %v4866 = vmul.f32 %v4843, %v4853
        %v4867 = vmul.f32 %v4846, %v4853
        %v4868 = vmul.f32 %v4849, %v4853
        %v4869 = vmul.f32 %v4852, %v4853
        %v4870 = vsub.f32 %v4787, %v4854
        %v4871 = vsub.f32 %v4788, %v4855
        %v4872 = vsub.f32 %v4789, %v4856
        %v4873 = vsub.f32 %v4790, %v4857
        %v4874 = vsub.f32 %v4791, %v4858
        %v4875 = vsub.f32 %v4792, %v4859
        %v4876 = vsub.f32 %v4793, %v4860
        %v4877 = vsub.f32 %v4794, %v4861
        %v4878 = vsub.f32 %v4795, %v4862
        %v4879 = vsub.f32 %v4796, %v4863
        %v4880 = vsub.f32 %v4797, %v4864
        %v4881 = vsub.f32 %v4798, %v4865
        %v4882 = vsub.f32 %v4799, %v4866
        %v4883 = vsub.f32 %v4800, %v4867
        %v4884 = vsub.f32 %v4801, %v4868
        %v4885 = vsub.f32 %v4802, %v4869
        %v4886 = vmul.f32 %v4870, %v4870
        %v4887 = vmul.f32 %v4871, %v4871
        %v4888 = vmul.f32 %v4872, %v4872
        %v4889 = vmul.f32 %v4873, %v4873
        %v4890 = vmul.f32 %v4874, %v4874
        %v4891 = vmul.f32 %v4875, %v4875
        %v4892 = vmul.f32 %v4876, %v4876
        %v4893 = vmul.f32 %v4877, %v4877
        %v4894 = vmul.f32 %v4878, %v4878
        %v4895 = vmul.f32 %v4879, %v4879
        %v4896 = vmul.f32 %v4880, %v4880
        %v4897 = vmul.f32 %v4881, %v4881
        %v4898 = vmul.f32 %v4882, %v4882
        %v4899 = vmul.f32 %v4883, %v4883
        %v4900 = vmul.f32 %v4884, %v4884
        %v4901 = vmul.f32 %v4885, %v4885
        %v4902 = vsel %vm856, %v4886, 0.0
        %4903 = vadd.xlane.f32.xlu0 %v4902
        %v4904 = vpop.xlane.xlu0 %4903
        %v4905 = vsel %vm856, %v4887, 0.0
        %4906 = vadd.xlane.f32.xlu0 %v4905
        %v4907 = vpop.xlane.xlu0 %4906
        %v4908 = vsel %vm856, %v4888, 0.0
        %4909 = vadd.xlane.f32.xlu0 %v4908
        %v4910 = vpop.xlane.xlu0 %4909
        %v4911 = vsel %vm856, %v4889, 0.0
        %4912 = vadd.xlane.f32.xlu0 %v4911
        %v4913 = vpop.xlane.xlu0 %4912
        %v4914 = vsel %vm856, %v4890, 0.0
        %4915 = vadd.xlane.f32.xlu0 %v4914
        %v4916 = vpop.xlane.xlu0 %4915
        %v4917 = vsel %vm856, %v4891, 0.0
        %4918 = vadd.xlane.f32.xlu0 %v4917
        %v4919 = vpop.xlane.xlu0 %4918
        %v4920 = vsel %vm856, %v4892, 0.0
        %4921 = vadd.xlane.f32.xlu0 %v4920
        %v4922 = vpop.xlane.xlu0 %4921
        %v4923 = vsel %vm856, %v4893, 0.0
        %4924 = vadd.xlane.f32.xlu0 %v4923
        %v4925 = vpop.xlane.xlu0 %4924
        %v4926 = vsel %vm856, %v4894, 0.0
        %4927 = vadd.xlane.f32.xlu0 %v4926
        %v4928 = vpop.xlane.xlu0 %4927
        %v4929 = vsel %vm856, %v4895, 0.0
        %4930 = vadd.xlane.f32.xlu0 %v4929
        %v4931 = vpop.xlane.xlu0 %4930
        %v4932 = vsel %vm856, %v4896, 0.0
        %4933 = vadd.xlane.f32.xlu0 %v4932
        %v4934 = vpop.xlane.xlu0 %4933
        %v4935 = vsel %vm856, %v4897, 0.0
        %4936 = vadd.xlane.f32.xlu0 %v4935
        %v4937 = vpop.xlane.xlu0 %4936
        %v4938 = vsel %vm856, %v4898, 0.0
        %4939 = vadd.xlane.f32.xlu0 %v4938
        %v4940 = vpop.xlane.xlu0 %4939
        %v4941 = vsel %vm856, %v4899, 0.0
        %4942 = vadd.xlane.f32.xlu0 %v4941
        %v4943 = vpop.xlane.xlu0 %4942
        %v4944 = vsel %vm856, %v4900, 0.0
        %4945 = vadd.xlane.f32.xlu0 %v4944
        %v4946 = vpop.xlane.xlu0 %4945
        %v4947 = vsel %vm856, %v4901, 0.0
        %4948 = vadd.xlane.f32.xlu0 %v4947
        %v4949 = vpop.xlane.xlu0 %4948
        %v4950 = vmul.f32 %v4904, %v4853
        %v4951 = vmul.f32 %v4907, %v4853
        %v4952 = vmul.f32 %v4910, %v4853
        %v4953 = vmul.f32 %v4913, %v4853
        %v4954 = vmul.f32 %v4916, %v4853
        %v4955 = vmul.f32 %v4919, %v4853
        %v4956 = vmul.f32 %v4922, %v4853
        %v4957 = vmul.f32 %v4925, %v4853
        %v4958 = vmul.f32 %v4928, %v4853
        %v4959 = vmul.f32 %v4931, %v4853
        %v4960 = vmul.f32 %v4934, %v4853
        %v4961 = vmul.f32 %v4937, %v4853
        %v4962 = vmul.f32 %v4940, %v4853
        %v4963 = vmul.f32 %v4943, %v4853
        %v4964 = vmul.f32 %v4946, %v4853
        %v4965 = vmul.f32 %v4949, %v4853
        %v4966 = vadd.f32 %v4950, 1e-06
        %v4967 = vadd.f32 %v4951, 1e-06
        %v4968 = vadd.f32 %v4952, 1e-06
        %v4969 = vadd.f32 %v4953, 1e-06
        %v4970 = vadd.f32 %v4954, 1e-06
        %v4971 = vadd.f32 %v4955, 1e-06
        %v4972 = vadd.f32 %v4956, 1e-06
        %v4973 = vadd.f32 %v4957, 1e-06
        %v4974 = vadd.f32 %v4958, 1e-06
        %v4975 = vadd.f32 %v4959, 1e-06
        %v4976 = vadd.f32 %v4960, 1e-06
        %v4977 = vadd.f32 %v4961, 1e-06
        %v4978 = vadd.f32 %v4962, 1e-06
        %v4979 = vadd.f32 %v4963, 1e-06
        %v4980 = vadd.f32 %v4964, 1e-06
        %v4981 = vadd.f32 %v4965, 1e-06
        %v4982 = vrsqrt.pop %v4966
        %v4983 = vrsqrt.pop %v4967
        %v4984 = vrsqrt.pop %v4968
        %v4985 = vrsqrt.pop %v4969
        %v4986 = vrsqrt.pop %v4970
        %v4987 = vrsqrt.pop %v4971
        %v4988 = vrsqrt.pop %v4972
        %v4989 = vrsqrt.pop %v4973
        %v4990 = vrsqrt.pop %v4974
        %v4991 = vrsqrt.pop %v4975
        %v4992 = vrsqrt.pop %v4976
        %v4993 = vrsqrt.pop %v4977
        %v4994 = vrsqrt.pop %v4978
        %v4995 = vrsqrt.pop %v4979
        %v4996 = vrsqrt.pop %v4980
        %v4997 = vrsqrt.pop %v4981
        %v4998 = vmul.f32 %v4870, %v4982
        %v4999 = vmul.f32 %v4871, %v4983
        %v5000 = vmul.f32 %v4872, %v4984
        %v5001 = vmul.f32 %v4873, %v4985
        %v5002 = vmul.f32 %v4874, %v4986
        %v5003 = vmul.f32 %v4875, %v4987
        %v5004 = vmul.f32 %v4876, %v4988
        %v5005 = vmul.f32 %v4877, %v4989
        %v5006 = vmul.f32 %v4878, %v4990
        %v5007 = vmul.f32 %v4879, %v4991
        %v5008 = vmul.f32 %v4880, %v4992
        %v5009 = vmul.f32 %v4881, %v4993
        %v5010 = vmul.f32 %v4882, %v4994
        %v5011 = vmul.f32 %v4883, %v4995
        %v5012 = vmul.f32 %v4884, %v4996
        %v5013 = vmul.f32 %v4885, %v4997
        %v5015 = vlaneseq
        %v5016 = vshrl.u32 %v5015, 7
        %v5017 = vsub.s32 0, %v5016
        %v5018 = vrot.slane %v4803, %v5017
        %v5020 = vmul.f32 %v4998, %v5018
        %v5021 = vmul.f32 %v4999, %v5018
        %v5022 = vmul.f32 %v5000, %v5018
        %v5023 = vmul.f32 %v5001, %v5018
        %v5024 = vmul.f32 %v5002, %v5018
        %v5025 = vmul.f32 %v5003, %v5018
        %v5026 = vmul.f32 %v5004, %v5018
        %v5027 = vmul.f32 %v5005, %v5018
        %v5028 = vmul.f32 %v5006, %v5018
        %v5029 = vmul.f32 %v5007, %v5018
        %v5030 = vmul.f32 %v5008, %v5018
        %v5031 = vmul.f32 %v5009, %v5018
        %v5032 = vmul.f32 %v5010, %v5018
        %v5033 = vmul.f32 %v5011, %v5018
        %v5034 = vmul.f32 %v5012, %v5018
        %v5035 = vmul.f32 %v5013, %v5018
        %v5037 = vlaneseq
        %v5038 = vshrl.u32 %v5037, 7
        %v5039 = vsub.s32 0, %v5038
        %v5040 = vrot.slane %v4804, %v5039
        %v5042 = vadd.f32 %v5020, %v5040
        %v5043 = vadd.f32 %v5021, %v5040
        %v5044 = vadd.f32 %v5022, %v5040
        %v5045 = vadd.f32 %v5023, %v5040
        %v5046 = vadd.f32 %v5024, %v5040
        %v5047 = vadd.f32 %v5025, %v5040
        %v5048 = vadd.f32 %v5026, %v5040
        %v5049 = vadd.f32 %v5027, %v5040
        %v5050 = vadd.f32 %v5028, %v5040
        %v5051 = vadd.f32 %v5029, %v5040
        %v5052 = vadd.f32 %v5030, %v5040
        %v5053 = vadd.f32 %v5031, %v5040
        %v5054 = vadd.f32 %v5032, %v5040
        %v5055 = vadd.f32 %v5033, %v5040
        %v5056 = vadd.f32 %v5034, %v5040
        %v5057 = vadd.f32 %v5035, %v5040
        %v5058 = vpack.c.bf16 %v5043, %v5042
        %v5059 = vpack.c.bf16 %v5045, %v5044
        %v5060 = vpack.c.bf16 %v5047, %v5046
        %v5061 = vpack.c.bf16 %v5049, %v5048
        %v5062 = vpack.c.bf16 %v5051, %v5050
        %v5063 = vpack.c.bf16 %v5053, %v5052
        %v5064 = vpack.c.bf16 %v5055, %v5054
        %v5065 = vpack.c.bf16 %v5057, %v5056
        %v5066 = vld [vmem:[%s651] sm:$0xf]
        %v5067 = vld [vmem:[%s651 + $0x4] sm:$0xf]
        %v5068 = vld [vmem:[%s659] sm:$0x1]
        %v5070 = vlaneseq
        %v5071 = vshrl.u32 %v5070, 7
        %v5072 = vsub.s32 0, %v5071
        %v5073 = vrot.slane %v5068, %v5072
        %v5077 = vunpack.c.l.b16 %v5066
        %v5078 = vunpack.c.l.b16 %v5067
        %v5079 = vpack.c.b16 %v5078, %v5077
        %v5082 = vsel %vm856, %v5058, 0
        %v5085 = vsel %vm856, %v5059, 0
        %v5088 = vsel %vm856, %v5060, 0
        %v5091 = vsel %vm856, %v5061, 0
        %v5094 = vsel %vm856, %v5062, 0
        %v5097 = vsel %vm856, %v5063, 0
        %v5100 = vsel %vm856, %v5064, 0
        %v5103 = vsel %vm856, %v5065, 0
        %5105 = vmatprep.subr.bf16.mxu0 0
        %5106 = vmatpush1.bf16.msra.mxu0 %v5079
        %5107 = vmatprep.subr.bf16.mxu0 0
        %5108 = vmatpush1.bf16.msra.mxu0 0
        %5109 = vmatprep.subr.bf16.mxu0 0
        %5110 = vmatpush1.bf16.msra.mxu0 0
        %5111 = vmatprep.subr.bf16.mxu0 0
        %5112 = vmatpush1.bf16.msra.mxu0 0
        %5113 = vmatprep.subr.bf16.mxu0 0
        %5114 = vmatpush1.bf16.msra.mxu0 0
        %5115 = vmatprep.subr.bf16.mxu0 0
        %5116 = vmatpush1.bf16.msra.mxu0 0
        %5117 = vmatprep.subr.bf16.mxu0 0
        %5118 = vmatpush1.bf16.msra.mxu0 0
        %5119 = vmatprep.subr.bf16.mxu0 0
        %5120 = vmatpush1.bf16.msra.mxu0 0
        %5121 = vmatprep.subr.bf16.mxu0 0
        %5122 = vmatpush1.bf16.msra.mxu0 0
        %5123 = vmatprep.subr.bf16.mxu0 0
        %5124 = vmatpush1.bf16.msra.mxu0 0
        %5125 = vmatprep.subr.bf16.mxu0 0
        %5126 = vmatpush1.bf16.msra.mxu0 0
        %5127 = vmatprep.subr.bf16.mxu0 0
        %5128 = vmatpush1.bf16.msra.mxu0 0
        %5129 = vmatprep.subr.bf16.mxu0 0
        %5130 = vmatpush1.bf16.msra.mxu0 0
        %5131 = vmatprep.subr.bf16.mxu0 0
        %5132 = vmatpush1.bf16.msra.mxu0 0
        %5133 = vmatprep.subr.bf16.mxu0 0
        %5134 = vmatpush1.bf16.msra.mxu0 0
        %5135 = vmatprep.subr.bf16.mxu0 0
        %5136 = vmatpush1.bf16.msra.mxu0 0
        %5137 = vmatprep.mubr.bf16.mxu0 0
        %5138 = vmatmul.mubr.bf16.gmra.mrb[0].mxu0 %v5082
        %v5139 = vpop.f32.mrb[0].mxu0
        %v5140 = vadd.f32 %v5073, %v5139
        %v5141 = vpop.f32.mrb[0].mxu0
        %v5142 = vpop.f32.mrb[0].mxu0
        %v5143 = vadd.f32 %v5073, %v5142
        %v5144 = vpop.f32.mrb[0].mxu0
        %5145 = vmatprep.mubr.bf16.mxu0 0
        %5146 = vmatmul.mubr.bf16.gmra.mrb[0].mxu0 %v5085
        %v5147 = vpop.f32.mrb[0].mxu0
        %v5148 = vadd.f32 %v5073, %v5147
        %v5149 = vpop.f32.mrb[0].mxu0
        %v5150 = vpop.f32.mrb[0].mxu0
        %v5151 = vadd.f32 %v5073, %v5150
        %v5152 = vpop.f32.mrb[0].mxu0
        %5153 = vmatprep.mubr.bf16.mxu0 0
        %5154 = vmatmul.mubr.bf16.gmra.mrb[0].mxu0 %v5088
        %v5155 = vpop.f32.mrb[0].mxu0
        %v5156 = vadd.f32 %v5073, %v5155
        %v5157 = vpop.f32.mrb[0].mxu0
        %v5158 = vpop.f32.mrb[0].mxu0
        %v5159 = vadd.f32 %v5073, %v5158
        %v5160 = vpop.f32.mrb[0].mxu0
        %5161 = vmatprep.mubr.bf16.mxu0 0
        %5162 = vmatmul.mubr.bf16.gmra.mrb[0].mxu0 %v5091
        %v5163 = vpop.f32.mrb[0].mxu0
        %v5164 = vadd.f32 %v5073, %v5163
        %v5165 = vpop.f32.mrb[0].mxu0
        %v5166 = vpop.f32.mrb[0].mxu0
        %v5167 = vadd.f32 %v5073, %v5166
        %v5168 = vpop.f32.mrb[0].mxu0
        %5169 = vmatprep.mubr.bf16.mxu0 0
        %5170 = vmatmul.mubr.bf16.gmra.mrb[0].mxu0 %v5094
        %v5171 = vpop.f32.mrb[0].mxu0
        %v5172 = vadd.f32 %v5073, %v5171
        %v5173 = vpop.f32.mrb[0].mxu0
        %v5174 = vpop.f32.mrb[0].mxu0
        %v5175 = vadd.f32 %v5073, %v5174
        %v5176 = vpop.f32.mrb[0].mxu0
        %5177 = vmatprep.mubr.bf16.mxu0 0
        %5178 = vmatmul.mubr.bf16.gmra.mrb[0].mxu0 %v5097
        %v5179 = vpop.f32.mrb[0].mxu0
        %v5180 = vadd.f32 %v5073, %v5179
        %v5181 = vpop.f32.mrb[0].mxu0
        %v5182 = vpop.f32.mrb[0].mxu0
        %v5183 = vadd.f32 %v5073, %v5182
        %v5184 = vpop.f32.mrb[0].mxu0
        %5185 = vmatprep.mubr.bf16.mxu0 0
        %5186 = vmatmul.mubr.bf16.gmra.mrb[0].mxu0 %v5100
        %v5187 = vpop.f32.mrb[0].mxu0
        %v5188 = vadd.f32 %v5073, %v5187
        %v5189 = vpop.f32.mrb[0].mxu0
        %v5190 = vpop.f32.mrb[0].mxu0
        %v5191 = vadd.f32 %v5073, %v5190
        %v5192 = vpop.f32.mrb[0].mxu0
        %5193 = vmatprep.mubr.bf16.mxu0 0
        %5194 = vmatmul.mubr.bf16.gmra.mrb[0].mxu0 %v5103
        %v5195 = vpop.f32.mrb[0].mxu0
        %v5196 = vadd.f32 %v5073, %v5195
        %v5197 = vpop.f32.mrb[0].mxu0
        %v5198 = vpop.f32.mrb[0].mxu0
        %v5199 = vadd.f32 %v5073, %v5198
        %v5200 = vpop.f32.mrb[0].mxu0
        %5201 = vdwg.mxu0
        %v5202 = vmax.f32 %v5140, 0.0
        %v5203 = vmax.f32 %v5143, 0.0
        %v5204 = vmax.f32 %v5148, 0.0
        %v5205 = vmax.f32 %v5151, 0.0
        %v5206 = vmax.f32 %v5156, 0.0
        %v5207 = vmax.f32 %v5159, 0.0
        %v5208 = vmax.f32 %v5164, 0.0
        %v5209 = vmax.f32 %v5167, 0.0
        %v5210 = vmax.f32 %v5172, 0.0
        %v5211 = vmax.f32 %v5175, 0.0
        %v5212 = vmax.f32 %v5180, 0.0
        %v5213 = vmax.f32 %v5183, 0.0
        %v5214 = vmax.f32 %v5188, 0.0
        %v5215 = vmax.f32 %v5191, 0.0
        %v5216 = vmax.f32 %v5196, 0.0
        %v5217 = vmax.f32 %v5199, 0.0
        %v5218 = vpack.c.bf16 %v5203, %v5202
        %v5219 = vpack.c.bf16 %v5205, %v5204
        %v5220 = vpack.c.bf16 %v5207, %v5206
        %v5221 = vpack.c.bf16 %v5209, %v5208
        %v5222 = vpack.c.bf16 %v5211, %v5210
        %v5223 = vpack.c.bf16 %v5213, %v5212
        %v5224 = vpack.c.bf16 %v5215, %v5214
        %v5225 = vpack.c.bf16 %v5217, %v5216
        %v5226 = vld [vmem:[%s668] sm:$0xf]
        %v5227 = vld [vmem:[%s668 + $0x4] sm:$0xf]
        %v5228 = vld [vmem:[%s668 + $0x8] sm:$0xf]
        %v5229 = vld [vmem:[%s668 + $0xc] sm:$0xf]
        %v5230 = vld [vmem:[%s668 + $0x10] sm:$0xf]
        %v5231 = vld [vmem:[%s668 + $0x14] sm:$0xf]
        %v5232 = vld [vmem:[%s668 + $0x18] sm:$0xf]
        %v5233 = vld [vmem:[%s668 + $0x1c] sm:$0xf]
        %v5234 = vld [vmem:[%s676] sm:$0x1]
        %v5236 = vlaneseq
        %v5237 = vshrl.u32 %v5236, 7
        %v5238 = vsub.s32 0, %v5237
        %v5239 = vrot.slane %v5234, %v5238
        %v5249 = vunpack.c.l.b16 %v5226
        %v5250 = vunpack.c.l.b16 %v5227
        %v5251 = vunpack.c.l.b16 %v5228
        %v5252 = vunpack.c.l.b16 %v5229
        %v5253 = vunpack.c.l.b16 %v5230
        %v5254 = vunpack.c.l.b16 %v5231
        %v5255 = vunpack.c.l.b16 %v5232
        %v5256 = vunpack.c.l.b16 %v5233
        %v5257 = vpack.c.b16 %v5250, %v5249
        %v5258 = vpack.c.b16 %v5252, %v5251
        %v5259 = vpack.c.b16 %v5254, %v5253
        %v5260 = vpack.c.b16 %v5256, %v5255
        %vm5265 = vcmask 523264
        %v5267 = vsel %vm5265, %v5218, 0
        %v5270 = vsel %vm5265, %v5219, 0
        %v5273 = vsel %vm5265, %v5220, 0
        %v5276 = vsel %vm5265, %v5221, 0
        %v5279 = vsel %vm5265, %v5222, 0
        %v5282 = vsel %vm5265, %v5223, 0
        %v5285 = vsel %vm5265, %v5224, 0
        %v5288 = vsel %vm5265, %v5225, 0
        %5290 = vmatprep.subr.bf16.mxu0 0
        %5291 = vmatpush1.bf16.msra.mxu0 %v5257
        %5292 = vmatprep.subr.bf16.mxu0 0
        %5293 = vmatpush1.bf16.msra.mxu0 %v5258
        %5294 = vmatprep.subr.bf16.mxu0 0
        %5295 = vmatpush1.bf16.msra.mxu0 %v5259
        %5296 = vmatprep.subr.bf16.mxu0 0
        %5297 = vmatpush1.bf16.msra.mxu0 %v5260
        %5298 = vmatprep.subr.bf16.mxu0 0
        %5299 = vmatpush1.bf16.msra.mxu0 0
        %5300 = vmatprep.subr.bf16.mxu0 0
        %5301 = vmatpush1.bf16.msra.mxu0 0
        %5302 = vmatprep.subr.bf16.mxu0 0
        %5303 = vmatpush1.bf16.msra.mxu0 0
        %5304 = vmatprep.subr.bf16.mxu0 0
        %5305 = vmatpush1.bf16.msra.mxu0 0
        %5306 = vmatprep.subr.bf16.mxu0 0
        %5307 = vmatpush1.bf16.msra.mxu0 0
        %5308 = vmatprep.subr.bf16.mxu0 0
        %5309 = vmatpush1.bf16.msra.mxu0 0
        %5310 = vmatprep.subr.bf16.mxu0 0
        %5311 = vmatpush1.bf16.msra.mxu0 0
        %5312 = vmatprep.subr.bf16.mxu0 0
        %5313 = vmatpush1.bf16.msra.mxu0 0
        %5314 = vmatprep.subr.bf16.mxu0 0
        %5315 = vmatpush1.bf16.msra.mxu0 0
        %5316 = vmatprep.subr.bf16.mxu0 0
        %5317 = vmatpush1.bf16.msra.mxu0 0
        %5318 = vmatprep.subr.bf16.mxu0 0
        %5319 = vmatpush1.bf16.msra.mxu0 0
        %5320 = vmatprep.subr.bf16.mxu0 0
        %5321 = vmatpush1.bf16.msra.mxu0 0
        %5322 = vmatprep.mubr.bf16.mxu0 0
        %5323 = vmatmul.mubr.bf16.gmra.mrb[0].mxu0 %v5267
        %v5324 = vpop.f32.mrb[0].mxu0
        %v5325 = vadd.f32 %v5239, %v5324
        %v5326 = vpop.f32.mrb[0].mxu0
        %v5327 = vpop.f32.mrb[0].mxu0
        %v5328 = vadd.f32 %v5239, %v5327
        %v5329 = vpop.f32.mrb[0].mxu0
        %5330 = vmatprep.mubr.bf16.mxu0 0
        %5331 = vmatmul.mubr.bf16.gmra.mrb[0].mxu0 %v5270
        %v5332 = vpop.f32.mrb[0].mxu0
        %v5333 = vadd.f32 %v5239, %v5332
        %v5334 = vpop.f32.mrb[0].mxu0
        %v5335 = vpop.f32.mrb[0].mxu0
        %v5336 = vadd.f32 %v5239, %v5335
        %v5337 = vpop.f32.mrb[0].mxu0
        %5338 = vmatprep.mubr.bf16.mxu0 0
        %5339 = vmatmul.mubr.bf16.gmra.mrb[0].mxu0 %v5273
        %v5340 = vpop.f32.mrb[0].mxu0
        %v5341 = vadd.f32 %v5239, %v5340
        %v5342 = vpop.f32.mrb[0].mxu0
        %v5343 = vpop.f32.mrb[0].mxu0
        %v5344 = vadd.f32 %v5239, %v5343
        %v5345 = vpop.f32.mrb[0].mxu0
        %5346 = vmatprep.mubr.bf16.mxu0 0
        %5347 = vmatmul.mubr.bf16.gmra.mrb[0].mxu0 %v5276
        %v5348 = vpop.f32.mrb[0].mxu0
        %v5349 = vadd.f32 %v5239, %v5348
        %v5350 = vpop.f32.mrb[0].mxu0
        %v5351 = vpop.f32.mrb[0].mxu0
        %v5352 = vadd.f32 %v5239, %v5351
        %v5353 = vpop.f32.mrb[0].mxu0
        %5354 = vmatprep.mubr.bf16.mxu0 0
        %5355 = vmatmul.mubr.bf16.gmra.mrb[0].mxu0 %v5279
        %v5356 = vpop.f32.mrb[0].mxu0
        %v5357 = vadd.f32 %v5239, %v5356
        %v5358 = vpop.f32.mrb[0].mxu0
        %v5359 = vpop.f32.mrb[0].mxu0
        %v5360 = vadd.f32 %v5239, %v5359
        %v5361 = vpop.f32.mrb[0].mxu0
        %5362 = vmatprep.mubr.bf16.mxu0 0
        %5363 = vmatmul.mubr.bf16.gmra.mrb[0].mxu0 %v5282
        %v5364 = vpop.f32.mrb[0].mxu0
        %v5365 = vadd.f32 %v5239, %v5364
        %v5366 = vpop.f32.mrb[0].mxu0
        %v5367 = vpop.f32.mrb[0].mxu0
        %v5368 = vadd.f32 %v5239, %v5367
        %v5369 = vpop.f32.mrb[0].mxu0
        %5370 = vmatprep.mubr.bf16.mxu0 0
        %5371 = vmatmul.mubr.bf16.gmra.mrb[0].mxu0 %v5285
        %v5372 = vpop.f32.mrb[0].mxu0
        %v5373 = vadd.f32 %v5239, %v5372
        %v5374 = vpop.f32.mrb[0].mxu0
        %v5375 = vpop.f32.mrb[0].mxu0
        %v5376 = vadd.f32 %v5239, %v5375
        %v5377 = vpop.f32.mrb[0].mxu0
        %5378 = vmatprep.mubr.bf16.mxu0 0
        %5379 = vmatmul.mubr.bf16.gmra.mrb[0].mxu0 %v5288
        %v5380 = vpop.f32.mrb[0].mxu0
        %v5381 = vadd.f32 %v5239, %v5380
        %v5382 = vpop.f32.mrb[0].mxu0
        %v5383 = vpop.f32.mrb[0].mxu0
        %v5384 = vadd.f32 %v5239, %v5383
        %v5385 = vpop.f32.mrb[0].mxu0
        %5386 = vdwg.mxu0
        %v5387 = vadd.f32 %v5042, %v5325
        %v5388 = vadd.f32 %v5043, %v5328
        %v5389 = vadd.f32 %v5044, %v5333
        %v5390 = vadd.f32 %v5045, %v5336
        %v5391 = vadd.f32 %v5046, %v5341
        %v5392 = vadd.f32 %v5047, %v5344
        %v5393 = vadd.f32 %v5048, %v5349
        %v5394 = vadd.f32 %v5049, %v5352
        %v5395 = vadd.f32 %v5050, %v5357
        %v5396 = vadd.f32 %v5051, %v5360
        %v5397 = vadd.f32 %v5052, %v5365
        %v5398 = vadd.f32 %v5053, %v5368
        %v5399 = vadd.f32 %v5054, %v5373
        %v5400 = vadd.f32 %v5055, %v5376
        %v5401 = vadd.f32 %v5056, %v5381
        %v5402 = vadd.f32 %v5057, %v5384
        %v5403 = vld [vmem:[%s684] sm:$0x1]
        %v5404 = vld [vmem:[%s692] sm:$0x1]
        %v5405 = vsel %vm856, %v5387, 0.0
        %5406 = vadd.xlane.f32.xlu0 %v5405
        %v5407 = vpop.xlane.xlu0 %5406
        %v5408 = vsel %vm856, %v5388, 0.0
        %5409 = vadd.xlane.f32.xlu0 %v5408
        %v5410 = vpop.xlane.xlu0 %5409
        %v5411 = vsel %vm856, %v5389, 0.0
        %5412 = vadd.xlane.f32.xlu0 %v5411
        %v5413 = vpop.xlane.xlu0 %5412
        %v5414 = vsel %vm856, %v5390, 0.0
        %5415 = vadd.xlane.f32.xlu0 %v5414
        %v5416 = vpop.xlane.xlu0 %5415
        %v5417 = vsel %vm856, %v5391, 0.0
        %5418 = vadd.xlane.f32.xlu0 %v5417
        %v5419 = vpop.xlane.xlu0 %5418
        %v5420 = vsel %vm856, %v5392, 0.0
        %5421 = vadd.xlane.f32.xlu0 %v5420
        %v5422 = vpop.xlane.xlu0 %5421
        %v5423 = vsel %vm856, %v5393, 0.0
        %5424 = vadd.xlane.f32.xlu0 %v5423
        %v5425 = vpop.xlane.xlu0 %5424
        %v5426 = vsel %vm856, %v5394, 0.0
        %5427 = vadd.xlane.f32.xlu0 %v5426
        %v5428 = vpop.xlane.xlu0 %5427
        %v5429 = vsel %vm856, %v5395, 0.0
        %5430 = vadd.xlane.f32.xlu0 %v5429
        %v5431 = vpop.xlane.xlu0 %5430
        %v5432 = vsel %vm856, %v5396, 0.0
        %5433 = vadd.xlane.f32.xlu0 %v5432
        %v5434 = vpop.xlane.xlu0 %5433
        %v5435 = vsel %vm856, %v5397, 0.0
        %5436 = vadd.xlane.f32.xlu0 %v5435
        %v5437 = vpop.xlane.xlu0 %5436
        %v5438 = vsel %vm856, %v5398, 0.0
        %5439 = vadd.xlane.f32.xlu0 %v5438
        %v5440 = vpop.xlane.xlu0 %5439
        %v5441 = vsel %vm856, %v5399, 0.0
        %5442 = vadd.xlane.f32.xlu0 %v5441
        %v5443 = vpop.xlane.xlu0 %5442
        %v5444 = vsel %vm856, %v5400, 0.0
        %5445 = vadd.xlane.f32.xlu0 %v5444
        %v5446 = vpop.xlane.xlu0 %5445
        %v5447 = vsel %vm856, %v5401, 0.0
        %5448 = vadd.xlane.f32.xlu0 %v5447
        %v5449 = vpop.xlane.xlu0 %5448
        %v5450 = vsel %vm856, %v5402, 0.0
        %5451 = vadd.xlane.f32.xlu0 %v5450
        %v5452 = vpop.xlane.xlu0 %5451
        %v5453 = vmul.f32 %v5407, %v4853
        %v5454 = vmul.f32 %v5410, %v4853
        %v5455 = vmul.f32 %v5413, %v4853
        %v5456 = vmul.f32 %v5416, %v4853
        %v5457 = vmul.f32 %v5419, %v4853
        %v5458 = vmul.f32 %v5422, %v4853
        %v5459 = vmul.f32 %v5425, %v4853
        %v5460 = vmul.f32 %v5428, %v4853
        %v5461 = vmul.f32 %v5431, %v4853
        %v5462 = vmul.f32 %v5434, %v4853
        %v5463 = vmul.f32 %v5437, %v4853
        %v5464 = vmul.f32 %v5440, %v4853
        %v5465 = vmul.f32 %v5443, %v4853
        %v5466 = vmul.f32 %v5446, %v4853
        %v5467 = vmul.f32 %v5449, %v4853
        %v5468 = vmul.f32 %v5452, %v4853
        %v5469 = vsub.f32 %v5387, %v5453
        %v5470 = vsub.f32 %v5388, %v5454
        %v5471 = vsub.f32 %v5389, %v5455
        %v5472 = vsub.f32 %v5390, %v5456
        %v5473 = vsub.f32 %v5391, %v5457
        %v5474 = vsub.f32 %v5392, %v5458
        %v5475 = vsub.f32 %v5393, %v5459
        %v5476 = vsub.f32 %v5394, %v5460
        %v5477 = vsub.f32 %v5395, %v5461
        %v5478 = vsub.f32 %v5396, %v5462
        %v5479 = vsub.f32 %v5397, %v5463
        %v5480 = vsub.f32 %v5398, %v5464
        %v5481 = vsub.f32 %v5399, %v5465
        %v5482 = vsub.f32 %v5400, %v5466
        %v5483 = vsub.f32 %v5401, %v5467
        %v5484 = vsub.f32 %v5402, %v5468
        %v5485 = vmul.f32 %v5469, %v5469
        %v5486 = vmul.f32 %v5470, %v5470
        %v5487 = vmul.f32 %v5471, %v5471
        %v5488 = vmul.f32 %v5472, %v5472
        %v5489 = vmul.f32 %v5473, %v5473
        %v5490 = vmul.f32 %v5474, %v5474
        %v5491 = vmul.f32 %v5475, %v5475
        %v5492 = vmul.f32 %v5476, %v5476
        %v5493 = vmul.f32 %v5477, %v5477
        %v5494 = vmul.f32 %v5478, %v5478
        %v5495 = vmul.f32 %v5479, %v5479
        %v5496 = vmul.f32 %v5480, %v5480
        %v5497 = vmul.f32 %v5481, %v5481
        %v5498 = vmul.f32 %v5482, %v5482
        %v5499 = vmul.f32 %v5483, %v5483
        %v5500 = vmul.f32 %v5484, %v5484
        %v5501 = vsel %vm856, %v5485, 0.0
        %5502 = vadd.xlane.f32.xlu0 %v5501
        %v5503 = vpop.xlane.xlu0 %5502
        %v5504 = vsel %vm856, %v5486, 0.0
        %5505 = vadd.xlane.f32.xlu0 %v5504
        %v5506 = vpop.xlane.xlu0 %5505
        %v5507 = vsel %vm856, %v5487, 0.0
        %5508 = vadd.xlane.f32.xlu0 %v5507
        %v5509 = vpop.xlane.xlu0 %5508
        %v5510 = vsel %vm856, %v5488, 0.0
        %5511 = vadd.xlane.f32.xlu0 %v5510
        %v5512 = vpop.xlane.xlu0 %5511
        %v5513 = vsel %vm856, %v5489, 0.0
        %5514 = vadd.xlane.f32.xlu0 %v5513
        %v5515 = vpop.xlane.xlu0 %5514
        %v5516 = vsel %vm856, %v5490, 0.0
        %5517 = vadd.xlane.f32.xlu0 %v5516
        %v5518 = vpop.xlane.xlu0 %5517
        %v5519 = vsel %vm856, %v5491, 0.0
        %5520 = vadd.xlane.f32.xlu0 %v5519
        %v5521 = vpop.xlane.xlu0 %5520
        %v5522 = vsel %vm856, %v5492, 0.0
        %5523 = vadd.xlane.f32.xlu0 %v5522
        %v5524 = vpop.xlane.xlu0 %5523
        %v5525 = vsel %vm856, %v5493, 0.0
        %5526 = vadd.xlane.f32.xlu0 %v5525
        %v5527 = vpop.xlane.xlu0 %5526
        %v5528 = vsel %vm856, %v5494, 0.0
        %5529 = vadd.xlane.f32.xlu0 %v5528
        %v5530 = vpop.xlane.xlu0 %5529
        %v5531 = vsel %vm856, %v5495, 0.0
        %5532 = vadd.xlane.f32.xlu0 %v5531
        %v5533 = vpop.xlane.xlu0 %5532
        %v5534 = vsel %vm856, %v5496, 0.0
        %5535 = vadd.xlane.f32.xlu0 %v5534
        %v5536 = vpop.xlane.xlu0 %5535
        %v5537 = vsel %vm856, %v5497, 0.0
        %5538 = vadd.xlane.f32.xlu0 %v5537
        %v5539 = vpop.xlane.xlu0 %5538
        %v5540 = vsel %vm856, %v5498, 0.0
        %5541 = vadd.xlane.f32.xlu0 %v5540
        %v5542 = vpop.xlane.xlu0 %5541
        %v5543 = vsel %vm856, %v5499, 0.0
        %5544 = vadd.xlane.f32.xlu0 %v5543
        %v5545 = vpop.xlane.xlu0 %5544
        %v5546 = vsel %vm856, %v5500, 0.0
        %5547 = vadd.xlane.f32.xlu0 %v5546
        %v5548 = vpop.xlane.xlu0 %5547
        %v5549 = vmul.f32 %v5503, %v4853
        %v5550 = vmul.f32 %v5506, %v4853
        %v5551 = vmul.f32 %v5509, %v4853
        %v5552 = vmul.f32 %v5512, %v4853
        %v5553 = vmul.f32 %v5515, %v4853
        %v5554 = vmul.f32 %v5518, %v4853
        %v5555 = vmul.f32 %v5521, %v4853
        %v5556 = vmul.f32 %v5524, %v4853
        %v5557 = vmul.f32 %v5527, %v4853
        %v5558 = vmul.f32 %v5530, %v4853
        %v5559 = vmul.f32 %v5533, %v4853
        %v5560 = vmul.f32 %v5536, %v4853
        %v5561 = vmul.f32 %v5539, %v4853
        %v5562 = vmul.f32 %v5542, %v4853
        %v5563 = vmul.f32 %v5545, %v4853
        %v5564 = vmul.f32 %v5548, %v4853
        %v5565 = vadd.f32 %v5549, 1e-06
        %v5566 = vadd.f32 %v5550, 1e-06
        %v5567 = vadd.f32 %v5551, 1e-06
        %v5568 = vadd.f32 %v5552, 1e-06
        %v5569 = vadd.f32 %v5553, 1e-06
        %v5570 = vadd.f32 %v5554, 1e-06
        %v5571 = vadd.f32 %v5555, 1e-06
        %v5572 = vadd.f32 %v5556, 1e-06
        %v5573 = vadd.f32 %v5557, 1e-06
        %v5574 = vadd.f32 %v5558, 1e-06
        %v5575 = vadd.f32 %v5559, 1e-06
        %v5576 = vadd.f32 %v5560, 1e-06
        %v5577 = vadd.f32 %v5561, 1e-06
        %v5578 = vadd.f32 %v5562, 1e-06
        %v5579 = vadd.f32 %v5563, 1e-06
        %v5580 = vadd.f32 %v5564, 1e-06
        %v5581 = vrsqrt.pop %v5565
        %v5582 = vrsqrt.pop %v5566
        %v5583 = vrsqrt.pop %v5567
        %v5584 = vrsqrt.pop %v5568
        %v5585 = vrsqrt.pop %v5569
        %v5586 = vrsqrt.pop %v5570
        %v5587 = vrsqrt.pop %v5571
        %v5588 = vrsqrt.pop %v5572
        %v5589 = vrsqrt.pop %v5573
        %v5590 = vrsqrt.pop %v5574
        %v5591 = vrsqrt.pop %v5575
        %v5592 = vrsqrt.pop %v5576
        %v5593 = vrsqrt.pop %v5577
        %v5594 = vrsqrt.pop %v5578
        %v5595 = vrsqrt.pop %v5579
        %v5596 = vrsqrt.pop %v5580
        %v5597 = vmul.f32 %v5469, %v5581
        %v5598 = vmul.f32 %v5470, %v5582
        %v5599 = vmul.f32 %v5471, %v5583
        %v5600 = vmul.f32 %v5472, %v5584
        %v5601 = vmul.f32 %v5473, %v5585
        %v5602 = vmul.f32 %v5474, %v5586
        %v5603 = vmul.f32 %v5475, %v5587
        %v5604 = vmul.f32 %v5476, %v5588
        %v5605 = vmul.f32 %v5477, %v5589
        %v5606 = vmul.f32 %v5478, %v5590
        %v5607 = vmul.f32 %v5479, %v5591
        %v5608 = vmul.f32 %v5480, %v5592
        %v5609 = vmul.f32 %v5481, %v5593
        %v5610 = vmul.f32 %v5482, %v5594
        %v5611 = vmul.f32 %v5483, %v5595
        %v5612 = vmul.f32 %v5484, %v5596
        %v5614 = vlaneseq
        %v5615 = vshrl.u32 %v5614, 7
        %v5616 = vsub.s32 0, %v5615
        %v5617 = vrot.slane %v5403, %v5616
        %v5619 = vmul.f32 %v5597, %v5617
        %v5620 = vmul.f32 %v5598, %v5617
        %v5621 = vmul.f32 %v5599, %v5617
        %v5622 = vmul.f32 %v5600, %v5617
        %v5623 = vmul.f32 %v5601, %v5617
        %v5624 = vmul.f32 %v5602, %v5617
        %v5625 = vmul.f32 %v5603, %v5617
        %v5626 = vmul.f32 %v5604, %v5617
        %v5627 = vmul.f32 %v5605, %v5617
        %v5628 = vmul.f32 %v5606, %v5617
        %v5629 = vmul.f32 %v5607, %v5617
        %v5630 = vmul.f32 %v5608, %v5617
        %v5631 = vmul.f32 %v5609, %v5617
        %v5632 = vmul.f32 %v5610, %v5617
        %v5633 = vmul.f32 %v5611, %v5617
        %v5634 = vmul.f32 %v5612, %v5617
        %v5636 = vlaneseq
        %v5637 = vshrl.u32 %v5636, 7
        %v5638 = vsub.s32 0, %v5637
        %v5639 = vrot.slane %v5404, %v5638
        %v5641 = vadd.f32 %v5619, %v5639
        %v5642 = vadd.f32 %v5620, %v5639
        %v5643 = vadd.f32 %v5621, %v5639
        %v5644 = vadd.f32 %v5622, %v5639
        %v5645 = vadd.f32 %v5623, %v5639
        %v5646 = vadd.f32 %v5624, %v5639
        %v5647 = vadd.f32 %v5625, %v5639
        %v5648 = vadd.f32 %v5626, %v5639
        %v5649 = vadd.f32 %v5627, %v5639
        %v5650 = vadd.f32 %v5628, %v5639
        %v5651 = vadd.f32 %v5629, %v5639
        %v5652 = vadd.f32 %v5630, %v5639
        %v5653 = vadd.f32 %v5631, %v5639
        %v5654 = vadd.f32 %v5632, %v5639
        %v5655 = vadd.f32 %v5633, %v5639
        %v5656 = vadd.f32 %v5634, %v5639
        %5657 = vst.msk [vmem:[#allocation2] sm:$0xff] %vm856, %v5641
        %5658 = vst.msk [vmem:[#allocation2 + $0x8] sm:$0xff] %vm856, %v5642
        %5659 = vst.msk [vmem:[#allocation2 + $0x10] sm:$0xff] %vm856, %v5643
        %5660 = vst.msk [vmem:[#allocation2 + $0x18] sm:$0xff] %vm856, %v5644
        %5661 = vst.msk [vmem:[#allocation2 + $0x20] sm:$0xff] %vm856, %v5645
        %5662 = vst.msk [vmem:[#allocation2 + $0x28] sm:$0xff] %vm856, %v5646
        %5663 = vst.msk [vmem:[#allocation2 + $0x30] sm:$0xff] %vm856, %v5647
        %5664 = vst.msk [vmem:[#allocation2 + $0x38] sm:$0xff] %vm856, %v5648
        %5665 = vst.msk [vmem:[#allocation2 + $0x40] sm:$0xff] %vm856, %v5649
        %5666 = vst.msk [vmem:[#allocation2 + $0x48] sm:$0xff] %vm856, %v5650
        %5667 = vst.msk [vmem:[#allocation2 + $0x50] sm:$0xff] %vm856, %v5651
        %5668 = vst.msk [vmem:[#allocation2 + $0x58] sm:$0xff] %vm856, %v5652
        %5669 = vst.msk [vmem:[#allocation2 + $0x60] sm:$0xff] %vm856, %v5653
        %5670 = vst.msk [vmem:[#allocation2 + $0x68] sm:$0xff] %vm856, %v5654
        %5671 = vst.msk [vmem:[#allocation2 + $0x70] sm:$0xff] %vm856, %v5655
        %5672 = vst.msk [vmem:[#allocation2 + $0x78] sm:$0xff] %vm856, %v5656
        %p5673 = scmp.eq.s32.totalorder %s31, 1
        // Predicated region
        $region121: #{dpran_forward.4} parent=67 // pred_check
          %p5674 = pneg %p5673
        $region122: #{dpran_forward.4} parent=67 // pred_check_branch
          %5676 = sbr.rel (%p5674) target = $region124
        $region123: #{dpran_forward.4} parent=67 // pred_region
          %5677 = vst.msk [vmem:[#allocation18] sm:$0xff] %vm856, %v5641
          %5678 = vst.msk [vmem:[#allocation18 + $0x8] sm:$0xff] %vm856, %v5642
          %5679 = vst.msk [vmem:[#allocation18 + $0x10] sm:$0xff] %vm856, %v5643
          %5680 = vst.msk [vmem:[#allocation18 + $0x18] sm:$0xff] %vm856, %v5644
          %5681 = vst.msk [vmem:[#allocation18 + $0x20] sm:$0xff] %vm856, %v5645
          %5682 = vst.msk [vmem:[#allocation18 + $0x28] sm:$0xff] %vm856, %v5646
          %5683 = vst.msk [vmem:[#allocation18 + $0x30] sm:$0xff] %vm856, %v5647
          %5684 = vst.msk [vmem:[#allocation18 + $0x38] sm:$0xff] %vm856, %v5648
          %5685 = vst.msk [vmem:[#allocation18 + $0x40] sm:$0xff] %vm856, %v5649
          %5686 = vst.msk [vmem:[#allocation18 + $0x48] sm:$0xff] %vm856, %v5650
          %5687 = vst.msk [vmem:[#allocation18 + $0x50] sm:$0xff] %vm856, %v5651
          %5688 = vst.msk [vmem:[#allocation18 + $0x58] sm:$0xff] %vm856, %v5652
          %5689 = vst.msk [vmem:[#allocation18 + $0x60] sm:$0xff] %vm856, %v5653
          %5690 = vst.msk [vmem:[#allocation18 + $0x68] sm:$0xff] %vm856, %v5654
          %5691 = vst.msk [vmem:[#allocation18 + $0x70] sm:$0xff] %vm856, %v5655
          %5692 = vst.msk [vmem:[#allocation18 + $0x78] sm:$0xff] %vm856, %v5656
        $region124: #{dpran_forward.4} parent=67 // pred_fallthru
          _
        // Predicated region
        $region125: #{dpran_forward.4} parent=67 // pred_check
          %p5693 = pneg %p363
        $region126: #{dpran_forward.4} parent=67 // pred_check_branch
          %5695 = sbr.rel (%p5693) target = $region128
        $region127: #{dpran_forward.4} parent=67 // pred_region
          %s5696 = smul.u32 16, %s30
          %s5698 = ssub.s32 2048, 2048
          %5699 = vsyncadd [#allocation5], %s5698
          %s5700 = smul.addr %s5696, 128
          %s5701 = scalar_lea.hbm %s12, %s5700
          %s5702 = sshll.u32 [#allocation18], 4
          %s5703 = int_to_ptr.vmem [resolvable:$true] %s5702
          %5708 = dma.vmem_to_hbm [thread:$0]  %s5703, 2048, %s5701, [#allocation5], 128, 128, 8
        $region128: #{dpran_forward.4} parent=67 // pred_fallthru
          _
        // Predicated region
        $region129: #{dpran_forward.4} parent=67 // pred_check
          %p5709 = pneg %p363
        $region130: #{dpran_forward.4} parent=67 // pred_check_branch
          %5711 = sbr.rel (%p5709) target = $region132
        $region131: #{dpran_forward.4} parent=67 // pred_region
          %5712 = dma.done [#allocation5], 2048
        $region132: #{dpran_forward.4} parent=67 // pred_fallthru
          _
      $region68: #{dpran_forward.4} parent=5 // pred_fallthru
        _
      %p5713 = scmp.le.s32.totalorder 2, %s21
      // Predicated region
      $region133: #{dpran_forward.4} parent=5 // pred_check
        %p5714 = pneg %p5713
      $region134: #{dpran_forward.4} parent=5 // pred_check_branch
        %5716 = sbr.rel (%p5714) target = $region136
      $region135: #{dpran_forward.4} parent=5 // pred_region
        %s5717 = ssub.s32 %s21, 2
      $region136: #{dpran_forward.4} parent=5 // pred_fallthru
        _
    $region6: #{dpran_forward.4} parent=1 // loop_footer
      %s25 = sadd.s32 1, %s21
    $region7: #{dpran_forward.4} parent=1 // loop_footer_branch
      %20 = sbr.rel target = $region3
    $region8: #{dpran_forward.4} parent=1 // loop_exit
      _
    %5718 = vsyncpa [#allocation4], 1
    %s5719 = scalar_lea.sflag [#allocation4], 1
    %5720 = vsyncpa %s5719, 1
    %5721 = vsyncpa [#allocation7], 1
    %5722 = vsyncpa [#allocation5], 1
    %s5723 = scalar_lea.sflag [#allocation5], 1
    %5724 = vsyncpa %s5723, 1

</llo_original>
